<compile_context>
chip_gen: v5e
topology: v5e:2x2
jax: 0.10.0
libtpu: 0.0.40
codegen_flags: <defaults>
</compile_context>

<pallas_src>
import jax
import jax.numpy as jnp
from jax import lax
from jax.experimental import pallas as pl
from jax.experimental.pallas import tpu as pltpu

TOTAL_LENGTH = 178  # hard-coded in the PyTorch forward (pad_packed_sequence)

_VMEM = pl.BlockSpec(memory_space=pltpu.MemorySpace.VMEM)
_MM_DTYPE = jnp.float32  # set to jnp.bfloat16 for faster MXU (numerics-changing)


# ------------------------------ fused kernel --------------------------------

def _make_bilstm_kernel(num_layers, T, B8, H, unroll):
    """Fused multi-layer bidirectional LSTM + output projection kernel.

    Gate columns use a gate-major layout: [i(2H) f(2H) g(2H) o(2H)] where each
    2H block is [fwd H | bwd H].  Hidden/cell state and the per-layer output
    scratch use the [fwd H | bwd H] layout (PyTorch's bidirectional concat
    order), so W_ih (rows), W_lin (rows) and W_hh (block-diagonal rows) line up
    with no in-kernel concatenation.
    """
    H2 = 2 * H
    G8 = 8 * H
    f32 = jnp.float32

    def kernel(*args):
        x_ref, msk_ref, dir_ref = args[0], args[1], args[2]
        pos = 3
        layers = []
        for _ in range(num_layers):
            layers.append((args[pos], args[pos + 1], args[pos + 2]))
            pos += 3
        wlin_ref, blin_ref = args[pos], args[pos + 1]
        out_ref = args[pos + 2]
        g_sc, ho_sc = args[pos + 3], args[pos + 4]

        # Hoisted once (layer- and time-invariant): per-lane "forward
        # direction" selector for the gate-major column layout.
        fwd_lane = jnp.broadcast_to(dir_ref[...] != 0, (B8, G8))

        for l, (wih_ref, whh_ref, b_ref) in enumerate(layers):
            # (1) One merged input projection for all timesteps and BOTH
            #     directions: (T*B8, D) @ (D, 8H), off the serial path.
            if l == 0:
                xin = x_ref[...]
            else:
                xin = ho_sc[...].reshape(T * B8, H2).astype(_MM_DTYPE)
            proj = jnp.dot(xin, wih_ref[...], preferred_element_type=f32)
            g_sc[...] = (proj + b_ref[...]).reshape(T, B8, G8)

            # (2) Block-diagonal recurrent weight, hoisted out of the loop.
            whh = whh_ref[...]                       # (2H, 8H)

            def step(s, carry):
                h, c = carry                         # (B8, 2H) = [fwd | bwd]
                t_f = s                              # forward walks 0 .. T-1
                t_b = T - 1 - s                      # backward walks T-1 .. 0
                # Input-projected gates: fwd lanes from time t_f, bwd lanes
                # from time t_b, merged with the hoisted lane mask.
                gin = jnp.where(fwd_lane, g_sc[t_f], g_sc[t_b])
                gates = gin + jnp.dot(h.astype(_MM_DTYPE), whh,
                                      preferred_element_type=f32)
                # Full-slab sigmoid + half-slab tanh; gate-major layout makes
                # i/f/g/o contiguous (B8, 2H) slices matching c's layout.
                sg = jax.nn.sigmoid(gates)
                i_g = sg[:, 0 * H2:1 * H2]
                f_g = sg[:, 1 * H2:2 * H2]
                g_g = jnp.tanh(gates[:, 2 * H2:3 * H2])
                o_g = sg[:, 3 * H2:4 * H2]
                c_new = f_g * c + i_g * g_g
                h_new = o_g * jnp.tanh(c_new)
                # Packed-sequence mask (precomputed in the wrapper, reused by
                # every layer): cols [:H] keyed on t_f < len, [H:] on t_b < len.
                mv = msk_ref[s] != 0                 # (B8, 2H) bool
                ho_sc[t_f, :, :H] = jnp.where(mv[:, :H], h_new[:, :H], 0.0)
                ho_sc[t_b, :, H:] = jnp.where(mv[:, H:], h_new[:, H:], 0.0)
                return jnp.where(mv, h_new, h), jnp.where(mv, c_new, c)

            zeros = jnp.zeros((B8, H2), f32)
            lax.fori_loop(0, T, step, (zeros, zeros), unroll=unroll)

        # (3) Fused output projection: one (T*B8, 2H) @ (2H, OP) matmul; the
        #     padded output width keeps the single HBM store lane-dense.
        out_ref[...] = (
            jnp.dot(ho_sc[...].reshape(T * B8, H2).astype(_MM_DTYPE),
                    wlin_ref[...], preferred_element_type=f32)
            + blin_ref[...])

    return kernel


# ------------------------------ weight prep ----------------------------------

def _prep_weights(params, H, out_pad):
    """Convert PyTorch-layout weights to the fused-kernel (gate-major) layout."""
    H2, G8 = 2 * H, 8 * H

    def merge_ih(wf, wb):            # (4H, D) x2 -> (D, 8H) gate-major
        cols = []
        for q in range(4):
            cols.append(wf[q * H:(q + 1) * H, :].T)     # gate q, fwd
            cols.append(wb[q * H:(q + 1) * H, :].T)     # gate q, bwd
        return jnp.concatenate(cols, axis=1)

    def merge_hh(wf, wb):            # (4H, H) x2 -> (2H, 8H) block-diagonal
        zero = jnp.zeros((H, H), jnp.float32)
        cols = []
        for q in range(4):
            cols.append(jnp.concatenate([wf[q * H:(q + 1) * H, :].T, zero], 0))
            cols.append(jnp.concatenate([zero, wb[q * H:(q + 1) * H, :].T], 0))
        return jnp.concatenate(cols, axis=1)

    def merge_bias(bf, bb):          # (4H,) x2 -> (1, 8H) gate-major
        segs = []
        for q in range(4):
            segs.append(bf[q * H:(q + 1) * H])
            segs.append(bb[q * H:(q + 1) * H])
        return jnp.concatenate(segs).reshape(1, G8)

    args = []
    for layer in params["lstm"]:
        (wih_f, whh_f, bih_f, bhh_f), (wih_b, whh_b, bih_b, bhh_b) = layer
        args.append(merge_ih(wih_f, wih_b).astype(_MM_DTYPE))
        args.append(merge_hh(whh_f, whh_b).astype(_MM_DTYPE))
        args.append(merge_bias(bih_f + bhh_f, bih_b + bhh_b))
    W, b = params["linear"]                               # (O, 2H), (O,)
    O = W.shape[0]
    wlin = (jnp.zeros((H2, out_pad), jnp.float32)
            .at[:, :O].set(W.T).astype(_MM_DTYPE))
    blin = jnp.zeros((1, out_pad), jnp.float32).at[0, :O].set(b)
    args.extend([wlin, blin])
    return args


# ------------------------------ JAX wrapper ----------------------------------

def bilstm_forward(params, data, lengths):
    # Embedding lookup, gathered directly time-major (no XLA transpose).
    x = params["embedding"][data.T]                       # (T, B, E)
    T, B, E = x.shape
    assert T <= TOTAL_LENGTH
    num_layers = len(params["lstm"])
    H = params["lstm"][0][0][1].shape[1]                  # whh: (4H, H)
    out_dim = params["linear"][0].shape[0]
    out_pad = ((out_dim + 127) // 128) * 128
    B8 = max(8, ((B + 7) // 8) * 8)                       # sublane padding

    x_flat = (jnp.zeros((T, B8, E), jnp.float32)
              .at[:, :B, :].set(x.astype(jnp.float32))
              ).reshape(T * B8, E).astype(_MM_DTYPE)

    # Precomputed packed-sequence step mask, reused by every layer:
    # msk[s, :, :H] = (s < len)   (forward time t_f = s)
    # msk[s, :, H:] = (T-1-s < len) (backward time t_b = T-1-s)
    len_b8 = (jnp.zeros((B8,), jnp.int32)
              .at[:B].set(jnp.asarray(lengths, jnp.int32)))
    t_idx = jnp.arange(T, dtype=jnp.int32)[:, None]       # (T, 1)
    valid_f = (t_idx < len_b8[None, :]).astype(jnp.int32)
    valid_b = ((T - 1 - t_idx) < len_b8[None, :]).astype(jnp.int32)
    msk = jnp.concatenate(
        [jnp.broadcast_to(valid_f[:, :, None], (T, B8, H)),
         jnp.broadcast_to(valid_b[:, :, None], (T, B8, H))], axis=2)

    # Per-lane direction selector for the gate-major column layout
    # [i_f i_b f_f f_b g_f g_b o_f o_b] (1 = forward lane).
    dirsel = jnp.tile(
        jnp.concatenate([jnp.ones((H,), jnp.int32),
                         jnp.zeros((H,), jnp.int32)]), 4).reshape(1, 8 * H)

    w_args = _prep_weights(params, H, out_pad)
    n_in = 3 + len(w_args)
    unroll = T if T <= 32 else 8                          # cap unroll for long T

    scores2d = pl.pallas_call(
        _make_bilstm_kernel(num_layers, T, B8, H, unroll),
        out_shape=jax.ShapeDtypeStruct((T * B8, out_pad), jnp.float32),
        in_specs=[_VMEM] * n_in,
        out_specs=_VMEM,
        scratch_shapes=[pltpu.VMEM((T, B8, 8 * H), jnp.float32),   # gate precomp
                        pltpu.VMEM((T, B8, 2 * H), jnp.float32)],  # layer outputs
    )(x_flat, msk, dirsel, *w_args)

    # Strip batch/lane padding; back to batch-first.
    scores = scores2d.reshape(T, B8, out_pad)[:, :B, :out_dim]
    scores = jnp.transpose(scores, (1, 0, 2))             # (B, T, O)

    # pad_packed_sequence(total_length=178) then Linear: padded frames are
    # Linear(0) = bias, so fill the 178-long slab with the bias and overwrite
    # the first T frames (the kernel already produced bias for t >= length,
    # because the masked stores zero the last layer's padded hidden outputs).
    bias = params["linear"][1].astype(jnp.float32)
    full = jnp.broadcast_to(bias.reshape(1, 1, out_dim),
                            (B, TOTAL_LENGTH, out_dim))
    return full.at[:, :T, :].set(scores)


# --------------------------- deterministic params ----------------------------

def init_params(key, vocab_size, embedding_dim, num_layers, hidden_dim, out_dim):
    n_keys = 1 + num_layers * 2 * 4 + 2
    keys = iter(jax.random.split(key, n_keys))
    k = 1.0 / (hidden_dim ** 0.5)
    params = {
        "embedding": jax.random.normal(next(keys), (vocab_size, embedding_dim),
                                       jnp.float32)
    }
    layers = []
    for layer in range(num_layers):
        in_dim = embedding_dim if layer == 0 else 2 * hidden_dim
        dirs = []
        for _direction in range(2):
            w_ih = jax.random.uniform(next(keys), (4 * hidden_dim, in_dim),
                                      jnp.float32, -k, k)
            w_hh = jax.random.uniform(next(keys), (4 * hidden_dim, hidden_dim),
                                      jnp.float32, -k, k)
            b_ih = jax.random.uniform(next(keys), (4 * hidden_dim,),
                                      jnp.float32, -k, k)
            b_hh = jax.random.uniform(next(keys), (4 * hidden_dim,),
                                      jnp.float32, -k, k)
            dirs.append((w_ih, w_hh, b_ih, b_hh))
        layers.append(tuple(dirs))
    params["lstm"] = tuple(layers)

    kl = 1.0 / ((2 * hidden_dim) ** 0.5)
    W = jax.random.uniform(next(keys), (out_dim, 2 * hidden_dim),
                           jnp.float32, -kl, kl)
    b = jax.random.uniform(next(keys), (out_dim,), jnp.float32, -kl, kl)
    params["linear"] = (W, b)
    return params


# ----------------------------------- main -------------------------------------

if __name__ == "__main__":
    vocab_size, embedding_dim, num_layers, hidden_dim, out_dim = 50, 16, 2, 32, 8
    key = jax.random.PRNGKey(0)
    pkey, dkey = jax.random.split(key)
    params = init_params(pkey, vocab_size, embedding_dim, num_layers,
                         hidden_dim, out_dim)

    B, T = 2, 16
    data = jax.random.randint(dkey, (B, T), 0, vocab_size, dtype=jnp.int32)
    # pack_padded_sequence default enforce_sorted=True -> descending lengths.
    lengths = jnp.array([16, 12], dtype=jnp.int32)

    forward = jax.jit(bilstm_forward)
    scores = forward(params, data, lengths)
    jax.block_until_ready(scores)
    assert scores.shape == (B, TOTAL_LENGTH, out_dim), scores.shape
    print("KERNEL_OK")
</pallas_src>

<mosaic_0001>
module attributes {stable_mosaic.version = 11 : i64} {
  func.func @kernel(%arg0: memref<128x16xf32, #tpu.memory_space<vmem>>, %arg1: memref<16x8x64xi32, #tpu.memory_space<vmem>>, %arg2: memref<1x256xi32, #tpu.memory_space<vmem>>, %arg3: memref<16x256xf32, #tpu.memory_space<vmem>>, %arg4: memref<64x256xf32, #tpu.memory_space<vmem>>, %arg5: memref<1x256xf32, #tpu.memory_space<vmem>>, %arg6: memref<64x256xf32, #tpu.memory_space<vmem>>, %arg7: memref<64x256xf32, #tpu.memory_space<vmem>>, %arg8: memref<1x256xf32, #tpu.memory_space<vmem>>, %arg9: memref<64x128xf32, #tpu.memory_space<vmem>>, %arg10: memref<1x128xf32, #tpu.memory_space<vmem>>, %arg11: memref<128x128xf32, #tpu.memory_space<vmem>>, %arg12: memref<16x8x256xf32, #tpu.memory_space<vmem>>, %arg13: memref<16x8x64xf32, #tpu.memory_space<vmem>>) attributes {dimension_semantics = [], scalar_prefetch = 0 : i64, scratch_operands = 2 : i64, tpu.core_type = #tpu.core_type<tc>} {
    %c0 = arith.constant 0 : index
    %c0_0 = arith.constant 0 : index
    %0 = vector.load %arg2[%c0, %c0_0] : memref<1x256xi32, #tpu.memory_space<vmem>>, vector<1x256xi32>
    %c0_i32 = arith.constant 0 : i32
    %1 = vector.broadcast %c0_i32 : i32 to vector<1x256xi32>
    %2 = arith.cmpi ne, %0, %1 : vector<1x256xi32>
    %3 = vector.shape_cast %2 : vector<1x256xi1> to vector<1x256xi1>
    %4 = vector.broadcast %3 : vector<1x256xi1> to vector<8x256xi1>
    %c0_1 = arith.constant 0 : index
    %c0_2 = arith.constant 0 : index
    %5 = vector.load %arg0[%c0_1, %c0_2] : memref<128x16xf32, #tpu.memory_space<vmem>>, vector<128x16xf32>
    %c0_3 = arith.constant 0 : index
    %c0_4 = arith.constant 0 : index
    %6 = vector.load %arg3[%c0_3, %c0_4] : memref<16x256xf32, #tpu.memory_space<vmem>>, vector<16x256xf32>
    %cst = arith.constant dense<0.000000e+00> : vector<128x256xf32>
    %7 = tpu.matmul %5, %6, %cst {dimension_numbers = #tpu.dot_dimension_numbers<[1], [0], [0], [1], [0, 0, 1, 1], [], []>} : vector<128x16xf32>, vector<16x256xf32>, vector<128x256xf32> -> vector<128x256xf32>
    %c0_5 = arith.constant 0 : index
    %c0_6 = arith.constant 0 : index
    %8 = vector.load %arg5[%c0_5, %c0_6] : memref<1x256xf32, #tpu.memory_space<vmem>>, vector<1x256xf32>
    %9 = vector.broadcast %8 : vector<1x256xf32> to vector<128x256xf32>
    %10 = arith.addf %7, %9 : vector<128x256xf32>
    %11 = vector.shape_cast %10 : vector<128x256xf32> to vector<16x8x256xf32>
    %c0_7 = arith.constant 0 : index
    %c0_8 = arith.constant 0 : index
    %c0_9 = arith.constant 0 : index
    %12 = vector.load %arg12[%c0_7, %c0_8, %c0_9] : memref<16x8x256xf32, #tpu.memory_space<vmem>>, vector<16x8x256xf32>
    tpu.vector_store %arg12[%c0_7, %c0_8, %c0_9], %11 {strides = array<i32>} : memref<16x8x256xf32, #tpu.memory_space<vmem>>, vector<16x8x256xf32>,
    %c0_10 = arith.constant 0 : index
    %c0_11 = arith.constant 0 : index
    %13 = vector.load %arg4[%c0_10, %c0_11] : memref<64x256xf32, #tpu.memory_space<vmem>>, vector<64x256xf32>
    %cst_12 = arith.constant 0.000000e+00 : f32
    %14 = vector.broadcast %cst_12 : f32 to vector<8x64xf32>
    %c0_i32_13 = arith.constant 0 : i32
    %c15_i32 = arith.constant 15 : i32
    %15 = arith.subi %c15_i32, %c0_i32_13 : i32
    %16 = arith.index_cast %c0_i32_13 : i32 to index
    %c0_14 = arith.constant 0 : index
    %c0_15 = arith.constant 0 : index
    %17 = vector.load %arg12[%16, %c0_14, %c0_15] : memref<16x8x256xf32, #tpu.memory_space<vmem>>, vector<1x8x256xf32>
    %18 = vector.shape_cast %17 : vector<1x8x256xf32> to vector<8x256xf32>
    %19 = arith.index_cast %15 : i32 to index
    %c0_16 = arith.constant 0 : index
    %c0_17 = arith.constant 0 : index
    %20 = vector.load %arg12[%19, %c0_16, %c0_17] : memref<16x8x256xf32, #tpu.memory_space<vmem>>, vector<1x8x256xf32>
    %21 = vector.shape_cast %20 : vector<1x8x256xf32> to vector<8x256xf32>
    %22 = arith.select %4, %18, %21 : vector<8x256xi1>, vector<8x256xf32>
    %cst_18 = arith.constant dense<0.000000e+00> : vector<8x256xf32>
    %23 = tpu.matmul %14, %13, %cst_18 {dimension_numbers = #tpu.dot_dimension_numbers<[1], [0], [0], [1], [0, 0, 1, 1], [], []>} : vector<8x64xf32>, vector<64x256xf32>, vector<8x256xf32> -> vector<8x256xf32>
    %24 = arith.addf %22, %23 : vector<8x256xf32>
    %25 = arith.negf %24 : vector<8x256xf32>
    %26 = math.exp %25 : vector<8x256xf32>
    %cst_19 = arith.constant 1.000000e+00 : f32
    %27 = vector.broadcast %cst_19 : f32 to vector<8x256xf32>
    %28 = arith.addf %27, %26 : vector<8x256xf32>
    %29 = arith.divf %27, %28 : vector<8x256xf32>
    %30 = vector.extract_strided_slice %29 {offsets = [0, 0], sizes = [8, 64], strides = [1, 1]} : vector<8x256xf32> to vector<8x64xf32>
    %31 = vector.extract_strided_slice %29 {offsets = [0, 64], sizes = [8, 64], strides = [1, 1]} : vector<8x256xf32> to vector<8x64xf32>
    %32 = vector.extract_strided_slice %24 {offsets = [0, 128], sizes = [8, 64], strides = [1, 1]} : vector<8x256xf32> to vector<8x64xf32>
    %33 = math.tanh %32 : vector<8x64xf32>
    %34 = vector.extract_strided_slice %29 {offsets = [0, 192], sizes = [8, 64], strides = [1, 1]} : vector<8x256xf32> to vector<8x64xf32>
    %35 = arith.mulf %31, %14 : vector<8x64xf32>
    %36 = arith.mulf %30, %33 : vector<8x64xf32>
    %37 = arith.addf %35, %36 : vector<8x64xf32>
    %38 = math.tanh %37 : vector<8x64xf32>
    %39 = arith.mulf %34, %38 : vector<8x64xf32>
    %40 = arith.index_cast %c0_i32_13 : i32 to index
    %c0_20 = arith.constant 0 : index
    %c0_21 = arith.constant 0 : index
    %41 = vector.load %arg1[%40, %c0_20, %c0_21] : memref<16x8x64xi32, #tpu.memory_space<vmem>>, vector<1x8x64xi32>
    %42 = vector.shape_cast %41 : vector<1x8x64xi32> to vector<8x64xi32>
    %c0_i32_22 = arith.constant 0 : i32
    %43 = vector.broadcast %c0_i32_22 : i32 to vector<8x64xi32>
    %44 = arith.cmpi ne, %42, %43 : vector<8x64xi32>
    %45 = vector.extract_strided_slice %44 {offsets = [0, 0], sizes = [8, 32], strides = [1, 1]} : vector<8x64xi1> to vector<8x32xi1>
    %46 = vector.extract_strided_slice %39 {offsets = [0, 0], sizes = [8, 32], strides = [1, 1]} : vector<8x64xf32> to vector<8x32xf32>
    %cst_23 = arith.constant 0.000000e+00 : f32
    %47 = vector.broadcast %cst_23 : f32 to vector<8x32xf32>
    %48 = arith.select %45, %46, %47 : vector<8x32xi1>, vector<8x32xf32>
    %49 = arith.index_cast %c0_i32_13 : i32 to index
    %c0_24 = arith.constant 0 : index
    %c0_25 = arith.constant 0 : index
    %50 = vector.load %arg13[%49, %c0_24, %c0_25] : memref<16x8x64xf32, #tpu.memory_space<vmem>>, vector<1x8x32xf32>
    %51 = vector.shape_cast %50 : vector<1x8x32xf32> to vector<8x32xf32>
    %52 = vector.shape_cast %48 : vector<8x32xf32> to vector<1x8x32xf32>
    tpu.vector_store %arg13[%49, %c0_24, %c0_25], %52 {strides = array<i32>} : memref<16x8x64xf32, #tpu.memory_space<vmem>>, vector<1x8x32xf32>,
    %53 = vector.extract_strided_slice %44 {offsets = [0, 32], sizes = [8, 32], strides = [1, 1]} : vector<8x64xi1> to vector<8x32xi1>
    %54 = vector.extract_strided_slice %39 {offsets = [0, 32], sizes = [8, 32], strides = [1, 1]} : vector<8x64xf32> to vector<8x32xf32>
    %cst_26 = arith.constant 0.000000e+00 : f32
    %55 = vector.broadcast %cst_26 : f32 to vector<8x32xf32>
    %56 = arith.select %53, %54, %55 : vector<8x32xi1>, vector<8x32xf32>
    %57 = arith.index_cast %15 : i32 to index
    %c0_27 = arith.constant 0 : index
    %c32 = arith.constant 32 : index
    %58 = vector.load %arg13[%57, %c0_27, %c32] : memref<16x8x64xf32, #tpu.memory_space<vmem>>, vector<1x8x32xf32>
    %59 = vector.shape_cast %58 : vector<1x8x32xf32> to vector<8x32xf32>
    %60 = vector.shape_cast %56 : vector<8x32xf32> to vector<1x8x32xf32>
    tpu.vector_store %arg13[%57, %c0_27, %c32], %60 {strides = array<i32>} : memref<16x8x64xf32, #tpu.memory_space<vmem>>, vector<1x8x32xf32>,
    %61 = arith.select %44, %39, %14 : vector<8x64xi1>, vector<8x64xf32>
    %62 = arith.select %44, %37, %14 : vector<8x64xi1>, vector<8x64xf32>
    %c1_i32 = arith.constant 1 : i32
    %c15_i32_28 = arith.constant 15 : i32
    %63 = arith.subi %c15_i32_28, %c1_i32 : i32
    %64 = arith.index_cast %c1_i32 : i32 to index
    %c0_29 = arith.constant 0 : index
    %c0_30 = arith.constant 0 : index
    %65 = vector.load %arg12[%64, %c0_29, %c0_30] : memref<16x8x256xf32, #tpu.memory_space<vmem>>, vector<1x8x256xf32>
    %66 = vector.shape_cast %65 : vector<1x8x256xf32> to vector<8x256xf32>
    %67 = arith.index_cast %63 : i32 to index
    %c0_31 = arith.constant 0 : index
    %c0_32 = arith.constant 0 : index
    %68 = vector.load %arg12[%67, %c0_31, %c0_32] : memref<16x8x256xf32, #tpu.memory_space<vmem>>, vector<1x8x256xf32>
    %69 = vector.shape_cast %68 : vector<1x8x256xf32> to vector<8x256xf32>
    %70 = arith.select %4, %66, %69 : vector<8x256xi1>, vector<8x256xf32>
    %cst_33 = arith.constant dense<0.000000e+00> : vector<8x256xf32>
    %71 = tpu.matmul %61, %13, %cst_33 {dimension_numbers = #tpu.dot_dimension_numbers<[1], [0], [0], [1], [0, 0, 1, 1], [], []>} : vector<8x64xf32>, vector<64x256xf32>, vector<8x256xf32> -> vector<8x256xf32>
    %72 = arith.addf %70, %71 : vector<8x256xf32>
    %73 = arith.negf %72 : vector<8x256xf32>
    %74 = math.exp %73 : vector<8x256xf32>
    %cst_34 = arith.constant 1.000000e+00 : f32
    %75 = vector.broadcast %cst_34 : f32 to vector<8x256xf32>
    %76 = arith.addf %75, %74 : vector<8x256xf32>
    %77 = arith.divf %75, %76 : vector<8x256xf32>
    %78 = vector.extract_strided_slice %77 {offsets = [0, 0], sizes = [8, 64], strides = [1, 1]} : vector<8x256xf32> to vector<8x64xf32>
    %79 = vector.extract_strided_slice %77 {offsets = [0, 64], sizes = [8, 64], strides = [1, 1]} : vector<8x256xf32> to vector<8x64xf32>
    %80 = vector.extract_strided_slice %72 {offsets = [0, 128], sizes = [8, 64], strides = [1, 1]} : vector<8x256xf32> to vector<8x64xf32>
    %81 = math.tanh %80 : vector<8x64xf32>
    %82 = vector.extract_strided_slice %77 {offsets = [0, 192], sizes = [8, 64], strides = [1, 1]} : vector<8x256xf32> to vector<8x64xf32>
    %83 = arith.mulf %79, %62 : vector<8x64xf32>
    %84 = arith.mulf %78, %81 : vector<8x64xf32>
    %85 = arith.addf %83, %84 : vector<8x64xf32>
    %86 = math.tanh %85 : vector<8x64xf32>
    %87 = arith.mulf %82, %86 : vector<8x64xf32>
    %88 = arith.index_cast %c1_i32 : i32 to index
    %c0_35 = arith.constant 0 : index
    %c0_36 = arith.constant 0 : index
    %89 = vector.load %arg1[%88, %c0_35, %c0_36] : memref<16x8x64xi32, #tpu.memory_space<vmem>>, vector<1x8x64xi32>
    %90 = vector.shape_cast %89 : vector<1x8x64xi32> to vector<8x64xi32>
    %c0_i32_37 = arith.constant 0 : i32
    %91 = vector.broadcast %c0_i32_37 : i32 to vector<8x64xi32>
    %92 = arith.cmpi ne, %90, %91 : vector<8x64xi32>
    %93 = vector.extract_strided_slice %92 {offsets = [0, 0], sizes = [8, 32], strides = [1, 1]} : vector<8x64xi1> to vector<8x32xi1>
    %94 = vector.extract_strided_slice %87 {offsets = [0, 0], sizes = [8, 32], strides = [1, 1]} : vector<8x64xf32> to vector<8x32xf32>
    %cst_38 = arith.constant 0.000000e+00 : f32
    %95 = vector.broadcast %cst_38 : f32 to vector<8x32xf32>
    %96 = arith.select %93, %94, %95 : vector<8x32xi1>, vector<8x32xf32>
    %97 = arith.index_cast %c1_i32 : i32 to index
    %c0_39 = arith.constant 0 : index
    %c0_40 = arith.constant 0 : index
    %98 = vector.load %arg13[%97, %c0_39, %c0_40] : memref<16x8x64xf32, #tpu.memory_space<vmem>>, vector<1x8x32xf32>
    %99 = vector.shape_cast %98 : vector<1x8x32xf32> to vector<8x32xf32>
    %100 = vector.shape_cast %96 : vector<8x32xf32> to vector<1x8x32xf32>
    tpu.vector_store %arg13[%97, %c0_39, %c0_40], %100 {strides = array<i32>} : memref<16x8x64xf32, #tpu.memory_space<vmem>>, vector<1x8x32xf32>,
    %101 = vector.extract_strided_slice %92 {offsets = [0, 32], sizes = [8, 32], strides = [1, 1]} : vector<8x64xi1> to vector<8x32xi1>
    %102 = vector.extract_strided_slice %87 {offsets = [0, 32], sizes = [8, 32], strides = [1, 1]} : vector<8x64xf32> to vector<8x32xf32>
    %cst_41 = arith.constant 0.000000e+00 : f32
    %103 = vector.broadcast %cst_41 : f32 to vector<8x32xf32>
    %104 = arith.select %101, %102, %103 : vector<8x32xi1>, vector<8x32xf32>
    %105 = arith.index_cast %63 : i32 to index
    %c0_42 = arith.constant 0 : index
    %c32_43 = arith.constant 32 : index
    %106 = vector.load %arg13[%105, %c0_42, %c32_43] : memref<16x8x64xf32, #tpu.memory_space<vmem>>, vector<1x8x32xf32>
    %107 = vector.shape_cast %106 : vector<1x8x32xf32> to vector<8x32xf32>
    %108 = vector.shape_cast %104 : vector<8x32xf32> to vector<1x8x32xf32>
    tpu.vector_store %arg13[%105, %c0_42, %c32_43], %108 {strides = array<i32>} : memref<16x8x64xf32, #tpu.memory_space<vmem>>, vector<1x8x32xf32>,
    %109 = arith.select %92, %87, %61 : vector<8x64xi1>, vector<8x64xf32>
    %110 = arith.select %92, %85, %62 : vector<8x64xi1>, vector<8x64xf32>
    %c2_i32 = arith.constant 2 : i32
    %c15_i32_44 = arith.constant 15 : i32
    %111 = arith.subi %c15_i32_44, %c2_i32 : i32
    %112 = arith.index_cast %c2_i32 : i32 to index
    %c0_45 = arith.constant 0 : index
    %c0_46 = arith.constant 0 : index
    %113 = vector.load %arg12[%112, %c0_45, %c0_46] : memref<16x8x256xf32, #tpu.memory_space<vmem>>, vector<1x8x256xf32>
    %114 = vector.shape_cast %113 : vector<1x8x256xf32> to vector<8x256xf32>
    %115 = arith.index_cast %111 : i32 to index
    %c0_47 = arith.constant 0 : index
    %c0_48 = arith.constant 0 : index
    %116 = vector.load %arg12[%115, %c0_47, %c0_48] : memref<16x8x256xf32, #tpu.memory_space<vmem>>, vector<1x8x256xf32>
    %117 = vector.shape_cast %116 : vector<1x8x256xf32> to vector<8x256xf32>
    %118 = arith.select %4, %114, %117 : vector<8x256xi1>, vector<8x256xf32>
    %cst_49 = arith.constant dense<0.000000e+00> : vector<8x256xf32>
    %119 = tpu.matmul %109, %13, %cst_49 {dimension_numbers = #tpu.dot_dimension_numbers<[1], [0], [0], [1], [0, 0, 1, 1], [], []>} : vector<8x64xf32>, vector<64x256xf32>, vector<8x256xf32> -> vector<8x256xf32>
    %120 = arith.addf %118, %119 : vector<8x256xf32>
    %121 = arith.negf %120 : vector<8x256xf32>
    %122 = math.exp %121 : vector<8x256xf32>
    %cst_50 = arith.constant 1.000000e+00 : f32
    %123 = vector.broadcast %cst_50 : f32 to vector<8x256xf32>
    %124 = arith.addf %123, %122 : vector<8x256xf32>
    %125 = arith.divf %123, %124 : vector<8x256xf32>
    %126 = vector.extract_strided_slice %125 {offsets = [0, 0], sizes = [8, 64], strides = [1, 1]} : vector<8x256xf32> to vector<8x64xf32>
    %127 = vector.extract_strided_slice %125 {offsets = [0, 64], sizes = [8, 64], strides = [1, 1]} : vector<8x256xf32> to vector<8x64xf32>
    %128 = vector.extract_strided_slice %120 {offsets = [0, 128], sizes = [8, 64], strides = [1, 1]} : vector<8x256xf32> to vector<8x64xf32>
    %129 = math.tanh %128 : vector<8x64xf32>
    %130 = vector.extract_strided_slice %125 {offsets = [0, 192], sizes = [8, 64], strides = [1, 1]} : vector<8x256xf32> to vector<8x64xf32>
    %131 = arith.mulf %127, %110 : vector<8x64xf32>
    %132 = arith.mulf %126, %129 : vector<8x64xf32>
    %133 = arith.addf %131, %132 : vector<8x64xf32>
    %134 = math.tanh %133 : vector<8x64xf32>
    %135 = arith.mulf %130, %134 : vector<8x64xf32>
    %136 = arith.index_cast %c2_i32 : i32 to index
    %c0_51 = arith.constant 0 : index
    %c0_52 = arith.constant 0 : index
    %137 = vector.load %arg1[%136, %c0_51, %c0_52] : memref<16x8x64xi32, #tpu.memory_space<vmem>>, vector<1x8x64xi32>
    %138 = vector.shape_cast %137 : vector<1x8x64xi32> to vector<8x64xi32>
    %c0_i32_53 = arith.constant 0 : i32
    %139 = vector.broadcast %c0_i32_53 : i32 to vector<8x64xi32>
    %140 = arith.cmpi ne, %138, %139 : vector<8x64xi32>
    %141 = vector.extract_strided_slice %140 {offsets = [0, 0], sizes = [8, 32], strides = [1, 1]} : vector<8x64xi1> to vector<8x32xi1>
    %142 = vector.extract_strided_slice %135 {offsets = [0, 0], sizes = [8, 32], strides = [1, 1]} : vector<8x64xf32> to vector<8x32xf32>
    %cst_54 = arith.constant 0.000000e+00 : f32
    %143 = vector.broadcast %cst_54 : f32 to vector<8x32xf32>
    %144 = arith.select %141, %142, %143 : vector<8x32xi1>, vector<8x32xf32>
    %145 = arith.index_cast %c2_i32 : i32 to index
    %c0_55 = arith.constant 0 : index
    %c0_56 = arith.constant 0 : index
    %146 = vector.load %arg13[%145, %c0_55, %c0_56] : memref<16x8x64xf32, #tpu.memory_space<vmem>>, vector<1x8x32xf32>
    %147 = vector.shape_cast %146 : vector<1x8x32xf32> to vector<8x32xf32>
    %148 = vector.shape_cast %144 : vector<8x32xf32> to vector<1x8x32xf32>
    tpu.vector_store %arg13[%145, %c0_55, %c0_56], %148 {strides = array<i32>} : memref<16x8x64xf32, #tpu.memory_space<vmem>>, vector<1x8x32xf32>,
    %149 = vector.extract_strided_slice %140 {offsets = [0, 32], sizes = [8, 32], strides = [1, 1]} : vector<8x64xi1> to vector<8x32xi1>
    %150 = vector.extract_strided_slice %135 {offsets = [0, 32], sizes = [8, 32], strides = [1, 1]} : vector<8x64xf32> to vector<8x32xf32>
    %cst_57 = arith.constant 0.000000e+00 : f32
    %151 = vector.broadcast %cst_57 : f32 to vector<8x32xf32>
    %152 = arith.select %149, %150, %151 : vector<8x32xi1>, vector<8x32xf32>
    %153 = arith.index_cast %111 : i32 to index
    %c0_58 = arith.constant 0 : index
    %c32_59 = arith.constant 32 : index
    %154 = vector.load %arg13[%153, %c0_58, %c32_59] : memref<16x8x64xf32, #tpu.memory_space<vmem>>, vector<1x8x32xf32>
    %155 = vector.shape_cast %154 : vector<1x8x32xf32> to vector<8x32xf32>
    %156 = vector.shape_cast %152 : vector<8x32xf32> to vector<1x8x32xf32>
    tpu.vector_store %arg13[%153, %c0_58, %c32_59], %156 {strides = array<i32>} : memref<16x8x64xf32, #tpu.memory_space<vmem>>, vector<1x8x32xf32>,
    %157 = arith.select %140, %135, %109 : vector<8x64xi1>, vector<8x64xf32>
    %158 = arith.select %140, %133, %110 : vector<8x64xi1>, vector<8x64xf32>
    %c3_i32 = arith.constant 3 : i32
    %c15_i32_60 = arith.constant 15 : i32
    %159 = arith.subi %c15_i32_60, %c3_i32 : i32
    %160 = arith.index_cast %c3_i32 : i32 to index
    %c0_61 = arith.constant 0 : index
    %c0_62 = arith.constant 0 : index
    %161 = vector.load %arg12[%160, %c0_61, %c0_62] : memref<16x8x256xf32, #tpu.memory_space<vmem>>, vector<1x8x256xf32>
    %162 = vector.shape_cast %161 : vector<1x8x256xf32> to vector<8x256xf32>
    %163 = arith.index_cast %159 : i32 to index
    %c0_63 = arith.constant 0 : index
    %c0_64 = arith.constant 0 : index
    %164 = vector.load %arg12[%163, %c0_63, %c0_64] : memref<16x8x256xf32, #tpu.memory_space<vmem>>, vector<1x8x256xf32>
    %165 = vector.shape_cast %164 : vector<1x8x256xf32> to vector<8x256xf32>
    %166 = arith.select %4, %162, %165 : vector<8x256xi1>, vector<8x256xf32>
    %cst_65 = arith.constant dense<0.000000e+00> : vector<8x256xf32>
    %167 = tpu.matmul %157, %13, %cst_65 {dimension_numbers = #tpu.dot_dimension_numbers<[1], [0], [0], [1], [0, 0, 1, 1], [], []>} : vector<8x64xf32>, vector<64x256xf32>, vector<8x256xf32> -> vector<8x256xf32>
    %168 = arith.addf %166, %167 : vector<8x256xf32>
    %169 = arith.negf %168 : vector<8x256xf32>
    %170 = math.exp %169 : vector<8x256xf32>
    %cst_66 = arith.constant 1.000000e+00 : f32
    %171 = vector.broadcast %cst_66 : f32 to vector<8x256xf32>
    %172 = arith.addf %171, %170 : vector<8x256xf32>
    %173 = arith.divf %171, %172 : vector<8x256xf32>
    %174 = vector.extract_strided_slice %173 {offsets = [0, 0], sizes = [8, 64], strides = [1, 1]} : vector<8x256xf32> to vector<8x64xf32>
    %175 = vector.extract_strided_slice %173 {offsets = [0, 64], sizes = [8, 64], strides = [1, 1]} : vector<8x256xf32> to vector<8x64xf32>
    %176 = vector.extract_strided_slice %168 {offsets = [0, 128], sizes = [8, 64], strides = [1, 1]} : vector<8x256xf32> to vector<8x64xf32>
    %177 = math.tanh %176 : vector<8x64xf32>
    %178 = vector.extract_strided_slice %173 {offsets = [0, 192], sizes = [8, 64], strides = [1, 1]} : vector<8x256xf32> to vector<8x64xf32>
    %179 = arith.mulf %175, %158 : vector<8x64xf32>
    %180 = arith.mulf %174, %177 : vector<8x64xf32>
    %181 = arith.addf %179, %180 : vector<8x64xf32>
    %182 = math.tanh %181 : vector<8x64xf32>
    %183 = arith.mulf %178, %182 : vector<8x64xf32>
    %184 = arith.index_cast %c3_i32 : i32 to index
    %c0_67 = arith.constant 0 : index
    %c0_68 = arith.constant 0 : index
    %185 = vector.load %arg1[%184, %c0_67, %c0_68] : memref<16x8x64xi32, #tpu.memory_space<vmem>>, vector<1x8x64xi32>
    %186 = vector.shape_cast %185 : vector<1x8x64xi32> to vector<8x64xi32>
    %c0_i32_69 = arith.constant 0 : i32
    %187 = vector.broadcast %c0_i32_69 : i32 to vector<8x64xi32>
    %188 = arith.cmpi ne, %186, %187 : vector<8x64xi32>
    %189 = vector.extract_strided_slice %188 {offsets = [0, 0], sizes = [8, 32], strides = [1, 1]} : vector<8x64xi1> to vector<8x32xi1>
    %190 = vector.extract_strided_slice %183 {offsets = [0, 0], sizes = [8, 32], strides = [1, 1]} : vector<8x64xf32> to vector<8x32xf32>
    %cst_70 = arith.constant 0.000000e+00 : f32
    %191 = vector.broadcast %cst_70 : f32 to vector<8x32xf32>
    %192 = arith.select %189, %190, %191 : vector<8x32xi1>, vector<8x32xf32>
    %193 = arith.index_cast %c3_i32 : i32 to index
    %c0_71 = arith.constant 0 : index
    %c0_72 = arith.constant 0 : index
    %194 = vector.load %arg13[%193, %c0_71, %c0_72] : memref<16x8x64xf32, #tpu.memory_space<vmem>>, vector<1x8x32xf32>
    %195 = vector.shape_cast %194 : vector<1x8x32xf32> to vector<8x32xf32>
    %196 = vector.shape_cast %192 : vector<8x32xf32> to vector<1x8x32xf32>
    tpu.vector_store %arg13[%193, %c0_71, %c0_72], %196 {strides = array<i32>} : memref<16x8x64xf32, #tpu.memory_space<vmem>>, vector<1x8x32xf32>,
    %197 = vector.extract_strided_slice %188 {offsets = [0, 32], sizes = [8, 32], strides = [1, 1]} : vector<8x64xi1> to vector<8x32xi1>
    %198 = vector.extract_strided_slice %183 {offsets = [0, 32], sizes = [8, 32], strides = [1, 1]} : vector<8x64xf32> to vector<8x32xf32>
    %cst_73 = arith.constant 0.000000e+00 : f32
    %199 = vector.broadcast %cst_73 : f32 to vector<8x32xf32>
    %200 = arith.select %197, %198, %199 : vector<8x32xi1>, vector<8x32xf32>
    %201 = arith.index_cast %159 : i32 to index
    %c0_74 = arith.constant 0 : index
    %c32_75 = arith.constant 32 : index
    %202 = vector.load %arg13[%201, %c0_74, %c32_75] : memref<16x8x64xf32, #tpu.memory_space<vmem>>, vector<1x8x32xf32>
    %203 = vector.shape_cast %202 : vector<1x8x32xf32> to vector<8x32xf32>
    %204 = vector.shape_cast %200 : vector<8x32xf32> to vector<1x8x32xf32>
    tpu.vector_store %arg13[%201, %c0_74, %c32_75], %204 {strides = array<i32>} : memref<16x8x64xf32, #tpu.memory_space<vmem>>, vector<1x8x32xf32>,
    %205 = arith.select %188, %183, %157 : vector<8x64xi1>, vector<8x64xf32>
    %206 = arith.select %188, %181, %158 : vector<8x64xi1>, vector<8x64xf32>
    %c4_i32 = arith.constant 4 : i32
    %c15_i32_76 = arith.constant 15 : i32
    %207 = arith.subi %c15_i32_76, %c4_i32 : i32
    %208 = arith.index_cast %c4_i32 : i32 to index
    %c0_77 = arith.constant 0 : index
    %c0_78 = arith.constant 0 : index
    %209 = vector.load %arg12[%208, %c0_77, %c0_78] : memref<16x8x256xf32, #tpu.memory_space<vmem>>, vector<1x8x256xf32>
    %210 = vector.shape_cast %209 : vector<1x8x256xf32> to vector<8x256xf32>
    %211 = arith.index_cast %207 : i32 to index
    %c0_79 = arith.constant 0 : index
    %c0_80 = arith.constant 0 : index
    %212 = vector.load %arg12[%211, %c0_79, %c0_80] : memref<16x8x256xf32, #tpu.memory_space<vmem>>, vector<1x8x256xf32>
    %213 = vector.shape_cast %212 : vector<1x8x256xf32> to vector<8x256xf32>
    %214 = arith.select %4, %210, %213 : vector<8x256xi1>, vector<8x256xf32>
    %cst_81 = arith.constant dense<0.000000e+00> : vector<8x256xf32>
    %215 = tpu.matmul %205, %13, %cst_81 {dimension_numbers = #tpu.dot_dimension_numbers<[1], [0], [0], [1], [0, 0, 1, 1], [], []>} : vector<8x64xf32>, vector<64x256xf32>, vector<8x256xf32> -> vector<8x256xf32>
    %216 = arith.addf %214, %215 : vector<8x256xf32>
    %217 = arith.negf %216 : vector<8x256xf32>
    %218 = math.exp %217 : vector<8x256xf32>
    %cst_82 = arith.constant 1.000000e+00 : f32
    %219 = vector.broadcast %cst_82 : f32 to vector<8x256xf32>
    %220 = arith.addf %219, %218 : vector<8x256xf32>
    %221 = arith.divf %219, %220 : vector<8x256xf32>
    %222 = vector.extract_strided_slice %221 {offsets = [0, 0], sizes = [8, 64], strides = [1, 1]} : vector<8x256xf32> to vector<8x64xf32>
    %223 = vector.extract_strided_slice %221 {offsets = [0, 64], sizes = [8, 64], strides = [1, 1]} : vector<8x256xf32> to vector<8x64xf32>
    %224 = vector.extract_strided_slice %216 {offsets = [0, 128], sizes = [8, 64], strides = [1, 1]} : vector<8x256xf32> to vector<8x64xf32>
    %225 = math.tanh %224 : vector<8x64xf32>
    %226 = vector.extract_strided_slice %221 {offsets = [0, 192], sizes = [8, 64], strides = [1, 1]} : vector<8x256xf32> to vector<8x64xf32>
    %227 = arith.mulf %223, %206 : vector<8x64xf32>
    %228 = arith.mulf %222, %225 : vector<8x64xf32>
    %229 = arith.addf %227, %228 : vector<8x64xf32>
    %230 = math.tanh %229 : vector<8x64xf32>
    %231 = arith.mulf %226, %230 : vector<8x64xf32>
    %232 = arith.index_cast %c4_i32 : i32 to index
    %c0_83 = arith.constant 0 : index
    %c0_84 = arith.constant 0 : index
    %233 = vector.load %arg1[%232, %c0_83, %c0_84] : memref<16x8x64xi32, #tpu.memory_space<vmem>>, vector<1x8x64xi32>
    %234 = vector.shape_cast %233 : vector<1x8x64xi32> to vector<8x64xi32>
    %c0_i32_85 = arith.constant 0 : i32
    %235 = vector.broadcast %c0_i32_85 : i32 to vector<8x64xi32>
    %236 = arith.cmpi ne, %234, %235 : vector<8x64xi32>
    %237 = vector.extract_strided_slice %236 {offsets = [0, 0], sizes = [8, 32], strides = [1, 1]} : vector<8x64xi1> to vector<8x32xi1>
    %238 = vector.extract_strided_slice %231 {offsets = [0, 0], sizes = [8, 32], strides = [1, 1]} : vector<8x64xf32> to vector<8x32xf32>
    %cst_86 = arith.constant 0.000000e+00 : f32
    %239 = vector.broadcast %cst_86 : f32 to vector<8x32xf32>
    %240 = arith.select %237, %238, %239 : vector<8x32xi1>, vector<8x32xf32>
    %241 = arith.index_cast %c4_i32 : i32 to index
    %c0_87 = arith.constant 0 : index
    %c0_88 = arith.constant 0 : index
    %242 = vector.load %arg13[%241, %c0_87, %c0_88] : memref<16x8x64xf32, #tpu.memory_space<vmem>>, vector<1x8x32xf32>
    %243 = vector.shape_cast %242 : vector<1x8x32xf32> to vector<8x32xf32>
    %244 = vector.shape_cast %240 : vector<8x32xf32> to vector<1x8x32xf32>
    tpu.vector_store %arg13[%241, %c0_87, %c0_88], %244 {strides = array<i32>} : memref<16x8x64xf32, #tpu.memory_space<vmem>>, vector<1x8x32xf32>,
    %245 = vector.extract_strided_slice %236 {offsets = [0, 32], sizes = [8, 32], strides = [1, 1]} : vector<8x64xi1> to vector<8x32xi1>
    %246 = vector.extract_strided_slice %231 {offsets = [0, 32], sizes = [8, 32], strides = [1, 1]} : vector<8x64xf32> to vector<8x32xf32>
    %cst_89 = arith.constant 0.000000e+00 : f32
    %247 = vector.broadcast %cst_89 : f32 to vector<8x32xf32>
    %248 = arith.select %245, %246, %247 : vector<8x32xi1>, vector<8x32xf32>
    %249 = arith.index_cast %207 : i32 to index
    %c0_90 = arith.constant 0 : index
    %c32_91 = arith.constant 32 : index
    %250 = vector.load %arg13[%249, %c0_90, %c32_91] : memref<16x8x64xf32, #tpu.memory_space<vmem>>, vector<1x8x32xf32>
    %251 = vector.shape_cast %250 : vector<1x8x32xf32> to vector<8x32xf32>
    %252 = vector.shape_cast %248 : vector<8x32xf32> to vector<1x8x32xf32>
    tpu.vector_store %arg13[%249, %c0_90, %c32_91], %252 {strides = array<i32>} : memref<16x8x64xf32, #tpu.memory_space<vmem>>, vector<1x8x32xf32>,
    %253 = arith.select %236, %231, %205 : vector<8x64xi1>, vector<8x64xf32>
    %254 = arith.select %236, %229, %206 : vector<8x64xi1>, vector<8x64xf32>
    %c5_i32 = arith.constant 5 : i32
    %c15_i32_92 = arith.constant 15 : i32
    %255 = arith.subi %c15_i32_92, %c5_i32 : i32
    %256 = arith.index_cast %c5_i32 : i32 to index
    %c0_93 = arith.constant 0 : index
    %c0_94 = arith.constant 0 : index
    %257 = vector.load %arg12[%256, %c0_93, %c0_94] : memref<16x8x256xf32, #tpu.memory_space<vmem>>, vector<1x8x256xf32>
    %258 = vector.shape_cast %257 : vector<1x8x256xf32> to vector<8x256xf32>
    %259 = arith.index_cast %255 : i32 to index
    %c0_95 = arith.constant 0 : index
    %c0_96 = arith.constant 0 : index
    %260 = vector.load %arg12[%259, %c0_95, %c0_96] : memref<16x8x256xf32, #tpu.memory_space<vmem>>, vector<1x8x256xf32>
    %261 = vector.shape_cast %260 : vector<1x8x256xf32> to vector<8x256xf32>
    %262 = arith.select %4, %258, %261 : vector<8x256xi1>, vector<8x256xf32>
    %cst_97 = arith.constant dense<0.000000e+00> : vector<8x256xf32>
    %263 = tpu.matmul %253, %13, %cst_97 {dimension_numbers = #tpu.dot_dimension_numbers<[1], [0], [0], [1], [0, 0, 1, 1], [], []>} : vector<8x64xf32>, vector<64x256xf32>, vector<8x256xf32> -> vector<8x256xf32>
    %264 = arith.addf %262, %263 : vector<8x256xf32>
    %265 = arith.negf %264 : vector<8x256xf32>
    %266 = math.exp %265 : vector<8x256xf32>
    %cst_98 = arith.constant 1.000000e+00 : f32
    %267 = vector.broadcast %cst_98 : f32 to vector<8x256xf32>
    %268 = arith.addf %267, %266 : vector<8x256xf32>
    %269 = arith.divf %267, %268 : vector<8x256xf32>
    %270 = vector.extract_strided_slice %269 {offsets = [0, 0], sizes = [8, 64], strides = [1, 1]} : vector<8x256xf32> to vector<8x64xf32>
    %271 = vector.extract_strided_slice %269 {offsets = [0, 64], sizes = [8, 64], strides = [1, 1]} : vector<8x256xf32> to vector<8x64xf32>
    %272 = vector.extract_strided_slice %264 {offsets = [0, 128], sizes = [8, 64], strides = [1, 1]} : vector<8x256xf32> to vector<8x64xf32>
    %273 = math.tanh %272 : vector<8x64xf32>
    %274 = vector.extract_strided_slice %269 {offsets = [0, 192], sizes = [8, 64], strides = [1, 1]} : vector<8x256xf32> to vector<8x64xf32>
    %275 = arith.mulf %271, %254 : vector<8x64xf32>
    %276 = arith.mulf %270, %273 : vector<8x64xf32>
    %277 = arith.addf %275, %276 : vector<8x64xf32>
    %278 = math.tanh %277 : vector<8x64xf32>
    %279 = arith.mulf %274, %278 : vector<8x64xf32>
    %280 = arith.index_cast %c5_i32 : i32 to index
    %c0_99 = arith.constant 0 : index
    %c0_100 = arith.constant 0 : index
    %281 = vector.load %arg1[%280, %c0_99, %c0_100] : memref<16x8x64xi32, #tpu.memory_space<vmem>>, vector<1x8x64xi32>
    %282 = vector.shape_cast %281 : vector<1x8x64xi32> to vector<8x64xi32>
    %c0_i32_101 = arith.constant 0 : i32
    %283 = vector.broadcast %c0_i32_101 : i32 to vector<8x64xi32>
    %284 = arith.cmpi ne, %282, %283 : vector<8x64xi32>
    %285 = vector.extract_strided_slice %284 {offsets = [0, 0], sizes = [8, 32], strides = [1, 1]} : vector<8x64xi1> to vector<8x32xi1>
    %286 = vector.extract_strided_slice %279 {offsets = [0, 0], sizes = [8, 32], strides = [1, 1]} : vector<8x64xf32> to vector<8x32xf32>
    %cst_102 = arith.constant 0.000000e+00 : f32
    %287 = vector.broadcast %cst_102 : f32 to vector<8x32xf32>
    %288 = arith.select %285, %286, %287 : vector<8x32xi1>, vector<8x32xf32>
    %289 = arith.index_cast %c5_i32 : i32 to index
    %c0_103 = arith.constant 0 : index
    %c0_104 = arith.constant 0 : index
    %290 = vector.load %arg13[%289, %c0_103, %c0_104] : memref<16x8x64xf32, #tpu.memory_space<vmem>>, vector<1x8x32xf32>
    %291 = vector.shape_cast %290 : vector<1x8x32xf32> to vector<8x32xf32>
    %292 = vector.shape_cast %288 : vector<8x32xf32> to vector<1x8x32xf32>
    tpu.vector_store %arg13[%289, %c0_103, %c0_104], %292 {strides = array<i32>} : memref<16x8x64xf32, #tpu.memory_space<vmem>>, vector<1x8x32xf32>,
    %293 = vector.extract_strided_slice %284 {offsets = [0, 32], sizes = [8, 32], strides = [1, 1]} : vector<8x64xi1> to vector<8x32xi1>
    %294 = vector.extract_strided_slice %279 {offsets = [0, 32], sizes = [8, 32], strides = [1, 1]} : vector<8x64xf32> to vector<8x32xf32>
    %cst_105 = arith.constant 0.000000e+00 : f32
    %295 = vector.broadcast %cst_105 : f32 to vector<8x32xf32>
    %296 = arith.select %293, %294, %295 : vector<8x32xi1>, vector<8x32xf32>
    %297 = arith.index_cast %255 : i32 to index
    %c0_106 = arith.constant 0 : index
    %c32_107 = arith.constant 32 : index
    %298 = vector.load %arg13[%297, %c0_106, %c32_107] : memref<16x8x64xf32, #tpu.memory_space<vmem>>, vector<1x8x32xf32>
    %299 = vector.shape_cast %298 : vector<1x8x32xf32> to vector<8x32xf32>
    %300 = vector.shape_cast %296 : vector<8x32xf32> to vector<1x8x32xf32>
    tpu.vector_store %arg13[%297, %c0_106, %c32_107], %300 {strides = array<i32>} : memref<16x8x64xf32, #tpu.memory_space<vmem>>, vector<1x8x32xf32>,
    %301 = arith.select %284, %279, %253 : vector<8x64xi1>, vector<8x64xf32>
    %302 = arith.select %284, %277, %254 : vector<8x64xi1>, vector<8x64xf32>
    %c6_i32 = arith.constant 6 : i32
    %c15_i32_108 = arith.constant 15 : i32
    %303 = arith.subi %c15_i32_108, %c6_i32 : i32
    %304 = arith.index_cast %c6_i32 : i32 to index
    %c0_109 = arith.constant 0 : index
    %c0_110 = arith.constant 0 : index
    %305 = vector.load %arg12[%304, %c0_109, %c0_110] : memref<16x8x256xf32, #tpu.memory_space<vmem>>, vector<1x8x256xf32>
    %306 = vector.shape_cast %305 : vector<1x8x256xf32> to vector<8x256xf32>
    %307 = arith.index_cast %303 : i32 to index
    %c0_111 = arith.constant 0 : index
    %c0_112 = arith.constant 0 : index
    %308 = vector.load %arg12[%307, %c0_111, %c0_112] : memref<16x8x256xf32, #tpu.memory_space<vmem>>, vector<1x8x256xf32>
    %309 = vector.shape_cast %308 : vector<1x8x256xf32> to vector<8x256xf32>
    %310 = arith.select %4, %306, %309 : vector<8x256xi1>, vector<8x256xf32>
    %cst_113 = arith.constant dense<0.000000e+00> : vector<8x256xf32>
    %311 = tpu.matmul %301, %13, %cst_113 {dimension_numbers = #tpu.dot_dimension_numbers<[1], [0], [0], [1], [0, 0, 1, 1], [], []>} : vector<8x64xf32>, vector<64x256xf32>, vector<8x256xf32> -> vector<8x256xf32>
    %312 = arith.addf %310, %311 : vector<8x256xf32>
    %313 = arith.negf %312 : vector<8x256xf32>
    %314 = math.exp %313 : vector<8x256xf32>
    %cst_114 = arith.constant 1.000000e+00 : f32
    %315 = vector.broadcast %cst_114 : f32 to vector<8x256xf32>
    %316 = arith.addf %315, %314 : vector<8x256xf32>
    %317 = arith.divf %315, %316 : vector<8x256xf32>
    %318 = vector.extract_strided_slice %317 {offsets = [0, 0], sizes = [8, 64], strides = [1, 1]} : vector<8x256xf32> to vector<8x64xf32>
    %319 = vector.extract_strided_slice %317 {offsets = [0, 64], sizes = [8, 64], strides = [1, 1]} : vector<8x256xf32> to vector<8x64xf32>
    %320 = vector.extract_strided_slice %312 {offsets = [0, 128], sizes = [8, 64], strides = [1, 1]} : vector<8x256xf32> to vector<8x64xf32>
    %321 = math.tanh %320 : vector<8x64xf32>
    %322 = vector.extract_strided_slice %317 {offsets = [0, 192], sizes = [8, 64], strides = [1, 1]} : vector<8x256xf32> to vector<8x64xf32>
    %323 = arith.mulf %319, %302 : vector<8x64xf32>
    %324 = arith.mulf %318, %321 : vector<8x64xf32>
    %325 = arith.addf %323, %324 : vector<8x64xf32>
    %326 = math.tanh %325 : vector<8x64xf32>
    %327 = arith.mulf %322, %326 : vector<8x64xf32>
    %328 = arith.index_cast %c6_i32 : i32 to index
    %c0_115 = arith.constant 0 : index
    %c0_116 = arith.constant 0 : index
    %329 = vector.load %arg1[%328, %c0_115, %c0_116] : memref<16x8x64xi32, #tpu.memory_space<vmem>>, vector<1x8x64xi32>
    %330 = vector.shape_cast %329 : vector<1x8x64xi32> to vector<8x64xi32>
    %c0_i32_117 = arith.constant 0 : i32
    %331 = vector.broadcast %c0_i32_117 : i32 to vector<8x64xi32>
    %332 = arith.cmpi ne, %330, %331 : vector<8x64xi32>
    %333 = vector.extract_strided_slice %332 {offsets = [0, 0], sizes = [8, 32], strides = [1, 1]} : vector<8x64xi1> to vector<8x32xi1>
    %334 = vector.extract_strided_slice %327 {offsets = [0, 0], sizes = [8, 32], strides = [1, 1]} : vector<8x64xf32> to vector<8x32xf32>
    %cst_118 = arith.constant 0.000000e+00 : f32
    %335 = vector.broadcast %cst_118 : f32 to vector<8x32xf32>
    %336 = arith.select %333, %334, %335 : vector<8x32xi1>, vector<8x32xf32>
    %337 = arith.index_cast %c6_i32 : i32 to index
    %c0_119 = arith.constant 0 : index
    %c0_120 = arith.constant 0 : index
    %338 = vector.load %arg13[%337, %c0_119, %c0_120] : memref<16x8x64xf32, #tpu.memory_space<vmem>>, vector<1x8x32xf32>
    %339 = vector.shape_cast %338 : vector<1x8x32xf32> to vector<8x32xf32>
    %340 = vector.shape_cast %336 : vector<8x32xf32> to vector<1x8x32xf32>
    tpu.vector_store %arg13[%337, %c0_119, %c0_120], %340 {strides = array<i32>} : memref<16x8x64xf32, #tpu.memory_space<vmem>>, vector<1x8x32xf32>,
    %341 = vector.extract_strided_slice %332 {offsets = [0, 32], sizes = [8, 32], strides = [1, 1]} : vector<8x64xi1> to vector<8x32xi1>
    %342 = vector.extract_strided_slice %327 {offsets = [0, 32], sizes = [8, 32], strides = [1, 1]} : vector<8x64xf32> to vector<8x32xf32>
    %cst_121 = arith.constant 0.000000e+00 : f32
    %343 = vector.broadcast %cst_121 : f32 to vector<8x32xf32>
    %344 = arith.select %341, %342, %343 : vector<8x32xi1>, vector<8x32xf32>
    %345 = arith.index_cast %303 : i32 to index
    %c0_122 = arith.constant 0 : index
    %c32_123 = arith.constant 32 : index
    %346 = vector.load %arg13[%345, %c0_122, %c32_123] : memref<16x8x64xf32, #tpu.memory_space<vmem>>, vector<1x8x32xf32>
    %347 = vector.shape_cast %346 : vector<1x8x32xf32> to vector<8x32xf32>
    %348 = vector.shape_cast %344 : vector<8x32xf32> to vector<1x8x32xf32>
    tpu.vector_store %arg13[%345, %c0_122, %c32_123], %348 {strides = array<i32>} : memref<16x8x64xf32, #tpu.memory_space<vmem>>, vector<1x8x32xf32>,
    %349 = arith.select %332, %327, %301 : vector<8x64xi1>, vector<8x64xf32>
    %350 = arith.select %332, %325, %302 : vector<8x64xi1>, vector<8x64xf32>
    %c7_i32 = arith.constant 7 : i32
    %c15_i32_124 = arith.constant 15 : i32
    %351 = arith.subi %c15_i32_124, %c7_i32 : i32
    %352 = arith.index_cast %c7_i32 : i32 to index
    %c0_125 = arith.constant 0 : index
    %c0_126 = arith.constant 0 : index
    %353 = vector.load %arg12[%352, %c0_125, %c0_126] : memref<16x8x256xf32, #tpu.memory_space<vmem>>, vector<1x8x256xf32>
    %354 = vector.shape_cast %353 : vector<1x8x256xf32> to vector<8x256xf32>
    %355 = arith.index_cast %351 : i32 to index
    %c0_127 = arith.constant 0 : index
    %c0_128 = arith.constant 0 : index
    %356 = vector.load %arg12[%355, %c0_127, %c0_128] : memref<16x8x256xf32, #tpu.memory_space<vmem>>, vector<1x8x256xf32>
    %357 = vector.shape_cast %356 : vector<1x8x256xf32> to vector<8x256xf32>
    %358 = arith.select %4, %354, %357 : vector<8x256xi1>, vector<8x256xf32>
    %cst_129 = arith.constant dense<0.000000e+00> : vector<8x256xf32>
    %359 = tpu.matmul %349, %13, %cst_129 {dimension_numbers = #tpu.dot_dimension_numbers<[1], [0], [0], [1], [0, 0, 1, 1], [], []>} : vector<8x64xf32>, vector<64x256xf32>, vector<8x256xf32> -> vector<8x256xf32>
    %360 = arith.addf %358, %359 : vector<8x256xf32>
    %361 = arith.negf %360 : vector<8x256xf32>
    %362 = math.exp %361 : vector<8x256xf32>
    %cst_130 = arith.constant 1.000000e+00 : f32
    %363 = vector.broadcast %cst_130 : f32 to vector<8x256xf32>
    %364 = arith.addf %363, %362 : vector<8x256xf32>
    %365 = arith.divf %363, %364 : vector<8x256xf32>
    %366 = vector.extract_strided_slice %365 {offsets = [0, 0], sizes = [8, 64], strides = [1, 1]} : vector<8x256xf32> to vector<8x64xf32>
    %367 = vector.extract_strided_slice %365 {offsets = [0, 64], sizes = [8, 64], strides = [1, 1]} : vector<8x256xf32> to vector<8x64xf32>
    %368 = vector.extract_strided_slice %360 {offsets = [0, 128], sizes = [8, 64], strides = [1, 1]} : vector<8x256xf32> to vector<8x64xf32>
    %369 = math.tanh %368 : vector<8x64xf32>
    %370 = vector.extract_strided_slice %365 {offsets = [0, 192], sizes = [8, 64], strides = [1, 1]} : vector<8x256xf32> to vector<8x64xf32>
    %371 = arith.mulf %367, %350 : vector<8x64xf32>
    %372 = arith.mulf %366, %369 : vector<8x64xf32>
    %373 = arith.addf %371, %372 : vector<8x64xf32>
    %374 = math.tanh %373 : vector<8x64xf32>
    %375 = arith.mulf %370, %374 : vector<8x64xf32>
    %376 = arith.index_cast %c7_i32 : i32 to index
    %c0_131 = arith.constant 0 : index
    %c0_132 = arith.constant 0 : index
    %377 = vector.load %arg1[%376, %c0_131, %c0_132] : memref<16x8x64xi32, #tpu.memory_space<vmem>>, vector<1x8x64xi32>
    %378 = vector.shape_cast %377 : vector<1x8x64xi32> to vector<8x64xi32>
    %c0_i32_133 = arith.constant 0 : i32
    %379 = vector.broadcast %c0_i32_133 : i32 to vector<8x64xi32>
    %380 = arith.cmpi ne, %378, %379 : vector<8x64xi32>
    %381 = vector.extract_strided_slice %380 {offsets = [0, 0], sizes = [8, 32], strides = [1, 1]} : vector<8x64xi1> to vector<8x32xi1>
    %382 = vector.extract_strided_slice %375 {offsets = [0, 0], sizes = [8, 32], strides = [1, 1]} : vector<8x64xf32> to vector<8x32xf32>
    %cst_134 = arith.constant 0.000000e+00 : f32
    %383 = vector.broadcast %cst_134 : f32 to vector<8x32xf32>
    %384 = arith.select %381, %382, %383 : vector<8x32xi1>, vector<8x32xf32>
    %385 = arith.index_cast %c7_i32 : i32 to index
    %c0_135 = arith.constant 0 : index
    %c0_136 = arith.constant 0 : index
    %386 = vector.load %arg13[%385, %c0_135, %c0_136] : memref<16x8x64xf32, #tpu.memory_space<vmem>>, vector<1x8x32xf32>
    %387 = vector.shape_cast %386 : vector<1x8x32xf32> to vector<8x32xf32>
    %388 = vector.shape_cast %384 : vector<8x32xf32> to vector<1x8x32xf32>
    tpu.vector_store %arg13[%385, %c0_135, %c0_136], %388 {strides = array<i32>} : memref<16x8x64xf32, #tpu.memory_space<vmem>>, vector<1x8x32xf32>,
    %389 = vector.extract_strided_slice %380 {offsets = [0, 32], sizes = [8, 32], strides = [1, 1]} : vector<8x64xi1> to vector<8x32xi1>
    %390 = vector.extract_strided_slice %375 {offsets = [0, 32], sizes = [8, 32], strides = [1, 1]} : vector<8x64xf32> to vector<8x32xf32>
    %cst_137 = arith.constant 0.000000e+00 : f32
    %391 = vector.broadcast %cst_137 : f32 to vector<8x32xf32>
    %392 = arith.select %389, %390, %391 : vector<8x32xi1>, vector<8x32xf32>
    %393 = arith.index_cast %351 : i32 to index
    %c0_138 = arith.constant 0 : index
    %c32_139 = arith.constant 32 : index
    %394 = vector.load %arg13[%393, %c0_138, %c32_139] : memref<16x8x64xf32, #tpu.memory_space<vmem>>, vector<1x8x32xf32>
    %395 = vector.shape_cast %394 : vector<1x8x32xf32> to vector<8x32xf32>
    %396 = vector.shape_cast %392 : vector<8x32xf32> to vector<1x8x32xf32>
    tpu.vector_store %arg13[%393, %c0_138, %c32_139], %396 {strides = array<i32>} : memref<16x8x64xf32, #tpu.memory_space<vmem>>, vector<1x8x32xf32>,
    %397 = arith.select %380, %375, %349 : vector<8x64xi1>, vector<8x64xf32>
    %398 = arith.select %380, %373, %350 : vector<8x64xi1>, vector<8x64xf32>
    %c8_i32 = arith.constant 8 : i32
    %c15_i32_140 = arith.constant 15 : i32
    %399 = arith.subi %c15_i32_140, %c8_i32 : i32
    %400 = arith.index_cast %c8_i32 : i32 to index
    %c0_141 = arith.constant 0 : index
    %c0_142 = arith.constant 0 : index
    %401 = vector.load %arg12[%400, %c0_141, %c0_142] : memref<16x8x256xf32, #tpu.memory_space<vmem>>, vector<1x8x256xf32>
    %402 = vector.shape_cast %401 : vector<1x8x256xf32> to vector<8x256xf32>
    %403 = arith.index_cast %399 : i32 to index
    %c0_143 = arith.constant 0 : index
    %c0_144 = arith.constant 0 : index
    %404 = vector.load %arg12[%403, %c0_143, %c0_144] : memref<16x8x256xf32, #tpu.memory_space<vmem>>, vector<1x8x256xf32>
    %405 = vector.shape_cast %404 : vector<1x8x256xf32> to vector<8x256xf32>
    %406 = arith.select %4, %402, %405 : vector<8x256xi1>, vector<8x256xf32>
    %cst_145 = arith.constant dense<0.000000e+00> : vector<8x256xf32>
    %407 = tpu.matmul %397, %13, %cst_145 {dimension_numbers = #tpu.dot_dimension_numbers<[1], [0], [0], [1], [0, 0, 1, 1], [], []>} : vector<8x64xf32>, vector<64x256xf32>, vector<8x256xf32> -> vector<8x256xf32>
    %408 = arith.addf %406, %407 : vector<8x256xf32>
    %409 = arith.negf %408 : vector<8x256xf32>
    %410 = math.exp %409 : vector<8x256xf32>
    %cst_146 = arith.constant 1.000000e+00 : f32
    %411 = vector.broadcast %cst_146 : f32 to vector<8x256xf32>
    %412 = arith.addf %411, %410 : vector<8x256xf32>
    %413 = arith.divf %411, %412 : vector<8x256xf32>
    %414 = vector.extract_strided_slice %413 {offsets = [0, 0], sizes = [8, 64], strides = [1, 1]} : vector<8x256xf32> to vector<8x64xf32>
    %415 = vector.extract_strided_slice %413 {offsets = [0, 64], sizes = [8, 64], strides = [1, 1]} : vector<8x256xf32> to vector<8x64xf32>
    %416 = vector.extract_strided_slice %408 {offsets = [0, 128], sizes = [8, 64], strides = [1, 1]} : vector<8x256xf32> to vector<8x64xf32>
    %417 = math.tanh %416 : vector<8x64xf32>
    %418 = vector.extract_strided_slice %413 {offsets = [0, 192], sizes = [8, 64], strides = [1, 1]} : vector<8x256xf32> to vector<8x64xf32>
    %419 = arith.mulf %415, %398 : vector<8x64xf32>
    %420 = arith.mulf %414, %417 : vector<8x64xf32>
    %421 = arith.addf %419, %420 : vector<8x64xf32>
    %422 = math.tanh %421 : vector<8x64xf32>
    %423 = arith.mulf %418, %422 : vector<8x64xf32>
    %424 = arith.index_cast %c8_i32 : i32 to index
    %c0_147 = arith.constant 0 : index
    %c0_148 = arith.constant 0 : index
    %425 = vector.load %arg1[%424, %c0_147, %c0_148] : memref<16x8x64xi32, #tpu.memory_space<vmem>>, vector<1x8x64xi32>
    %426 = vector.shape_cast %425 : vector<1x8x64xi32> to vector<8x64xi32>
    %c0_i32_149 = arith.constant 0 : i32
    %427 = vector.broadcast %c0_i32_149 : i32 to vector<8x64xi32>
    %428 = arith.cmpi ne, %426, %427 : vector<8x64xi32>
    %429 = vector.extract_strided_slice %428 {offsets = [0, 0], sizes = [8, 32], strides = [1, 1]} : vector<8x64xi1> to vector<8x32xi1>
    %430 = vector.extract_strided_slice %423 {offsets = [0, 0], sizes = [8, 32], strides = [1, 1]} : vector<8x64xf32> to vector<8x32xf32>
    %cst_150 = arith.constant 0.000000e+00 : f32
    %431 = vector.broadcast %cst_150 : f32 to vector<8x32xf32>
    %432 = arith.select %429, %430, %431 : vector<8x32xi1>, vector<8x32xf32>
    %433 = arith.index_cast %c8_i32 : i32 to index
    %c0_151 = arith.constant 0 : index
    %c0_152 = arith.constant 0 : index
    %434 = vector.load %arg13[%433, %c0_151, %c0_152] : memref<16x8x64xf32, #tpu.memory_space<vmem>>, vector<1x8x32xf32>
    %435 = vector.shape_cast %434 : vector<1x8x32xf32> to vector<8x32xf32>
    %436 = vector.shape_cast %432 : vector<8x32xf32> to vector<1x8x32xf32>
    tpu.vector_store %arg13[%433, %c0_151, %c0_152], %436 {strides = array<i32>} : memref<16x8x64xf32, #tpu.memory_space<vmem>>, vector<1x8x32xf32>,
    %437 = vector.extract_strided_slice %428 {offsets = [0, 32], sizes = [8, 32], strides = [1, 1]} : vector<8x64xi1> to vector<8x32xi1>
    %438 = vector.extract_strided_slice %423 {offsets = [0, 32], sizes = [8, 32], strides = [1, 1]} : vector<8x64xf32> to vector<8x32xf32>
    %cst_153 = arith.constant 0.000000e+00 : f32
    %439 = vector.broadcast %cst_153 : f32 to vector<8x32xf32>
    %440 = arith.select %437, %438, %439 : vector<8x32xi1>, vector<8x32xf32>
    %441 = arith.index_cast %399 : i32 to index
    %c0_154 = arith.constant 0 : index
    %c32_155 = arith.constant 32 : index
    %442 = vector.load %arg13[%441, %c0_154, %c32_155] : memref<16x8x64xf32, #tpu.memory_space<vmem>>, vector<1x8x32xf32>
    %443 = vector.shape_cast %442 : vector<1x8x32xf32> to vector<8x32xf32>
    %444 = vector.shape_cast %440 : vector<8x32xf32> to vector<1x8x32xf32>
    tpu.vector_store %arg13[%441, %c0_154, %c32_155], %444 {strides = array<i32>} : memref<16x8x64xf32, #tpu.memory_space<vmem>>, vector<1x8x32xf32>,
    %445 = arith.select %428, %423, %397 : vector<8x64xi1>, vector<8x64xf32>
    %446 = arith.select %428, %421, %398 : vector<8x64xi1>, vector<8x64xf32>
    %c9_i32 = arith.constant 9 : i32
    %c15_i32_156 = arith.constant 15 : i32
    %447 = arith.subi %c15_i32_156, %c9_i32 : i32
    %448 = arith.index_cast %c9_i32 : i32 to index
    %c0_157 = arith.constant 0 : index
    %c0_158 = arith.constant 0 : index
    %449 = vector.load %arg12[%448, %c0_157, %c0_158] : memref<16x8x256xf32, #tpu.memory_space<vmem>>, vector<1x8x256xf32>
    %450 = vector.shape_cast %449 : vector<1x8x256xf32> to vector<8x256xf32>
    %451 = arith.index_cast %447 : i32 to index
    %c0_159 = arith.constant 0 : index
    %c0_160 = arith.constant 0 : index
    %452 = vector.load %arg12[%451, %c0_159, %c0_160] : memref<16x8x256xf32, #tpu.memory_space<vmem>>, vector<1x8x256xf32>
    %453 = vector.shape_cast %452 : vector<1x8x256xf32> to vector<8x256xf32>
    %454 = arith.select %4, %450, %453 : vector<8x256xi1>, vector<8x256xf32>
    %cst_161 = arith.constant dense<0.000000e+00> : vector<8x256xf32>
    %455 = tpu.matmul %445, %13, %cst_161 {dimension_numbers = #tpu.dot_dimension_numbers<[1], [0], [0], [1], [0, 0, 1, 1], [], []>} : vector<8x64xf32>, vector<64x256xf32>, vector<8x256xf32> -> vector<8x256xf32>
    %456 = arith.addf %454, %455 : vector<8x256xf32>
    %457 = arith.negf %456 : vector<8x256xf32>
    %458 = math.exp %457 : vector<8x256xf32>
    %cst_162 = arith.constant 1.000000e+00 : f32
    %459 = vector.broadcast %cst_162 : f32 to vector<8x256xf32>
    %460 = arith.addf %459, %458 : vector<8x256xf32>
    %461 = arith.divf %459, %460 : vector<8x256xf32>
    %462 = vector.extract_strided_slice %461 {offsets = [0, 0], sizes = [8, 64], strides = [1, 1]} : vector<8x256xf32> to vector<8x64xf32>
    %463 = vector.extract_strided_slice %461 {offsets = [0, 64], sizes = [8, 64], strides = [1, 1]} : vector<8x256xf32> to vector<8x64xf32>
    %464 = vector.extract_strided_slice %456 {offsets = [0, 128], sizes = [8, 64], strides = [1, 1]} : vector<8x256xf32> to vector<8x64xf32>
    %465 = math.tanh %464 : vector<8x64xf32>
    %466 = vector.extract_strided_slice %461 {offsets = [0, 192], sizes = [8, 64], strides = [1, 1]} : vector<8x256xf32> to vector<8x64xf32>
    %467 = arith.mulf %463, %446 : vector<8x64xf32>
    %468 = arith.mulf %462, %465 : vector<8x64xf32>
    %469 = arith.addf %467, %468 : vector<8x64xf32>
    %470 = math.tanh %469 : vector<8x64xf32>
    %471 = arith.mulf %466, %470 : vector<8x64xf32>
    %472 = arith.index_cast %c9_i32 : i32 to index
    %c0_163 = arith.constant 0 : index
    %c0_164 = arith.constant 0 : index
    %473 = vector.load %arg1[%472, %c0_163, %c0_164] : memref<16x8x64xi32, #tpu.memory_space<vmem>>, vector<1x8x64xi32>
    %474 = vector.shape_cast %473 : vector<1x8x64xi32> to vector<8x64xi32>
    %c0_i32_165 = arith.constant 0 : i32
    %475 = vector.broadcast %c0_i32_165 : i32 to vector<8x64xi32>
    %476 = arith.cmpi ne, %474, %475 : vector<8x64xi32>
    %477 = vector.extract_strided_slice %476 {offsets = [0, 0], sizes = [8, 32], strides = [1, 1]} : vector<8x64xi1> to vector<8x32xi1>
    %478 = vector.extract_strided_slice %471 {offsets = [0, 0], sizes = [8, 32], strides = [1, 1]} : vector<8x64xf32> to vector<8x32xf32>
    %cst_166 = arith.constant 0.000000e+00 : f32
    %479 = vector.broadcast %cst_166 : f32 to vector<8x32xf32>
    %480 = arith.select %477, %478, %479 : vector<8x32xi1>, vector<8x32xf32>
    %481 = arith.index_cast %c9_i32 : i32 to index
    %c0_167 = arith.constant 0 : index
    %c0_168 = arith.constant 0 : index
    %482 = vector.load %arg13[%481, %c0_167, %c0_168] : memref<16x8x64xf32, #tpu.memory_space<vmem>>, vector<1x8x32xf32>
    %483 = vector.shape_cast %482 : vector<1x8x32xf32> to vector<8x32xf32>
    %484 = vector.shape_cast %480 : vector<8x32xf32> to vector<1x8x32xf32>
    tpu.vector_store %arg13[%481, %c0_167, %c0_168], %484 {strides = array<i32>} : memref<16x8x64xf32, #tpu.memory_space<vmem>>, vector<1x8x32xf32>,
    %485 = vector.extract_strided_slice %476 {offsets = [0, 32], sizes = [8, 32], strides = [1, 1]} : vector<8x64xi1> to vector<8x32xi1>
    %486 = vector.extract_strided_slice %471 {offsets = [0, 32], sizes = [8, 32], strides = [1, 1]} : vector<8x64xf32> to vector<8x32xf32>
    %cst_169 = arith.constant 0.000000e+00 : f32
    %487 = vector.broadcast %cst_169 : f32 to vector<8x32xf32>
    %488 = arith.select %485, %486, %487 : vector<8x32xi1>, vector<8x32xf32>
    %489 = arith.index_cast %447 : i32 to index
    %c0_170 = arith.constant 0 : index
    %c32_171 = arith.constant 32 : index
    %490 = vector.load %arg13[%489, %c0_170, %c32_171] : memref<16x8x64xf32, #tpu.memory_space<vmem>>, vector<1x8x32xf32>
    %491 = vector.shape_cast %490 : vector<1x8x32xf32> to vector<8x32xf32>
    %492 = vector.shape_cast %488 : vector<8x32xf32> to vector<1x8x32xf32>
    tpu.vector_store %arg13[%489, %c0_170, %c32_171], %492 {strides = array<i32>} : memref<16x8x64xf32, #tpu.memory_space<vmem>>, vector<1x8x32xf32>,
    %493 = arith.select %476, %471, %445 : vector<8x64xi1>, vector<8x64xf32>
    %494 = arith.select %476, %469, %446 : vector<8x64xi1>, vector<8x64xf32>
    %c10_i32 = arith.constant 10 : i32
    %c15_i32_172 = arith.constant 15 : i32
    %495 = arith.subi %c15_i32_172, %c10_i32 : i32
    %496 = arith.index_cast %c10_i32 : i32 to index
    %c0_173 = arith.constant 0 : index
    %c0_174 = arith.constant 0 : index
    %497 = vector.load %arg12[%496, %c0_173, %c0_174] : memref<16x8x256xf32, #tpu.memory_space<vmem>>, vector<1x8x256xf32>
    %498 = vector.shape_cast %497 : vector<1x8x256xf32> to vector<8x256xf32>
    %499 = arith.index_cast %495 : i32 to index
    %c0_175 = arith.constant 0 : index
    %c0_176 = arith.constant 0 : index
    %500 = vector.load %arg12[%499, %c0_175, %c0_176] : memref<16x8x256xf32, #tpu.memory_space<vmem>>, vector<1x8x256xf32>
    %501 = vector.shape_cast %500 : vector<1x8x256xf32> to vector<8x256xf32>
    %502 = arith.select %4, %498, %501 : vector<8x256xi1>, vector<8x256xf32>
    %cst_177 = arith.constant dense<0.000000e+00> : vector<8x256xf32>
    %503 = tpu.matmul %493, %13, %cst_177 {dimension_numbers = #tpu.dot_dimension_numbers<[1], [0], [0], [1], [0, 0, 1, 1], [], []>} : vector<8x64xf32>, vector<64x256xf32>, vector<8x256xf32> -> vector<8x256xf32>
    %504 = arith.addf %502, %503 : vector<8x256xf32>
    %505 = arith.negf %504 : vector<8x256xf32>
    %506 = math.exp %505 : vector<8x256xf32>
    %cst_178 = arith.constant 1.000000e+00 : f32
    %507 = vector.broadcast %cst_178 : f32 to vector<8x256xf32>
    %508 = arith.addf %507, %506 : vector<8x256xf32>
    %509 = arith.divf %507, %508 : vector<8x256xf32>
    %510 = vector.extract_strided_slice %509 {offsets = [0, 0], sizes = [8, 64], strides = [1, 1]} : vector<8x256xf32> to vector<8x64xf32>
    %511 = vector.extract_strided_slice %509 {offsets = [0, 64], sizes = [8, 64], strides = [1, 1]} : vector<8x256xf32> to vector<8x64xf32>
    %512 = vector.extract_strided_slice %504 {offsets = [0, 128], sizes = [8, 64], strides = [1, 1]} : vector<8x256xf32> to vector<8x64xf32>
    %513 = math.tanh %512 : vector<8x64xf32>
    %514 = vector.extract_strided_slice %509 {offsets = [0, 192], sizes = [8, 64], strides = [1, 1]} : vector<8x256xf32> to vector<8x64xf32>
    %515 = arith.mulf %511, %494 : vector<8x64xf32>
    %516 = arith.mulf %510, %513 : vector<8x64xf32>
    %517 = arith.addf %515, %516 : vector<8x64xf32>
    %518 = math.tanh %517 : vector<8x64xf32>
    %519 = arith.mulf %514, %518 : vector<8x64xf32>
    %520 = arith.index_cast %c10_i32 : i32 to index
    %c0_179 = arith.constant 0 : index
    %c0_180 = arith.constant 0 : index
    %521 = vector.load %arg1[%520, %c0_179, %c0_180] : memref<16x8x64xi32, #tpu.memory_space<vmem>>, vector<1x8x64xi32>
    %522 = vector.shape_cast %521 : vector<1x8x64xi32> to vector<8x64xi32>
    %c0_i32_181 = arith.constant 0 : i32
    %523 = vector.broadcast %c0_i32_181 : i32 to vector<8x64xi32>
    %524 = arith.cmpi ne, %522, %523 : vector<8x64xi32>
    %525 = vector.extract_strided_slice %524 {offsets = [0, 0], sizes = [8, 32], strides = [1, 1]} : vector<8x64xi1> to vector<8x32xi1>
    %526 = vector.extract_strided_slice %519 {offsets = [0, 0], sizes = [8, 32], strides = [1, 1]} : vector<8x64xf32> to vector<8x32xf32>
    %cst_182 = arith.constant 0.000000e+00 : f32
    %527 = vector.broadcast %cst_182 : f32 to vector<8x32xf32>
    %528 = arith.select %525, %526, %527 : vector<8x32xi1>, vector<8x32xf32>
    %529 = arith.index_cast %c10_i32 : i32 to index
    %c0_183 = arith.constant 0 : index
    %c0_184 = arith.constant 0 : index
    %530 = vector.load %arg13[%529, %c0_183, %c0_184] : memref<16x8x64xf32, #tpu.memory_space<vmem>>, vector<1x8x32xf32>
    %531 = vector.shape_cast %530 : vector<1x8x32xf32> to vector<8x32xf32>
    %532 = vector.shape_cast %528 : vector<8x32xf32> to vector<1x8x32xf32>
    tpu.vector_store %arg13[%529, %c0_183, %c0_184], %532 {strides = array<i32>} : memref<16x8x64xf32, #tpu.memory_space<vmem>>, vector<1x8x32xf32>,
    %533 = vector.extract_strided_slice %524 {offsets = [0, 32], sizes = [8, 32], strides = [1, 1]} : vector<8x64xi1> to vector<8x32xi1>
    %534 = vector.extract_strided_slice %519 {offsets = [0, 32], sizes = [8, 32], strides = [1, 1]} : vector<8x64xf32> to vector<8x32xf32>
    %cst_185 = arith.constant 0.000000e+00 : f32
    %535 = vector.broadcast %cst_185 : f32 to vector<8x32xf32>
    %536 = arith.select %533, %534, %535 : vector<8x32xi1>, vector<8x32xf32>
    %537 = arith.index_cast %495 : i32 to index
    %c0_186 = arith.constant 0 : index
    %c32_187 = arith.constant 32 : index
    %538 = vector.load %arg13[%537, %c0_186, %c32_187] : memref<16x8x64xf32, #tpu.memory_space<vmem>>, vector<1x8x32xf32>
    %539 = vector.shape_cast %538 : vector<1x8x32xf32> to vector<8x32xf32>
    %540 = vector.shape_cast %536 : vector<8x32xf32> to vector<1x8x32xf32>
    tpu.vector_store %arg13[%537, %c0_186, %c32_187], %540 {strides = array<i32>} : memref<16x8x64xf32, #tpu.memory_space<vmem>>, vector<1x8x32xf32>,
    %541 = arith.select %524, %519, %493 : vector<8x64xi1>, vector<8x64xf32>
    %542 = arith.select %524, %517, %494 : vector<8x64xi1>, vector<8x64xf32>
    %c11_i32 = arith.constant 11 : i32
    %c15_i32_188 = arith.constant 15 : i32
    %543 = arith.subi %c15_i32_188, %c11_i32 : i32
    %544 = arith.index_cast %c11_i32 : i32 to index
    %c0_189 = arith.constant 0 : index
    %c0_190 = arith.constant 0 : index
    %545 = vector.load %arg12[%544, %c0_189, %c0_190] : memref<16x8x256xf32, #tpu.memory_space<vmem>>, vector<1x8x256xf32>
    %546 = vector.shape_cast %545 : vector<1x8x256xf32> to vector<8x256xf32>
    %547 = arith.index_cast %543 : i32 to index
    %c0_191 = arith.constant 0 : index
    %c0_192 = arith.constant 0 : index
    %548 = vector.load %arg12[%547, %c0_191, %c0_192] : memref<16x8x256xf32, #tpu.memory_space<vmem>>, vector<1x8x256xf32>
    %549 = vector.shape_cast %548 : vector<1x8x256xf32> to vector<8x256xf32>
    %550 = arith.select %4, %546, %549 : vector<8x256xi1>, vector<8x256xf32>
    %cst_193 = arith.constant dense<0.000000e+00> : vector<8x256xf32>
    %551 = tpu.matmul %541, %13, %cst_193 {dimension_numbers = #tpu.dot_dimension_numbers<[1], [0], [0], [1], [0, 0, 1, 1], [], []>} : vector<8x64xf32>, vector<64x256xf32>, vector<8x256xf32> -> vector<8x256xf32>
    %552 = arith.addf %550, %551 : vector<8x256xf32>
    %553 = arith.negf %552 : vector<8x256xf32>
    %554 = math.exp %553 : vector<8x256xf32>
    %cst_194 = arith.constant 1.000000e+00 : f32
    %555 = vector.broadcast %cst_194 : f32 to vector<8x256xf32>
    %556 = arith.addf %555, %554 : vector<8x256xf32>
    %557 = arith.divf %555, %556 : vector<8x256xf32>
    %558 = vector.extract_strided_slice %557 {offsets = [0, 0], sizes = [8, 64], strides = [1, 1]} : vector<8x256xf32> to vector<8x64xf32>
    %559 = vector.extract_strided_slice %557 {offsets = [0, 64], sizes = [8, 64], strides = [1, 1]} : vector<8x256xf32> to vector<8x64xf32>
    %560 = vector.extract_strided_slice %552 {offsets = [0, 128], sizes = [8, 64], strides = [1, 1]} : vector<8x256xf32> to vector<8x64xf32>
    %561 = math.tanh %560 : vector<8x64xf32>
    %562 = vector.extract_strided_slice %557 {offsets = [0, 192], sizes = [8, 64], strides = [1, 1]} : vector<8x256xf32> to vector<8x64xf32>
    %563 = arith.mulf %559, %542 : vector<8x64xf32>
    %564 = arith.mulf %558, %561 : vector<8x64xf32>
    %565 = arith.addf %563, %564 : vector<8x64xf32>
    %566 = math.tanh %565 : vector<8x64xf32>
    %567 = arith.mulf %562, %566 : vector<8x64xf32>
    %568 = arith.index_cast %c11_i32 : i32 to index
    %c0_195 = arith.constant 0 : index
    %c0_196 = arith.constant 0 : index
    %569 = vector.load %arg1[%568, %c0_195, %c0_196] : memref<16x8x64xi32, #tpu.memory_space<vmem>>, vector<1x8x64xi32>
    %570 = vector.shape_cast %569 : vector<1x8x64xi32> to vector<8x64xi32>
    %c0_i32_197 = arith.constant 0 : i32
    %571 = vector.broadcast %c0_i32_197 : i32 to vector<8x64xi32>
    %572 = arith.cmpi ne, %570, %571 : vector<8x64xi32>
    %573 = vector.extract_strided_slice %572 {offsets = [0, 0], sizes = [8, 32], strides = [1, 1]} : vector<8x64xi1> to vector<8x32xi1>
    %574 = vector.extract_strided_slice %567 {offsets = [0, 0], sizes = [8, 32], strides = [1, 1]} : vector<8x64xf32> to vector<8x32xf32>
    %cst_198 = arith.constant 0.000000e+00 : f32
    %575 = vector.broadcast %cst_198 : f32 to vector<8x32xf32>
    %576 = arith.select %573, %574, %575 : vector<8x32xi1>, vector<8x32xf32>
    %577 = arith.index_cast %c11_i32 : i32 to index
    %c0_199 = arith.constant 0 : index
    %c0_200 = arith.constant 0 : index
    %578 = vector.load %arg13[%577, %c0_199, %c0_200] : memref<16x8x64xf32, #tpu.memory_space<vmem>>, vector<1x8x32xf32>
    %579 = vector.shape_cast %578 : vector<1x8x32xf32> to vector<8x32xf32>
    %580 = vector.shape_cast %576 : vector<8x32xf32> to vector<1x8x32xf32>
    tpu.vector_store %arg13[%577, %c0_199, %c0_200], %580 {strides = array<i32>} : memref<16x8x64xf32, #tpu.memory_space<vmem>>, vector<1x8x32xf32>,
    %581 = vector.extract_strided_slice %572 {offsets = [0, 32], sizes = [8, 32], strides = [1, 1]} : vector<8x64xi1> to vector<8x32xi1>
    %582 = vector.extract_strided_slice %567 {offsets = [0, 32], sizes = [8, 32], strides = [1, 1]} : vector<8x64xf32> to vector<8x32xf32>
    %cst_201 = arith.constant 0.000000e+00 : f32
    %583 = vector.broadcast %cst_201 : f32 to vector<8x32xf32>
    %584 = arith.select %581, %582, %583 : vector<8x32xi1>, vector<8x32xf32>
    %585 = arith.index_cast %543 : i32 to index
    %c0_202 = arith.constant 0 : index
    %c32_203 = arith.constant 32 : index
    %586 = vector.load %arg13[%585, %c0_202, %c32_203] : memref<16x8x64xf32, #tpu.memory_space<vmem>>, vector<1x8x32xf32>
    %587 = vector.shape_cast %586 : vector<1x8x32xf32> to vector<8x32xf32>
    %588 = vector.shape_cast %584 : vector<8x32xf32> to vector<1x8x32xf32>
    tpu.vector_store %arg13[%585, %c0_202, %c32_203], %588 {strides = array<i32>} : memref<16x8x64xf32, #tpu.memory_space<vmem>>, vector<1x8x32xf32>,
    %589 = arith.select %572, %567, %541 : vector<8x64xi1>, vector<8x64xf32>
    %590 = arith.select %572, %565, %542 : vector<8x64xi1>, vector<8x64xf32>
    %c12_i32 = arith.constant 12 : i32
    %c15_i32_204 = arith.constant 15 : i32
    %591 = arith.subi %c15_i32_204, %c12_i32 : i32
    %592 = arith.index_cast %c12_i32 : i32 to index
    %c0_205 = arith.constant 0 : index
    %c0_206 = arith.constant 0 : index
    %593 = vector.load %arg12[%592, %c0_205, %c0_206] : memref<16x8x256xf32, #tpu.memory_space<vmem>>, vector<1x8x256xf32>
    %594 = vector.shape_cast %593 : vector<1x8x256xf32> to vector<8x256xf32>
    %595 = arith.index_cast %591 : i32 to index
    %c0_207 = arith.constant 0 : index
    %c0_208 = arith.constant 0 : index
    %596 = vector.load %arg12[%595, %c0_207, %c0_208] : memref<16x8x256xf32, #tpu.memory_space<vmem>>, vector<1x8x256xf32>
    %597 = vector.shape_cast %596 : vector<1x8x256xf32> to vector<8x256xf32>
    %598 = arith.select %4, %594, %597 : vector<8x256xi1>, vector<8x256xf32>
    %cst_209 = arith.constant dense<0.000000e+00> : vector<8x256xf32>
    %599 = tpu.matmul %589, %13, %cst_209 {dimension_numbers = #tpu.dot_dimension_numbers<[1], [0], [0], [1], [0, 0, 1, 1], [], []>} : vector<8x64xf32>, vector<64x256xf32>, vector<8x256xf32> -> vector<8x256xf32>
    %600 = arith.addf %598, %599 : vector<8x256xf32>
    %601 = arith.negf %600 : vector<8x256xf32>
    %602 = math.exp %601 : vector<8x256xf32>
    %cst_210 = arith.constant 1.000000e+00 : f32
    %603 = vector.broadcast %cst_210 : f32 to vector<8x256xf32>
    %604 = arith.addf %603, %602 : vector<8x256xf32>
    %605 = arith.divf %603, %604 : vector<8x256xf32>
    %606 = vector.extract_strided_slice %605 {offsets = [0, 0], sizes = [8, 64], strides = [1, 1]} : vector<8x256xf32> to vector<8x64xf32>
    %607 = vector.extract_strided_slice %605 {offsets = [0, 64], sizes = [8, 64], strides = [1, 1]} : vector<8x256xf32> to vector<8x64xf32>
    %608 = vector.extract_strided_slice %600 {offsets = [0, 128], sizes = [8, 64], strides = [1, 1]} : vector<8x256xf32> to vector<8x64xf32>
    %609 = math.tanh %608 : vector<8x64xf32>
    %610 = vector.extract_strided_slice %605 {offsets = [0, 192], sizes = [8, 64], strides = [1, 1]} : vector<8x256xf32> to vector<8x64xf32>
    %611 = arith.mulf %607, %590 : vector<8x64xf32>
    %612 = arith.mulf %606, %609 : vector<8x64xf32>
    %613 = arith.addf %611, %612 : vector<8x64xf32>
    %614 = math.tanh %613 : vector<8x64xf32>
    %615 = arith.mulf %610, %614 : vector<8x64xf32>
    %616 = arith.index_cast %c12_i32 : i32 to index
    %c0_211 = arith.constant 0 : index
    %c0_212 = arith.constant 0 : index
    %617 = vector.load %arg1[%616, %c0_211, %c0_212] : memref<16x8x64xi32, #tpu.memory_space<vmem>>, vector<1x8x64xi32>
    %618 = vector.shape_cast %617 : vector<1x8x64xi32> to vector<8x64xi32>
    %c0_i32_213 = arith.constant 0 : i32
    %619 = vector.broadcast %c0_i32_213 : i32 to vector<8x64xi32>
    %620 = arith.cmpi ne, %618, %619 : vector<8x64xi32>
    %621 = vector.extract_strided_slice %620 {offsets = [0, 0], sizes = [8, 32], strides = [1, 1]} : vector<8x64xi1> to vector<8x32xi1>
    %622 = vector.extract_strided_slice %615 {offsets = [0, 0], sizes = [8, 32], strides = [1, 1]} : vector<8x64xf32> to vector<8x32xf32>
    %cst_214 = arith.constant 0.000000e+00 : f32
    %623 = vector.broadcast %cst_214 : f32 to vector<8x32xf32>
    %624 = arith.select %621, %622, %623 : vector<8x32xi1>, vector<8x32xf32>
    %625 = arith.index_cast %c12_i32 : i32 to index
    %c0_215 = arith.constant 0 : index
    %c0_216 = arith.constant 0 : index
    %626 = vector.load %arg13[%625, %c0_215, %c0_216] : memref<16x8x64xf32, #tpu.memory_space<vmem>>, vector<1x8x32xf32>
    %627 = vector.shape_cast %626 : vector<1x8x32xf32> to vector<8x32xf32>
    %628 = vector.shape_cast %624 : vector<8x32xf32> to vector<1x8x32xf32>
    tpu.vector_store %arg13[%625, %c0_215, %c0_216], %628 {strides = array<i32>} : memref<16x8x64xf32, #tpu.memory_space<vmem>>, vector<1x8x32xf32>,
    %629 = vector.extract_strided_slice %620 {offsets = [0, 32], sizes = [8, 32], strides = [1, 1]} : vector<8x64xi1> to vector<8x32xi1>
    %630 = vector.extract_strided_slice %615 {offsets = [0, 32], sizes = [8, 32], strides = [1, 1]} : vector<8x64xf32> to vector<8x32xf32>
    %cst_217 = arith.constant 0.000000e+00 : f32
    %631 = vector.broadcast %cst_217 : f32 to vector<8x32xf32>
    %632 = arith.select %629, %630, %631 : vector<8x32xi1>, vector<8x32xf32>
    %633 = arith.index_cast %591 : i32 to index
    %c0_218 = arith.constant 0 : index
    %c32_219 = arith.constant 32 : index
    %634 = vector.load %arg13[%633, %c0_218, %c32_219] : memref<16x8x64xf32, #tpu.memory_space<vmem>>, vector<1x8x32xf32>
    %635 = vector.shape_cast %634 : vector<1x8x32xf32> to vector<8x32xf32>
    %636 = vector.shape_cast %632 : vector<8x32xf32> to vector<1x8x32xf32>
    tpu.vector_store %arg13[%633, %c0_218, %c32_219], %636 {strides = array<i32>} : memref<16x8x64xf32, #tpu.memory_space<vmem>>, vector<1x8x32xf32>,
    %637 = arith.select %620, %615, %589 : vector<8x64xi1>, vector<8x64xf32>
    %638 = arith.select %620, %613, %590 : vector<8x64xi1>, vector<8x64xf32>
    %c13_i32 = arith.constant 13 : i32
    %c15_i32_220 = arith.constant 15 : i32
    %639 = arith.subi %c15_i32_220, %c13_i32 : i32
    %640 = arith.index_cast %c13_i32 : i32 to index
    %c0_221 = arith.constant 0 : index
    %c0_222 = arith.constant 0 : index
    %641 = vector.load %arg12[%640, %c0_221, %c0_222] : memref<16x8x256xf32, #tpu.memory_space<vmem>>, vector<1x8x256xf32>
    %642 = vector.shape_cast %641 : vector<1x8x256xf32> to vector<8x256xf32>
    %643 = arith.index_cast %639 : i32 to index
    %c0_223 = arith.constant 0 : index
    %c0_224 = arith.constant 0 : index
    %644 = vector.load %arg12[%643, %c0_223, %c0_224] : memref<16x8x256xf32, #tpu.memory_space<vmem>>, vector<1x8x256xf32>
    %645 = vector.shape_cast %644 : vector<1x8x256xf32> to vector<8x256xf32>
    %646 = arith.select %4, %642, %645 : vector<8x256xi1>, vector<8x256xf32>
    %cst_225 = arith.constant dense<0.000000e+00> : vector<8x256xf32>
    %647 = tpu.matmul %637, %13, %cst_225 {dimension_numbers = #tpu.dot_dimension_numbers<[1], [0], [0], [1], [0, 0, 1, 1], [], []>} : vector<8x64xf32>, vector<64x256xf32>, vector<8x256xf32> -> vector<8x256xf32>
    %648 = arith.addf %646, %647 : vector<8x256xf32>
    %649 = arith.negf %648 : vector<8x256xf32>
    %650 = math.exp %649 : vector<8x256xf32>
    %cst_226 = arith.constant 1.000000e+00 : f32
    %651 = vector.broadcast %cst_226 : f32 to vector<8x256xf32>
    %652 = arith.addf %651, %650 : vector<8x256xf32>
    %653 = arith.divf %651, %652 : vector<8x256xf32>
    %654 = vector.extract_strided_slice %653 {offsets = [0, 0], sizes = [8, 64], strides = [1, 1]} : vector<8x256xf32> to vector<8x64xf32>
    %655 = vector.extract_strided_slice %653 {offsets = [0, 64], sizes = [8, 64], strides = [1, 1]} : vector<8x256xf32> to vector<8x64xf32>
    %656 = vector.extract_strided_slice %648 {offsets = [0, 128], sizes = [8, 64], strides = [1, 1]} : vector<8x256xf32> to vector<8x64xf32>
    %657 = math.tanh %656 : vector<8x64xf32>
    %658 = vector.extract_strided_slice %653 {offsets = [0, 192], sizes = [8, 64], strides = [1, 1]} : vector<8x256xf32> to vector<8x64xf32>
    %659 = arith.mulf %655, %638 : vector<8x64xf32>
    %660 = arith.mulf %654, %657 : vector<8x64xf32>
    %661 = arith.addf %659, %660 : vector<8x64xf32>
    %662 = math.tanh %661 : vector<8x64xf32>
    %663 = arith.mulf %658, %662 : vector<8x64xf32>
    %664 = arith.index_cast %c13_i32 : i32 to index
    %c0_227 = arith.constant 0 : index
    %c0_228 = arith.constant 0 : index
    %665 = vector.load %arg1[%664, %c0_227, %c0_228] : memref<16x8x64xi32, #tpu.memory_space<vmem>>, vector<1x8x64xi32>
    %666 = vector.shape_cast %665 : vector<1x8x64xi32> to vector<8x64xi32>
    %c0_i32_229 = arith.constant 0 : i32
    %667 = vector.broadcast %c0_i32_229 : i32 to vector<8x64xi32>
    %668 = arith.cmpi ne, %666, %667 : vector<8x64xi32>
    %669 = vector.extract_strided_slice %668 {offsets = [0, 0], sizes = [8, 32], strides = [1, 1]} : vector<8x64xi1> to vector<8x32xi1>
    %670 = vector.extract_strided_slice %663 {offsets = [0, 0], sizes = [8, 32], strides = [1, 1]} : vector<8x64xf32> to vector<8x32xf32>
    %cst_230 = arith.constant 0.000000e+00 : f32
    %671 = vector.broadcast %cst_230 : f32 to vector<8x32xf32>
    %672 = arith.select %669, %670, %671 : vector<8x32xi1>, vector<8x32xf32>
    %673 = arith.index_cast %c13_i32 : i32 to index
    %c0_231 = arith.constant 0 : index
    %c0_232 = arith.constant 0 : index
    %674 = vector.load %arg13[%673, %c0_231, %c0_232] : memref<16x8x64xf32, #tpu.memory_space<vmem>>, vector<1x8x32xf32>
    %675 = vector.shape_cast %674 : vector<1x8x32xf32> to vector<8x32xf32>
    %676 = vector.shape_cast %672 : vector<8x32xf32> to vector<1x8x32xf32>
    tpu.vector_store %arg13[%673, %c0_231, %c0_232], %676 {strides = array<i32>} : memref<16x8x64xf32, #tpu.memory_space<vmem>>, vector<1x8x32xf32>,
    %677 = vector.extract_strided_slice %668 {offsets = [0, 32], sizes = [8, 32], strides = [1, 1]} : vector<8x64xi1> to vector<8x32xi1>
    %678 = vector.extract_strided_slice %663 {offsets = [0, 32], sizes = [8, 32], strides = [1, 1]} : vector<8x64xf32> to vector<8x32xf32>
    %cst_233 = arith.constant 0.000000e+00 : f32
    %679 = vector.broadcast %cst_233 : f32 to vector<8x32xf32>
    %680 = arith.select %677, %678, %679 : vector<8x32xi1>, vector<8x32xf32>
    %681 = arith.index_cast %639 : i32 to index
    %c0_234 = arith.constant 0 : index
    %c32_235 = arith.constant 32 : index
    %682 = vector.load %arg13[%681, %c0_234, %c32_235] : memref<16x8x64xf32, #tpu.memory_space<vmem>>, vector<1x8x32xf32>
    %683 = vector.shape_cast %682 : vector<1x8x32xf32> to vector<8x32xf32>
    %684 = vector.shape_cast %680 : vector<8x32xf32> to vector<1x8x32xf32>
    tpu.vector_store %arg13[%681, %c0_234, %c32_235], %684 {strides = array<i32>} : memref<16x8x64xf32, #tpu.memory_space<vmem>>, vector<1x8x32xf32>,
    %685 = arith.select %668, %663, %637 : vector<8x64xi1>, vector<8x64xf32>
    %686 = arith.select %668, %661, %638 : vector<8x64xi1>, vector<8x64xf32>
    %c14_i32 = arith.constant 14 : i32
    %c15_i32_236 = arith.constant 15 : i32
    %687 = arith.subi %c15_i32_236, %c14_i32 : i32
    %688 = arith.index_cast %c14_i32 : i32 to index
    %c0_237 = arith.constant 0 : index
    %c0_238 = arith.constant 0 : index
    %689 = vector.load %arg12[%688, %c0_237, %c0_238] : memref<16x8x256xf32, #tpu.memory_space<vmem>>, vector<1x8x256xf32>
    %690 = vector.shape_cast %689 : vector<1x8x256xf32> to vector<8x256xf32>
    %691 = arith.index_cast %687 : i32 to index
    %c0_239 = arith.constant 0 : index
    %c0_240 = arith.constant 0 : index
    %692 = vector.load %arg12[%691, %c0_239, %c0_240] : memref<16x8x256xf32, #tpu.memory_space<vmem>>, vector<1x8x256xf32>
    %693 = vector.shape_cast %692 : vector<1x8x256xf32> to vector<8x256xf32>
    %694 = arith.select %4, %690, %693 : vector<8x256xi1>, vector<8x256xf32>
    %cst_241 = arith.constant dense<0.000000e+00> : vector<8x256xf32>
    %695 = tpu.matmul %685, %13, %cst_241 {dimension_numbers = #tpu.dot_dimension_numbers<[1], [0], [0], [1], [0, 0, 1, 1], [], []>} : vector<8x64xf32>, vector<64x256xf32>, vector<8x256xf32> -> vector<8x256xf32>
    %696 = arith.addf %694, %695 : vector<8x256xf32>
    %697 = arith.negf %696 : vector<8x256xf32>
    %698 = math.exp %697 : vector<8x256xf32>
    %cst_242 = arith.constant 1.000000e+00 : f32
    %699 = vector.broadcast %cst_242 : f32 to vector<8x256xf32>
    %700 = arith.addf %699, %698 : vector<8x256xf32>
    %701 = arith.divf %699, %700 : vector<8x256xf32>
    %702 = vector.extract_strided_slice %701 {offsets = [0, 0], sizes = [8, 64], strides = [1, 1]} : vector<8x256xf32> to vector<8x64xf32>
    %703 = vector.extract_strided_slice %701 {offsets = [0, 64], sizes = [8, 64], strides = [1, 1]} : vector<8x256xf32> to vector<8x64xf32>
    %704 = vector.extract_strided_slice %696 {offsets = [0, 128], sizes = [8, 64], strides = [1, 1]} : vector<8x256xf32> to vector<8x64xf32>
    %705 = math.tanh %704 : vector<8x64xf32>
    %706 = vector.extract_strided_slice %701 {offsets = [0, 192], sizes = [8, 64], strides = [1, 1]} : vector<8x256xf32> to vector<8x64xf32>
    %707 = arith.mulf %703, %686 : vector<8x64xf32>
    %708 = arith.mulf %702, %705 : vector<8x64xf32>
    %709 = arith.addf %707, %708 : vector<8x64xf32>
    %710 = math.tanh %709 : vector<8x64xf32>
    %711 = arith.mulf %706, %710 : vector<8x64xf32>
    %712 = arith.index_cast %c14_i32 : i32 to index
    %c0_243 = arith.constant 0 : index
    %c0_244 = arith.constant 0 : index
    %713 = vector.load %arg1[%712, %c0_243, %c0_244] : memref<16x8x64xi32, #tpu.memory_space<vmem>>, vector<1x8x64xi32>
    %714 = vector.shape_cast %713 : vector<1x8x64xi32> to vector<8x64xi32>
    %c0_i32_245 = arith.constant 0 : i32
    %715 = vector.broadcast %c0_i32_245 : i32 to vector<8x64xi32>
    %716 = arith.cmpi ne, %714, %715 : vector<8x64xi32>
    %717 = vector.extract_strided_slice %716 {offsets = [0, 0], sizes = [8, 32], strides = [1, 1]} : vector<8x64xi1> to vector<8x32xi1>
    %718 = vector.extract_strided_slice %711 {offsets = [0, 0], sizes = [8, 32], strides = [1, 1]} : vector<8x64xf32> to vector<8x32xf32>
    %cst_246 = arith.constant 0.000000e+00 : f32
    %719 = vector.broadcast %cst_246 : f32 to vector<8x32xf32>
    %720 = arith.select %717, %718, %719 : vector<8x32xi1>, vector<8x32xf32>
    %721 = arith.index_cast %c14_i32 : i32 to index
    %c0_247 = arith.constant 0 : index
    %c0_248 = arith.constant 0 : index
    %722 = vector.load %arg13[%721, %c0_247, %c0_248] : memref<16x8x64xf32, #tpu.memory_space<vmem>>, vector<1x8x32xf32>
    %723 = vector.shape_cast %722 : vector<1x8x32xf32> to vector<8x32xf32>
    %724 = vector.shape_cast %720 : vector<8x32xf32> to vector<1x8x32xf32>
    tpu.vector_store %arg13[%721, %c0_247, %c0_248], %724 {strides = array<i32>} : memref<16x8x64xf32, #tpu.memory_space<vmem>>, vector<1x8x32xf32>,
    %725 = vector.extract_strided_slice %716 {offsets = [0, 32], sizes = [8, 32], strides = [1, 1]} : vector<8x64xi1> to vector<8x32xi1>
    %726 = vector.extract_strided_slice %711 {offsets = [0, 32], sizes = [8, 32], strides = [1, 1]} : vector<8x64xf32> to vector<8x32xf32>
    %cst_249 = arith.constant 0.000000e+00 : f32
    %727 = vector.broadcast %cst_249 : f32 to vector<8x32xf32>
    %728 = arith.select %725, %726, %727 : vector<8x32xi1>, vector<8x32xf32>
    %729 = arith.index_cast %687 : i32 to index
    %c0_250 = arith.constant 0 : index
    %c32_251 = arith.constant 32 : index
    %730 = vector.load %arg13[%729, %c0_250, %c32_251] : memref<16x8x64xf32, #tpu.memory_space<vmem>>, vector<1x8x32xf32>
    %731 = vector.shape_cast %730 : vector<1x8x32xf32> to vector<8x32xf32>
    %732 = vector.shape_cast %728 : vector<8x32xf32> to vector<1x8x32xf32>
    tpu.vector_store %arg13[%729, %c0_250, %c32_251], %732 {strides = array<i32>} : memref<16x8x64xf32, #tpu.memory_space<vmem>>, vector<1x8x32xf32>,
    %733 = arith.select %716, %711, %685 : vector<8x64xi1>, vector<8x64xf32>
    %734 = arith.select %716, %709, %686 : vector<8x64xi1>, vector<8x64xf32>
    %c15_i32_252 = arith.constant 15 : i32
    %c15_i32_253 = arith.constant 15 : i32
    %735 = arith.subi %c15_i32_253, %c15_i32_252 : i32
    %736 = arith.index_cast %c15_i32_252 : i32 to index
    %c0_254 = arith.constant 0 : index
    %c0_255 = arith.constant 0 : index
    %737 = vector.load %arg12[%736, %c0_254, %c0_255] : memref<16x8x256xf32, #tpu.memory_space<vmem>>, vector<1x8x256xf32>
    %738 = vector.shape_cast %737 : vector<1x8x256xf32> to vector<8x256xf32>
    %739 = arith.index_cast %735 : i32 to index
    %c0_256 = arith.constant 0 : index
    %c0_257 = arith.constant 0 : index
    %740 = vector.load %arg12[%739, %c0_256, %c0_257] : memref<16x8x256xf32, #tpu.memory_space<vmem>>, vector<1x8x256xf32>
    %741 = vector.shape_cast %740 : vector<1x8x256xf32> to vector<8x256xf32>
    %742 = arith.select %4, %738, %741 : vector<8x256xi1>, vector<8x256xf32>
    %cst_258 = arith.constant dense<0.000000e+00> : vector<8x256xf32>
    %743 = tpu.matmul %733, %13, %cst_258 {dimension_numbers = #tpu.dot_dimension_numbers<[1], [0], [0], [1], [0, 0, 1, 1], [], []>} : vector<8x64xf32>, vector<64x256xf32>, vector<8x256xf32> -> vector<8x256xf32>
    %744 = arith.addf %742, %743 : vector<8x256xf32>
    %745 = arith.negf %744 : vector<8x256xf32>
    %746 = math.exp %745 : vector<8x256xf32>
    %cst_259 = arith.constant 1.000000e+00 : f32
    %747 = vector.broadcast %cst_259 : f32 to vector<8x256xf32>
    %748 = arith.addf %747, %746 : vector<8x256xf32>
    %749 = arith.divf %747, %748 : vector<8x256xf32>
    %750 = vector.extract_strided_slice %749 {offsets = [0, 0], sizes = [8, 64], strides = [1, 1]} : vector<8x256xf32> to vector<8x64xf32>
    %751 = vector.extract_strided_slice %749 {offsets = [0, 64], sizes = [8, 64], strides = [1, 1]} : vector<8x256xf32> to vector<8x64xf32>
    %752 = vector.extract_strided_slice %744 {offsets = [0, 128], sizes = [8, 64], strides = [1, 1]} : vector<8x256xf32> to vector<8x64xf32>
    %753 = math.tanh %752 : vector<8x64xf32>
    %754 = vector.extract_strided_slice %749 {offsets = [0, 192], sizes = [8, 64], strides = [1, 1]} : vector<8x256xf32> to vector<8x64xf32>
    %755 = arith.mulf %751, %734 : vector<8x64xf32>
    %756 = arith.mulf %750, %753 : vector<8x64xf32>
    %757 = arith.addf %755, %756 : vector<8x64xf32>
    %758 = math.tanh %757 : vector<8x64xf32>
    %759 = arith.mulf %754, %758 : vector<8x64xf32>
    %760 = arith.index_cast %c15_i32_252 : i32 to index
    %c0_260 = arith.constant 0 : index
    %c0_261 = arith.constant 0 : index
    %761 = vector.load %arg1[%760, %c0_260, %c0_261] : memref<16x8x64xi32, #tpu.memory_space<vmem>>, vector<1x8x64xi32>
    %762 = vector.shape_cast %761 : vector<1x8x64xi32> to vector<8x64xi32>
    %c0_i32_262 = arith.constant 0 : i32
    %763 = vector.broadcast %c0_i32_262 : i32 to vector<8x64xi32>
    %764 = arith.cmpi ne, %762, %763 : vector<8x64xi32>
    %765 = vector.extract_strided_slice %764 {offsets = [0, 0], sizes = [8, 32], strides = [1, 1]} : vector<8x64xi1> to vector<8x32xi1>
    %766 = vector.extract_strided_slice %759 {offsets = [0, 0], sizes = [8, 32], strides = [1, 1]} : vector<8x64xf32> to vector<8x32xf32>
    %cst_263 = arith.constant 0.000000e+00 : f32
    %767 = vector.broadcast %cst_263 : f32 to vector<8x32xf32>
    %768 = arith.select %765, %766, %767 : vector<8x32xi1>, vector<8x32xf32>
    %769 = arith.index_cast %c15_i32_252 : i32 to index
    %c0_264 = arith.constant 0 : index
    %c0_265 = arith.constant 0 : index
    %770 = vector.load %arg13[%769, %c0_264, %c0_265] : memref<16x8x64xf32, #tpu.memory_space<vmem>>, vector<1x8x32xf32>
    %771 = vector.shape_cast %770 : vector<1x8x32xf32> to vector<8x32xf32>
    %772 = vector.shape_cast %768 : vector<8x32xf32> to vector<1x8x32xf32>
    tpu.vector_store %arg13[%769, %c0_264, %c0_265], %772 {strides = array<i32>} : memref<16x8x64xf32, #tpu.memory_space<vmem>>, vector<1x8x32xf32>,
    %773 = vector.extract_strided_slice %764 {offsets = [0, 32], sizes = [8, 32], strides = [1, 1]} : vector<8x64xi1> to vector<8x32xi1>
    %774 = vector.extract_strided_slice %759 {offsets = [0, 32], sizes = [8, 32], strides = [1, 1]} : vector<8x64xf32> to vector<8x32xf32>
    %cst_266 = arith.constant 0.000000e+00 : f32
    %775 = vector.broadcast %cst_266 : f32 to vector<8x32xf32>
    %776 = arith.select %773, %774, %775 : vector<8x32xi1>, vector<8x32xf32>
    %777 = arith.index_cast %735 : i32 to index
    %c0_267 = arith.constant 0 : index
    %c32_268 = arith.constant 32 : index
    %778 = vector.load %arg13[%777, %c0_267, %c32_268] : memref<16x8x64xf32, #tpu.memory_space<vmem>>, vector<1x8x32xf32>
    %779 = vector.shape_cast %778 : vector<1x8x32xf32> to vector<8x32xf32>
    %780 = vector.shape_cast %776 : vector<8x32xf32> to vector<1x8x32xf32>
    tpu.vector_store %arg13[%777, %c0_267, %c32_268], %780 {strides = array<i32>} : memref<16x8x64xf32, #tpu.memory_space<vmem>>, vector<1x8x32xf32>,
    %781 = arith.select %764, %759, %733 : vector<8x64xi1>, vector<8x64xf32>
    %782 = arith.select %764, %757, %734 : vector<8x64xi1>, vector<8x64xf32>
    %c16_i32 = arith.constant 16 : i32
    %c0_269 = arith.constant 0 : index
    %c0_270 = arith.constant 0 : index
    %c0_271 = arith.constant 0 : index
    %783 = vector.load %arg13[%c0_269, %c0_270, %c0_271] : memref<16x8x64xf32, #tpu.memory_space<vmem>>, vector<16x8x64xf32>
    %784 = vector.shape_cast %783 : vector<16x8x64xf32> to vector<128x64xf32>
    %c0_272 = arith.constant 0 : index
    %c0_273 = arith.constant 0 : index
    %785 = vector.load %arg6[%c0_272, %c0_273] : memref<64x256xf32, #tpu.memory_space<vmem>>, vector<64x256xf32>
    %cst_274 = arith.constant dense<0.000000e+00> : vector<128x256xf32>
    %786 = tpu.matmul %784, %785, %cst_274 {dimension_numbers = #tpu.dot_dimension_numbers<[1], [0], [0], [1], [0, 0, 1, 1], [], []>} : vector<128x64xf32>, vector<64x256xf32>, vector<128x256xf32> -> vector<128x256xf32>
    %c0_275 = arith.constant 0 : index
    %c0_276 = arith.constant 0 : index
    %787 = vector.load %arg8[%c0_275, %c0_276] : memref<1x256xf32, #tpu.memory_space<vmem>>, vector<1x256xf32>
    %788 = vector.broadcast %787 : vector<1x256xf32> to vector<128x256xf32>
    %789 = arith.addf %786, %788 : vector<128x256xf32>
    %790 = vector.shape_cast %789 : vector<128x256xf32> to vector<16x8x256xf32>
    %c0_277 = arith.constant 0 : index
    %c0_278 = arith.constant 0 : index
    %c0_279 = arith.constant 0 : index
    %791 = vector.load %arg12[%c0_277, %c0_278, %c0_279] : memref<16x8x256xf32, #tpu.memory_space<vmem>>, vector<16x8x256xf32>
    tpu.vector_store %arg12[%c0_277, %c0_278, %c0_279], %790 {strides = array<i32>} : memref<16x8x256xf32, #tpu.memory_space<vmem>>, vector<16x8x256xf32>,
    %c0_280 = arith.constant 0 : index
    %c0_281 = arith.constant 0 : index
    %792 = vector.load %arg7[%c0_280, %c0_281] : memref<64x256xf32, #tpu.memory_space<vmem>>, vector<64x256xf32>
    %cst_282 = arith.constant 0.000000e+00 : f32
    %793 = vector.broadcast %cst_282 : f32 to vector<8x64xf32>
    %c0_i32_283 = arith.constant 0 : i32
    %c15_i32_284 = arith.constant 15 : i32
    %794 = arith.subi %c15_i32_284, %c0_i32_283 : i32
    %795 = arith.index_cast %c0_i32_283 : i32 to index
    %c0_285 = arith.constant 0 : index
    %c0_286 = arith.constant 0 : index
    %796 = vector.load %arg12[%795, %c0_285, %c0_286] : memref<16x8x256xf32, #tpu.memory_space<vmem>>, vector<1x8x256xf32>
    %797 = vector.shape_cast %796 : vector<1x8x256xf32> to vector<8x256xf32>
    %798 = arith.index_cast %794 : i32 to index
    %c0_287 = arith.constant 0 : index
    %c0_288 = arith.constant 0 : index
    %799 = vector.load %arg12[%798, %c0_287, %c0_288] : memref<16x8x256xf32, #tpu.memory_space<vmem>>, vector<1x8x256xf32>
    %800 = vector.shape_cast %799 : vector<1x8x256xf32> to vector<8x256xf32>
    %801 = arith.select %4, %797, %800 : vector<8x256xi1>, vector<8x256xf32>
    %cst_289 = arith.constant dense<0.000000e+00> : vector<8x256xf32>
    %802 = tpu.matmul %793, %792, %cst_289 {dimension_numbers = #tpu.dot_dimension_numbers<[1], [0], [0], [1], [0, 0, 1, 1], [], []>} : vector<8x64xf32>, vector<64x256xf32>, vector<8x256xf32> -> vector<8x256xf32>
    %803 = arith.addf %801, %802 : vector<8x256xf32>
    %804 = arith.negf %803 : vector<8x256xf32>
    %805 = math.exp %804 : vector<8x256xf32>
    %cst_290 = arith.constant 1.000000e+00 : f32
    %806 = vector.broadcast %cst_290 : f32 to vector<8x256xf32>
    %807 = arith.addf %806, %805 : vector<8x256xf32>
    %808 = arith.divf %806, %807 : vector<8x256xf32>
    %809 = vector.extract_strided_slice %808 {offsets = [0, 0], sizes = [8, 64], strides = [1, 1]} : vector<8x256xf32> to vector<8x64xf32>
    %810 = vector.extract_strided_slice %808 {offsets = [0, 64], sizes = [8, 64], strides = [1, 1]} : vector<8x256xf32> to vector<8x64xf32>
    %811 = vector.extract_strided_slice %803 {offsets = [0, 128], sizes = [8, 64], strides = [1, 1]} : vector<8x256xf32> to vector<8x64xf32>
    %812 = math.tanh %811 : vector<8x64xf32>
    %813 = vector.extract_strided_slice %808 {offsets = [0, 192], sizes = [8, 64], strides = [1, 1]} : vector<8x256xf32> to vector<8x64xf32>
    %814 = arith.mulf %810, %793 : vector<8x64xf32>
    %815 = arith.mulf %809, %812 : vector<8x64xf32>
    %816 = arith.addf %814, %815 : vector<8x64xf32>
    %817 = math.tanh %816 : vector<8x64xf32>
    %818 = arith.mulf %813, %817 : vector<8x64xf32>
    %819 = arith.index_cast %c0_i32_283 : i32 to index
    %c0_291 = arith.constant 0 : index
    %c0_292 = arith.constant 0 : index
    %820 = vector.load %arg1[%819, %c0_291, %c0_292] : memref<16x8x64xi32, #tpu.memory_space<vmem>>, vector<1x8x64xi32>
    %821 = vector.shape_cast %820 : vector<1x8x64xi32> to vector<8x64xi32>
    %c0_i32_293 = arith.constant 0 : i32
    %822 = vector.broadcast %c0_i32_293 : i32 to vector<8x64xi32>
    %823 = arith.cmpi ne, %821, %822 : vector<8x64xi32>
    %824 = vector.extract_strided_slice %823 {offsets = [0, 0], sizes = [8, 32], strides = [1, 1]} : vector<8x64xi1> to vector<8x32xi1>
    %825 = vector.extract_strided_slice %818 {offsets = [0, 0], sizes = [8, 32], strides = [1, 1]} : vector<8x64xf32> to vector<8x32xf32>
    %cst_294 = arith.constant 0.000000e+00 : f32
    %826 = vector.broadcast %cst_294 : f32 to vector<8x32xf32>
    %827 = arith.select %824, %825, %826 : vector<8x32xi1>, vector<8x32xf32>
    %828 = arith.index_cast %c0_i32_283 : i32 to index
    %c0_295 = arith.constant 0 : index
    %c0_296 = arith.constant 0 : index
    %829 = vector.load %arg13[%828, %c0_295, %c0_296] : memref<16x8x64xf32, #tpu.memory_space<vmem>>, vector<1x8x32xf32>
    %830 = vector.shape_cast %829 : vector<1x8x32xf32> to vector<8x32xf32>
    %831 = vector.shape_cast %827 : vector<8x32xf32> to vector<1x8x32xf32>
    tpu.vector_store %arg13[%828, %c0_295, %c0_296], %831 {strides = array<i32>} : memref<16x8x64xf32, #tpu.memory_space<vmem>>, vector<1x8x32xf32>,
    %832 = vector.extract_strided_slice %823 {offsets = [0, 32], sizes = [8, 32], strides = [1, 1]} : vector<8x64xi1> to vector<8x32xi1>
    %833 = vector.extract_strided_slice %818 {offsets = [0, 32], sizes = [8, 32], strides = [1, 1]} : vector<8x64xf32> to vector<8x32xf32>
    %cst_297 = arith.constant 0.000000e+00 : f32
    %834 = vector.broadcast %cst_297 : f32 to vector<8x32xf32>
    %835 = arith.select %832, %833, %834 : vector<8x32xi1>, vector<8x32xf32>
    %836 = arith.index_cast %794 : i32 to index
    %c0_298 = arith.constant 0 : index
    %c32_299 = arith.constant 32 : index
    %837 = vector.load %arg13[%836, %c0_298, %c32_299] : memref<16x8x64xf32, #tpu.memory_space<vmem>>, vector<1x8x32xf32>
    %838 = vector.shape_cast %837 : vector<1x8x32xf32> to vector<8x32xf32>
    %839 = vector.shape_cast %835 : vector<8x32xf32> to vector<1x8x32xf32>
    tpu.vector_store %arg13[%836, %c0_298, %c32_299], %839 {strides = array<i32>} : memref<16x8x64xf32, #tpu.memory_space<vmem>>, vector<1x8x32xf32>,
    %840 = arith.select %823, %818, %793 : vector<8x64xi1>, vector<8x64xf32>
    %841 = arith.select %823, %816, %793 : vector<8x64xi1>, vector<8x64xf32>
    %c1_i32_300 = arith.constant 1 : i32
    %c15_i32_301 = arith.constant 15 : i32
    %842 = arith.subi %c15_i32_301, %c1_i32_300 : i32
    %843 = arith.index_cast %c1_i32_300 : i32 to index
    %c0_302 = arith.constant 0 : index
    %c0_303 = arith.constant 0 : index
    %844 = vector.load %arg12[%843, %c0_302, %c0_303] : memref<16x8x256xf32, #tpu.memory_space<vmem>>, vector<1x8x256xf32>
    %845 = vector.shape_cast %844 : vector<1x8x256xf32> to vector<8x256xf32>
    %846 = arith.index_cast %842 : i32 to index
    %c0_304 = arith.constant 0 : index
    %c0_305 = arith.constant 0 : index
    %847 = vector.load %arg12[%846, %c0_304, %c0_305] : memref<16x8x256xf32, #tpu.memory_space<vmem>>, vector<1x8x256xf32>
    %848 = vector.shape_cast %847 : vector<1x8x256xf32> to vector<8x256xf32>
    %849 = arith.select %4, %845, %848 : vector<8x256xi1>, vector<8x256xf32>
    %cst_306 = arith.constant dense<0.000000e+00> : vector<8x256xf32>
    %850 = tpu.matmul %840, %792, %cst_306 {dimension_numbers = #tpu.dot_dimension_numbers<[1], [0], [0], [1], [0, 0, 1, 1], [], []>} : vector<8x64xf32>, vector<64x256xf32>, vector<8x256xf32> -> vector<8x256xf32>
    %851 = arith.addf %849, %850 : vector<8x256xf32>
    %852 = arith.negf %851 : vector<8x256xf32>
    %853 = math.exp %852 : vector<8x256xf32>
    %cst_307 = arith.constant 1.000000e+00 : f32
    %854 = vector.broadcast %cst_307 : f32 to vector<8x256xf32>
    %855 = arith.addf %854, %853 : vector<8x256xf32>
    %856 = arith.divf %854, %855 : vector<8x256xf32>
    %857 = vector.extract_strided_slice %856 {offsets = [0, 0], sizes = [8, 64], strides = [1, 1]} : vector<8x256xf32> to vector<8x64xf32>
    %858 = vector.extract_strided_slice %856 {offsets = [0, 64], sizes = [8, 64], strides = [1, 1]} : vector<8x256xf32> to vector<8x64xf32>
    %859 = vector.extract_strided_slice %851 {offsets = [0, 128], sizes = [8, 64], strides = [1, 1]} : vector<8x256xf32> to vector<8x64xf32>
    %860 = math.tanh %859 : vector<8x64xf32>
    %861 = vector.extract_strided_slice %856 {offsets = [0, 192], sizes = [8, 64], strides = [1, 1]} : vector<8x256xf32> to vector<8x64xf32>
    %862 = arith.mulf %858, %841 : vector<8x64xf32>
    %863 = arith.mulf %857, %860 : vector<8x64xf32>
    %864 = arith.addf %862, %863 : vector<8x64xf32>
    %865 = math.tanh %864 : vector<8x64xf32>
    %866 = arith.mulf %861, %865 : vector<8x64xf32>
    %867 = arith.index_cast %c1_i32_300 : i32 to index
    %c0_308 = arith.constant 0 : index
    %c0_309 = arith.constant 0 : index
    %868 = vector.load %arg1[%867, %c0_308, %c0_309] : memref<16x8x64xi32, #tpu.memory_space<vmem>>, vector<1x8x64xi32>
    %869 = vector.shape_cast %868 : vector<1x8x64xi32> to vector<8x64xi32>
    %c0_i32_310 = arith.constant 0 : i32
    %870 = vector.broadcast %c0_i32_310 : i32 to vector<8x64xi32>
    %871 = arith.cmpi ne, %869, %870 : vector<8x64xi32>
    %872 = vector.extract_strided_slice %871 {offsets = [0, 0], sizes = [8, 32], strides = [1, 1]} : vector<8x64xi1> to vector<8x32xi1>
    %873 = vector.extract_strided_slice %866 {offsets = [0, 0], sizes = [8, 32], strides = [1, 1]} : vector<8x64xf32> to vector<8x32xf32>
    %cst_311 = arith.constant 0.000000e+00 : f32
    %874 = vector.broadcast %cst_311 : f32 to vector<8x32xf32>
    %875 = arith.select %872, %873, %874 : vector<8x32xi1>, vector<8x32xf32>
    %876 = arith.index_cast %c1_i32_300 : i32 to index
    %c0_312 = arith.constant 0 : index
    %c0_313 = arith.constant 0 : index
    %877 = vector.load %arg13[%876, %c0_312, %c0_313] : memref<16x8x64xf32, #tpu.memory_space<vmem>>, vector<1x8x32xf32>
    %878 = vector.shape_cast %877 : vector<1x8x32xf32> to vector<8x32xf32>
    %879 = vector.shape_cast %875 : vector<8x32xf32> to vector<1x8x32xf32>
    tpu.vector_store %arg13[%876, %c0_312, %c0_313], %879 {strides = array<i32>} : memref<16x8x64xf32, #tpu.memory_space<vmem>>, vector<1x8x32xf32>,
    %880 = vector.extract_strided_slice %871 {offsets = [0, 32], sizes = [8, 32], strides = [1, 1]} : vector<8x64xi1> to vector<8x32xi1>
    %881 = vector.extract_strided_slice %866 {offsets = [0, 32], sizes = [8, 32], strides = [1, 1]} : vector<8x64xf32> to vector<8x32xf32>
    %cst_314 = arith.constant 0.000000e+00 : f32
    %882 = vector.broadcast %cst_314 : f32 to vector<8x32xf32>
    %883 = arith.select %880, %881, %882 : vector<8x32xi1>, vector<8x32xf32>
    %884 = arith.index_cast %842 : i32 to index
    %c0_315 = arith.constant 0 : index
    %c32_316 = arith.constant 32 : index
    %885 = vector.load %arg13[%884, %c0_315, %c32_316] : memref<16x8x64xf32, #tpu.memory_space<vmem>>, vector<1x8x32xf32>
    %886 = vector.shape_cast %885 : vector<1x8x32xf32> to vector<8x32xf32>
    %887 = vector.shape_cast %883 : vector<8x32xf32> to vector<1x8x32xf32>
    tpu.vector_store %arg13[%884, %c0_315, %c32_316], %887 {strides = array<i32>} : memref<16x8x64xf32, #tpu.memory_space<vmem>>, vector<1x8x32xf32>,
    %888 = arith.select %871, %866, %840 : vector<8x64xi1>, vector<8x64xf32>
    %889 = arith.select %871, %864, %841 : vector<8x64xi1>, vector<8x64xf32>
    %c2_i32_317 = arith.constant 2 : i32
    %c15_i32_318 = arith.constant 15 : i32
    %890 = arith.subi %c15_i32_318, %c2_i32_317 : i32
    %891 = arith.index_cast %c2_i32_317 : i32 to index
    %c0_319 = arith.constant 0 : index
    %c0_320 = arith.constant 0 : index
    %892 = vector.load %arg12[%891, %c0_319, %c0_320] : memref<16x8x256xf32, #tpu.memory_space<vmem>>, vector<1x8x256xf32>
    %893 = vector.shape_cast %892 : vector<1x8x256xf32> to vector<8x256xf32>
    %894 = arith.index_cast %890 : i32 to index
    %c0_321 = arith.constant 0 : index
    %c0_322 = arith.constant 0 : index
    %895 = vector.load %arg12[%894, %c0_321, %c0_322] : memref<16x8x256xf32, #tpu.memory_space<vmem>>, vector<1x8x256xf32>
    %896 = vector.shape_cast %895 : vector<1x8x256xf32> to vector<8x256xf32>
    %897 = arith.select %4, %893, %896 : vector<8x256xi1>, vector<8x256xf32>
    %cst_323 = arith.constant dense<0.000000e+00> : vector<8x256xf32>
    %898 = tpu.matmul %888, %792, %cst_323 {dimension_numbers = #tpu.dot_dimension_numbers<[1], [0], [0], [1], [0, 0, 1, 1], [], []>} : vector<8x64xf32>, vector<64x256xf32>, vector<8x256xf32> -> vector<8x256xf32>
    %899 = arith.addf %897, %898 : vector<8x256xf32>
    %900 = arith.negf %899 : vector<8x256xf32>
    %901 = math.exp %900 : vector<8x256xf32>
    %cst_324 = arith.constant 1.000000e+00 : f32
    %902 = vector.broadcast %cst_324 : f32 to vector<8x256xf32>
    %903 = arith.addf %902, %901 : vector<8x256xf32>
    %904 = arith.divf %902, %903 : vector<8x256xf32>
    %905 = vector.extract_strided_slice %904 {offsets = [0, 0], sizes = [8, 64], strides = [1, 1]} : vector<8x256xf32> to vector<8x64xf32>
    %906 = vector.extract_strided_slice %904 {offsets = [0, 64], sizes = [8, 64], strides = [1, 1]} : vector<8x256xf32> to vector<8x64xf32>
    %907 = vector.extract_strided_slice %899 {offsets = [0, 128], sizes = [8, 64], strides = [1, 1]} : vector<8x256xf32> to vector<8x64xf32>
    %908 = math.tanh %907 : vector<8x64xf32>
    %909 = vector.extract_strided_slice %904 {offsets = [0, 192], sizes = [8, 64], strides = [1, 1]} : vector<8x256xf32> to vector<8x64xf32>
    %910 = arith.mulf %906, %889 : vector<8x64xf32>
    %911 = arith.mulf %905, %908 : vector<8x64xf32>
    %912 = arith.addf %910, %911 : vector<8x64xf32>
    %913 = math.tanh %912 : vector<8x64xf32>
    %914 = arith.mulf %909, %913 : vector<8x64xf32>
    %915 = arith.index_cast %c2_i32_317 : i32 to index
    %c0_325 = arith.constant 0 : index
    %c0_326 = arith.constant 0 : index
    %916 = vector.load %arg1[%915, %c0_325, %c0_326] : memref<16x8x64xi32, #tpu.memory_space<vmem>>, vector<1x8x64xi32>
    %917 = vector.shape_cast %916 : vector<1x8x64xi32> to vector<8x64xi32>
    %c0_i32_327 = arith.constant 0 : i32
    %918 = vector.broadcast %c0_i32_327 : i32 to vector<8x64xi32>
    %919 = arith.cmpi ne, %917, %918 : vector<8x64xi32>
    %920 = vector.extract_strided_slice %919 {offsets = [0, 0], sizes = [8, 32], strides = [1, 1]} : vector<8x64xi1> to vector<8x32xi1>
    %921 = vector.extract_strided_slice %914 {offsets = [0, 0], sizes = [8, 32], strides = [1, 1]} : vector<8x64xf32> to vector<8x32xf32>
    %cst_328 = arith.constant 0.000000e+00 : f32
    %922 = vector.broadcast %cst_328 : f32 to vector<8x32xf32>
    %923 = arith.select %920, %921, %922 : vector<8x32xi1>, vector<8x32xf32>
    %924 = arith.index_cast %c2_i32_317 : i32 to index
    %c0_329 = arith.constant 0 : index
    %c0_330 = arith.constant 0 : index
    %925 = vector.load %arg13[%924, %c0_329, %c0_330] : memref<16x8x64xf32, #tpu.memory_space<vmem>>, vector<1x8x32xf32>
    %926 = vector.shape_cast %925 : vector<1x8x32xf32> to vector<8x32xf32>
    %927 = vector.shape_cast %923 : vector<8x32xf32> to vector<1x8x32xf32>
    tpu.vector_store %arg13[%924, %c0_329, %c0_330], %927 {strides = array<i32>} : memref<16x8x64xf32, #tpu.memory_space<vmem>>, vector<1x8x32xf32>,
    %928 = vector.extract_strided_slice %919 {offsets = [0, 32], sizes = [8, 32], strides = [1, 1]} : vector<8x64xi1> to vector<8x32xi1>
    %929 = vector.extract_strided_slice %914 {offsets = [0, 32], sizes = [8, 32], strides = [1, 1]} : vector<8x64xf32> to vector<8x32xf32>
    %cst_331 = arith.constant 0.000000e+00 : f32
    %930 = vector.broadcast %cst_331 : f32 to vector<8x32xf32>
    %931 = arith.select %928, %929, %930 : vector<8x32xi1>, vector<8x32xf32>
    %932 = arith.index_cast %890 : i32 to index
    %c0_332 = arith.constant 0 : index
    %c32_333 = arith.constant 32 : index
    %933 = vector.load %arg13[%932, %c0_332, %c32_333] : memref<16x8x64xf32, #tpu.memory_space<vmem>>, vector<1x8x32xf32>
    %934 = vector.shape_cast %933 : vector<1x8x32xf32> to vector<8x32xf32>
    %935 = vector.shape_cast %931 : vector<8x32xf32> to vector<1x8x32xf32>
    tpu.vector_store %arg13[%932, %c0_332, %c32_333], %935 {strides = array<i32>} : memref<16x8x64xf32, #tpu.memory_space<vmem>>, vector<1x8x32xf32>,
    %936 = arith.select %919, %914, %888 : vector<8x64xi1>, vector<8x64xf32>
    %937 = arith.select %919, %912, %889 : vector<8x64xi1>, vector<8x64xf32>
    %c3_i32_334 = arith.constant 3 : i32
    %c15_i32_335 = arith.constant 15 : i32
    %938 = arith.subi %c15_i32_335, %c3_i32_334 : i32
    %939 = arith.index_cast %c3_i32_334 : i32 to index
    %c0_336 = arith.constant 0 : index
    %c0_337 = arith.constant 0 : index
    %940 = vector.load %arg12[%939, %c0_336, %c0_337] : memref<16x8x256xf32, #tpu.memory_space<vmem>>, vector<1x8x256xf32>
    %941 = vector.shape_cast %940 : vector<1x8x256xf32> to vector<8x256xf32>
    %942 = arith.index_cast %938 : i32 to index
    %c0_338 = arith.constant 0 : index
    %c0_339 = arith.constant 0 : index
    %943 = vector.load %arg12[%942, %c0_338, %c0_339] : memref<16x8x256xf32, #tpu.memory_space<vmem>>, vector<1x8x256xf32>
    %944 = vector.shape_cast %943 : vector<1x8x256xf32> to vector<8x256xf32>
    %945 = arith.select %4, %941, %944 : vector<8x256xi1>, vector<8x256xf32>
    %cst_340 = arith.constant dense<0.000000e+00> : vector<8x256xf32>
    %946 = tpu.matmul %936, %792, %cst_340 {dimension_numbers = #tpu.dot_dimension_numbers<[1], [0], [0], [1], [0, 0, 1, 1], [], []>} : vector<8x64xf32>, vector<64x256xf32>, vector<8x256xf32> -> vector<8x256xf32>
    %947 = arith.addf %945, %946 : vector<8x256xf32>
    %948 = arith.negf %947 : vector<8x256xf32>
    %949 = math.exp %948 : vector<8x256xf32>
    %cst_341 = arith.constant 1.000000e+00 : f32
    %950 = vector.broadcast %cst_341 : f32 to vector<8x256xf32>
    %951 = arith.addf %950, %949 : vector<8x256xf32>
    %952 = arith.divf %950, %951 : vector<8x256xf32>
    %953 = vector.extract_strided_slice %952 {offsets = [0, 0], sizes = [8, 64], strides = [1, 1]} : vector<8x256xf32> to vector<8x64xf32>
    %954 = vector.extract_strided_slice %952 {offsets = [0, 64], sizes = [8, 64], strides = [1, 1]} : vector<8x256xf32> to vector<8x64xf32>
    %955 = vector.extract_strided_slice %947 {offsets = [0, 128], sizes = [8, 64], strides = [1, 1]} : vector<8x256xf32> to vector<8x64xf32>
    %956 = math.tanh %955 : vector<8x64xf32>
    %957 = vector.extract_strided_slice %952 {offsets = [0, 192], sizes = [8, 64], strides = [1, 1]} : vector<8x256xf32> to vector<8x64xf32>
    %958 = arith.mulf %954, %937 : vector<8x64xf32>
    %959 = arith.mulf %953, %956 : vector<8x64xf32>
    %960 = arith.addf %958, %959 : vector<8x64xf32>
    %961 = math.tanh %960 : vector<8x64xf32>
    %962 = arith.mulf %957, %961 : vector<8x64xf32>
    %963 = arith.index_cast %c3_i32_334 : i32 to index
    %c0_342 = arith.constant 0 : index
    %c0_343 = arith.constant 0 : index
    %964 = vector.load %arg1[%963, %c0_342, %c0_343] : memref<16x8x64xi32, #tpu.memory_space<vmem>>, vector<1x8x64xi32>
    %965 = vector.shape_cast %964 : vector<1x8x64xi32> to vector<8x64xi32>
    %c0_i32_344 = arith.constant 0 : i32
    %966 = vector.broadcast %c0_i32_344 : i32 to vector<8x64xi32>
    %967 = arith.cmpi ne, %965, %966 : vector<8x64xi32>
    %968 = vector.extract_strided_slice %967 {offsets = [0, 0], sizes = [8, 32], strides = [1, 1]} : vector<8x64xi1> to vector<8x32xi1>
    %969 = vector.extract_strided_slice %962 {offsets = [0, 0], sizes = [8, 32], strides = [1, 1]} : vector<8x64xf32> to vector<8x32xf32>
    %cst_345 = arith.constant 0.000000e+00 : f32
    %970 = vector.broadcast %cst_345 : f32 to vector<8x32xf32>
    %971 = arith.select %968, %969, %970 : vector<8x32xi1>, vector<8x32xf32>
    %972 = arith.index_cast %c3_i32_334 : i32 to index
    %c0_346 = arith.constant 0 : index
    %c0_347 = arith.constant 0 : index
    %973 = vector.load %arg13[%972, %c0_346, %c0_347] : memref<16x8x64xf32, #tpu.memory_space<vmem>>, vector<1x8x32xf32>
    %974 = vector.shape_cast %973 : vector<1x8x32xf32> to vector<8x32xf32>
    %975 = vector.shape_cast %971 : vector<8x32xf32> to vector<1x8x32xf32>
    tpu.vector_store %arg13[%972, %c0_346, %c0_347], %975 {strides = array<i32>} : memref<16x8x64xf32, #tpu.memory_space<vmem>>, vector<1x8x32xf32>,
    %976 = vector.extract_strided_slice %967 {offsets = [0, 32], sizes = [8, 32], strides = [1, 1]} : vector<8x64xi1> to vector<8x32xi1>
    %977 = vector.extract_strided_slice %962 {offsets = [0, 32], sizes = [8, 32], strides = [1, 1]} : vector<8x64xf32> to vector<8x32xf32>
    %cst_348 = arith.constant 0.000000e+00 : f32
    %978 = vector.broadcast %cst_348 : f32 to vector<8x32xf32>
    %979 = arith.select %976, %977, %978 : vector<8x32xi1>, vector<8x32xf32>
    %980 = arith.index_cast %938 : i32 to index
    %c0_349 = arith.constant 0 : index
    %c32_350 = arith.constant 32 : index
    %981 = vector.load %arg13[%980, %c0_349, %c32_350] : memref<16x8x64xf32, #tpu.memory_space<vmem>>, vector<1x8x32xf32>
    %982 = vector.shape_cast %981 : vector<1x8x32xf32> to vector<8x32xf32>
    %983 = vector.shape_cast %979 : vector<8x32xf32> to vector<1x8x32xf32>
    tpu.vector_store %arg13[%980, %c0_349, %c32_350], %983 {strides = array<i32>} : memref<16x8x64xf32, #tpu.memory_space<vmem>>, vector<1x8x32xf32>,
    %984 = arith.select %967, %962, %936 : vector<8x64xi1>, vector<8x64xf32>
    %985 = arith.select %967, %960, %937 : vector<8x64xi1>, vector<8x64xf32>
    %c4_i32_351 = arith.constant 4 : i32
    %c15_i32_352 = arith.constant 15 : i32
    %986 = arith.subi %c15_i32_352, %c4_i32_351 : i32
    %987 = arith.index_cast %c4_i32_351 : i32 to index
    %c0_353 = arith.constant 0 : index
    %c0_354 = arith.constant 0 : index
    %988 = vector.load %arg12[%987, %c0_353, %c0_354] : memref<16x8x256xf32, #tpu.memory_space<vmem>>, vector<1x8x256xf32>
    %989 = vector.shape_cast %988 : vector<1x8x256xf32> to vector<8x256xf32>
    %990 = arith.index_cast %986 : i32 to index
    %c0_355 = arith.constant 0 : index
    %c0_356 = arith.constant 0 : index
    %991 = vector.load %arg12[%990, %c0_355, %c0_356] : memref<16x8x256xf32, #tpu.memory_space<vmem>>, vector<1x8x256xf32>
    %992 = vector.shape_cast %991 : vector<1x8x256xf32> to vector<8x256xf32>
    %993 = arith.select %4, %989, %992 : vector<8x256xi1>, vector<8x256xf32>
    %cst_357 = arith.constant dense<0.000000e+00> : vector<8x256xf32>
    %994 = tpu.matmul %984, %792, %cst_357 {dimension_numbers = #tpu.dot_dimension_numbers<[1], [0], [0], [1], [0, 0, 1, 1], [], []>} : vector<8x64xf32>, vector<64x256xf32>, vector<8x256xf32> -> vector<8x256xf32>
    %995 = arith.addf %993, %994 : vector<8x256xf32>
    %996 = arith.negf %995 : vector<8x256xf32>
    %997 = math.exp %996 : vector<8x256xf32>
    %cst_358 = arith.constant 1.000000e+00 : f32
    %998 = vector.broadcast %cst_358 : f32 to vector<8x256xf32>
    %999 = arith.addf %998, %997 : vector<8x256xf32>
    %1000 = arith.divf %998, %999 : vector<8x256xf32>
    %1001 = vector.extract_strided_slice %1000 {offsets = [0, 0], sizes = [8, 64], strides = [1, 1]} : vector<8x256xf32> to vector<8x64xf32>
    %1002 = vector.extract_strided_slice %1000 {offsets = [0, 64], sizes = [8, 64], strides = [1, 1]} : vector<8x256xf32> to vector<8x64xf32>
    %1003 = vector.extract_strided_slice %995 {offsets = [0, 128], sizes = [8, 64], strides = [1, 1]} : vector<8x256xf32> to vector<8x64xf32>
    %1004 = math.tanh %1003 : vector<8x64xf32>
    %1005 = vector.extract_strided_slice %1000 {offsets = [0, 192], sizes = [8, 64], strides = [1, 1]} : vector<8x256xf32> to vector<8x64xf32>
    %1006 = arith.mulf %1002, %985 : vector<8x64xf32>
    %1007 = arith.mulf %1001, %1004 : vector<8x64xf32>
    %1008 = arith.addf %1006, %1007 : vector<8x64xf32>
    %1009 = math.tanh %1008 : vector<8x64xf32>
    %1010 = arith.mulf %1005, %1009 : vector<8x64xf32>
    %1011 = arith.index_cast %c4_i32_351 : i32 to index
    %c0_359 = arith.constant 0 : index
    %c0_360 = arith.constant 0 : index
    %1012 = vector.load %arg1[%1011, %c0_359, %c0_360] : memref<16x8x64xi32, #tpu.memory_space<vmem>>, vector<1x8x64xi32>
    %1013 = vector.shape_cast %1012 : vector<1x8x64xi32> to vector<8x64xi32>
    %c0_i32_361 = arith.constant 0 : i32
    %1014 = vector.broadcast %c0_i32_361 : i32 to vector<8x64xi32>
    %1015 = arith.cmpi ne, %1013, %1014 : vector<8x64xi32>
    %1016 = vector.extract_strided_slice %1015 {offsets = [0, 0], sizes = [8, 32], strides = [1, 1]} : vector<8x64xi1> to vector<8x32xi1>
    %1017 = vector.extract_strided_slice %1010 {offsets = [0, 0], sizes = [8, 32], strides = [1, 1]} : vector<8x64xf32> to vector<8x32xf32>
    %cst_362 = arith.constant 0.000000e+00 : f32
    %1018 = vector.broadcast %cst_362 : f32 to vector<8x32xf32>
    %1019 = arith.select %1016, %1017, %1018 : vector<8x32xi1>, vector<8x32xf32>
    %1020 = arith.index_cast %c4_i32_351 : i32 to index
    %c0_363 = arith.constant 0 : index
    %c0_364 = arith.constant 0 : index
    %1021 = vector.load %arg13[%1020, %c0_363, %c0_364] : memref<16x8x64xf32, #tpu.memory_space<vmem>>, vector<1x8x32xf32>
    %1022 = vector.shape_cast %1021 : vector<1x8x32xf32> to vector<8x32xf32>
    %1023 = vector.shape_cast %1019 : vector<8x32xf32> to vector<1x8x32xf32>
    tpu.vector_store %arg13[%1020, %c0_363, %c0_364], %1023 {strides = array<i32>} : memref<16x8x64xf32, #tpu.memory_space<vmem>>, vector<1x8x32xf32>,
    %1024 = vector.extract_strided_slice %1015 {offsets = [0, 32], sizes = [8, 32], strides = [1, 1]} : vector<8x64xi1> to vector<8x32xi1>
    %1025 = vector.extract_strided_slice %1010 {offsets = [0, 32], sizes = [8, 32], strides = [1, 1]} : vector<8x64xf32> to vector<8x32xf32>
    %cst_365 = arith.constant 0.000000e+00 : f32
    %1026 = vector.broadcast %cst_365 : f32 to vector<8x32xf32>
    %1027 = arith.select %1024, %1025, %1026 : vector<8x32xi1>, vector<8x32xf32>
    %1028 = arith.index_cast %986 : i32 to index
    %c0_366 = arith.constant 0 : index
    %c32_367 = arith.constant 32 : index
    %1029 = vector.load %arg13[%1028, %c0_366, %c32_367] : memref<16x8x64xf32, #tpu.memory_space<vmem>>, vector<1x8x32xf32>
    %1030 = vector.shape_cast %1029 : vector<1x8x32xf32> to vector<8x32xf32>
    %1031 = vector.shape_cast %1027 : vector<8x32xf32> to vector<1x8x32xf32>
    tpu.vector_store %arg13[%1028, %c0_366, %c32_367], %1031 {strides = array<i32>} : memref<16x8x64xf32, #tpu.memory_space<vmem>>, vector<1x8x32xf32>,
    %1032 = arith.select %1015, %1010, %984 : vector<8x64xi1>, vector<8x64xf32>
    %1033 = arith.select %1015, %1008, %985 : vector<8x64xi1>, vector<8x64xf32>
    %c5_i32_368 = arith.constant 5 : i32
    %c15_i32_369 = arith.constant 15 : i32
    %1034 = arith.subi %c15_i32_369, %c5_i32_368 : i32
    %1035 = arith.index_cast %c5_i32_368 : i32 to index
    %c0_370 = arith.constant 0 : index
    %c0_371 = arith.constant 0 : index
    %1036 = vector.load %arg12[%1035, %c0_370, %c0_371] : memref<16x8x256xf32, #tpu.memory_space<vmem>>, vector<1x8x256xf32>
    %1037 = vector.shape_cast %1036 : vector<1x8x256xf32> to vector<8x256xf32>
    %1038 = arith.index_cast %1034 : i32 to index
    %c0_372 = arith.constant 0 : index
    %c0_373 = arith.constant 0 : index
    %1039 = vector.load %arg12[%1038, %c0_372, %c0_373] : memref<16x8x256xf32, #tpu.memory_space<vmem>>, vector<1x8x256xf32>
    %1040 = vector.shape_cast %1039 : vector<1x8x256xf32> to vector<8x256xf32>
    %1041 = arith.select %4, %1037, %1040 : vector<8x256xi1>, vector<8x256xf32>
    %cst_374 = arith.constant dense<0.000000e+00> : vector<8x256xf32>
    %1042 = tpu.matmul %1032, %792, %cst_374 {dimension_numbers = #tpu.dot_dimension_numbers<[1], [0], [0], [1], [0, 0, 1, 1], [], []>} : vector<8x64xf32>, vector<64x256xf32>, vector<8x256xf32> -> vector<8x256xf32>
    %1043 = arith.addf %1041, %1042 : vector<8x256xf32>
    %1044 = arith.negf %1043 : vector<8x256xf32>
    %1045 = math.exp %1044 : vector<8x256xf32>
    %cst_375 = arith.constant 1.000000e+00 : f32
    %1046 = vector.broadcast %cst_375 : f32 to vector<8x256xf32>
    %1047 = arith.addf %1046, %1045 : vector<8x256xf32>
    %1048 = arith.divf %1046, %1047 : vector<8x256xf32>
    %1049 = vector.extract_strided_slice %1048 {offsets = [0, 0], sizes = [8, 64], strides = [1, 1]} : vector<8x256xf32> to vector<8x64xf32>
    %1050 = vector.extract_strided_slice %1048 {offsets = [0, 64], sizes = [8, 64], strides = [1, 1]} : vector<8x256xf32> to vector<8x64xf32>
    %1051 = vector.extract_strided_slice %1043 {offsets = [0, 128], sizes = [8, 64], strides = [1, 1]} : vector<8x256xf32> to vector<8x64xf32>
    %1052 = math.tanh %1051 : vector<8x64xf32>
    %1053 = vector.extract_strided_slice %1048 {offsets = [0, 192], sizes = [8, 64], strides = [1, 1]} : vector<8x256xf32> to vector<8x64xf32>
    %1054 = arith.mulf %1050, %1033 : vector<8x64xf32>
    %1055 = arith.mulf %1049, %1052 : vector<8x64xf32>
    %1056 = arith.addf %1054, %1055 : vector<8x64xf32>
    %1057 = math.tanh %1056 : vector<8x64xf32>
    %1058 = arith.mulf %1053, %1057 : vector<8x64xf32>
    %1059 = arith.index_cast %c5_i32_368 : i32 to index
    %c0_376 = arith.constant 0 : index
    %c0_377 = arith.constant 0 : index
    %1060 = vector.load %arg1[%1059, %c0_376, %c0_377] : memref<16x8x64xi32, #tpu.memory_space<vmem>>, vector<1x8x64xi32>
    %1061 = vector.shape_cast %1060 : vector<1x8x64xi32> to vector<8x64xi32>
    %c0_i32_378 = arith.constant 0 : i32
    %1062 = vector.broadcast %c0_i32_378 : i32 to vector<8x64xi32>
    %1063 = arith.cmpi ne, %1061, %1062 : vector<8x64xi32>
    %1064 = vector.extract_strided_slice %1063 {offsets = [0, 0], sizes = [8, 32], strides = [1, 1]} : vector<8x64xi1> to vector<8x32xi1>
    %1065 = vector.extract_strided_slice %1058 {offsets = [0, 0], sizes = [8, 32], strides = [1, 1]} : vector<8x64xf32> to vector<8x32xf32>
    %cst_379 = arith.constant 0.000000e+00 : f32
    %1066 = vector.broadcast %cst_379 : f32 to vector<8x32xf32>
    %1067 = arith.select %1064, %1065, %1066 : vector<8x32xi1>, vector<8x32xf32>
    %1068 = arith.index_cast %c5_i32_368 : i32 to index
    %c0_380 = arith.constant 0 : index
    %c0_381 = arith.constant 0 : index
    %1069 = vector.load %arg13[%1068, %c0_380, %c0_381] : memref<16x8x64xf32, #tpu.memory_space<vmem>>, vector<1x8x32xf32>
    %1070 = vector.shape_cast %1069 : vector<1x8x32xf32> to vector<8x32xf32>
    %1071 = vector.shape_cast %1067 : vector<8x32xf32> to vector<1x8x32xf32>
    tpu.vector_store %arg13[%1068, %c0_380, %c0_381], %1071 {strides = array<i32>} : memref<16x8x64xf32, #tpu.memory_space<vmem>>, vector<1x8x32xf32>,
    %1072 = vector.extract_strided_slice %1063 {offsets = [0, 32], sizes = [8, 32], strides = [1, 1]} : vector<8x64xi1> to vector<8x32xi1>
    %1073 = vector.extract_strided_slice %1058 {offsets = [0, 32], sizes = [8, 32], strides = [1, 1]} : vector<8x64xf32> to vector<8x32xf32>
    %cst_382 = arith.constant 0.000000e+00 : f32
    %1074 = vector.broadcast %cst_382 : f32 to vector<8x32xf32>
    %1075 = arith.select %1072, %1073, %1074 : vector<8x32xi1>, vector<8x32xf32>
    %1076 = arith.index_cast %1034 : i32 to index
    %c0_383 = arith.constant 0 : index
    %c32_384 = arith.constant 32 : index
    %1077 = vector.load %arg13[%1076, %c0_383, %c32_384] : memref<16x8x64xf32, #tpu.memory_space<vmem>>, vector<1x8x32xf32>
    %1078 = vector.shape_cast %1077 : vector<1x8x32xf32> to vector<8x32xf32>
    %1079 = vector.shape_cast %1075 : vector<8x32xf32> to vector<1x8x32xf32>
    tpu.vector_store %arg13[%1076, %c0_383, %c32_384], %1079 {strides = array<i32>} : memref<16x8x64xf32, #tpu.memory_space<vmem>>, vector<1x8x32xf32>,
    %1080 = arith.select %1063, %1058, %1032 : vector<8x64xi1>, vector<8x64xf32>
    %1081 = arith.select %1063, %1056, %1033 : vector<8x64xi1>, vector<8x64xf32>
    %c6_i32_385 = arith.constant 6 : i32
    %c15_i32_386 = arith.constant 15 : i32
    %1082 = arith.subi %c15_i32_386, %c6_i32_385 : i32
    %1083 = arith.index_cast %c6_i32_385 : i32 to index
    %c0_387 = arith.constant 0 : index
    %c0_388 = arith.constant 0 : index
    %1084 = vector.load %arg12[%1083, %c0_387, %c0_388] : memref<16x8x256xf32, #tpu.memory_space<vmem>>, vector<1x8x256xf32>
    %1085 = vector.shape_cast %1084 : vector<1x8x256xf32> to vector<8x256xf32>
    %1086 = arith.index_cast %1082 : i32 to index
    %c0_389 = arith.constant 0 : index
    %c0_390 = arith.constant 0 : index
    %1087 = vector.load %arg12[%1086, %c0_389, %c0_390] : memref<16x8x256xf32, #tpu.memory_space<vmem>>, vector<1x8x256xf32>
    %1088 = vector.shape_cast %1087 : vector<1x8x256xf32> to vector<8x256xf32>
    %1089 = arith.select %4, %1085, %1088 : vector<8x256xi1>, vector<8x256xf32>
    %cst_391 = arith.constant dense<0.000000e+00> : vector<8x256xf32>
    %1090 = tpu.matmul %1080, %792, %cst_391 {dimension_numbers = #tpu.dot_dimension_numbers<[1], [0], [0], [1], [0, 0, 1, 1], [], []>} : vector<8x64xf32>, vector<64x256xf32>, vector<8x256xf32> -> vector<8x256xf32>
    %1091 = arith.addf %1089, %1090 : vector<8x256xf32>
    %1092 = arith.negf %1091 : vector<8x256xf32>
    %1093 = math.exp %1092 : vector<8x256xf32>
    %cst_392 = arith.constant 1.000000e+00 : f32
    %1094 = vector.broadcast %cst_392 : f32 to vector<8x256xf32>
    %1095 = arith.addf %1094, %1093 : vector<8x256xf32>
    %1096 = arith.divf %1094, %1095 : vector<8x256xf32>
    %1097 = vector.extract_strided_slice %1096 {offsets = [0, 0], sizes = [8, 64], strides = [1, 1]} : vector<8x256xf32> to vector<8x64xf32>
    %1098 = vector.extract_strided_slice %1096 {offsets = [0, 64], sizes = [8, 64], strides = [1, 1]} : vector<8x256xf32> to vector<8x64xf32>
    %1099 = vector.extract_strided_slice %1091 {offsets = [0, 128], sizes = [8, 64], strides = [1, 1]} : vector<8x256xf32> to vector<8x64xf32>
    %1100 = math.tanh %1099 : vector<8x64xf32>
    %1101 = vector.extract_strided_slice %1096 {offsets = [0, 192], sizes = [8, 64], strides = [1, 1]} : vector<8x256xf32> to vector<8x64xf32>
    %1102 = arith.mulf %1098, %1081 : vector<8x64xf32>
    %1103 = arith.mulf %1097, %1100 : vector<8x64xf32>
    %1104 = arith.addf %1102, %1103 : vector<8x64xf32>
    %1105 = math.tanh %1104 : vector<8x64xf32>
    %1106 = arith.mulf %1101, %1105 : vector<8x64xf32>
    %1107 = arith.index_cast %c6_i32_385 : i32 to index
    %c0_393 = arith.constant 0 : index
    %c0_394 = arith.constant 0 : index
    %1108 = vector.load %arg1[%1107, %c0_393, %c0_394] : memref<16x8x64xi32, #tpu.memory_space<vmem>>, vector<1x8x64xi32>
    %1109 = vector.shape_cast %1108 : vector<1x8x64xi32> to vector<8x64xi32>
    %c0_i32_395 = arith.constant 0 : i32
    %1110 = vector.broadcast %c0_i32_395 : i32 to vector<8x64xi32>
    %1111 = arith.cmpi ne, %1109, %1110 : vector<8x64xi32>
    %1112 = vector.extract_strided_slice %1111 {offsets = [0, 0], sizes = [8, 32], strides = [1, 1]} : vector<8x64xi1> to vector<8x32xi1>
    %1113 = vector.extract_strided_slice %1106 {offsets = [0, 0], sizes = [8, 32], strides = [1, 1]} : vector<8x64xf32> to vector<8x32xf32>
    %cst_396 = arith.constant 0.000000e+00 : f32
    %1114 = vector.broadcast %cst_396 : f32 to vector<8x32xf32>
    %1115 = arith.select %1112, %1113, %1114 : vector<8x32xi1>, vector<8x32xf32>
    %1116 = arith.index_cast %c6_i32_385 : i32 to index
    %c0_397 = arith.constant 0 : index
    %c0_398 = arith.constant 0 : index
    %1117 = vector.load %arg13[%1116, %c0_397, %c0_398] : memref<16x8x64xf32, #tpu.memory_space<vmem>>, vector<1x8x32xf32>
    %1118 = vector.shape_cast %1117 : vector<1x8x32xf32> to vector<8x32xf32>
    %1119 = vector.shape_cast %1115 : vector<8x32xf32> to vector<1x8x32xf32>
    tpu.vector_store %arg13[%1116, %c0_397, %c0_398], %1119 {strides = array<i32>} : memref<16x8x64xf32, #tpu.memory_space<vmem>>, vector<1x8x32xf32>,
    %1120 = vector.extract_strided_slice %1111 {offsets = [0, 32], sizes = [8, 32], strides = [1, 1]} : vector<8x64xi1> to vector<8x32xi1>
    %1121 = vector.extract_strided_slice %1106 {offsets = [0, 32], sizes = [8, 32], strides = [1, 1]} : vector<8x64xf32> to vector<8x32xf32>
    %cst_399 = arith.constant 0.000000e+00 : f32
    %1122 = vector.broadcast %cst_399 : f32 to vector<8x32xf32>
    %1123 = arith.select %1120, %1121, %1122 : vector<8x32xi1>, vector<8x32xf32>
    %1124 = arith.index_cast %1082 : i32 to index
    %c0_400 = arith.constant 0 : index
    %c32_401 = arith.constant 32 : index
    %1125 = vector.load %arg13[%1124, %c0_400, %c32_401] : memref<16x8x64xf32, #tpu.memory_space<vmem>>, vector<1x8x32xf32>
    %1126 = vector.shape_cast %1125 : vector<1x8x32xf32> to vector<8x32xf32>
    %1127 = vector.shape_cast %1123 : vector<8x32xf32> to vector<1x8x32xf32>
    tpu.vector_store %arg13[%1124, %c0_400, %c32_401], %1127 {strides = array<i32>} : memref<16x8x64xf32, #tpu.memory_space<vmem>>, vector<1x8x32xf32>,
    %1128 = arith.select %1111, %1106, %1080 : vector<8x64xi1>, vector<8x64xf32>
    %1129 = arith.select %1111, %1104, %1081 : vector<8x64xi1>, vector<8x64xf32>
    %c7_i32_402 = arith.constant 7 : i32
    %c15_i32_403 = arith.constant 15 : i32
    %1130 = arith.subi %c15_i32_403, %c7_i32_402 : i32
    %1131 = arith.index_cast %c7_i32_402 : i32 to index
    %c0_404 = arith.constant 0 : index
    %c0_405 = arith.constant 0 : index
    %1132 = vector.load %arg12[%1131, %c0_404, %c0_405] : memref<16x8x256xf32, #tpu.memory_space<vmem>>, vector<1x8x256xf32>
    %1133 = vector.shape_cast %1132 : vector<1x8x256xf32> to vector<8x256xf32>
    %1134 = arith.index_cast %1130 : i32 to index
    %c0_406 = arith.constant 0 : index
    %c0_407 = arith.constant 0 : index
    %1135 = vector.load %arg12[%1134, %c0_406, %c0_407] : memref<16x8x256xf32, #tpu.memory_space<vmem>>, vector<1x8x256xf32>
    %1136 = vector.shape_cast %1135 : vector<1x8x256xf32> to vector<8x256xf32>
    %1137 = arith.select %4, %1133, %1136 : vector<8x256xi1>, vector<8x256xf32>
    %cst_408 = arith.constant dense<0.000000e+00> : vector<8x256xf32>
    %1138 = tpu.matmul %1128, %792, %cst_408 {dimension_numbers = #tpu.dot_dimension_numbers<[1], [0], [0], [1], [0, 0, 1, 1], [], []>} : vector<8x64xf32>, vector<64x256xf32>, vector<8x256xf32> -> vector<8x256xf32>
    %1139 = arith.addf %1137, %1138 : vector<8x256xf32>
    %1140 = arith.negf %1139 : vector<8x256xf32>
    %1141 = math.exp %1140 : vector<8x256xf32>
    %cst_409 = arith.constant 1.000000e+00 : f32
    %1142 = vector.broadcast %cst_409 : f32 to vector<8x256xf32>
    %1143 = arith.addf %1142, %1141 : vector<8x256xf32>
    %1144 = arith.divf %1142, %1143 : vector<8x256xf32>
    %1145 = vector.extract_strided_slice %1144 {offsets = [0, 0], sizes = [8, 64], strides = [1, 1]} : vector<8x256xf32> to vector<8x64xf32>
    %1146 = vector.extract_strided_slice %1144 {offsets = [0, 64], sizes = [8, 64], strides = [1, 1]} : vector<8x256xf32> to vector<8x64xf32>
    %1147 = vector.extract_strided_slice %1139 {offsets = [0, 128], sizes = [8, 64], strides = [1, 1]} : vector<8x256xf32> to vector<8x64xf32>
    %1148 = math.tanh %1147 : vector<8x64xf32>
    %1149 = vector.extract_strided_slice %1144 {offsets = [0, 192], sizes = [8, 64], strides = [1, 1]} : vector<8x256xf32> to vector<8x64xf32>
    %1150 = arith.mulf %1146, %1129 : vector<8x64xf32>
    %1151 = arith.mulf %1145, %1148 : vector<8x64xf32>
    %1152 = arith.addf %1150, %1151 : vector<8x64xf32>
    %1153 = math.tanh %1152 : vector<8x64xf32>
    %1154 = arith.mulf %1149, %1153 : vector<8x64xf32>
    %1155 = arith.index_cast %c7_i32_402 : i32 to index
    %c0_410 = arith.constant 0 : index
    %c0_411 = arith.constant 0 : index
    %1156 = vector.load %arg1[%1155, %c0_410, %c0_411] : memref<16x8x64xi32, #tpu.memory_space<vmem>>, vector<1x8x64xi32>
    %1157 = vector.shape_cast %1156 : vector<1x8x64xi32> to vector<8x64xi32>
    %c0_i32_412 = arith.constant 0 : i32
    %1158 = vector.broadcast %c0_i32_412 : i32 to vector<8x64xi32>
    %1159 = arith.cmpi ne, %1157, %1158 : vector<8x64xi32>
    %1160 = vector.extract_strided_slice %1159 {offsets = [0, 0], sizes = [8, 32], strides = [1, 1]} : vector<8x64xi1> to vector<8x32xi1>
    %1161 = vector.extract_strided_slice %1154 {offsets = [0, 0], sizes = [8, 32], strides = [1, 1]} : vector<8x64xf32> to vector<8x32xf32>
    %cst_413 = arith.constant 0.000000e+00 : f32
    %1162 = vector.broadcast %cst_413 : f32 to vector<8x32xf32>
    %1163 = arith.select %1160, %1161, %1162 : vector<8x32xi1>, vector<8x32xf32>
    %1164 = arith.index_cast %c7_i32_402 : i32 to index
    %c0_414 = arith.constant 0 : index
    %c0_415 = arith.constant 0 : index
    %1165 = vector.load %arg13[%1164, %c0_414, %c0_415] : memref<16x8x64xf32, #tpu.memory_space<vmem>>, vector<1x8x32xf32>
    %1166 = vector.shape_cast %1165 : vector<1x8x32xf32> to vector<8x32xf32>
    %1167 = vector.shape_cast %1163 : vector<8x32xf32> to vector<1x8x32xf32>
    tpu.vector_store %arg13[%1164, %c0_414, %c0_415], %1167 {strides = array<i32>} : memref<16x8x64xf32, #tpu.memory_space<vmem>>, vector<1x8x32xf32>,
    %1168 = vector.extract_strided_slice %1159 {offsets = [0, 32], sizes = [8, 32], strides = [1, 1]} : vector<8x64xi1> to vector<8x32xi1>
    %1169 = vector.extract_strided_slice %1154 {offsets = [0, 32], sizes = [8, 32], strides = [1, 1]} : vector<8x64xf32> to vector<8x32xf32>
    %cst_416 = arith.constant 0.000000e+00 : f32
    %1170 = vector.broadcast %cst_416 : f32 to vector<8x32xf32>
    %1171 = arith.select %1168, %1169, %1170 : vector<8x32xi1>, vector<8x32xf32>
    %1172 = arith.index_cast %1130 : i32 to index
    %c0_417 = arith.constant 0 : index
    %c32_418 = arith.constant 32 : index
    %1173 = vector.load %arg13[%1172, %c0_417, %c32_418] : memref<16x8x64xf32, #tpu.memory_space<vmem>>, vector<1x8x32xf32>
    %1174 = vector.shape_cast %1173 : vector<1x8x32xf32> to vector<8x32xf32>
    %1175 = vector.shape_cast %1171 : vector<8x32xf32> to vector<1x8x32xf32>
    tpu.vector_store %arg13[%1172, %c0_417, %c32_418], %1175 {strides = array<i32>} : memref<16x8x64xf32, #tpu.memory_space<vmem>>, vector<1x8x32xf32>,
    %1176 = arith.select %1159, %1154, %1128 : vector<8x64xi1>, vector<8x64xf32>
    %1177 = arith.select %1159, %1152, %1129 : vector<8x64xi1>, vector<8x64xf32>
    %c8_i32_419 = arith.constant 8 : i32
    %c15_i32_420 = arith.constant 15 : i32
    %1178 = arith.subi %c15_i32_420, %c8_i32_419 : i32
    %1179 = arith.index_cast %c8_i32_419 : i32 to index
    %c0_421 = arith.constant 0 : index
    %c0_422 = arith.constant 0 : index
    %1180 = vector.load %arg12[%1179, %c0_421, %c0_422] : memref<16x8x256xf32, #tpu.memory_space<vmem>>, vector<1x8x256xf32>
    %1181 = vector.shape_cast %1180 : vector<1x8x256xf32> to vector<8x256xf32>
    %1182 = arith.index_cast %1178 : i32 to index
    %c0_423 = arith.constant 0 : index
    %c0_424 = arith.constant 0 : index
    %1183 = vector.load %arg12[%1182, %c0_423, %c0_424] : memref<16x8x256xf32, #tpu.memory_space<vmem>>, vector<1x8x256xf32>
    %1184 = vector.shape_cast %1183 : vector<1x8x256xf32> to vector<8x256xf32>
    %1185 = arith.select %4, %1181, %1184 : vector<8x256xi1>, vector<8x256xf32>
    %cst_425 = arith.constant dense<0.000000e+00> : vector<8x256xf32>
    %1186 = tpu.matmul %1176, %792, %cst_425 {dimension_numbers = #tpu.dot_dimension_numbers<[1], [0], [0], [1], [0, 0, 1, 1], [], []>} : vector<8x64xf32>, vector<64x256xf32>, vector<8x256xf32> -> vector<8x256xf32>
    %1187 = arith.addf %1185, %1186 : vector<8x256xf32>
    %1188 = arith.negf %1187 : vector<8x256xf32>
    %1189 = math.exp %1188 : vector<8x256xf32>
    %cst_426 = arith.constant 1.000000e+00 : f32
    %1190 = vector.broadcast %cst_426 : f32 to vector<8x256xf32>
    %1191 = arith.addf %1190, %1189 : vector<8x256xf32>
    %1192 = arith.divf %1190, %1191 : vector<8x256xf32>
    %1193 = vector.extract_strided_slice %1192 {offsets = [0, 0], sizes = [8, 64], strides = [1, 1]} : vector<8x256xf32> to vector<8x64xf32>
    %1194 = vector.extract_strided_slice %1192 {offsets = [0, 64], sizes = [8, 64], strides = [1, 1]} : vector<8x256xf32> to vector<8x64xf32>
    %1195 = vector.extract_strided_slice %1187 {offsets = [0, 128], sizes = [8, 64], strides = [1, 1]} : vector<8x256xf32> to vector<8x64xf32>
    %1196 = math.tanh %1195 : vector<8x64xf32>
    %1197 = vector.extract_strided_slice %1192 {offsets = [0, 192], sizes = [8, 64], strides = [1, 1]} : vector<8x256xf32> to vector<8x64xf32>
    %1198 = arith.mulf %1194, %1177 : vector<8x64xf32>
    %1199 = arith.mulf %1193, %1196 : vector<8x64xf32>
    %1200 = arith.addf %1198, %1199 : vector<8x64xf32>
    %1201 = math.tanh %1200 : vector<8x64xf32>
    %1202 = arith.mulf %1197, %1201 : vector<8x64xf32>
    %1203 = arith.index_cast %c8_i32_419 : i32 to index
    %c0_427 = arith.constant 0 : index
    %c0_428 = arith.constant 0 : index
    %1204 = vector.load %arg1[%1203, %c0_427, %c0_428] : memref<16x8x64xi32, #tpu.memory_space<vmem>>, vector<1x8x64xi32>
    %1205 = vector.shape_cast %1204 : vector<1x8x64xi32> to vector<8x64xi32>
    %c0_i32_429 = arith.constant 0 : i32
    %1206 = vector.broadcast %c0_i32_429 : i32 to vector<8x64xi32>
    %1207 = arith.cmpi ne, %1205, %1206 : vector<8x64xi32>
    %1208 = vector.extract_strided_slice %1207 {offsets = [0, 0], sizes = [8, 32], strides = [1, 1]} : vector<8x64xi1> to vector<8x32xi1>
    %1209 = vector.extract_strided_slice %1202 {offsets = [0, 0], sizes = [8, 32], strides = [1, 1]} : vector<8x64xf32> to vector<8x32xf32>
    %cst_430 = arith.constant 0.000000e+00 : f32
    %1210 = vector.broadcast %cst_430 : f32 to vector<8x32xf32>
    %1211 = arith.select %1208, %1209, %1210 : vector<8x32xi1>, vector<8x32xf32>
    %1212 = arith.index_cast %c8_i32_419 : i32 to index
    %c0_431 = arith.constant 0 : index
    %c0_432 = arith.constant 0 : index
    %1213 = vector.load %arg13[%1212, %c0_431, %c0_432] : memref<16x8x64xf32, #tpu.memory_space<vmem>>, vector<1x8x32xf32>
    %1214 = vector.shape_cast %1213 : vector<1x8x32xf32> to vector<8x32xf32>
    %1215 = vector.shape_cast %1211 : vector<8x32xf32> to vector<1x8x32xf32>
    tpu.vector_store %arg13[%1212, %c0_431, %c0_432], %1215 {strides = array<i32>} : memref<16x8x64xf32, #tpu.memory_space<vmem>>, vector<1x8x32xf32>,
    %1216 = vector.extract_strided_slice %1207 {offsets = [0, 32], sizes = [8, 32], strides = [1, 1]} : vector<8x64xi1> to vector<8x32xi1>
    %1217 = vector.extract_strided_slice %1202 {offsets = [0, 32], sizes = [8, 32], strides = [1, 1]} : vector<8x64xf32> to vector<8x32xf32>
    %cst_433 = arith.constant 0.000000e+00 : f32
    %1218 = vector.broadcast %cst_433 : f32 to vector<8x32xf32>
    %1219 = arith.select %1216, %1217, %1218 : vector<8x32xi1>, vector<8x32xf32>
    %1220 = arith.index_cast %1178 : i32 to index
    %c0_434 = arith.constant 0 : index
    %c32_435 = arith.constant 32 : index
    %1221 = vector.load %arg13[%1220, %c0_434, %c32_435] : memref<16x8x64xf32, #tpu.memory_space<vmem>>, vector<1x8x32xf32>
    %1222 = vector.shape_cast %1221 : vector<1x8x32xf32> to vector<8x32xf32>
    %1223 = vector.shape_cast %1219 : vector<8x32xf32> to vector<1x8x32xf32>
    tpu.vector_store %arg13[%1220, %c0_434, %c32_435], %1223 {strides = array<i32>} : memref<16x8x64xf32, #tpu.memory_space<vmem>>, vector<1x8x32xf32>,
    %1224 = arith.select %1207, %1202, %1176 : vector<8x64xi1>, vector<8x64xf32>
    %1225 = arith.select %1207, %1200, %1177 : vector<8x64xi1>, vector<8x64xf32>
    %c9_i32_436 = arith.constant 9 : i32
    %c15_i32_437 = arith.constant 15 : i32
    %1226 = arith.subi %c15_i32_437, %c9_i32_436 : i32
    %1227 = arith.index_cast %c9_i32_436 : i32 to index
    %c0_438 = arith.constant 0 : index
    %c0_439 = arith.constant 0 : index
    %1228 = vector.load %arg12[%1227, %c0_438, %c0_439] : memref<16x8x256xf32, #tpu.memory_space<vmem>>, vector<1x8x256xf32>
    %1229 = vector.shape_cast %1228 : vector<1x8x256xf32> to vector<8x256xf32>
    %1230 = arith.index_cast %1226 : i32 to index
    %c0_440 = arith.constant 0 : index
    %c0_441 = arith.constant 0 : index
    %1231 = vector.load %arg12[%1230, %c0_440, %c0_441] : memref<16x8x256xf32, #tpu.memory_space<vmem>>, vector<1x8x256xf32>
    %1232 = vector.shape_cast %1231 : vector<1x8x256xf32> to vector<8x256xf32>
    %1233 = arith.select %4, %1229, %1232 : vector<8x256xi1>, vector<8x256xf32>
    %cst_442 = arith.constant dense<0.000000e+00> : vector<8x256xf32>
    %1234 = tpu.matmul %1224, %792, %cst_442 {dimension_numbers = #tpu.dot_dimension_numbers<[1], [0], [0], [1], [0, 0, 1, 1], [], []>} : vector<8x64xf32>, vector<64x256xf32>, vector<8x256xf32> -> vector<8x256xf32>
    %1235 = arith.addf %1233, %1234 : vector<8x256xf32>
    %1236 = arith.negf %1235 : vector<8x256xf32>
    %1237 = math.exp %1236 : vector<8x256xf32>
    %cst_443 = arith.constant 1.000000e+00 : f32
    %1238 = vector.broadcast %cst_443 : f32 to vector<8x256xf32>
    %1239 = arith.addf %1238, %1237 : vector<8x256xf32>
    %1240 = arith.divf %1238, %1239 : vector<8x256xf32>
    %1241 = vector.extract_strided_slice %1240 {offsets = [0, 0], sizes = [8, 64], strides = [1, 1]} : vector<8x256xf32> to vector<8x64xf32>
    %1242 = vector.extract_strided_slice %1240 {offsets = [0, 64], sizes = [8, 64], strides = [1, 1]} : vector<8x256xf32> to vector<8x64xf32>
    %1243 = vector.extract_strided_slice %1235 {offsets = [0, 128], sizes = [8, 64], strides = [1, 1]} : vector<8x256xf32> to vector<8x64xf32>
    %1244 = math.tanh %1243 : vector<8x64xf32>
    %1245 = vector.extract_strided_slice %1240 {offsets = [0, 192], sizes = [8, 64], strides = [1, 1]} : vector<8x256xf32> to vector<8x64xf32>
    %1246 = arith.mulf %1242, %1225 : vector<8x64xf32>
    %1247 = arith.mulf %1241, %1244 : vector<8x64xf32>
    %1248 = arith.addf %1246, %1247 : vector<8x64xf32>
    %1249 = math.tanh %1248 : vector<8x64xf32>
    %1250 = arith.mulf %1245, %1249 : vector<8x64xf32>
    %1251 = arith.index_cast %c9_i32_436 : i32 to index
    %c0_444 = arith.constant 0 : index
    %c0_445 = arith.constant 0 : index
    %1252 = vector.load %arg1[%1251, %c0_444, %c0_445] : memref<16x8x64xi32, #tpu.memory_space<vmem>>, vector<1x8x64xi32>
    %1253 = vector.shape_cast %1252 : vector<1x8x64xi32> to vector<8x64xi32>
    %c0_i32_446 = arith.constant 0 : i32
    %1254 = vector.broadcast %c0_i32_446 : i32 to vector<8x64xi32>
    %1255 = arith.cmpi ne, %1253, %1254 : vector<8x64xi32>
    %1256 = vector.extract_strided_slice %1255 {offsets = [0, 0], sizes = [8, 32], strides = [1, 1]} : vector<8x64xi1> to vector<8x32xi1>
    %1257 = vector.extract_strided_slice %1250 {offsets = [0, 0], sizes = [8, 32], strides = [1, 1]} : vector<8x64xf32> to vector<8x32xf32>
    %cst_447 = arith.constant 0.000000e+00 : f32
    %1258 = vector.broadcast %cst_447 : f32 to vector<8x32xf32>
    %1259 = arith.select %1256, %1257, %1258 : vector<8x32xi1>, vector<8x32xf32>
    %1260 = arith.index_cast %c9_i32_436 : i32 to index
    %c0_448 = arith.constant 0 : index
    %c0_449 = arith.constant 0 : index
    %1261 = vector.load %arg13[%1260, %c0_448, %c0_449] : memref<16x8x64xf32, #tpu.memory_space<vmem>>, vector<1x8x32xf32>
    %1262 = vector.shape_cast %1261 : vector<1x8x32xf32> to vector<8x32xf32>
    %1263 = vector.shape_cast %1259 : vector<8x32xf32> to vector<1x8x32xf32>
    tpu.vector_store %arg13[%1260, %c0_448, %c0_449], %1263 {strides = array<i32>} : memref<16x8x64xf32, #tpu.memory_space<vmem>>, vector<1x8x32xf32>,
    %1264 = vector.extract_strided_slice %1255 {offsets = [0, 32], sizes = [8, 32], strides = [1, 1]} : vector<8x64xi1> to vector<8x32xi1>
    %1265 = vector.extract_strided_slice %1250 {offsets = [0, 32], sizes = [8, 32], strides = [1, 1]} : vector<8x64xf32> to vector<8x32xf32>
    %cst_450 = arith.constant 0.000000e+00 : f32
    %1266 = vector.broadcast %cst_450 : f32 to vector<8x32xf32>
    %1267 = arith.select %1264, %1265, %1266 : vector<8x32xi1>, vector<8x32xf32>
    %1268 = arith.index_cast %1226 : i32 to index
    %c0_451 = arith.constant 0 : index
    %c32_452 = arith.constant 32 : index
    %1269 = vector.load %arg13[%1268, %c0_451, %c32_452] : memref<16x8x64xf32, #tpu.memory_space<vmem>>, vector<1x8x32xf32>
    %1270 = vector.shape_cast %1269 : vector<1x8x32xf32> to vector<8x32xf32>
    %1271 = vector.shape_cast %1267 : vector<8x32xf32> to vector<1x8x32xf32>
    tpu.vector_store %arg13[%1268, %c0_451, %c32_452], %1271 {strides = array<i32>} : memref<16x8x64xf32, #tpu.memory_space<vmem>>, vector<1x8x32xf32>,
    %1272 = arith.select %1255, %1250, %1224 : vector<8x64xi1>, vector<8x64xf32>
    %1273 = arith.select %1255, %1248, %1225 : vector<8x64xi1>, vector<8x64xf32>
    %c10_i32_453 = arith.constant 10 : i32
    %c15_i32_454 = arith.constant 15 : i32
    %1274 = arith.subi %c15_i32_454, %c10_i32_453 : i32
    %1275 = arith.index_cast %c10_i32_453 : i32 to index
    %c0_455 = arith.constant 0 : index
    %c0_456 = arith.constant 0 : index
    %1276 = vector.load %arg12[%1275, %c0_455, %c0_456] : memref<16x8x256xf32, #tpu.memory_space<vmem>>, vector<1x8x256xf32>
    %1277 = vector.shape_cast %1276 : vector<1x8x256xf32> to vector<8x256xf32>
    %1278 = arith.index_cast %1274 : i32 to index
    %c0_457 = arith.constant 0 : index
    %c0_458 = arith.constant 0 : index
    %1279 = vector.load %arg12[%1278, %c0_457, %c0_458] : memref<16x8x256xf32, #tpu.memory_space<vmem>>, vector<1x8x256xf32>
    %1280 = vector.shape_cast %1279 : vector<1x8x256xf32> to vector<8x256xf32>
    %1281 = arith.select %4, %1277, %1280 : vector<8x256xi1>, vector<8x256xf32>
    %cst_459 = arith.constant dense<0.000000e+00> : vector<8x256xf32>
    %1282 = tpu.matmul %1272, %792, %cst_459 {dimension_numbers = #tpu.dot_dimension_numbers<[1], [0], [0], [1], [0, 0, 1, 1], [], []>} : vector<8x64xf32>, vector<64x256xf32>, vector<8x256xf32> -> vector<8x256xf32>
    %1283 = arith.addf %1281, %1282 : vector<8x256xf32>
    %1284 = arith.negf %1283 : vector<8x256xf32>
    %1285 = math.exp %1284 : vector<8x256xf32>
    %cst_460 = arith.constant 1.000000e+00 : f32
    %1286 = vector.broadcast %cst_460 : f32 to vector<8x256xf32>
    %1287 = arith.addf %1286, %1285 : vector<8x256xf32>
    %1288 = arith.divf %1286, %1287 : vector<8x256xf32>
    %1289 = vector.extract_strided_slice %1288 {offsets = [0, 0], sizes = [8, 64], strides = [1, 1]} : vector<8x256xf32> to vector<8x64xf32>
    %1290 = vector.extract_strided_slice %1288 {offsets = [0, 64], sizes = [8, 64], strides = [1, 1]} : vector<8x256xf32> to vector<8x64xf32>
    %1291 = vector.extract_strided_slice %1283 {offsets = [0, 128], sizes = [8, 64], strides = [1, 1]} : vector<8x256xf32> to vector<8x64xf32>
    %1292 = math.tanh %1291 : vector<8x64xf32>
    %1293 = vector.extract_strided_slice %1288 {offsets = [0, 192], sizes = [8, 64], strides = [1, 1]} : vector<8x256xf32> to vector<8x64xf32>
    %1294 = arith.mulf %1290, %1273 : vector<8x64xf32>
    %1295 = arith.mulf %1289, %1292 : vector<8x64xf32>
    %1296 = arith.addf %1294, %1295 : vector<8x64xf32>
    %1297 = math.tanh %1296 : vector<8x64xf32>
    %1298 = arith.mulf %1293, %1297 : vector<8x64xf32>
    %1299 = arith.index_cast %c10_i32_453 : i32 to index
    %c0_461 = arith.constant 0 : index
    %c0_462 = arith.constant 0 : index
    %1300 = vector.load %arg1[%1299, %c0_461, %c0_462] : memref<16x8x64xi32, #tpu.memory_space<vmem>>, vector<1x8x64xi32>
    %1301 = vector.shape_cast %1300 : vector<1x8x64xi32> to vector<8x64xi32>
    %c0_i32_463 = arith.constant 0 : i32
    %1302 = vector.broadcast %c0_i32_463 : i32 to vector<8x64xi32>
    %1303 = arith.cmpi ne, %1301, %1302 : vector<8x64xi32>
    %1304 = vector.extract_strided_slice %1303 {offsets = [0, 0], sizes = [8, 32], strides = [1, 1]} : vector<8x64xi1> to vector<8x32xi1>
    %1305 = vector.extract_strided_slice %1298 {offsets = [0, 0], sizes = [8, 32], strides = [1, 1]} : vector<8x64xf32> to vector<8x32xf32>
    %cst_464 = arith.constant 0.000000e+00 : f32
    %1306 = vector.broadcast %cst_464 : f32 to vector<8x32xf32>
    %1307 = arith.select %1304, %1305, %1306 : vector<8x32xi1>, vector<8x32xf32>
    %1308 = arith.index_cast %c10_i32_453 : i32 to index
    %c0_465 = arith.constant 0 : index
    %c0_466 = arith.constant 0 : index
    %1309 = vector.load %arg13[%1308, %c0_465, %c0_466] : memref<16x8x64xf32, #tpu.memory_space<vmem>>, vector<1x8x32xf32>
    %1310 = vector.shape_cast %1309 : vector<1x8x32xf32> to vector<8x32xf32>
    %1311 = vector.shape_cast %1307 : vector<8x32xf32> to vector<1x8x32xf32>
    tpu.vector_store %arg13[%1308, %c0_465, %c0_466], %1311 {strides = array<i32>} : memref<16x8x64xf32, #tpu.memory_space<vmem>>, vector<1x8x32xf32>,
    %1312 = vector.extract_strided_slice %1303 {offsets = [0, 32], sizes = [8, 32], strides = [1, 1]} : vector<8x64xi1> to vector<8x32xi1>
    %1313 = vector.extract_strided_slice %1298 {offsets = [0, 32], sizes = [8, 32], strides = [1, 1]} : vector<8x64xf32> to vector<8x32xf32>
    %cst_467 = arith.constant 0.000000e+00 : f32
    %1314 = vector.broadcast %cst_467 : f32 to vector<8x32xf32>
    %1315 = arith.select %1312, %1313, %1314 : vector<8x32xi1>, vector<8x32xf32>
    %1316 = arith.index_cast %1274 : i32 to index
    %c0_468 = arith.constant 0 : index
    %c32_469 = arith.constant 32 : index
    %1317 = vector.load %arg13[%1316, %c0_468, %c32_469] : memref<16x8x64xf32, #tpu.memory_space<vmem>>, vector<1x8x32xf32>
    %1318 = vector.shape_cast %1317 : vector<1x8x32xf32> to vector<8x32xf32>
    %1319 = vector.shape_cast %1315 : vector<8x32xf32> to vector<1x8x32xf32>
    tpu.vector_store %arg13[%1316, %c0_468, %c32_469], %1319 {strides = array<i32>} : memref<16x8x64xf32, #tpu.memory_space<vmem>>, vector<1x8x32xf32>,
    %1320 = arith.select %1303, %1298, %1272 : vector<8x64xi1>, vector<8x64xf32>
    %1321 = arith.select %1303, %1296, %1273 : vector<8x64xi1>, vector<8x64xf32>
    %c11_i32_470 = arith.constant 11 : i32
    %c15_i32_471 = arith.constant 15 : i32
    %1322 = arith.subi %c15_i32_471, %c11_i32_470 : i32
    %1323 = arith.index_cast %c11_i32_470 : i32 to index
    %c0_472 = arith.constant 0 : index
    %c0_473 = arith.constant 0 : index
    %1324 = vector.load %arg12[%1323, %c0_472, %c0_473] : memref<16x8x256xf32, #tpu.memory_space<vmem>>, vector<1x8x256xf32>
    %1325 = vector.shape_cast %1324 : vector<1x8x256xf32> to vector<8x256xf32>
    %1326 = arith.index_cast %1322 : i32 to index
    %c0_474 = arith.constant 0 : index
    %c0_475 = arith.constant 0 : index
    %1327 = vector.load %arg12[%1326, %c0_474, %c0_475] : memref<16x8x256xf32, #tpu.memory_space<vmem>>, vector<1x8x256xf32>
    %1328 = vector.shape_cast %1327 : vector<1x8x256xf32> to vector<8x256xf32>
    %1329 = arith.select %4, %1325, %1328 : vector<8x256xi1>, vector<8x256xf32>
    %cst_476 = arith.constant dense<0.000000e+00> : vector<8x256xf32>
    %1330 = tpu.matmul %1320, %792, %cst_476 {dimension_numbers = #tpu.dot_dimension_numbers<[1], [0], [0], [1], [0, 0, 1, 1], [], []>} : vector<8x64xf32>, vector<64x256xf32>, vector<8x256xf32> -> vector<8x256xf32>
    %1331 = arith.addf %1329, %1330 : vector<8x256xf32>
    %1332 = arith.negf %1331 : vector<8x256xf32>
    %1333 = math.exp %1332 : vector<8x256xf32>
    %cst_477 = arith.constant 1.000000e+00 : f32
    %1334 = vector.broadcast %cst_477 : f32 to vector<8x256xf32>
    %1335 = arith.addf %1334, %1333 : vector<8x256xf32>
    %1336 = arith.divf %1334, %1335 : vector<8x256xf32>
    %1337 = vector.extract_strided_slice %1336 {offsets = [0, 0], sizes = [8, 64], strides = [1, 1]} : vector<8x256xf32> to vector<8x64xf32>
    %1338 = vector.extract_strided_slice %1336 {offsets = [0, 64], sizes = [8, 64], strides = [1, 1]} : vector<8x256xf32> to vector<8x64xf32>
    %1339 = vector.extract_strided_slice %1331 {offsets = [0, 128], sizes = [8, 64], strides = [1, 1]} : vector<8x256xf32> to vector<8x64xf32>
    %1340 = math.tanh %1339 : vector<8x64xf32>
    %1341 = vector.extract_strided_slice %1336 {offsets = [0, 192], sizes = [8, 64], strides = [1, 1]} : vector<8x256xf32> to vector<8x64xf32>
    %1342 = arith.mulf %1338, %1321 : vector<8x64xf32>
    %1343 = arith.mulf %1337, %1340 : vector<8x64xf32>
    %1344 = arith.addf %1342, %1343 : vector<8x64xf32>
    %1345 = math.tanh %1344 : vector<8x64xf32>
    %1346 = arith.mulf %1341, %1345 : vector<8x64xf32>
    %1347 = arith.index_cast %c11_i32_470 : i32 to index
    %c0_478 = arith.constant 0 : index
    %c0_479 = arith.constant 0 : index
    %1348 = vector.load %arg1[%1347, %c0_478, %c0_479] : memref<16x8x64xi32, #tpu.memory_space<vmem>>, vector<1x8x64xi32>
    %1349 = vector.shape_cast %1348 : vector<1x8x64xi32> to vector<8x64xi32>
    %c0_i32_480 = arith.constant 0 : i32
    %1350 = vector.broadcast %c0_i32_480 : i32 to vector<8x64xi32>
    %1351 = arith.cmpi ne, %1349, %1350 : vector<8x64xi32>
    %1352 = vector.extract_strided_slice %1351 {offsets = [0, 0], sizes = [8, 32], strides = [1, 1]} : vector<8x64xi1> to vector<8x32xi1>
    %1353 = vector.extract_strided_slice %1346 {offsets = [0, 0], sizes = [8, 32], strides = [1, 1]} : vector<8x64xf32> to vector<8x32xf32>
    %cst_481 = arith.constant 0.000000e+00 : f32
    %1354 = vector.broadcast %cst_481 : f32 to vector<8x32xf32>
    %1355 = arith.select %1352, %1353, %1354 : vector<8x32xi1>, vector<8x32xf32>
    %1356 = arith.index_cast %c11_i32_470 : i32 to index
    %c0_482 = arith.constant 0 : index
    %c0_483 = arith.constant 0 : index
    %1357 = vector.load %arg13[%1356, %c0_482, %c0_483] : memref<16x8x64xf32, #tpu.memory_space<vmem>>, vector<1x8x32xf32>
    %1358 = vector.shape_cast %1357 : vector<1x8x32xf32> to vector<8x32xf32>
    %1359 = vector.shape_cast %1355 : vector<8x32xf32> to vector<1x8x32xf32>
    tpu.vector_store %arg13[%1356, %c0_482, %c0_483], %1359 {strides = array<i32>} : memref<16x8x64xf32, #tpu.memory_space<vmem>>, vector<1x8x32xf32>,
    %1360 = vector.extract_strided_slice %1351 {offsets = [0, 32], sizes = [8, 32], strides = [1, 1]} : vector<8x64xi1> to vector<8x32xi1>
    %1361 = vector.extract_strided_slice %1346 {offsets = [0, 32], sizes = [8, 32], strides = [1, 1]} : vector<8x64xf32> to vector<8x32xf32>
    %cst_484 = arith.constant 0.000000e+00 : f32
    %1362 = vector.broadcast %cst_484 : f32 to vector<8x32xf32>
    %1363 = arith.select %1360, %1361, %1362 : vector<8x32xi1>, vector<8x32xf32>
    %1364 = arith.index_cast %1322 : i32 to index
    %c0_485 = arith.constant 0 : index
    %c32_486 = arith.constant 32 : index
    %1365 = vector.load %arg13[%1364, %c0_485, %c32_486] : memref<16x8x64xf32, #tpu.memory_space<vmem>>, vector<1x8x32xf32>
    %1366 = vector.shape_cast %1365 : vector<1x8x32xf32> to vector<8x32xf32>
    %1367 = vector.shape_cast %1363 : vector<8x32xf32> to vector<1x8x32xf32>
    tpu.vector_store %arg13[%1364, %c0_485, %c32_486], %1367 {strides = array<i32>} : memref<16x8x64xf32, #tpu.memory_space<vmem>>, vector<1x8x32xf32>,
    %1368 = arith.select %1351, %1346, %1320 : vector<8x64xi1>, vector<8x64xf32>
    %1369 = arith.select %1351, %1344, %1321 : vector<8x64xi1>, vector<8x64xf32>
    %c12_i32_487 = arith.constant 12 : i32
    %c15_i32_488 = arith.constant 15 : i32
    %1370 = arith.subi %c15_i32_488, %c12_i32_487 : i32
    %1371 = arith.index_cast %c12_i32_487 : i32 to index
    %c0_489 = arith.constant 0 : index
    %c0_490 = arith.constant 0 : index
    %1372 = vector.load %arg12[%1371, %c0_489, %c0_490] : memref<16x8x256xf32, #tpu.memory_space<vmem>>, vector<1x8x256xf32>
    %1373 = vector.shape_cast %1372 : vector<1x8x256xf32> to vector<8x256xf32>
    %1374 = arith.index_cast %1370 : i32 to index
    %c0_491 = arith.constant 0 : index
    %c0_492 = arith.constant 0 : index
    %1375 = vector.load %arg12[%1374, %c0_491, %c0_492] : memref<16x8x256xf32, #tpu.memory_space<vmem>>, vector<1x8x256xf32>
    %1376 = vector.shape_cast %1375 : vector<1x8x256xf32> to vector<8x256xf32>
    %1377 = arith.select %4, %1373, %1376 : vector<8x256xi1>, vector<8x256xf32>
    %cst_493 = arith.constant dense<0.000000e+00> : vector<8x256xf32>
    %1378 = tpu.matmul %1368, %792, %cst_493 {dimension_numbers = #tpu.dot_dimension_numbers<[1], [0], [0], [1], [0, 0, 1, 1], [], []>} : vector<8x64xf32>, vector<64x256xf32>, vector<8x256xf32> -> vector<8x256xf32>
    %1379 = arith.addf %1377, %1378 : vector<8x256xf32>
    %1380 = arith.negf %1379 : vector<8x256xf32>
    %1381 = math.exp %1380 : vector<8x256xf32>
    %cst_494 = arith.constant 1.000000e+00 : f32
    %1382 = vector.broadcast %cst_494 : f32 to vector<8x256xf32>
    %1383 = arith.addf %1382, %1381 : vector<8x256xf32>
    %1384 = arith.divf %1382, %1383 : vector<8x256xf32>
    %1385 = vector.extract_strided_slice %1384 {offsets = [0, 0], sizes = [8, 64], strides = [1, 1]} : vector<8x256xf32> to vector<8x64xf32>
    %1386 = vector.extract_strided_slice %1384 {offsets = [0, 64], sizes = [8, 64], strides = [1, 1]} : vector<8x256xf32> to vector<8x64xf32>
    %1387 = vector.extract_strided_slice %1379 {offsets = [0, 128], sizes = [8, 64], strides = [1, 1]} : vector<8x256xf32> to vector<8x64xf32>
    %1388 = math.tanh %1387 : vector<8x64xf32>
    %1389 = vector.extract_strided_slice %1384 {offsets = [0, 192], sizes = [8, 64], strides = [1, 1]} : vector<8x256xf32> to vector<8x64xf32>
    %1390 = arith.mulf %1386, %1369 : vector<8x64xf32>
    %1391 = arith.mulf %1385, %1388 : vector<8x64xf32>
    %1392 = arith.addf %1390, %1391 : vector<8x64xf32>
    %1393 = math.tanh %1392 : vector<8x64xf32>
    %1394 = arith.mulf %1389, %1393 : vector<8x64xf32>
    %1395 = arith.index_cast %c12_i32_487 : i32 to index
    %c0_495 = arith.constant 0 : index
    %c0_496 = arith.constant 0 : index
    %1396 = vector.load %arg1[%1395, %c0_495, %c0_496] : memref<16x8x64xi32, #tpu.memory_space<vmem>>, vector<1x8x64xi32>
    %1397 = vector.shape_cast %1396 : vector<1x8x64xi32> to vector<8x64xi32>
    %c0_i32_497 = arith.constant 0 : i32
    %1398 = vector.broadcast %c0_i32_497 : i32 to vector<8x64xi32>
    %1399 = arith.cmpi ne, %1397, %1398 : vector<8x64xi32>
    %1400 = vector.extract_strided_slice %1399 {offsets = [0, 0], sizes = [8, 32], strides = [1, 1]} : vector<8x64xi1> to vector<8x32xi1>
    %1401 = vector.extract_strided_slice %1394 {offsets = [0, 0], sizes = [8, 32], strides = [1, 1]} : vector<8x64xf32> to vector<8x32xf32>
    %cst_498 = arith.constant 0.000000e+00 : f32
    %1402 = vector.broadcast %cst_498 : f32 to vector<8x32xf32>
    %1403 = arith.select %1400, %1401, %1402 : vector<8x32xi1>, vector<8x32xf32>
    %1404 = arith.index_cast %c12_i32_487 : i32 to index
    %c0_499 = arith.constant 0 : index
    %c0_500 = arith.constant 0 : index
    %1405 = vector.load %arg13[%1404, %c0_499, %c0_500] : memref<16x8x64xf32, #tpu.memory_space<vmem>>, vector<1x8x32xf32>
    %1406 = vector.shape_cast %1405 : vector<1x8x32xf32> to vector<8x32xf32>
    %1407 = vector.shape_cast %1403 : vector<8x32xf32> to vector<1x8x32xf32>
    tpu.vector_store %arg13[%1404, %c0_499, %c0_500], %1407 {strides = array<i32>} : memref<16x8x64xf32, #tpu.memory_space<vmem>>, vector<1x8x32xf32>,
    %1408 = vector.extract_strided_slice %1399 {offsets = [0, 32], sizes = [8, 32], strides = [1, 1]} : vector<8x64xi1> to vector<8x32xi1>
    %1409 = vector.extract_strided_slice %1394 {offsets = [0, 32], sizes = [8, 32], strides = [1, 1]} : vector<8x64xf32> to vector<8x32xf32>
    %cst_501 = arith.constant 0.000000e+00 : f32
    %1410 = vector.broadcast %cst_501 : f32 to vector<8x32xf32>
    %1411 = arith.select %1408, %1409, %1410 : vector<8x32xi1>, vector<8x32xf32>
    %1412 = arith.index_cast %1370 : i32 to index
    %c0_502 = arith.constant 0 : index
    %c32_503 = arith.constant 32 : index
    %1413 = vector.load %arg13[%1412, %c0_502, %c32_503] : memref<16x8x64xf32, #tpu.memory_space<vmem>>, vector<1x8x32xf32>
    %1414 = vector.shape_cast %1413 : vector<1x8x32xf32> to vector<8x32xf32>
    %1415 = vector.shape_cast %1411 : vector<8x32xf32> to vector<1x8x32xf32>
    tpu.vector_store %arg13[%1412, %c0_502, %c32_503], %1415 {strides = array<i32>} : memref<16x8x64xf32, #tpu.memory_space<vmem>>, vector<1x8x32xf32>,
    %1416 = arith.select %1399, %1394, %1368 : vector<8x64xi1>, vector<8x64xf32>
    %1417 = arith.select %1399, %1392, %1369 : vector<8x64xi1>, vector<8x64xf32>
    %c13_i32_504 = arith.constant 13 : i32
    %c15_i32_505 = arith.constant 15 : i32
    %1418 = arith.subi %c15_i32_505, %c13_i32_504 : i32
    %1419 = arith.index_cast %c13_i32_504 : i32 to index
    %c0_506 = arith.constant 0 : index
    %c0_507 = arith.constant 0 : index
    %1420 = vector.load %arg12[%1419, %c0_506, %c0_507] : memref<16x8x256xf32, #tpu.memory_space<vmem>>, vector<1x8x256xf32>
    %1421 = vector.shape_cast %1420 : vector<1x8x256xf32> to vector<8x256xf32>
    %1422 = arith.index_cast %1418 : i32 to index
    %c0_508 = arith.constant 0 : index
    %c0_509 = arith.constant 0 : index
    %1423 = vector.load %arg12[%1422, %c0_508, %c0_509] : memref<16x8x256xf32, #tpu.memory_space<vmem>>, vector<1x8x256xf32>
    %1424 = vector.shape_cast %1423 : vector<1x8x256xf32> to vector<8x256xf32>
    %1425 = arith.select %4, %1421, %1424 : vector<8x256xi1>, vector<8x256xf32>
    %cst_510 = arith.constant dense<0.000000e+00> : vector<8x256xf32>
    %1426 = tpu.matmul %1416, %792, %cst_510 {dimension_numbers = #tpu.dot_dimension_numbers<[1], [0], [0], [1], [0, 0, 1, 1], [], []>} : vector<8x64xf32>, vector<64x256xf32>, vector<8x256xf32> -> vector<8x256xf32>
    %1427 = arith.addf %1425, %1426 : vector<8x256xf32>
    %1428 = arith.negf %1427 : vector<8x256xf32>
    %1429 = math.exp %1428 : vector<8x256xf32>
    %cst_511 = arith.constant 1.000000e+00 : f32
    %1430 = vector.broadcast %cst_511 : f32 to vector<8x256xf32>
    %1431 = arith.addf %1430, %1429 : vector<8x256xf32>
    %1432 = arith.divf %1430, %1431 : vector<8x256xf32>
    %1433 = vector.extract_strided_slice %1432 {offsets = [0, 0], sizes = [8, 64], strides = [1, 1]} : vector<8x256xf32> to vector<8x64xf32>
    %1434 = vector.extract_strided_slice %1432 {offsets = [0, 64], sizes = [8, 64], strides = [1, 1]} : vector<8x256xf32> to vector<8x64xf32>
    %1435 = vector.extract_strided_slice %1427 {offsets = [0, 128], sizes = [8, 64], strides = [1, 1]} : vector<8x256xf32> to vector<8x64xf32>
    %1436 = math.tanh %1435 : vector<8x64xf32>
    %1437 = vector.extract_strided_slice %1432 {offsets = [0, 192], sizes = [8, 64], strides = [1, 1]} : vector<8x256xf32> to vector<8x64xf32>
    %1438 = arith.mulf %1434, %1417 : vector<8x64xf32>
    %1439 = arith.mulf %1433, %1436 : vector<8x64xf32>
    %1440 = arith.addf %1438, %1439 : vector<8x64xf32>
    %1441 = math.tanh %1440 : vector<8x64xf32>
    %1442 = arith.mulf %1437, %1441 : vector<8x64xf32>
    %1443 = arith.index_cast %c13_i32_504 : i32 to index
    %c0_512 = arith.constant 0 : index
    %c0_513 = arith.constant 0 : index
    %1444 = vector.load %arg1[%1443, %c0_512, %c0_513] : memref<16x8x64xi32, #tpu.memory_space<vmem>>, vector<1x8x64xi32>
    %1445 = vector.shape_cast %1444 : vector<1x8x64xi32> to vector<8x64xi32>
    %c0_i32_514 = arith.constant 0 : i32
    %1446 = vector.broadcast %c0_i32_514 : i32 to vector<8x64xi32>
    %1447 = arith.cmpi ne, %1445, %1446 : vector<8x64xi32>
    %1448 = vector.extract_strided_slice %1447 {offsets = [0, 0], sizes = [8, 32], strides = [1, 1]} : vector<8x64xi1> to vector<8x32xi1>
    %1449 = vector.extract_strided_slice %1442 {offsets = [0, 0], sizes = [8, 32], strides = [1, 1]} : vector<8x64xf32> to vector<8x32xf32>
    %cst_515 = arith.constant 0.000000e+00 : f32
    %1450 = vector.broadcast %cst_515 : f32 to vector<8x32xf32>
    %1451 = arith.select %1448, %1449, %1450 : vector<8x32xi1>, vector<8x32xf32>
    %1452 = arith.index_cast %c13_i32_504 : i32 to index
    %c0_516 = arith.constant 0 : index
    %c0_517 = arith.constant 0 : index
    %1453 = vector.load %arg13[%1452, %c0_516, %c0_517] : memref<16x8x64xf32, #tpu.memory_space<vmem>>, vector<1x8x32xf32>
    %1454 = vector.shape_cast %1453 : vector<1x8x32xf32> to vector<8x32xf32>
    %1455 = vector.shape_cast %1451 : vector<8x32xf32> to vector<1x8x32xf32>
    tpu.vector_store %arg13[%1452, %c0_516, %c0_517], %1455 {strides = array<i32>} : memref<16x8x64xf32, #tpu.memory_space<vmem>>, vector<1x8x32xf32>,
    %1456 = vector.extract_strided_slice %1447 {offsets = [0, 32], sizes = [8, 32], strides = [1, 1]} : vector<8x64xi1> to vector<8x32xi1>
    %1457 = vector.extract_strided_slice %1442 {offsets = [0, 32], sizes = [8, 32], strides = [1, 1]} : vector<8x64xf32> to vector<8x32xf32>
    %cst_518 = arith.constant 0.000000e+00 : f32
    %1458 = vector.broadcast %cst_518 : f32 to vector<8x32xf32>
    %1459 = arith.select %1456, %1457, %1458 : vector<8x32xi1>, vector<8x32xf32>
    %1460 = arith.index_cast %1418 : i32 to index
    %c0_519 = arith.constant 0 : index
    %c32_520 = arith.constant 32 : index
    %1461 = vector.load %arg13[%1460, %c0_519, %c32_520] : memref<16x8x64xf32, #tpu.memory_space<vmem>>, vector<1x8x32xf32>
    %1462 = vector.shape_cast %1461 : vector<1x8x32xf32> to vector<8x32xf32>
    %1463 = vector.shape_cast %1459 : vector<8x32xf32> to vector<1x8x32xf32>
    tpu.vector_store %arg13[%1460, %c0_519, %c32_520], %1463 {strides = array<i32>} : memref<16x8x64xf32, #tpu.memory_space<vmem>>, vector<1x8x32xf32>,
    %1464 = arith.select %1447, %1442, %1416 : vector<8x64xi1>, vector<8x64xf32>
    %1465 = arith.select %1447, %1440, %1417 : vector<8x64xi1>, vector<8x64xf32>
    %c14_i32_521 = arith.constant 14 : i32
    %c15_i32_522 = arith.constant 15 : i32
    %1466 = arith.subi %c15_i32_522, %c14_i32_521 : i32
    %1467 = arith.index_cast %c14_i32_521 : i32 to index
    %c0_523 = arith.constant 0 : index
    %c0_524 = arith.constant 0 : index
    %1468 = vector.load %arg12[%1467, %c0_523, %c0_524] : memref<16x8x256xf32, #tpu.memory_space<vmem>>, vector<1x8x256xf32>
    %1469 = vector.shape_cast %1468 : vector<1x8x256xf32> to vector<8x256xf32>
    %1470 = arith.index_cast %1466 : i32 to index
    %c0_525 = arith.constant 0 : index
    %c0_526 = arith.constant 0 : index
    %1471 = vector.load %arg12[%1470, %c0_525, %c0_526] : memref<16x8x256xf32, #tpu.memory_space<vmem>>, vector<1x8x256xf32>
    %1472 = vector.shape_cast %1471 : vector<1x8x256xf32> to vector<8x256xf32>
    %1473 = arith.select %4, %1469, %1472 : vector<8x256xi1>, vector<8x256xf32>
    %cst_527 = arith.constant dense<0.000000e+00> : vector<8x256xf32>
    %1474 = tpu.matmul %1464, %792, %cst_527 {dimension_numbers = #tpu.dot_dimension_numbers<[1], [0], [0], [1], [0, 0, 1, 1], [], []>} : vector<8x64xf32>, vector<64x256xf32>, vector<8x256xf32> -> vector<8x256xf32>
    %1475 = arith.addf %1473, %1474 : vector<8x256xf32>
    %1476 = arith.negf %1475 : vector<8x256xf32>
    %1477 = math.exp %1476 : vector<8x256xf32>
    %cst_528 = arith.constant 1.000000e+00 : f32
    %1478 = vector.broadcast %cst_528 : f32 to vector<8x256xf32>
    %1479 = arith.addf %1478, %1477 : vector<8x256xf32>
    %1480 = arith.divf %1478, %1479 : vector<8x256xf32>
    %1481 = vector.extract_strided_slice %1480 {offsets = [0, 0], sizes = [8, 64], strides = [1, 1]} : vector<8x256xf32> to vector<8x64xf32>
    %1482 = vector.extract_strided_slice %1480 {offsets = [0, 64], sizes = [8, 64], strides = [1, 1]} : vector<8x256xf32> to vector<8x64xf32>
    %1483 = vector.extract_strided_slice %1475 {offsets = [0, 128], sizes = [8, 64], strides = [1, 1]} : vector<8x256xf32> to vector<8x64xf32>
    %1484 = math.tanh %1483 : vector<8x64xf32>
    %1485 = vector.extract_strided_slice %1480 {offsets = [0, 192], sizes = [8, 64], strides = [1, 1]} : vector<8x256xf32> to vector<8x64xf32>
    %1486 = arith.mulf %1482, %1465 : vector<8x64xf32>
    %1487 = arith.mulf %1481, %1484 : vector<8x64xf32>
    %1488 = arith.addf %1486, %1487 : vector<8x64xf32>
    %1489 = math.tanh %1488 : vector<8x64xf32>
    %1490 = arith.mulf %1485, %1489 : vector<8x64xf32>
    %1491 = arith.index_cast %c14_i32_521 : i32 to index
    %c0_529 = arith.constant 0 : index
    %c0_530 = arith.constant 0 : index
    %1492 = vector.load %arg1[%1491, %c0_529, %c0_530] : memref<16x8x64xi32, #tpu.memory_space<vmem>>, vector<1x8x64xi32>
    %1493 = vector.shape_cast %1492 : vector<1x8x64xi32> to vector<8x64xi32>
    %c0_i32_531 = arith.constant 0 : i32
    %1494 = vector.broadcast %c0_i32_531 : i32 to vector<8x64xi32>
    %1495 = arith.cmpi ne, %1493, %1494 : vector<8x64xi32>
    %1496 = vector.extract_strided_slice %1495 {offsets = [0, 0], sizes = [8, 32], strides = [1, 1]} : vector<8x64xi1> to vector<8x32xi1>
    %1497 = vector.extract_strided_slice %1490 {offsets = [0, 0], sizes = [8, 32], strides = [1, 1]} : vector<8x64xf32> to vector<8x32xf32>
    %cst_532 = arith.constant 0.000000e+00 : f32
    %1498 = vector.broadcast %cst_532 : f32 to vector<8x32xf32>
    %1499 = arith.select %1496, %1497, %1498 : vector<8x32xi1>, vector<8x32xf32>
    %1500 = arith.index_cast %c14_i32_521 : i32 to index
    %c0_533 = arith.constant 0 : index
    %c0_534 = arith.constant 0 : index
    %1501 = vector.load %arg13[%1500, %c0_533, %c0_534] : memref<16x8x64xf32, #tpu.memory_space<vmem>>, vector<1x8x32xf32>
    %1502 = vector.shape_cast %1501 : vector<1x8x32xf32> to vector<8x32xf32>
    %1503 = vector.shape_cast %1499 : vector<8x32xf32> to vector<1x8x32xf32>
    tpu.vector_store %arg13[%1500, %c0_533, %c0_534], %1503 {strides = array<i32>} : memref<16x8x64xf32, #tpu.memory_space<vmem>>, vector<1x8x32xf32>,
    %1504 = vector.extract_strided_slice %1495 {offsets = [0, 32], sizes = [8, 32], strides = [1, 1]} : vector<8x64xi1> to vector<8x32xi1>
    %1505 = vector.extract_strided_slice %1490 {offsets = [0, 32], sizes = [8, 32], strides = [1, 1]} : vector<8x64xf32> to vector<8x32xf32>
    %cst_535 = arith.constant 0.000000e+00 : f32
    %1506 = vector.broadcast %cst_535 : f32 to vector<8x32xf32>
    %1507 = arith.select %1504, %1505, %1506 : vector<8x32xi1>, vector<8x32xf32>
    %1508 = arith.index_cast %1466 : i32 to index
    %c0_536 = arith.constant 0 : index
    %c32_537 = arith.constant 32 : index
    %1509 = vector.load %arg13[%1508, %c0_536, %c32_537] : memref<16x8x64xf32, #tpu.memory_space<vmem>>, vector<1x8x32xf32>
    %1510 = vector.shape_cast %1509 : vector<1x8x32xf32> to vector<8x32xf32>
    %1511 = vector.shape_cast %1507 : vector<8x32xf32> to vector<1x8x32xf32>
    tpu.vector_store %arg13[%1508, %c0_536, %c32_537], %1511 {strides = array<i32>} : memref<16x8x64xf32, #tpu.memory_space<vmem>>, vector<1x8x32xf32>,
    %1512 = arith.select %1495, %1490, %1464 : vector<8x64xi1>, vector<8x64xf32>
    %1513 = arith.select %1495, %1488, %1465 : vector<8x64xi1>, vector<8x64xf32>
    %c15_i32_538 = arith.constant 15 : i32
    %c15_i32_539 = arith.constant 15 : i32
    %1514 = arith.subi %c15_i32_539, %c15_i32_538 : i32
    %1515 = arith.index_cast %c15_i32_538 : i32 to index
    %c0_540 = arith.constant 0 : index
    %c0_541 = arith.constant 0 : index
    %1516 = vector.load %arg12[%1515, %c0_540, %c0_541] : memref<16x8x256xf32, #tpu.memory_space<vmem>>, vector<1x8x256xf32>
    %1517 = vector.shape_cast %1516 : vector<1x8x256xf32> to vector<8x256xf32>
    %1518 = arith.index_cast %1514 : i32 to index
    %c0_542 = arith.constant 0 : index
    %c0_543 = arith.constant 0 : index
    %1519 = vector.load %arg12[%1518, %c0_542, %c0_543] : memref<16x8x256xf32, #tpu.memory_space<vmem>>, vector<1x8x256xf32>
    %1520 = vector.shape_cast %1519 : vector<1x8x256xf32> to vector<8x256xf32>
    %1521 = arith.select %4, %1517, %1520 : vector<8x256xi1>, vector<8x256xf32>
    %cst_544 = arith.constant dense<0.000000e+00> : vector<8x256xf32>
    %1522 = tpu.matmul %1512, %792, %cst_544 {dimension_numbers = #tpu.dot_dimension_numbers<[1], [0], [0], [1], [0, 0, 1, 1], [], []>} : vector<8x64xf32>, vector<64x256xf32>, vector<8x256xf32> -> vector<8x256xf32>
    %1523 = arith.addf %1521, %1522 : vector<8x256xf32>
    %1524 = arith.negf %1523 : vector<8x256xf32>
    %1525 = math.exp %1524 : vector<8x256xf32>
    %cst_545 = arith.constant 1.000000e+00 : f32
    %1526 = vector.broadcast %cst_545 : f32 to vector<8x256xf32>
    %1527 = arith.addf %1526, %1525 : vector<8x256xf32>
    %1528 = arith.divf %1526, %1527 : vector<8x256xf32>
    %1529 = vector.extract_strided_slice %1528 {offsets = [0, 0], sizes = [8, 64], strides = [1, 1]} : vector<8x256xf32> to vector<8x64xf32>
    %1530 = vector.extract_strided_slice %1528 {offsets = [0, 64], sizes = [8, 64], strides = [1, 1]} : vector<8x256xf32> to vector<8x64xf32>
    %1531 = vector.extract_strided_slice %1523 {offsets = [0, 128], sizes = [8, 64], strides = [1, 1]} : vector<8x256xf32> to vector<8x64xf32>
    %1532 = math.tanh %1531 : vector<8x64xf32>
    %1533 = vector.extract_strided_slice %1528 {offsets = [0, 192], sizes = [8, 64], strides = [1, 1]} : vector<8x256xf32> to vector<8x64xf32>
    %1534 = arith.mulf %1530, %1513 : vector<8x64xf32>
    %1535 = arith.mulf %1529, %1532 : vector<8x64xf32>
    %1536 = arith.addf %1534, %1535 : vector<8x64xf32>
    %1537 = math.tanh %1536 : vector<8x64xf32>
    %1538 = arith.mulf %1533, %1537 : vector<8x64xf32>
    %1539 = arith.index_cast %c15_i32_538 : i32 to index
    %c0_546 = arith.constant 0 : index
    %c0_547 = arith.constant 0 : index
    %1540 = vector.load %arg1[%1539, %c0_546, %c0_547] : memref<16x8x64xi32, #tpu.memory_space<vmem>>, vector<1x8x64xi32>
    %1541 = vector.shape_cast %1540 : vector<1x8x64xi32> to vector<8x64xi32>
    %c0_i32_548 = arith.constant 0 : i32
    %1542 = vector.broadcast %c0_i32_548 : i32 to vector<8x64xi32>
    %1543 = arith.cmpi ne, %1541, %1542 : vector<8x64xi32>
    %1544 = vector.extract_strided_slice %1543 {offsets = [0, 0], sizes = [8, 32], strides = [1, 1]} : vector<8x64xi1> to vector<8x32xi1>
    %1545 = vector.extract_strided_slice %1538 {offsets = [0, 0], sizes = [8, 32], strides = [1, 1]} : vector<8x64xf32> to vector<8x32xf32>
    %cst_549 = arith.constant 0.000000e+00 : f32
    %1546 = vector.broadcast %cst_549 : f32 to vector<8x32xf32>
    %1547 = arith.select %1544, %1545, %1546 : vector<8x32xi1>, vector<8x32xf32>
    %1548 = arith.index_cast %c15_i32_538 : i32 to index
    %c0_550 = arith.constant 0 : index
    %c0_551 = arith.constant 0 : index
    %1549 = vector.load %arg13[%1548, %c0_550, %c0_551] : memref<16x8x64xf32, #tpu.memory_space<vmem>>, vector<1x8x32xf32>
    %1550 = vector.shape_cast %1549 : vector<1x8x32xf32> to vector<8x32xf32>
    %1551 = vector.shape_cast %1547 : vector<8x32xf32> to vector<1x8x32xf32>
    tpu.vector_store %arg13[%1548, %c0_550, %c0_551], %1551 {strides = array<i32>} : memref<16x8x64xf32, #tpu.memory_space<vmem>>, vector<1x8x32xf32>,
    %1552 = vector.extract_strided_slice %1543 {offsets = [0, 32], sizes = [8, 32], strides = [1, 1]} : vector<8x64xi1> to vector<8x32xi1>
    %1553 = vector.extract_strided_slice %1538 {offsets = [0, 32], sizes = [8, 32], strides = [1, 1]} : vector<8x64xf32> to vector<8x32xf32>
    %cst_552 = arith.constant 0.000000e+00 : f32
    %1554 = vector.broadcast %cst_552 : f32 to vector<8x32xf32>
    %1555 = arith.select %1552, %1553, %1554 : vector<8x32xi1>, vector<8x32xf32>
    %1556 = arith.index_cast %1514 : i32 to index
    %c0_553 = arith.constant 0 : index
    %c32_554 = arith.constant 32 : index
    %1557 = vector.load %arg13[%1556, %c0_553, %c32_554] : memref<16x8x64xf32, #tpu.memory_space<vmem>>, vector<1x8x32xf32>
    %1558 = vector.shape_cast %1557 : vector<1x8x32xf32> to vector<8x32xf32>
    %1559 = vector.shape_cast %1555 : vector<8x32xf32> to vector<1x8x32xf32>
    tpu.vector_store %arg13[%1556, %c0_553, %c32_554], %1559 {strides = array<i32>} : memref<16x8x64xf32, #tpu.memory_space<vmem>>, vector<1x8x32xf32>,
    %1560 = arith.select %1543, %1538, %1512 : vector<8x64xi1>, vector<8x64xf32>
    %1561 = arith.select %1543, %1536, %1513 : vector<8x64xi1>, vector<8x64xf32>
    %c16_i32_555 = arith.constant 16 : i32
    %c0_556 = arith.constant 0 : index
    %c0_557 = arith.constant 0 : index
    %c0_558 = arith.constant 0 : index
    %1562 = vector.load %arg13[%c0_556, %c0_557, %c0_558] : memref<16x8x64xf32, #tpu.memory_space<vmem>>, vector<16x8x64xf32>
    %1563 = vector.shape_cast %1562 : vector<16x8x64xf32> to vector<128x64xf32>
    %c0_559 = arith.constant 0 : index
    %c0_560 = arith.constant 0 : index
    %1564 = vector.load %arg9[%c0_559, %c0_560] : memref<64x128xf32, #tpu.memory_space<vmem>>, vector<64x128xf32>
    %cst_561 = arith.constant dense<0.000000e+00> : vector<128x128xf32>
    %1565 = tpu.matmul %1563, %1564, %cst_561 {dimension_numbers = #tpu.dot_dimension_numbers<[1], [0], [0], [1], [0, 0, 1, 1], [], []>} : vector<128x64xf32>, vector<64x128xf32>, vector<128x128xf32> -> vector<128x128xf32>
    %c0_562 = arith.constant 0 : index
    %c0_563 = arith.constant 0 : index
    %1566 = vector.load %arg10[%c0_562, %c0_563] : memref<1x128xf32, #tpu.memory_space<vmem>>, vector<1x128xf32>
    %1567 = vector.broadcast %1566 : vector<1x128xf32> to vector<128x128xf32>
    %1568 = arith.addf %1565, %1567 : vector<128x128xf32>
    %c0_564 = arith.constant 0 : index
    %c0_565 = arith.constant 0 : index
    %1569 = vector.load %arg11[%c0_564, %c0_565] : memref<128x128xf32, #tpu.memory_space<vmem>>, vector<128x128xf32>
    tpu.vector_store %arg11[%c0_564, %c0_565], %1568 {strides = array<i32>} : memref<128x128xf32, #tpu.memory_space<vmem>>, vector<128x128xf32>,
    return
  }
}

</mosaic_0001>

<llo_original>
// kernel: tile.6
$region0: #{tile.6}
  #allocation0 [shape = 's32[1]{0}', space=sflag, size = 0x4, scoped, tag = 'scoped memory for tile.6']
  %s0 = inlined_call_operand.vmem [shape: s32[64], index: 0, kind: input, shape index: {}]
  %s1 = inlined_call_operand.vmem [shape: s32[4,64], index: 1, kind: output, shape index: {}]
  // Predicated region
  $region2: #{tile.6} parent=0 // pred_check
    _
  $region3: #{tile.6} parent=0 // pred_check_branch
    %3 = sbr.rel (0) target = $region5
  $region4: #{tile.6} parent=0 // pred_region
    _
  $region5: #{tile.6} parent=0 // pred_fallthru
    _
  %v4 = vld [vmem:[%s0] ss:$0 sm:$0xff]
  %5 = vst [vmem:[%s1] sm:$0xf] %v4

// kernel: tile.7
$region0: #{tile.7}
  %s0 = inlined_call_operand.vmem [shape: s32[4,64], index: 0, kind: input, shape index: {}]
  %s1 = inlined_call_operand.vmem [shape: s32[1,256], index: 1, kind: output, shape index: {}]
  $region1: #{tile.7} parent=0
    #allocation0 [shape = 'u8[8192]{0}', space=vmem, size = 0x2000, scoped, tag = 'scoped mem for output reshape']
    #allocation1 [shape = 'u8[4096]{0}', space=vmem, size = 0x1000, scoped, tag = 'scoped mem for input reshape']
    %s3 = ssub.s32 16, 1
    %v4 = vld [vmem:[%s0] sm:%s3]
    %5 = vst [vmem:[#allocation1] sm:%s3] %v4
    %s6 = smov 3
    %v7 = vld [vmem:[#allocation1] ss:$2 sm:%s6]
    %vm8 = vcmask 523264
    %9 = vst.msk [vmem:[#allocation0] ss:$8 sm:$0x3] %vm8, %v7
    %s10 = scalar_lea.vmem [#allocation1], 1
    %s11 = smov 3
    %v12 = vld [vmem:[%s10] ss:$2 sm:%s11]
    %13 = vrot.lane.b32.xlu0 %v12, 64
    %v14 = vpop.permute.xlu0 %13
    %vm15 = vcmask 1048064
    %16 = vst.msk [vmem:[#allocation0] ss:$8 sm:$0x3] %vm15, %v14
    %s18 = ssub.s32 2, 1
    %v19 = vld [vmem:[#allocation0] sm:%s18]
    %s21 = ssub.s32 2, 1
    %22 = vst [vmem:[%s1] sm:%s21] %v19
    %s23 = scalar_lea.vmem [#allocation0], 8
    %v24 = vld [vmem:[%s23] sm:%s18]
    %s26 = ssub.s32 2, 1
    %s27 = scalar_lea.vmem %s1, 1
    %28 = vst [vmem:[%s27] sm:%s26] %v24

// kernel: bilstm_forward.1
$region0: #{bilstm_forward.1}
  #allocation0 [shape = 'u32[]', space=smem, size = 0x4, offset = 0x4, fixed_abs, tag = 'smem constant byte address 0x4 - core index']
  #allocation1 [shape = 'u32[72,128]{1,0:T(1,128)}', space=vmem, size = 0x9000, scoped, tag = 'internal scratch']
  #allocation2 [shape = 'f32[16,8,256]{2,1,0:T(8,128)}', space=vmem, size = 0x20000, scoped, tag = 'scratch operand']
  #allocation3 [shape = 'f32[16,8,64]{2,1,0:T(8,128)}', space=vmem, size = 0x10000, scoped, tag = 'scratch operand']
  %s0 = inlined_call_operand.vmem [shape: f32[128,16], index: 0, kind: input, shape index: {}]
  %s1 = inlined_call_operand.vmem [shape: s32[16,8,64], index: 1, kind: input, shape index: {}]
  %s2 = inlined_call_operand.vmem [shape: s32[1,256], index: 2, kind: input, shape index: {}]
  %s3 = inlined_call_operand.vmem [shape: f32[16,256], index: 3, kind: input, shape index: {}]
  %s4 = inlined_call_operand.vmem [shape: f32[64,256], index: 4, kind: input, shape index: {}]
  %s5 = inlined_call_operand.vmem [shape: f32[1,256], index: 5, kind: input, shape index: {}]
  %s6 = inlined_call_operand.vmem [shape: f32[64,256], index: 6, kind: input, shape index: {}]
  %s7 = inlined_call_operand.vmem [shape: f32[64,256], index: 7, kind: input, shape index: {}]
  %s8 = inlined_call_operand.vmem [shape: f32[1,256], index: 8, kind: input, shape index: {}]
  %s9 = inlined_call_operand.vmem [shape: f32[64,128], index: 9, kind: input, shape index: {}]
  %s10 = inlined_call_operand.vmem [shape: f32[1,128], index: 10, kind: input, shape index: {}]
  %s11 = inlined_call_operand.vmem [shape: f32[128,128], index: 11, kind: output, shape index: {}]
  %s12 = sld [smem:[#allocation0]]
  $region54: #{bilstm_forward.1} parent=0
    _
  %s14 = ssub.s32 1, %s12
  %s15 = scalar_select 0, %s14, %s12
  // Predicated region
  $region2: #{bilstm_forward.1} parent=0 // pred_check
    _
  $region3: #{bilstm_forward.1} parent=0 // pred_check_branch
    %17 = sbr.rel (0) target = $region5
  $region4: #{bilstm_forward.1} parent=0 // pred_region
    _
  $region5: #{bilstm_forward.1} parent=0 // pred_fallthru
    _
  // Predicated region
  $region6: #{bilstm_forward.1} parent=0 // pred_check
    _
  $region7: #{bilstm_forward.1} parent=0 // pred_check_branch
    %19 = sbr.rel (0) target = $region9
  $region8: #{bilstm_forward.1} parent=0 // pred_region
    _
  $region9: #{bilstm_forward.1} parent=0 // pred_fallthru
    _
  // Predicated region
  $region10: #{bilstm_forward.1} parent=0 // pred_check
    _
  $region11: #{bilstm_forward.1} parent=0 // pred_check_branch
    %21 = sbr.rel (0) target = $region13
  $region12: #{bilstm_forward.1} parent=0 // pred_region
    _
  $region13: #{bilstm_forward.1} parent=0 // pred_fallthru
    _
  // Predicated region
  $region14: #{bilstm_forward.1} parent=0 // pred_check
    _
  $region15: #{bilstm_forward.1} parent=0 // pred_check_branch
    %23 = sbr.rel (0) target = $region17
  $region16: #{bilstm_forward.1} parent=0 // pred_region
    _
  $region17: #{bilstm_forward.1} parent=0 // pred_fallthru
    _
  // Predicated region
  $region18: #{bilstm_forward.1} parent=0 // pred_check
    _
  $region19: #{bilstm_forward.1} parent=0 // pred_check_branch
    %25 = sbr.rel (0) target = $region21
  $region20: #{bilstm_forward.1} parent=0 // pred_region
    _
  $region21: #{bilstm_forward.1} parent=0 // pred_fallthru
    _
  // Predicated region
  $region22: #{bilstm_forward.1} parent=0 // pred_check
    _
  $region23: #{bilstm_forward.1} parent=0 // pred_check_branch
    %27 = sbr.rel (0) target = $region25
  $region24: #{bilstm_forward.1} parent=0 // pred_region
    _
  $region25: #{bilstm_forward.1} parent=0 // pred_fallthru
    _
  // Predicated region
  $region26: #{bilstm_forward.1} parent=0 // pred_check
    _
  $region27: #{bilstm_forward.1} parent=0 // pred_check_branch
    %29 = sbr.rel (0) target = $region29
  $region28: #{bilstm_forward.1} parent=0 // pred_region
    _
  $region29: #{bilstm_forward.1} parent=0 // pred_fallthru
    _
  // Predicated region
  $region30: #{bilstm_forward.1} parent=0 // pred_check
    _
  $region31: #{bilstm_forward.1} parent=0 // pred_check_branch
    %31 = sbr.rel (0) target = $region33
  $region32: #{bilstm_forward.1} parent=0 // pred_region
    _
  $region33: #{bilstm_forward.1} parent=0 // pred_fallthru
    _
  // Predicated region
  $region34: #{bilstm_forward.1} parent=0 // pred_check
    _
  $region35: #{bilstm_forward.1} parent=0 // pred_check_branch
    %33 = sbr.rel (0) target = $region37
  $region36: #{bilstm_forward.1} parent=0 // pred_region
    _
  $region37: #{bilstm_forward.1} parent=0 // pred_fallthru
    _
  // Predicated region
  $region38: #{bilstm_forward.1} parent=0 // pred_check
    _
  $region39: #{bilstm_forward.1} parent=0 // pred_check_branch
    %35 = sbr.rel (0) target = $region41
  $region40: #{bilstm_forward.1} parent=0 // pred_region
    _
  $region41: #{bilstm_forward.1} parent=0 // pred_fallthru
    _
  // Predicated region
  $region42: #{bilstm_forward.1} parent=0 // pred_check
    _
  $region43: #{bilstm_forward.1} parent=0 // pred_check_branch
    %37 = sbr.rel (0) target = $region45
  $region44: #{bilstm_forward.1} parent=0 // pred_region
    _
  $region45: #{bilstm_forward.1} parent=0 // pred_fallthru
    _
  %v38 = vld [vmem:[%s2] sm:$0x3]
  %vm39 = vcmp.ne.s32.totalorder %v38, 0
  %v40 = vsel %vm39, 1, 0
  %v41 = vperm.slane %v40, 0
  %v42 = vperm.slane %v40, 1
  %vm43 = vcmp.eq.s32.totalorder %v41, 1
  %vm44 = vcmp.eq.s32.totalorder %v42, 1
  %v45 = vld [vmem:[%s0] sm:$0xff]
  %v46 = vld [vmem:[%s0 + $0x8] sm:$0xff]
  %v47 = vld [vmem:[%s0 + $0x10] sm:$0xff]
  %v48 = vld [vmem:[%s0 + $0x18] sm:$0xff]
  %v49 = vld [vmem:[%s0 + $0x20] sm:$0xff]
  %v50 = vld [vmem:[%s0 + $0x28] sm:$0xff]
  %v51 = vld [vmem:[%s0 + $0x30] sm:$0xff]
  %v52 = vld [vmem:[%s0 + $0x38] sm:$0xff]
  %v53 = vld [vmem:[%s0 + $0x40] sm:$0xff]
  %v54 = vld [vmem:[%s0 + $0x48] sm:$0xff]
  %v55 = vld [vmem:[%s0 + $0x50] sm:$0xff]
  %v56 = vld [vmem:[%s0 + $0x58] sm:$0xff]
  %v57 = vld [vmem:[%s0 + $0x60] sm:$0xff]
  %v58 = vld [vmem:[%s0 + $0x68] sm:$0xff]
  %v59 = vld [vmem:[%s0 + $0x70] sm:$0xff]
  %v60 = vld [vmem:[%s0 + $0x78] sm:$0xff]
  %v61 = vld [vmem:[%s3] sm:$0xff]
  %v62 = vld [vmem:[%s3 + $0x8] sm:$0xff]
  %v63 = vld [vmem:[%s3 + $0x10] sm:$0xff]
  %v64 = vld [vmem:[%s3 + $0x18] sm:$0xff]
  %v65 = vld [vmem:[%s5] sm:$0x3]
  %v67 = vperm.slane %v65, 0
  %v68 = vperm.slane %v65, 1
  %vm71 = vcmask 130048
  %v73 = vsel %vm71, %v45, 0
  %v76 = vsel %vm71, %v46, 0
  %v79 = vsel %vm71, %v47, 0
  %v82 = vsel %vm71, %v48, 0
  %v85 = vsel %vm71, %v49, 0
  %v88 = vsel %vm71, %v50, 0
  %v91 = vsel %vm71, %v51, 0
  %v94 = vsel %vm71, %v52, 0
  %v97 = vsel %vm71, %v53, 0
  %v100 = vsel %vm71, %v54, 0
  %v103 = vsel %vm71, %v55, 0
  %v106 = vsel %vm71, %v56, 0
  %v109 = vsel %vm71, %v57, 0
  %v112 = vsel %vm71, %v58, 0
  %v115 = vsel %vm71, %v59, 0
  %v118 = vsel %vm71, %v60, 0
  %120 = vmatpush.msra.mxu0 0.0
  %121 = vmatpush.msra.mxu0 0.0
  %122 = vmatpush.msra.mxu0 0.0
  %123 = vmatpush.msra.mxu0 0.0
  %124 = vmatpush.msra.mxu0 0.0
  %125 = vmatpush.msra.mxu0 0.0
  %126 = vmatpush.msra.mxu0 0.0
  %127 = vmatpush.msra.mxu0 0.0
  %128 = vmatpush.msra.mxu0 0.0
  %129 = vmatpush.msra.mxu0 0.0
  %130 = vmatpush.msra.mxu0 0.0
  %131 = vmatpush.msra.mxu0 0.0
  %132 = vmatpush.msra.mxu0 0.0
  %133 = vmatpush.msra.mxu0 0.0
  %134 = vmatpush.msra.mxu0 %v63
  %135 = vmatpush.msra.mxu0 %v61
  %136 = vmatmul.f32.gmra.mxu0 %v73
  %v137 = vpop.f32.mrf.mxu0
  %v138 = vadd.f32 %v67, %v137
  %139 = vmatmul.f32.gmra.mxu0 %v76
  %v140 = vpop.f32.mrf.mxu0
  %v141 = vadd.f32 %v67, %v140
  %142 = vmatmul.f32.gmra.mxu0 %v79
  %v143 = vpop.f32.mrf.mxu0
  %v144 = vadd.f32 %v67, %v143
  %145 = vmatmul.f32.gmra.mxu0 %v82
  %v146 = vpop.f32.mrf.mxu0
  %v147 = vadd.f32 %v67, %v146
  %148 = vmatmul.f32.gmra.mxu0 %v85
  %v149 = vpop.f32.mrf.mxu0
  %v150 = vadd.f32 %v67, %v149
  %151 = vmatmul.f32.gmra.mxu0 %v88
  %v152 = vpop.f32.mrf.mxu0
  %v153 = vadd.f32 %v67, %v152
  %154 = vmatmul.f32.gmra.mxu0 %v91
  %v155 = vpop.f32.mrf.mxu0
  %v156 = vadd.f32 %v67, %v155
  %157 = vmatmul.f32.gmra.mxu0 %v94
  %v158 = vpop.f32.mrf.mxu0
  %v159 = vadd.f32 %v67, %v158
  %160 = vmatmul.f32.gmra.mxu0 %v97
  %v161 = vpop.f32.mrf.mxu0
  %v162 = vadd.f32 %v67, %v161
  %163 = vmatmul.f32.gmra.mxu0 %v100
  %v164 = vpop.f32.mrf.mxu0
  %v165 = vadd.f32 %v67, %v164
  %166 = vmatmul.f32.gmra.mxu0 %v103
  %v167 = vpop.f32.mrf.mxu0
  %v168 = vadd.f32 %v67, %v167
  %169 = vmatmul.f32.gmra.mxu0 %v106
  %v170 = vpop.f32.mrf.mxu0
  %v171 = vadd.f32 %v67, %v170
  %172 = vmatmul.f32.gmra.mxu0 %v109
  %v173 = vpop.f32.mrf.mxu0
  %v174 = vadd.f32 %v67, %v173
  %175 = vmatmul.f32.gmra.mxu0 %v112
  %v176 = vpop.f32.mrf.mxu0
  %v177 = vadd.f32 %v67, %v176
  %178 = vmatmul.f32.gmra.mxu0 %v115
  %v179 = vpop.f32.mrf.mxu0
  %v180 = vadd.f32 %v67, %v179
  %181 = vmatmul.f32.gmra.mxu0 %v118
  %v182 = vpop.f32.mrf.mxu0
  %v183 = vadd.f32 %v67, %v182
  %184 = vdwg.mxu0
  %185 = vmatpush.msra.mxu0 0.0
  %186 = vmatpush.msra.mxu0 0.0
  %187 = vmatpush.msra.mxu0 0.0
  %188 = vmatpush.msra.mxu0 0.0
  %189 = vmatpush.msra.mxu0 0.0
  %190 = vmatpush.msra.mxu0 0.0
  %191 = vmatpush.msra.mxu0 0.0
  %192 = vmatpush.msra.mxu0 0.0
  %193 = vmatpush.msra.mxu0 0.0
  %194 = vmatpush.msra.mxu0 0.0
  %195 = vmatpush.msra.mxu0 0.0
  %196 = vmatpush.msra.mxu0 0.0
  %197 = vmatpush.msra.mxu0 0.0
  %198 = vmatpush.msra.mxu0 0.0
  %199 = vmatpush.msra.mxu0 %v64
  %200 = vmatpush.msra.mxu0 %v62
  %201 = vmatmul.f32.gmra.mxu0 %v73
  %v202 = vpop.f32.mrf.mxu0
  %v203 = vadd.f32 %v68, %v202
  %204 = vmatmul.f32.gmra.mxu0 %v76
  %v205 = vpop.f32.mrf.mxu0
  %v206 = vadd.f32 %v68, %v205
  %207 = vmatmul.f32.gmra.mxu0 %v79
  %v208 = vpop.f32.mrf.mxu0
  %v209 = vadd.f32 %v68, %v208
  %210 = vmatmul.f32.gmra.mxu0 %v82
  %v211 = vpop.f32.mrf.mxu0
  %v212 = vadd.f32 %v68, %v211
  %213 = vmatmul.f32.gmra.mxu0 %v85
  %v214 = vpop.f32.mrf.mxu0
  %v215 = vadd.f32 %v68, %v214
  %216 = vmatmul.f32.gmra.mxu0 %v88
  %v217 = vpop.f32.mrf.mxu0
  %v218 = vadd.f32 %v68, %v217
  %219 = vmatmul.f32.gmra.mxu0 %v91
  %v220 = vpop.f32.mrf.mxu0
  %v221 = vadd.f32 %v68, %v220
  %222 = vmatmul.f32.gmra.mxu0 %v94
  %v223 = vpop.f32.mrf.mxu0
  %v224 = vadd.f32 %v68, %v223
  %225 = vmatmul.f32.gmra.mxu0 %v97
  %v226 = vpop.f32.mrf.mxu0
  %v227 = vadd.f32 %v68, %v226
  %228 = vmatmul.f32.gmra.mxu0 %v100
  %v229 = vpop.f32.mrf.mxu0
  %v230 = vadd.f32 %v68, %v229
  %231 = vmatmul.f32.gmra.mxu0 %v103
  %v232 = vpop.f32.mrf.mxu0
  %v233 = vadd.f32 %v68, %v232
  %234 = vmatmul.f32.gmra.mxu0 %v106
  %v235 = vpop.f32.mrf.mxu0
  %v236 = vadd.f32 %v68, %v235
  %237 = vmatmul.f32.gmra.mxu0 %v109
  %v238 = vpop.f32.mrf.mxu0
  %v239 = vadd.f32 %v68, %v238
  %240 = vmatmul.f32.gmra.mxu0 %v112
  %v241 = vpop.f32.mrf.mxu0
  %v242 = vadd.f32 %v68, %v241
  %243 = vmatmul.f32.gmra.mxu0 %v115
  %v244 = vpop.f32.mrf.mxu0
  %v245 = vadd.f32 %v68, %v244
  %246 = vmatmul.f32.gmra.mxu0 %v118
  %v247 = vpop.f32.mrf.mxu0
  %v248 = vadd.f32 %v68, %v247
  %249 = vdwg.mxu0
  %250 = vst [vmem:[#allocation2] sm:$0xff] %v138
  %251 = vst [vmem:[#allocation2 + $0x8] sm:$0xff] %v203
  %252 = vst [vmem:[#allocation2 + $0x10] sm:$0xff] %v141
  %253 = vst [vmem:[#allocation2 + $0x18] sm:$0xff] %v206
  %254 = vst [vmem:[#allocation2 + $0x20] sm:$0xff] %v144
  %255 = vst [vmem:[#allocation2 + $0x28] sm:$0xff] %v209
  %256 = vst [vmem:[#allocation2 + $0x30] sm:$0xff] %v147
  %257 = vst [vmem:[#allocation2 + $0x38] sm:$0xff] %v212
  %258 = vst [vmem:[#allocation2 + $0x40] sm:$0xff] %v150
  %259 = vst [vmem:[#allocation2 + $0x48] sm:$0xff] %v215
  %260 = vst [vmem:[#allocation2 + $0x50] sm:$0xff] %v153
  %261 = vst [vmem:[#allocation2 + $0x58] sm:$0xff] %v218
  %262 = vst [vmem:[#allocation2 + $0x60] sm:$0xff] %v156
  %263 = vst [vmem:[#allocation2 + $0x68] sm:$0xff] %v221
  %264 = vst [vmem:[#allocation2 + $0x70] sm:$0xff] %v159
  %265 = vst [vmem:[#allocation2 + $0x78] sm:$0xff] %v224
  %266 = vst [vmem:[#allocation2 + $0x80] sm:$0xff] %v162
  %267 = vst [vmem:[#allocation2 + $0x88] sm:$0xff] %v227
  %268 = vst [vmem:[#allocation2 + $0x90] sm:$0xff] %v165
  %269 = vst [vmem:[#allocation2 + $0x98] sm:$0xff] %v230
  %270 = vst [vmem:[#allocation2 + $0xa0] sm:$0xff] %v168
  %271 = vst [vmem:[#allocation2 + $0xa8] sm:$0xff] %v233
  %272 = vst [vmem:[#allocation2 + $0xb0] sm:$0xff] %v171
  %273 = vst [vmem:[#allocation2 + $0xb8] sm:$0xff] %v236
  %274 = vst [vmem:[#allocation2 + $0xc0] sm:$0xff] %v174
  %275 = vst [vmem:[#allocation2 + $0xc8] sm:$0xff] %v239
  %276 = vst [vmem:[#allocation2 + $0xd0] sm:$0xff] %v177
  %277 = vst [vmem:[#allocation2 + $0xd8] sm:$0xff] %v242
  %278 = vst [vmem:[#allocation2 + $0xe0] sm:$0xff] %v180
  %279 = vst [vmem:[#allocation2 + $0xe8] sm:$0xff] %v245
  %280 = vst [vmem:[#allocation2 + $0xf0] sm:$0xff] %v183
  %281 = vst [vmem:[#allocation2 + $0xf8] sm:$0xff] %v248
  %v282 = vld [vmem:[%s4] sm:$0xff]
  %v283 = vld [vmem:[%s4 + $0x8] sm:$0xff]
  %v284 = vld [vmem:[%s4 + $0x10] sm:$0xff]
  %v285 = vld [vmem:[%s4 + $0x18] sm:$0xff]
  %v286 = vld [vmem:[%s4 + $0x20] sm:$0xff]
  %v287 = vld [vmem:[%s4 + $0x28] sm:$0xff]
  %v288 = vld [vmem:[%s4 + $0x30] sm:$0xff]
  %v289 = vld [vmem:[%s4 + $0x38] sm:$0xff]
  %v290 = vld [vmem:[%s4 + $0x40] sm:$0xff]
  %v291 = vld [vmem:[%s4 + $0x48] sm:$0xff]
  %v292 = vld [vmem:[%s4 + $0x50] sm:$0xff]
  %v293 = vld [vmem:[%s4 + $0x58] sm:$0xff]
  %v294 = vld [vmem:[%s4 + $0x60] sm:$0xff]
  %v295 = vld [vmem:[%s4 + $0x68] sm:$0xff]
  %v296 = vld [vmem:[%s4 + $0x70] sm:$0xff]
  %v297 = vld [vmem:[%s4 + $0x78] sm:$0xff]
  %v298 = vld [vmem:[#allocation2] sm:$0xff]
  %v299 = vld [vmem:[#allocation2 + $0x8] sm:$0xff]
  %s300 = scalar_lea.vmem [#allocation2], 240
  %v301 = vld [vmem:[%s300] sm:$0xff]
  %v302 = vld [vmem:[%s300 + $0x8] sm:$0xff]
  %v303 = vsel %vm43, %v298, %v301
  %v304 = vsel %vm44, %v299, %v302
  %vm305 = vcmask 523264
  %v307 = vsel %vm305, 0.0, 0
  %309 = vmatpush.msra.mxu0 0.0
  %310 = vmatpush.msra.mxu0 0.0
  %311 = vmatpush.msra.mxu0 0.0
  %312 = vmatpush.msra.mxu0 0.0
  %313 = vmatpush.msra.mxu0 0.0
  %314 = vmatpush.msra.mxu0 0.0
  %315 = vmatpush.msra.mxu0 0.0
  %316 = vmatpush.msra.mxu0 0.0
  %317 = vmatpush.msra.mxu0 %v296
  %318 = vmatpush.msra.mxu0 %v294
  %319 = vmatpush.msra.mxu0 %v292
  %320 = vmatpush.msra.mxu0 %v290
  %321 = vmatpush.msra.mxu0 %v288
  %322 = vmatpush.msra.mxu0 %v286
  %323 = vmatpush.msra.mxu0 %v284
  %324 = vmatpush.msra.mxu0 %v282
  %325 = vmatmul.f32.gmra.mxu0 %v307
  %v326 = vpop.f32.mrf.mxu0
  %v327 = vadd.f32 0.0, %v326
  %328 = vdwg.mxu0
  %329 = vmatpush.msra.mxu0 0.0
  %330 = vmatpush.msra.mxu0 0.0
  %331 = vmatpush.msra.mxu0 0.0
  %332 = vmatpush.msra.mxu0 0.0
  %333 = vmatpush.msra.mxu0 0.0
  %334 = vmatpush.msra.mxu0 0.0
  %335 = vmatpush.msra.mxu0 0.0
  %336 = vmatpush.msra.mxu0 0.0
  %337 = vmatpush.msra.mxu0 %v297
  %338 = vmatpush.msra.mxu0 %v295
  %339 = vmatpush.msra.mxu0 %v293
  %340 = vmatpush.msra.mxu0 %v291
  %341 = vmatpush.msra.mxu0 %v289
  %342 = vmatpush.msra.mxu0 %v287
  %343 = vmatpush.msra.mxu0 %v285
  %344 = vmatpush.msra.mxu0 %v283
  %345 = vmatmul.f32.gmra.mxu0 %v307
  %v346 = vpop.f32.mrf.mxu0
  %v347 = vadd.f32 0.0, %v346
  %348 = vdwg.mxu0
  %v349 = vadd.f32 %v303, %v327
  %v350 = vadd.f32 %v304, %v347
  %v351 = vxor.u32 %v349, 2147483648
  %v352 = vxor.u32 %v350, 2147483648
  %v353 = vmul.f32 %v351, 1.442695
  %v354 = vpow.pop %v353
  %v355 = vmul.f32 %v352, 1.442695
  %v356 = vpow.pop %v355
  %v357 = vadd.f32 %v354, 1.0
  %v358 = vadd.f32 %v356, 1.0
  %v359 = vrcp.pop %v357
  %v360 = vmul.f32 %v357, %v359
  %v361 = vsub.f32 1.0, %v360
  %v362 = vmul.f32 %v359, %v361
  %v363 = vadd.f32 %v359, %v362
  %vm364 = vweird.f32 %v357
  %vm365 = vweird.f32 %v359
  %vm366 = vmor %vm364, %vm365
  %v367 = vsel %vm366, %v359, %v363
  %v368 = vand.u32 2147483647, %v357
  %vm369 = vcmp.eq.f32.partialorder %v368, 8.507059e+37
  %v370 = vand.u32 %v357, 2147483648
  %v371 = vor.u32 1.1754944e-38, %v370
  %v372 = vsel %vm369, %v371, %v367
  %v373 = vmul.f32 1.0, %v372
  %v374 = vrcp.pop %v358
  %v375 = vmul.f32 %v358, %v374
  %v376 = vsub.f32 1.0, %v375
  %v377 = vmul.f32 %v374, %v376
  %v378 = vadd.f32 %v374, %v377
  %vm379 = vweird.f32 %v358
  %vm380 = vweird.f32 %v374
  %vm381 = vmor %vm379, %vm380
  %v382 = vsel %vm381, %v374, %v378
  %v383 = vand.u32 2147483647, %v358
  %vm384 = vcmp.eq.f32.partialorder %v383, 8.507059e+37
  %v385 = vand.u32 %v358, 2147483648
  %v386 = vor.u32 1.1754944e-38, %v385
  %v387 = vsel %vm384, %v386, %v382
  %v388 = vmul.f32 1.0, %v387
  %v389 = vtanh.pop %v350
  %v390 = vmul.f32 %v373, 0.0
  %v391 = vmul.f32 %v373, %v389
  %393 = vrot.lane.b32.xlu0 %v391, 64
  %v394 = vpop.permute.xlu0 %393
  %v396 = vadd.f32 %v390, %v394
  %v397 = vtanh.pop %v396
  %v398 = vmul.f32 %v388, %v397
  %v399 = vld [vmem:[%s1] sm:$0xff]
  %vm400 = vcmp.ne.s32.totalorder %v399, 0
  %402 = vrot.lane.b32.xlu0 %v398, 64
  %v403 = vpop.permute.xlu0 %402
  %v405 = vsel %vm400, %v403, 0.0
  %vm406 = vcmask 261120
  %407 = vst.msk [vmem:[#allocation3] sm:$0xff] %vm406, %v405
  %s408 = scalar_lea.vmem [#allocation3], 120
  %vm409 = vcmask 523520
  %410 = vst.msk [vmem:[%s408] sm:$0xff] %vm409, %v405
  %412 = vrot.lane.b32.xlu0 %v396, 64
  %v413 = vpop.permute.xlu0 %412
  %v415 = vsel %vm400, %v413, 0.0
  %s416 = scalar_lea.vmem [#allocation2], 16
  %v417 = vld [vmem:[%s416] sm:$0xff]
  %v418 = vld [vmem:[%s416 + $0x8] sm:$0xff]
  %s419 = scalar_lea.vmem [#allocation2], 224
  %v420 = vld [vmem:[%s419] sm:$0xff]
  %v421 = vld [vmem:[%s419 + $0x8] sm:$0xff]
  %v422 = vsel %vm43, %v417, %v420
  %v423 = vsel %vm44, %v418, %v421
  %v425 = vsel %vm305, %v405, 0
  %427 = vmatpush.msra.mxu0 0.0
  %428 = vmatpush.msra.mxu0 0.0
  %429 = vmatpush.msra.mxu0 0.0
  %430 = vmatpush.msra.mxu0 0.0
  %431 = vmatpush.msra.mxu0 0.0
  %432 = vmatpush.msra.mxu0 0.0
  %433 = vmatpush.msra.mxu0 0.0
  %434 = vmatpush.msra.mxu0 0.0
  %435 = vmatpush.msra.mxu0 %v296
  %436 = vmatpush.msra.mxu0 %v294
  %437 = vmatpush.msra.mxu0 %v292
  %438 = vmatpush.msra.mxu0 %v290
  %439 = vmatpush.msra.mxu0 %v288
  %440 = vmatpush.msra.mxu0 %v286
  %441 = vmatpush.msra.mxu0 %v284
  %442 = vmatpush.msra.mxu0 %v282
  %443 = vmatmul.f32.gmra.mxu0 %v425
  %v444 = vpop.f32.mrf.mxu0
  %v445 = vadd.f32 0.0, %v444
  %446 = vdwg.mxu0
  %447 = vmatpush.msra.mxu0 0.0
  %448 = vmatpush.msra.mxu0 0.0
  %449 = vmatpush.msra.mxu0 0.0
  %450 = vmatpush.msra.mxu0 0.0
  %451 = vmatpush.msra.mxu0 0.0
  %452 = vmatpush.msra.mxu0 0.0
  %453 = vmatpush.msra.mxu0 0.0
  %454 = vmatpush.msra.mxu0 0.0
  %455 = vmatpush.msra.mxu0 %v297
  %456 = vmatpush.msra.mxu0 %v295
  %457 = vmatpush.msra.mxu0 %v293
  %458 = vmatpush.msra.mxu0 %v291
  %459 = vmatpush.msra.mxu0 %v289
  %460 = vmatpush.msra.mxu0 %v287
  %461 = vmatpush.msra.mxu0 %v285
  %462 = vmatpush.msra.mxu0 %v283
  %463 = vmatmul.f32.gmra.mxu0 %v425
  %v464 = vpop.f32.mrf.mxu0
  %v465 = vadd.f32 0.0, %v464
  %466 = vdwg.mxu0
  %v467 = vadd.f32 %v422, %v445
  %v468 = vadd.f32 %v423, %v465
  %v469 = vxor.u32 %v467, 2147483648
  %v470 = vxor.u32 %v468, 2147483648
  %v471 = vmul.f32 %v469, 1.442695
  %v472 = vpow.pop %v471
  %v473 = vmul.f32 %v470, 1.442695
  %v474 = vpow.pop %v473
  %v475 = vadd.f32 %v472, 1.0
  %v476 = vadd.f32 %v474, 1.0
  %v477 = vrcp.pop %v475
  %v478 = vmul.f32 %v475, %v477
  %v479 = vsub.f32 1.0, %v478
  %v480 = vmul.f32 %v477, %v479
  %v481 = vadd.f32 %v477, %v480
  %vm482 = vweird.f32 %v475
  %vm483 = vweird.f32 %v477
  %vm484 = vmor %vm482, %vm483
  %v485 = vsel %vm484, %v477, %v481
  %v486 = vand.u32 2147483647, %v475
  %vm487 = vcmp.eq.f32.partialorder %v486, 8.507059e+37
  %v488 = vand.u32 %v475, 2147483648
  %v489 = vor.u32 1.1754944e-38, %v488
  %v490 = vsel %vm487, %v489, %v485
  %v491 = vmul.f32 1.0, %v490
  %v492 = vrcp.pop %v476
  %v493 = vmul.f32 %v476, %v492
  %v494 = vsub.f32 1.0, %v493
  %v495 = vmul.f32 %v492, %v494
  %v496 = vadd.f32 %v492, %v495
  %vm497 = vweird.f32 %v476
  %vm498 = vweird.f32 %v492
  %vm499 = vmor %vm497, %vm498
  %v500 = vsel %vm499, %v492, %v496
  %v501 = vand.u32 2147483647, %v476
  %vm502 = vcmp.eq.f32.partialorder %v501, 8.507059e+37
  %v503 = vand.u32 %v476, 2147483648
  %v504 = vor.u32 1.1754944e-38, %v503
  %v505 = vsel %vm502, %v504, %v500
  %v506 = vmul.f32 1.0, %v505
  %v507 = vtanh.pop %v468
  %509 = vrot.lane.b32.xlu0 %v415, 64
  %v510 = vpop.permute.xlu0 %509
  %v512 = vmul.f32 %v491, %v510
  %v513 = vmul.f32 %v491, %v507
  %515 = vrot.lane.b32.xlu0 %v513, 64
  %v516 = vpop.permute.xlu0 %515
  %v518 = vadd.f32 %v512, %v516
  %v519 = vtanh.pop %v518
  %v520 = vmul.f32 %v506, %v519
  %s521 = scalar_lea.vmem %s1, 8
  %v522 = vld [vmem:[%s521] sm:$0xff]
  %vm523 = vcmp.ne.s32.totalorder %v522, 0
  %525 = vrot.lane.b32.xlu0 %v520, 64
  %v526 = vpop.permute.xlu0 %525
  %v528 = vsel %vm523, %v526, 0.0
  %s529 = scalar_lea.vmem [#allocation3], 8
  %530 = vst.msk [vmem:[%s529] sm:$0xff] %vm406, %v528
  %s531 = scalar_lea.vmem [#allocation3], 112
  %532 = vst.msk [vmem:[%s531] sm:$0xff] %vm409, %v528
  %v533 = vsel %vm523, %v526, %v405
  %535 = vrot.lane.b32.xlu0 %v518, 64
  %v536 = vpop.permute.xlu0 %535
  %v538 = vsel %vm523, %v536, %v415
  %s539 = scalar_lea.vmem [#allocation2], 32
  %v540 = vld [vmem:[%s539] sm:$0xff]
  %v541 = vld [vmem:[%s539 + $0x8] sm:$0xff]
  %s542 = scalar_lea.vmem [#allocation2], 208
  %v543 = vld [vmem:[%s542] sm:$0xff]
  %v544 = vld [vmem:[%s542 + $0x8] sm:$0xff]
  %v545 = vsel %vm43, %v540, %v543
  %v546 = vsel %vm44, %v541, %v544
  %v548 = vsel %vm305, %v533, 0
  %550 = vmatpush.msra.mxu0 0.0
  %551 = vmatpush.msra.mxu0 0.0
  %552 = vmatpush.msra.mxu0 0.0
  %553 = vmatpush.msra.mxu0 0.0
  %554 = vmatpush.msra.mxu0 0.0
  %555 = vmatpush.msra.mxu0 0.0
  %556 = vmatpush.msra.mxu0 0.0
  %557 = vmatpush.msra.mxu0 0.0
  %558 = vmatpush.msra.mxu0 %v296
  %559 = vmatpush.msra.mxu0 %v294
  %560 = vmatpush.msra.mxu0 %v292
  %561 = vmatpush.msra.mxu0 %v290
  %562 = vmatpush.msra.mxu0 %v288
  %563 = vmatpush.msra.mxu0 %v286
  %564 = vmatpush.msra.mxu0 %v284
  %565 = vmatpush.msra.mxu0 %v282
  %566 = vmatmul.f32.gmra.mxu0 %v548
  %v567 = vpop.f32.mrf.mxu0
  %v568 = vadd.f32 0.0, %v567
  %569 = vdwg.mxu0
  %570 = vmatpush.msra.mxu0 0.0
  %571 = vmatpush.msra.mxu0 0.0
  %572 = vmatpush.msra.mxu0 0.0
  %573 = vmatpush.msra.mxu0 0.0
  %574 = vmatpush.msra.mxu0 0.0
  %575 = vmatpush.msra.mxu0 0.0
  %576 = vmatpush.msra.mxu0 0.0
  %577 = vmatpush.msra.mxu0 0.0
  %578 = vmatpush.msra.mxu0 %v297
  %579 = vmatpush.msra.mxu0 %v295
  %580 = vmatpush.msra.mxu0 %v293
  %581 = vmatpush.msra.mxu0 %v291
  %582 = vmatpush.msra.mxu0 %v289
  %583 = vmatpush.msra.mxu0 %v287
  %584 = vmatpush.msra.mxu0 %v285
  %585 = vmatpush.msra.mxu0 %v283
  %586 = vmatmul.f32.gmra.mxu0 %v548
  %v587 = vpop.f32.mrf.mxu0
  %v588 = vadd.f32 0.0, %v587
  %589 = vdwg.mxu0
  %v590 = vadd.f32 %v545, %v568
  %v591 = vadd.f32 %v546, %v588
  %v592 = vxor.u32 %v590, 2147483648
  %v593 = vxor.u32 %v591, 2147483648
  %v594 = vmul.f32 %v592, 1.442695
  %v595 = vpow.pop %v594
  %v596 = vmul.f32 %v593, 1.442695
  %v597 = vpow.pop %v596
  %v598 = vadd.f32 %v595, 1.0
  %v599 = vadd.f32 %v597, 1.0
  %v600 = vrcp.pop %v598
  %v601 = vmul.f32 %v598, %v600
  %v602 = vsub.f32 1.0, %v601
  %v603 = vmul.f32 %v600, %v602
  %v604 = vadd.f32 %v600, %v603
  %vm605 = vweird.f32 %v598
  %vm606 = vweird.f32 %v600
  %vm607 = vmor %vm605, %vm606
  %v608 = vsel %vm607, %v600, %v604
  %v609 = vand.u32 2147483647, %v598
  %vm610 = vcmp.eq.f32.partialorder %v609, 8.507059e+37
  %v611 = vand.u32 %v598, 2147483648
  %v612 = vor.u32 1.1754944e-38, %v611
  %v613 = vsel %vm610, %v612, %v608
  %v614 = vmul.f32 1.0, %v613
  %v615 = vrcp.pop %v599
  %v616 = vmul.f32 %v599, %v615
  %v617 = vsub.f32 1.0, %v616
  %v618 = vmul.f32 %v615, %v617
  %v619 = vadd.f32 %v615, %v618
  %vm620 = vweird.f32 %v599
  %vm621 = vweird.f32 %v615
  %vm622 = vmor %vm620, %vm621
  %v623 = vsel %vm622, %v615, %v619
  %v624 = vand.u32 2147483647, %v599
  %vm625 = vcmp.eq.f32.partialorder %v624, 8.507059e+37
  %v626 = vand.u32 %v599, 2147483648
  %v627 = vor.u32 1.1754944e-38, %v626
  %v628 = vsel %vm625, %v627, %v623
  %v629 = vmul.f32 1.0, %v628
  %v630 = vtanh.pop %v591
  %632 = vrot.lane.b32.xlu0 %v538, 64
  %v633 = vpop.permute.xlu0 %632
  %v635 = vmul.f32 %v614, %v633
  %v636 = vmul.f32 %v614, %v630
  %638 = vrot.lane.b32.xlu0 %v636, 64
  %v639 = vpop.permute.xlu0 %638
  %v641 = vadd.f32 %v635, %v639
  %v642 = vtanh.pop %v641
  %v643 = vmul.f32 %v629, %v642
  %s644 = scalar_lea.vmem %s1, 16
  %v645 = vld [vmem:[%s644] sm:$0xff]
  %vm646 = vcmp.ne.s32.totalorder %v645, 0
  %648 = vrot.lane.b32.xlu0 %v643, 64
  %v649 = vpop.permute.xlu0 %648
  %v651 = vsel %vm646, %v649, 0.0
  %s652 = scalar_lea.vmem [#allocation3], 16
  %653 = vst.msk [vmem:[%s652] sm:$0xff] %vm406, %v651
  %s654 = scalar_lea.vmem [#allocation3], 104
  %655 = vst.msk [vmem:[%s654] sm:$0xff] %vm409, %v651
  %v656 = vsel %vm646, %v649, %v533
  %658 = vrot.lane.b32.xlu0 %v641, 64
  %v659 = vpop.permute.xlu0 %658
  %v661 = vsel %vm646, %v659, %v538
  %s662 = scalar_lea.vmem [#allocation2], 48
  %v663 = vld [vmem:[%s662] sm:$0xff]
  %v664 = vld [vmem:[%s662 + $0x8] sm:$0xff]
  %s665 = scalar_lea.vmem [#allocation2], 192
  %v666 = vld [vmem:[%s665] sm:$0xff]
  %v667 = vld [vmem:[%s665 + $0x8] sm:$0xff]
  %v668 = vsel %vm43, %v663, %v666
  %v669 = vsel %vm44, %v664, %v667
  %v671 = vsel %vm305, %v656, 0
  %673 = vmatpush.msra.mxu0 0.0
  %674 = vmatpush.msra.mxu0 0.0
  %675 = vmatpush.msra.mxu0 0.0
  %676 = vmatpush.msra.mxu0 0.0
  %677 = vmatpush.msra.mxu0 0.0
  %678 = vmatpush.msra.mxu0 0.0
  %679 = vmatpush.msra.mxu0 0.0
  %680 = vmatpush.msra.mxu0 0.0
  %681 = vmatpush.msra.mxu0 %v296
  %682 = vmatpush.msra.mxu0 %v294
  %683 = vmatpush.msra.mxu0 %v292
  %684 = vmatpush.msra.mxu0 %v290
  %685 = vmatpush.msra.mxu0 %v288
  %686 = vmatpush.msra.mxu0 %v286
  %687 = vmatpush.msra.mxu0 %v284
  %688 = vmatpush.msra.mxu0 %v282
  %689 = vmatmul.f32.gmra.mxu0 %v671
  %v690 = vpop.f32.mrf.mxu0
  %v691 = vadd.f32 0.0, %v690
  %692 = vdwg.mxu0
  %693 = vmatpush.msra.mxu0 0.0
  %694 = vmatpush.msra.mxu0 0.0
  %695 = vmatpush.msra.mxu0 0.0
  %696 = vmatpush.msra.mxu0 0.0
  %697 = vmatpush.msra.mxu0 0.0
  %698 = vmatpush.msra.mxu0 0.0
  %699 = vmatpush.msra.mxu0 0.0
  %700 = vmatpush.msra.mxu0 0.0
  %701 = vmatpush.msra.mxu0 %v297
  %702 = vmatpush.msra.mxu0 %v295
  %703 = vmatpush.msra.mxu0 %v293
  %704 = vmatpush.msra.mxu0 %v291
  %705 = vmatpush.msra.mxu0 %v289
  %706 = vmatpush.msra.mxu0 %v287
  %707 = vmatpush.msra.mxu0 %v285
  %708 = vmatpush.msra.mxu0 %v283
  %709 = vmatmul.f32.gmra.mxu0 %v671
  %v710 = vpop.f32.mrf.mxu0
  %v711 = vadd.f32 0.0, %v710
  %712 = vdwg.mxu0
  %v713 = vadd.f32 %v668, %v691
  %v714 = vadd.f32 %v669, %v711
  %v715 = vxor.u32 %v713, 2147483648
  %v716 = vxor.u32 %v714, 2147483648
  %v717 = vmul.f32 %v715, 1.442695
  %v718 = vpow.pop %v717
  %v719 = vmul.f32 %v716, 1.442695
  %v720 = vpow.pop %v719
  %v721 = vadd.f32 %v718, 1.0
  %v722 = vadd.f32 %v720, 1.0
  %v723 = vrcp.pop %v721
  %v724 = vmul.f32 %v721, %v723
  %v725 = vsub.f32 1.0, %v724
  %v726 = vmul.f32 %v723, %v725
  %v727 = vadd.f32 %v723, %v726
  %vm728 = vweird.f32 %v721
  %vm729 = vweird.f32 %v723
  %vm730 = vmor %vm728, %vm729
  %v731 = vsel %vm730, %v723, %v727
  %v732 = vand.u32 2147483647, %v721
  %vm733 = vcmp.eq.f32.partialorder %v732, 8.507059e+37
  %v734 = vand.u32 %v721, 2147483648
  %v735 = vor.u32 1.1754944e-38, %v734
  %v736 = vsel %vm733, %v735, %v731
  %v737 = vmul.f32 1.0, %v736
  %v738 = vrcp.pop %v722
  %v739 = vmul.f32 %v722, %v738
  %v740 = vsub.f32 1.0, %v739
  %v741 = vmul.f32 %v738, %v740
  %v742 = vadd.f32 %v738, %v741
  %vm743 = vweird.f32 %v722
  %vm744 = vweird.f32 %v738
  %vm745 = vmor %vm743, %vm744
  %v746 = vsel %vm745, %v738, %v742
  %v747 = vand.u32 2147483647, %v722
  %vm748 = vcmp.eq.f32.partialorder %v747, 8.507059e+37
  %v749 = vand.u32 %v722, 2147483648
  %v750 = vor.u32 1.1754944e-38, %v749
  %v751 = vsel %vm748, %v750, %v746
  %v752 = vmul.f32 1.0, %v751
  %v753 = vtanh.pop %v714
  %755 = vrot.lane.b32.xlu0 %v661, 64
  %v756 = vpop.permute.xlu0 %755
  %v758 = vmul.f32 %v737, %v756
  %v759 = vmul.f32 %v737, %v753
  %761 = vrot.lane.b32.xlu0 %v759, 64
  %v762 = vpop.permute.xlu0 %761
  %v764 = vadd.f32 %v758, %v762
  %v765 = vtanh.pop %v764
  %v766 = vmul.f32 %v752, %v765
  %s767 = scalar_lea.vmem %s1, 24
  %v768 = vld [vmem:[%s767] sm:$0xff]
  %vm769 = vcmp.ne.s32.totalorder %v768, 0
  %771 = vrot.lane.b32.xlu0 %v766, 64
  %v772 = vpop.permute.xlu0 %771
  %v774 = vsel %vm769, %v772, 0.0
  %s775 = scalar_lea.vmem [#allocation3], 24
  %776 = vst.msk [vmem:[%s775] sm:$0xff] %vm406, %v774
  %s777 = scalar_lea.vmem [#allocation3], 96
  %778 = vst.msk [vmem:[%s777] sm:$0xff] %vm409, %v774
  %v779 = vsel %vm769, %v772, %v656
  %781 = vrot.lane.b32.xlu0 %v764, 64
  %v782 = vpop.permute.xlu0 %781
  %v784 = vsel %vm769, %v782, %v661
  %s785 = scalar_lea.vmem [#allocation2], 64
  %v786 = vld [vmem:[%s785] sm:$0xff]
  %v787 = vld [vmem:[%s785 + $0x8] sm:$0xff]
  %s788 = scalar_lea.vmem [#allocation2], 176
  %v789 = vld [vmem:[%s788] sm:$0xff]
  %v790 = vld [vmem:[%s788 + $0x8] sm:$0xff]
  %v791 = vsel %vm43, %v786, %v789
  %v792 = vsel %vm44, %v787, %v790
  %v794 = vsel %vm305, %v779, 0
  %796 = vmatpush.msra.mxu0 0.0
  %797 = vmatpush.msra.mxu0 0.0
  %798 = vmatpush.msra.mxu0 0.0
  %799 = vmatpush.msra.mxu0 0.0
  %800 = vmatpush.msra.mxu0 0.0
  %801 = vmatpush.msra.mxu0 0.0
  %802 = vmatpush.msra.mxu0 0.0
  %803 = vmatpush.msra.mxu0 0.0
  %804 = vmatpush.msra.mxu0 %v296
  %805 = vmatpush.msra.mxu0 %v294
  %806 = vmatpush.msra.mxu0 %v292
  %807 = vmatpush.msra.mxu0 %v290
  %808 = vmatpush.msra.mxu0 %v288
  %809 = vmatpush.msra.mxu0 %v286
  %810 = vmatpush.msra.mxu0 %v284
  %811 = vmatpush.msra.mxu0 %v282
  %812 = vmatmul.f32.gmra.mxu0 %v794
  %v813 = vpop.f32.mrf.mxu0
  %v814 = vadd.f32 0.0, %v813
  %815 = vdwg.mxu0
  %816 = vmatpush.msra.mxu0 0.0
  %817 = vmatpush.msra.mxu0 0.0
  %818 = vmatpush.msra.mxu0 0.0
  %819 = vmatpush.msra.mxu0 0.0
  %820 = vmatpush.msra.mxu0 0.0
  %821 = vmatpush.msra.mxu0 0.0
  %822 = vmatpush.msra.mxu0 0.0
  %823 = vmatpush.msra.mxu0 0.0
  %824 = vmatpush.msra.mxu0 %v297
  %825 = vmatpush.msra.mxu0 %v295
  %826 = vmatpush.msra.mxu0 %v293
  %827 = vmatpush.msra.mxu0 %v291
  %828 = vmatpush.msra.mxu0 %v289
  %829 = vmatpush.msra.mxu0 %v287
  %830 = vmatpush.msra.mxu0 %v285
  %831 = vmatpush.msra.mxu0 %v283
  %832 = vmatmul.f32.gmra.mxu0 %v794
  %v833 = vpop.f32.mrf.mxu0
  %v834 = vadd.f32 0.0, %v833
  %835 = vdwg.mxu0
  %v836 = vadd.f32 %v791, %v814
  %v837 = vadd.f32 %v792, %v834
  %v838 = vxor.u32 %v836, 2147483648
  %v839 = vxor.u32 %v837, 2147483648
  %v840 = vmul.f32 %v838, 1.442695
  %v841 = vpow.pop %v840
  %v842 = vmul.f32 %v839, 1.442695
  %v843 = vpow.pop %v842
  %v844 = vadd.f32 %v841, 1.0
  %v845 = vadd.f32 %v843, 1.0
  %v846 = vrcp.pop %v844
  %v847 = vmul.f32 %v844, %v846
  %v848 = vsub.f32 1.0, %v847
  %v849 = vmul.f32 %v846, %v848
  %v850 = vadd.f32 %v846, %v849
  %vm851 = vweird.f32 %v844
  %vm852 = vweird.f32 %v846
  %vm853 = vmor %vm851, %vm852
  %v854 = vsel %vm853, %v846, %v850
  %v855 = vand.u32 2147483647, %v844
  %vm856 = vcmp.eq.f32.partialorder %v855, 8.507059e+37
  %v857 = vand.u32 %v844, 2147483648
  %v858 = vor.u32 1.1754944e-38, %v857
  %v859 = vsel %vm856, %v858, %v854
  %v860 = vmul.f32 1.0, %v859
  %v861 = vrcp.pop %v845
  %v862 = vmul.f32 %v845, %v861
  %v863 = vsub.f32 1.0, %v862
  %v864 = vmul.f32 %v861, %v863
  %v865 = vadd.f32 %v861, %v864
  %vm866 = vweird.f32 %v845
  %vm867 = vweird.f32 %v861
  %vm868 = vmor %vm866, %vm867
  %v869 = vsel %vm868, %v861, %v865
  %v870 = vand.u32 2147483647, %v845
  %vm871 = vcmp.eq.f32.partialorder %v870, 8.507059e+37
  %v872 = vand.u32 %v845, 2147483648
  %v873 = vor.u32 1.1754944e-38, %v872
  %v874 = vsel %vm871, %v873, %v869
  %v875 = vmul.f32 1.0, %v874
  %v876 = vtanh.pop %v837
  %878 = vrot.lane.b32.xlu0 %v784, 64
  %v879 = vpop.permute.xlu0 %878
  %v881 = vmul.f32 %v860, %v879
  %v882 = vmul.f32 %v860, %v876
  %884 = vrot.lane.b32.xlu0 %v882, 64
  %v885 = vpop.permute.xlu0 %884
  %v887 = vadd.f32 %v881, %v885
  %v888 = vtanh.pop %v887
  %v889 = vmul.f32 %v875, %v888
  %s890 = scalar_lea.vmem %s1, 32
  %v891 = vld [vmem:[%s890] sm:$0xff]
  %vm892 = vcmp.ne.s32.totalorder %v891, 0
  %894 = vrot.lane.b32.xlu0 %v889, 64
  %v895 = vpop.permute.xlu0 %894
  %v897 = vsel %vm892, %v895, 0.0
  %s898 = scalar_lea.vmem [#allocation3], 32
  %899 = vst.msk [vmem:[%s898] sm:$0xff] %vm406, %v897
  %s900 = scalar_lea.vmem [#allocation3], 88
  %901 = vst.msk [vmem:[%s900] sm:$0xff] %vm409, %v897
  %v902 = vsel %vm892, %v895, %v779
  %904 = vrot.lane.b32.xlu0 %v887, 64
  %v905 = vpop.permute.xlu0 %904
  %v907 = vsel %vm892, %v905, %v784
  %s908 = scalar_lea.vmem [#allocation2], 80
  %v909 = vld [vmem:[%s908] sm:$0xff]
  %v910 = vld [vmem:[%s908 + $0x8] sm:$0xff]
  %s911 = scalar_lea.vmem [#allocation2], 160
  %v912 = vld [vmem:[%s911] sm:$0xff]
  %v913 = vld [vmem:[%s911 + $0x8] sm:$0xff]
  %v914 = vsel %vm43, %v909, %v912
  %v915 = vsel %vm44, %v910, %v913
  %v917 = vsel %vm305, %v902, 0
  %919 = vmatpush.msra.mxu0 0.0
  %920 = vmatpush.msra.mxu0 0.0
  %921 = vmatpush.msra.mxu0 0.0
  %922 = vmatpush.msra.mxu0 0.0
  %923 = vmatpush.msra.mxu0 0.0
  %924 = vmatpush.msra.mxu0 0.0
  %925 = vmatpush.msra.mxu0 0.0
  %926 = vmatpush.msra.mxu0 0.0
  %927 = vmatpush.msra.mxu0 %v296
  %928 = vmatpush.msra.mxu0 %v294
  %929 = vmatpush.msra.mxu0 %v292
  %930 = vmatpush.msra.mxu0 %v290
  %931 = vmatpush.msra.mxu0 %v288
  %932 = vmatpush.msra.mxu0 %v286
  %933 = vmatpush.msra.mxu0 %v284
  %934 = vmatpush.msra.mxu0 %v282
  %935 = vmatmul.f32.gmra.mxu0 %v917
  %v936 = vpop.f32.mrf.mxu0
  %v937 = vadd.f32 0.0, %v936
  %938 = vdwg.mxu0
  %939 = vmatpush.msra.mxu0 0.0
  %940 = vmatpush.msra.mxu0 0.0
  %941 = vmatpush.msra.mxu0 0.0
  %942 = vmatpush.msra.mxu0 0.0
  %943 = vmatpush.msra.mxu0 0.0
  %944 = vmatpush.msra.mxu0 0.0
  %945 = vmatpush.msra.mxu0 0.0
  %946 = vmatpush.msra.mxu0 0.0
  %947 = vmatpush.msra.mxu0 %v297
  %948 = vmatpush.msra.mxu0 %v295
  %949 = vmatpush.msra.mxu0 %v293
  %950 = vmatpush.msra.mxu0 %v291
  %951 = vmatpush.msra.mxu0 %v289
  %952 = vmatpush.msra.mxu0 %v287
  %953 = vmatpush.msra.mxu0 %v285
  %954 = vmatpush.msra.mxu0 %v283
  %955 = vmatmul.f32.gmra.mxu0 %v917
  %v956 = vpop.f32.mrf.mxu0
  %v957 = vadd.f32 0.0, %v956
  %958 = vdwg.mxu0
  %v959 = vadd.f32 %v914, %v937
  %v960 = vadd.f32 %v915, %v957
  %v961 = vxor.u32 %v959, 2147483648
  %v962 = vxor.u32 %v960, 2147483648
  %v963 = vmul.f32 %v961, 1.442695
  %v964 = vpow.pop %v963
  %v965 = vmul.f32 %v962, 1.442695
  %v966 = vpow.pop %v965
  %v967 = vadd.f32 %v964, 1.0
  %v968 = vadd.f32 %v966, 1.0
  %v969 = vrcp.pop %v967
  %v970 = vmul.f32 %v967, %v969
  %v971 = vsub.f32 1.0, %v970
  %v972 = vmul.f32 %v969, %v971
  %v973 = vadd.f32 %v969, %v972
  %vm974 = vweird.f32 %v967
  %vm975 = vweird.f32 %v969
  %vm976 = vmor %vm974, %vm975
  %v977 = vsel %vm976, %v969, %v973
  %v978 = vand.u32 2147483647, %v967
  %vm979 = vcmp.eq.f32.partialorder %v978, 8.507059e+37
  %v980 = vand.u32 %v967, 2147483648
  %v981 = vor.u32 1.1754944e-38, %v980
  %v982 = vsel %vm979, %v981, %v977
  %v983 = vmul.f32 1.0, %v982
  %v984 = vrcp.pop %v968
  %v985 = vmul.f32 %v968, %v984
  %v986 = vsub.f32 1.0, %v985
  %v987 = vmul.f32 %v984, %v986
  %v988 = vadd.f32 %v984, %v987
  %vm989 = vweird.f32 %v968
  %vm990 = vweird.f32 %v984
  %vm991 = vmor %vm989, %vm990
  %v992 = vsel %vm991, %v984, %v988
  %v993 = vand.u32 2147483647, %v968
  %vm994 = vcmp.eq.f32.partialorder %v993, 8.507059e+37
  %v995 = vand.u32 %v968, 2147483648
  %v996 = vor.u32 1.1754944e-38, %v995
  %v997 = vsel %vm994, %v996, %v992
  %v998 = vmul.f32 1.0, %v997
  %v999 = vtanh.pop %v960
  %1001 = vrot.lane.b32.xlu0 %v907, 64
  %v1002 = vpop.permute.xlu0 %1001
  %v1004 = vmul.f32 %v983, %v1002
  %v1005 = vmul.f32 %v983, %v999
  %1007 = vrot.lane.b32.xlu0 %v1005, 64
  %v1008 = vpop.permute.xlu0 %1007
  %v1010 = vadd.f32 %v1004, %v1008
  %v1011 = vtanh.pop %v1010
  %v1012 = vmul.f32 %v998, %v1011
  %s1013 = scalar_lea.vmem %s1, 40
  %v1014 = vld [vmem:[%s1013] sm:$0xff]
  %vm1015 = vcmp.ne.s32.totalorder %v1014, 0
  %1017 = vrot.lane.b32.xlu0 %v1012, 64
  %v1018 = vpop.permute.xlu0 %1017
  %v1020 = vsel %vm1015, %v1018, 0.0
  %s1021 = scalar_lea.vmem [#allocation3], 40
  %1022 = vst.msk [vmem:[%s1021] sm:$0xff] %vm406, %v1020
  %s1023 = scalar_lea.vmem [#allocation3], 80
  %1024 = vst.msk [vmem:[%s1023] sm:$0xff] %vm409, %v1020
  %v1025 = vsel %vm1015, %v1018, %v902
  %1027 = vrot.lane.b32.xlu0 %v1010, 64
  %v1028 = vpop.permute.xlu0 %1027
  %v1030 = vsel %vm1015, %v1028, %v907
  %s1031 = scalar_lea.vmem [#allocation2], 96
  %v1032 = vld [vmem:[%s1031] sm:$0xff]
  %v1033 = vld [vmem:[%s1031 + $0x8] sm:$0xff]
  %s1034 = scalar_lea.vmem [#allocation2], 144
  %v1035 = vld [vmem:[%s1034] sm:$0xff]
  %v1036 = vld [vmem:[%s1034 + $0x8] sm:$0xff]
  %v1037 = vsel %vm43, %v1032, %v1035
  %v1038 = vsel %vm44, %v1033, %v1036
  %v1040 = vsel %vm305, %v1025, 0
  %1042 = vmatpush.msra.mxu0 0.0
  %1043 = vmatpush.msra.mxu0 0.0
  %1044 = vmatpush.msra.mxu0 0.0
  %1045 = vmatpush.msra.mxu0 0.0
  %1046 = vmatpush.msra.mxu0 0.0
  %1047 = vmatpush.msra.mxu0 0.0
  %1048 = vmatpush.msra.mxu0 0.0
  %1049 = vmatpush.msra.mxu0 0.0
  %1050 = vmatpush.msra.mxu0 %v296
  %1051 = vmatpush.msra.mxu0 %v294
  %1052 = vmatpush.msra.mxu0 %v292
  %1053 = vmatpush.msra.mxu0 %v290
  %1054 = vmatpush.msra.mxu0 %v288
  %1055 = vmatpush.msra.mxu0 %v286
  %1056 = vmatpush.msra.mxu0 %v284
  %1057 = vmatpush.msra.mxu0 %v282
  %1058 = vmatmul.f32.gmra.mxu0 %v1040
  %v1059 = vpop.f32.mrf.mxu0
  %v1060 = vadd.f32 0.0, %v1059
  %1061 = vdwg.mxu0
  %1062 = vmatpush.msra.mxu0 0.0
  %1063 = vmatpush.msra.mxu0 0.0
  %1064 = vmatpush.msra.mxu0 0.0
  %1065 = vmatpush.msra.mxu0 0.0
  %1066 = vmatpush.msra.mxu0 0.0
  %1067 = vmatpush.msra.mxu0 0.0
  %1068 = vmatpush.msra.mxu0 0.0
  %1069 = vmatpush.msra.mxu0 0.0
  %1070 = vmatpush.msra.mxu0 %v297
  %1071 = vmatpush.msra.mxu0 %v295
  %1072 = vmatpush.msra.mxu0 %v293
  %1073 = vmatpush.msra.mxu0 %v291
  %1074 = vmatpush.msra.mxu0 %v289
  %1075 = vmatpush.msra.mxu0 %v287
  %1076 = vmatpush.msra.mxu0 %v285
  %1077 = vmatpush.msra.mxu0 %v283
  %1078 = vmatmul.f32.gmra.mxu0 %v1040
  %v1079 = vpop.f32.mrf.mxu0
  %v1080 = vadd.f32 0.0, %v1079
  %1081 = vdwg.mxu0
  %v1082 = vadd.f32 %v1037, %v1060
  %v1083 = vadd.f32 %v1038, %v1080
  %v1084 = vxor.u32 %v1082, 2147483648
  %v1085 = vxor.u32 %v1083, 2147483648
  %v1086 = vmul.f32 %v1084, 1.442695
  %v1087 = vpow.pop %v1086
  %v1088 = vmul.f32 %v1085, 1.442695
  %v1089 = vpow.pop %v1088
  %v1090 = vadd.f32 %v1087, 1.0
  %v1091 = vadd.f32 %v1089, 1.0
  %v1092 = vrcp.pop %v1090
  %v1093 = vmul.f32 %v1090, %v1092
  %v1094 = vsub.f32 1.0, %v1093
  %v1095 = vmul.f32 %v1092, %v1094
  %v1096 = vadd.f32 %v1092, %v1095
  %vm1097 = vweird.f32 %v1090
  %vm1098 = vweird.f32 %v1092
  %vm1099 = vmor %vm1097, %vm1098
  %v1100 = vsel %vm1099, %v1092, %v1096
  %v1101 = vand.u32 2147483647, %v1090
  %vm1102 = vcmp.eq.f32.partialorder %v1101, 8.507059e+37
  %v1103 = vand.u32 %v1090, 2147483648
  %v1104 = vor.u32 1.1754944e-38, %v1103
  %v1105 = vsel %vm1102, %v1104, %v1100
  %v1106 = vmul.f32 1.0, %v1105
  %v1107 = vrcp.pop %v1091
  %v1108 = vmul.f32 %v1091, %v1107
  %v1109 = vsub.f32 1.0, %v1108
  %v1110 = vmul.f32 %v1107, %v1109
  %v1111 = vadd.f32 %v1107, %v1110
  %vm1112 = vweird.f32 %v1091
  %vm1113 = vweird.f32 %v1107
  %vm1114 = vmor %vm1112, %vm1113
  %v1115 = vsel %vm1114, %v1107, %v1111
  %v1116 = vand.u32 2147483647, %v1091
  %vm1117 = vcmp.eq.f32.partialorder %v1116, 8.507059e+37
  %v1118 = vand.u32 %v1091, 2147483648
  %v1119 = vor.u32 1.1754944e-38, %v1118
  %v1120 = vsel %vm1117, %v1119, %v1115
  %v1121 = vmul.f32 1.0, %v1120
  %v1122 = vtanh.pop %v1083
  %1124 = vrot.lane.b32.xlu0 %v1030, 64
  %v1125 = vpop.permute.xlu0 %1124
  %v1127 = vmul.f32 %v1106, %v1125
  %v1128 = vmul.f32 %v1106, %v1122
  %1130 = vrot.lane.b32.xlu0 %v1128, 64
  %v1131 = vpop.permute.xlu0 %1130
  %v1133 = vadd.f32 %v1127, %v1131
  %v1134 = vtanh.pop %v1133
  %v1135 = vmul.f32 %v1121, %v1134
  %s1136 = scalar_lea.vmem %s1, 48
  %v1137 = vld [vmem:[%s1136] sm:$0xff]
  %vm1138 = vcmp.ne.s32.totalorder %v1137, 0
  %1140 = vrot.lane.b32.xlu0 %v1135, 64
  %v1141 = vpop.permute.xlu0 %1140
  %v1143 = vsel %vm1138, %v1141, 0.0
  %s1144 = scalar_lea.vmem [#allocation3], 48
  %1145 = vst.msk [vmem:[%s1144] sm:$0xff] %vm406, %v1143
  %s1146 = scalar_lea.vmem [#allocation3], 72
  %1147 = vst.msk [vmem:[%s1146] sm:$0xff] %vm409, %v1143
  %v1148 = vsel %vm1138, %v1141, %v1025
  %1150 = vrot.lane.b32.xlu0 %v1133, 64
  %v1151 = vpop.permute.xlu0 %1150
  %v1153 = vsel %vm1138, %v1151, %v1030
  %s1154 = scalar_lea.vmem [#allocation2], 112
  %v1155 = vld [vmem:[%s1154] sm:$0xff]
  %v1156 = vld [vmem:[%s1154 + $0x8] sm:$0xff]
  %s1157 = scalar_lea.vmem [#allocation2], 128
  %v1158 = vld [vmem:[%s1157] sm:$0xff]
  %v1159 = vld [vmem:[%s1157 + $0x8] sm:$0xff]
  %v1160 = vsel %vm43, %v1155, %v1158
  %v1161 = vsel %vm44, %v1156, %v1159
  %v1163 = vsel %vm305, %v1148, 0
  %1165 = vmatpush.msra.mxu0 0.0
  %1166 = vmatpush.msra.mxu0 0.0
  %1167 = vmatpush.msra.mxu0 0.0
  %1168 = vmatpush.msra.mxu0 0.0
  %1169 = vmatpush.msra.mxu0 0.0
  %1170 = vmatpush.msra.mxu0 0.0
  %1171 = vmatpush.msra.mxu0 0.0
  %1172 = vmatpush.msra.mxu0 0.0
  %1173 = vmatpush.msra.mxu0 %v296
  %1174 = vmatpush.msra.mxu0 %v294
  %1175 = vmatpush.msra.mxu0 %v292
  %1176 = vmatpush.msra.mxu0 %v290
  %1177 = vmatpush.msra.mxu0 %v288
  %1178 = vmatpush.msra.mxu0 %v286
  %1179 = vmatpush.msra.mxu0 %v284
  %1180 = vmatpush.msra.mxu0 %v282
  %1181 = vmatmul.f32.gmra.mxu0 %v1163
  %v1182 = vpop.f32.mrf.mxu0
  %v1183 = vadd.f32 0.0, %v1182
  %1184 = vdwg.mxu0
  %1185 = vmatpush.msra.mxu0 0.0
  %1186 = vmatpush.msra.mxu0 0.0
  %1187 = vmatpush.msra.mxu0 0.0
  %1188 = vmatpush.msra.mxu0 0.0
  %1189 = vmatpush.msra.mxu0 0.0
  %1190 = vmatpush.msra.mxu0 0.0
  %1191 = vmatpush.msra.mxu0 0.0
  %1192 = vmatpush.msra.mxu0 0.0
  %1193 = vmatpush.msra.mxu0 %v297
  %1194 = vmatpush.msra.mxu0 %v295
  %1195 = vmatpush.msra.mxu0 %v293
  %1196 = vmatpush.msra.mxu0 %v291
  %1197 = vmatpush.msra.mxu0 %v289
  %1198 = vmatpush.msra.mxu0 %v287
  %1199 = vmatpush.msra.mxu0 %v285
  %1200 = vmatpush.msra.mxu0 %v283
  %1201 = vmatmul.f32.gmra.mxu0 %v1163
  %v1202 = vpop.f32.mrf.mxu0
  %v1203 = vadd.f32 0.0, %v1202
  %1204 = vdwg.mxu0
  %v1205 = vadd.f32 %v1160, %v1183
  %v1206 = vadd.f32 %v1161, %v1203
  %v1207 = vxor.u32 %v1205, 2147483648
  %v1208 = vxor.u32 %v1206, 2147483648
  %v1209 = vmul.f32 %v1207, 1.442695
  %v1210 = vpow.pop %v1209
  %v1211 = vmul.f32 %v1208, 1.442695
  %v1212 = vpow.pop %v1211
  %v1213 = vadd.f32 %v1210, 1.0
  %v1214 = vadd.f32 %v1212, 1.0
  %v1215 = vrcp.pop %v1213
  %v1216 = vmul.f32 %v1213, %v1215
  %v1217 = vsub.f32 1.0, %v1216
  %v1218 = vmul.f32 %v1215, %v1217
  %v1219 = vadd.f32 %v1215, %v1218
  %vm1220 = vweird.f32 %v1213
  %vm1221 = vweird.f32 %v1215
  %vm1222 = vmor %vm1220, %vm1221
  %v1223 = vsel %vm1222, %v1215, %v1219
  %v1224 = vand.u32 2147483647, %v1213
  %vm1225 = vcmp.eq.f32.partialorder %v1224, 8.507059e+37
  %v1226 = vand.u32 %v1213, 2147483648
  %v1227 = vor.u32 1.1754944e-38, %v1226
  %v1228 = vsel %vm1225, %v1227, %v1223
  %v1229 = vmul.f32 1.0, %v1228
  %v1230 = vrcp.pop %v1214
  %v1231 = vmul.f32 %v1214, %v1230
  %v1232 = vsub.f32 1.0, %v1231
  %v1233 = vmul.f32 %v1230, %v1232
  %v1234 = vadd.f32 %v1230, %v1233
  %vm1235 = vweird.f32 %v1214
  %vm1236 = vweird.f32 %v1230
  %vm1237 = vmor %vm1235, %vm1236
  %v1238 = vsel %vm1237, %v1230, %v1234
  %v1239 = vand.u32 2147483647, %v1214
  %vm1240 = vcmp.eq.f32.partialorder %v1239, 8.507059e+37
  %v1241 = vand.u32 %v1214, 2147483648
  %v1242 = vor.u32 1.1754944e-38, %v1241
  %v1243 = vsel %vm1240, %v1242, %v1238
  %v1244 = vmul.f32 1.0, %v1243
  %v1245 = vtanh.pop %v1206
  %1247 = vrot.lane.b32.xlu0 %v1153, 64
  %v1248 = vpop.permute.xlu0 %1247
  %v1250 = vmul.f32 %v1229, %v1248
  %v1251 = vmul.f32 %v1229, %v1245
  %1253 = vrot.lane.b32.xlu0 %v1251, 64
  %v1254 = vpop.permute.xlu0 %1253
  %v1256 = vadd.f32 %v1250, %v1254
  %v1257 = vtanh.pop %v1256
  %v1258 = vmul.f32 %v1244, %v1257
  %s1259 = scalar_lea.vmem %s1, 56
  %v1260 = vld [vmem:[%s1259] sm:$0xff]
  %vm1261 = vcmp.ne.s32.totalorder %v1260, 0
  %1263 = vrot.lane.b32.xlu0 %v1258, 64
  %v1264 = vpop.permute.xlu0 %1263
  %v1266 = vsel %vm1261, %v1264, 0.0
  %s1267 = scalar_lea.vmem [#allocation3], 56
  %1268 = vst.msk [vmem:[%s1267] sm:$0xff] %vm406, %v1266
  %s1269 = scalar_lea.vmem [#allocation3], 64
  %1270 = vst.msk [vmem:[%s1269] sm:$0xff] %vm409, %v1266
  %v1271 = vsel %vm1261, %v1264, %v1148
  %1273 = vrot.lane.b32.xlu0 %v1256, 64
  %v1274 = vpop.permute.xlu0 %1273
  %v1276 = vsel %vm1261, %v1274, %v1153
  %v1277 = vld [vmem:[%s1157] sm:$0xff]
  %v1278 = vld [vmem:[%s1157 + $0x8] sm:$0xff]
  %v1279 = vld [vmem:[%s1154] sm:$0xff]
  %v1280 = vld [vmem:[%s1154 + $0x8] sm:$0xff]
  %v1281 = vsel %vm43, %v1277, %v1279
  %v1282 = vsel %vm44, %v1278, %v1280
  %v1284 = vsel %vm305, %v1271, 0
  %1286 = vmatpush.msra.mxu0 0.0
  %1287 = vmatpush.msra.mxu0 0.0
  %1288 = vmatpush.msra.mxu0 0.0
  %1289 = vmatpush.msra.mxu0 0.0
  %1290 = vmatpush.msra.mxu0 0.0
  %1291 = vmatpush.msra.mxu0 0.0
  %1292 = vmatpush.msra.mxu0 0.0
  %1293 = vmatpush.msra.mxu0 0.0
  %1294 = vmatpush.msra.mxu0 %v296
  %1295 = vmatpush.msra.mxu0 %v294
  %1296 = vmatpush.msra.mxu0 %v292
  %1297 = vmatpush.msra.mxu0 %v290
  %1298 = vmatpush.msra.mxu0 %v288
  %1299 = vmatpush.msra.mxu0 %v286
  %1300 = vmatpush.msra.mxu0 %v284
  %1301 = vmatpush.msra.mxu0 %v282
  %1302 = vmatmul.f32.gmra.mxu0 %v1284
  %v1303 = vpop.f32.mrf.mxu0
  %v1304 = vadd.f32 0.0, %v1303
  %1305 = vdwg.mxu0
  %1306 = vmatpush.msra.mxu0 0.0
  %1307 = vmatpush.msra.mxu0 0.0
  %1308 = vmatpush.msra.mxu0 0.0
  %1309 = vmatpush.msra.mxu0 0.0
  %1310 = vmatpush.msra.mxu0 0.0
  %1311 = vmatpush.msra.mxu0 0.0
  %1312 = vmatpush.msra.mxu0 0.0
  %1313 = vmatpush.msra.mxu0 0.0
  %1314 = vmatpush.msra.mxu0 %v297
  %1315 = vmatpush.msra.mxu0 %v295
  %1316 = vmatpush.msra.mxu0 %v293
  %1317 = vmatpush.msra.mxu0 %v291
  %1318 = vmatpush.msra.mxu0 %v289
  %1319 = vmatpush.msra.mxu0 %v287
  %1320 = vmatpush.msra.mxu0 %v285
  %1321 = vmatpush.msra.mxu0 %v283
  %1322 = vmatmul.f32.gmra.mxu0 %v1284
  %v1323 = vpop.f32.mrf.mxu0
  %v1324 = vadd.f32 0.0, %v1323
  %1325 = vdwg.mxu0
  %v1326 = vadd.f32 %v1281, %v1304
  %v1327 = vadd.f32 %v1282, %v1324
  %v1328 = vxor.u32 %v1326, 2147483648
  %v1329 = vxor.u32 %v1327, 2147483648
  %v1330 = vmul.f32 %v1328, 1.442695
  %v1331 = vpow.pop %v1330
  %v1332 = vmul.f32 %v1329, 1.442695
  %v1333 = vpow.pop %v1332
  %v1334 = vadd.f32 %v1331, 1.0
  %v1335 = vadd.f32 %v1333, 1.0
  %v1336 = vrcp.pop %v1334
  %v1337 = vmul.f32 %v1334, %v1336
  %v1338 = vsub.f32 1.0, %v1337
  %v1339 = vmul.f32 %v1336, %v1338
  %v1340 = vadd.f32 %v1336, %v1339
  %vm1341 = vweird.f32 %v1334
  %vm1342 = vweird.f32 %v1336
  %vm1343 = vmor %vm1341, %vm1342
  %v1344 = vsel %vm1343, %v1336, %v1340
  %v1345 = vand.u32 2147483647, %v1334
  %vm1346 = vcmp.eq.f32.partialorder %v1345, 8.507059e+37
  %v1347 = vand.u32 %v1334, 2147483648
  %v1348 = vor.u32 1.1754944e-38, %v1347
  %v1349 = vsel %vm1346, %v1348, %v1344
  %v1350 = vmul.f32 1.0, %v1349
  %v1351 = vrcp.pop %v1335
  %v1352 = vmul.f32 %v1335, %v1351
  %v1353 = vsub.f32 1.0, %v1352
  %v1354 = vmul.f32 %v1351, %v1353
  %v1355 = vadd.f32 %v1351, %v1354
  %vm1356 = vweird.f32 %v1335
  %vm1357 = vweird.f32 %v1351
  %vm1358 = vmor %vm1356, %vm1357
  %v1359 = vsel %vm1358, %v1351, %v1355
  %v1360 = vand.u32 2147483647, %v1335
  %vm1361 = vcmp.eq.f32.partialorder %v1360, 8.507059e+37
  %v1362 = vand.u32 %v1335, 2147483648
  %v1363 = vor.u32 1.1754944e-38, %v1362
  %v1364 = vsel %vm1361, %v1363, %v1359
  %v1365 = vmul.f32 1.0, %v1364
  %v1366 = vtanh.pop %v1327
  %1368 = vrot.lane.b32.xlu0 %v1276, 64
  %v1369 = vpop.permute.xlu0 %1368
  %v1371 = vmul.f32 %v1350, %v1369
  %v1372 = vmul.f32 %v1350, %v1366
  %1374 = vrot.lane.b32.xlu0 %v1372, 64
  %v1375 = vpop.permute.xlu0 %1374
  %v1377 = vadd.f32 %v1371, %v1375
  %v1378 = vtanh.pop %v1377
  %v1379 = vmul.f32 %v1365, %v1378
  %s1380 = scalar_lea.vmem %s1, 64
  %v1381 = vld [vmem:[%s1380] sm:$0xff]
  %vm1382 = vcmp.ne.s32.totalorder %v1381, 0
  %1384 = vrot.lane.b32.xlu0 %v1379, 64
  %v1385 = vpop.permute.xlu0 %1384
  %v1387 = vsel %vm1382, %v1385, 0.0
  %1388 = vst.msk [vmem:[%s1269] sm:$0xff] %vm406, %v1387
  %1389 = vst.msk [vmem:[%s1267] sm:$0xff] %vm409, %v1387
  %v1390 = vsel %vm1382, %v1385, %v1271
  %1392 = vrot.lane.b32.xlu0 %v1377, 64
  %v1393 = vpop.permute.xlu0 %1392
  %v1395 = vsel %vm1382, %v1393, %v1276
  %v1396 = vld [vmem:[%s1034] sm:$0xff]
  %v1397 = vld [vmem:[%s1034 + $0x8] sm:$0xff]
  %v1398 = vld [vmem:[%s1031] sm:$0xff]
  %v1399 = vld [vmem:[%s1031 + $0x8] sm:$0xff]
  %v1400 = vsel %vm43, %v1396, %v1398
  %v1401 = vsel %vm44, %v1397, %v1399
  %v1403 = vsel %vm305, %v1390, 0
  %1405 = vmatpush.msra.mxu0 0.0
  %1406 = vmatpush.msra.mxu0 0.0
  %1407 = vmatpush.msra.mxu0 0.0
  %1408 = vmatpush.msra.mxu0 0.0
  %1409 = vmatpush.msra.mxu0 0.0
  %1410 = vmatpush.msra.mxu0 0.0
  %1411 = vmatpush.msra.mxu0 0.0
  %1412 = vmatpush.msra.mxu0 0.0
  %1413 = vmatpush.msra.mxu0 %v296
  %1414 = vmatpush.msra.mxu0 %v294
  %1415 = vmatpush.msra.mxu0 %v292
  %1416 = vmatpush.msra.mxu0 %v290
  %1417 = vmatpush.msra.mxu0 %v288
  %1418 = vmatpush.msra.mxu0 %v286
  %1419 = vmatpush.msra.mxu0 %v284
  %1420 = vmatpush.msra.mxu0 %v282
  %1421 = vmatmul.f32.gmra.mxu0 %v1403
  %v1422 = vpop.f32.mrf.mxu0
  %v1423 = vadd.f32 0.0, %v1422
  %1424 = vdwg.mxu0
  %1425 = vmatpush.msra.mxu0 0.0
  %1426 = vmatpush.msra.mxu0 0.0
  %1427 = vmatpush.msra.mxu0 0.0
  %1428 = vmatpush.msra.mxu0 0.0
  %1429 = vmatpush.msra.mxu0 0.0
  %1430 = vmatpush.msra.mxu0 0.0
  %1431 = vmatpush.msra.mxu0 0.0
  %1432 = vmatpush.msra.mxu0 0.0
  %1433 = vmatpush.msra.mxu0 %v297
  %1434 = vmatpush.msra.mxu0 %v295
  %1435 = vmatpush.msra.mxu0 %v293
  %1436 = vmatpush.msra.mxu0 %v291
  %1437 = vmatpush.msra.mxu0 %v289
  %1438 = vmatpush.msra.mxu0 %v287
  %1439 = vmatpush.msra.mxu0 %v285
  %1440 = vmatpush.msra.mxu0 %v283
  %1441 = vmatmul.f32.gmra.mxu0 %v1403
  %v1442 = vpop.f32.mrf.mxu0
  %v1443 = vadd.f32 0.0, %v1442
  %1444 = vdwg.mxu0
  %v1445 = vadd.f32 %v1400, %v1423
  %v1446 = vadd.f32 %v1401, %v1443
  %v1447 = vxor.u32 %v1445, 2147483648
  %v1448 = vxor.u32 %v1446, 2147483648
  %v1449 = vmul.f32 %v1447, 1.442695
  %v1450 = vpow.pop %v1449
  %v1451 = vmul.f32 %v1448, 1.442695
  %v1452 = vpow.pop %v1451
  %v1453 = vadd.f32 %v1450, 1.0
  %v1454 = vadd.f32 %v1452, 1.0
  %v1455 = vrcp.pop %v1453
  %v1456 = vmul.f32 %v1453, %v1455
  %v1457 = vsub.f32 1.0, %v1456
  %v1458 = vmul.f32 %v1455, %v1457
  %v1459 = vadd.f32 %v1455, %v1458
  %vm1460 = vweird.f32 %v1453
  %vm1461 = vweird.f32 %v1455
  %vm1462 = vmor %vm1460, %vm1461
  %v1463 = vsel %vm1462, %v1455, %v1459
  %v1464 = vand.u32 2147483647, %v1453
  %vm1465 = vcmp.eq.f32.partialorder %v1464, 8.507059e+37
  %v1466 = vand.u32 %v1453, 2147483648
  %v1467 = vor.u32 1.1754944e-38, %v1466
  %v1468 = vsel %vm1465, %v1467, %v1463
  %v1469 = vmul.f32 1.0, %v1468
  %v1470 = vrcp.pop %v1454
  %v1471 = vmul.f32 %v1454, %v1470
  %v1472 = vsub.f32 1.0, %v1471
  %v1473 = vmul.f32 %v1470, %v1472
  %v1474 = vadd.f32 %v1470, %v1473
  %vm1475 = vweird.f32 %v1454
  %vm1476 = vweird.f32 %v1470
  %vm1477 = vmor %vm1475, %vm1476
  %v1478 = vsel %vm1477, %v1470, %v1474
  %v1479 = vand.u32 2147483647, %v1454
  %vm1480 = vcmp.eq.f32.partialorder %v1479, 8.507059e+37
  %v1481 = vand.u32 %v1454, 2147483648
  %v1482 = vor.u32 1.1754944e-38, %v1481
  %v1483 = vsel %vm1480, %v1482, %v1478
  %v1484 = vmul.f32 1.0, %v1483
  %v1485 = vtanh.pop %v1446
  %1487 = vrot.lane.b32.xlu0 %v1395, 64
  %v1488 = vpop.permute.xlu0 %1487
  %v1490 = vmul.f32 %v1469, %v1488
  %v1491 = vmul.f32 %v1469, %v1485
  %1493 = vrot.lane.b32.xlu0 %v1491, 64
  %v1494 = vpop.permute.xlu0 %1493
  %v1496 = vadd.f32 %v1490, %v1494
  %v1497 = vtanh.pop %v1496
  %v1498 = vmul.f32 %v1484, %v1497
  %s1499 = scalar_lea.vmem %s1, 72
  %v1500 = vld [vmem:[%s1499] sm:$0xff]
  %vm1501 = vcmp.ne.s32.totalorder %v1500, 0
  %1503 = vrot.lane.b32.xlu0 %v1498, 64
  %v1504 = vpop.permute.xlu0 %1503
  %v1506 = vsel %vm1501, %v1504, 0.0
  %1507 = vst.msk [vmem:[%s1146] sm:$0xff] %vm406, %v1506
  %1508 = vst.msk [vmem:[%s1144] sm:$0xff] %vm409, %v1506
  %v1509 = vsel %vm1501, %v1504, %v1390
  %1511 = vrot.lane.b32.xlu0 %v1496, 64
  %v1512 = vpop.permute.xlu0 %1511
  %v1514 = vsel %vm1501, %v1512, %v1395
  %v1515 = vld [vmem:[%s911] sm:$0xff]
  %v1516 = vld [vmem:[%s911 + $0x8] sm:$0xff]
  %v1517 = vld [vmem:[%s908] sm:$0xff]
  %v1518 = vld [vmem:[%s908 + $0x8] sm:$0xff]
  %v1519 = vsel %vm43, %v1515, %v1517
  %v1520 = vsel %vm44, %v1516, %v1518
  %v1522 = vsel %vm305, %v1509, 0
  %1524 = vmatpush.msra.mxu0 0.0
  %1525 = vmatpush.msra.mxu0 0.0
  %1526 = vmatpush.msra.mxu0 0.0
  %1527 = vmatpush.msra.mxu0 0.0
  %1528 = vmatpush.msra.mxu0 0.0
  %1529 = vmatpush.msra.mxu0 0.0
  %1530 = vmatpush.msra.mxu0 0.0
  %1531 = vmatpush.msra.mxu0 0.0
  %1532 = vmatpush.msra.mxu0 %v296
  %1533 = vmatpush.msra.mxu0 %v294
  %1534 = vmatpush.msra.mxu0 %v292
  %1535 = vmatpush.msra.mxu0 %v290
  %1536 = vmatpush.msra.mxu0 %v288
  %1537 = vmatpush.msra.mxu0 %v286
  %1538 = vmatpush.msra.mxu0 %v284
  %1539 = vmatpush.msra.mxu0 %v282
  %1540 = vmatmul.f32.gmra.mxu0 %v1522
  %v1541 = vpop.f32.mrf.mxu0
  %v1542 = vadd.f32 0.0, %v1541
  %1543 = vdwg.mxu0
  %1544 = vmatpush.msra.mxu0 0.0
  %1545 = vmatpush.msra.mxu0 0.0
  %1546 = vmatpush.msra.mxu0 0.0
  %1547 = vmatpush.msra.mxu0 0.0
  %1548 = vmatpush.msra.mxu0 0.0
  %1549 = vmatpush.msra.mxu0 0.0
  %1550 = vmatpush.msra.mxu0 0.0
  %1551 = vmatpush.msra.mxu0 0.0
  %1552 = vmatpush.msra.mxu0 %v297
  %1553 = vmatpush.msra.mxu0 %v295
  %1554 = vmatpush.msra.mxu0 %v293
  %1555 = vmatpush.msra.mxu0 %v291
  %1556 = vmatpush.msra.mxu0 %v289
  %1557 = vmatpush.msra.mxu0 %v287
  %1558 = vmatpush.msra.mxu0 %v285
  %1559 = vmatpush.msra.mxu0 %v283
  %1560 = vmatmul.f32.gmra.mxu0 %v1522
  %v1561 = vpop.f32.mrf.mxu0
  %v1562 = vadd.f32 0.0, %v1561
  %1563 = vdwg.mxu0
  %v1564 = vadd.f32 %v1519, %v1542
  %v1565 = vadd.f32 %v1520, %v1562
  %v1566 = vxor.u32 %v1564, 2147483648
  %v1567 = vxor.u32 %v1565, 2147483648
  %v1568 = vmul.f32 %v1566, 1.442695
  %v1569 = vpow.pop %v1568
  %v1570 = vmul.f32 %v1567, 1.442695
  %v1571 = vpow.pop %v1570
  %v1572 = vadd.f32 %v1569, 1.0
  %v1573 = vadd.f32 %v1571, 1.0
  %v1574 = vrcp.pop %v1572
  %v1575 = vmul.f32 %v1572, %v1574
  %v1576 = vsub.f32 1.0, %v1575
  %v1577 = vmul.f32 %v1574, %v1576
  %v1578 = vadd.f32 %v1574, %v1577
  %vm1579 = vweird.f32 %v1572
  %vm1580 = vweird.f32 %v1574
  %vm1581 = vmor %vm1579, %vm1580
  %v1582 = vsel %vm1581, %v1574, %v1578
  %v1583 = vand.u32 2147483647, %v1572
  %vm1584 = vcmp.eq.f32.partialorder %v1583, 8.507059e+37
  %v1585 = vand.u32 %v1572, 2147483648
  %v1586 = vor.u32 1.1754944e-38, %v1585
  %v1587 = vsel %vm1584, %v1586, %v1582
  %v1588 = vmul.f32 1.0, %v1587
  %v1589 = vrcp.pop %v1573
  %v1590 = vmul.f32 %v1573, %v1589
  %v1591 = vsub.f32 1.0, %v1590
  %v1592 = vmul.f32 %v1589, %v1591
  %v1593 = vadd.f32 %v1589, %v1592
  %vm1594 = vweird.f32 %v1573
  %vm1595 = vweird.f32 %v1589
  %vm1596 = vmor %vm1594, %vm1595
  %v1597 = vsel %vm1596, %v1589, %v1593
  %v1598 = vand.u32 2147483647, %v1573
  %vm1599 = vcmp.eq.f32.partialorder %v1598, 8.507059e+37
  %v1600 = vand.u32 %v1573, 2147483648
  %v1601 = vor.u32 1.1754944e-38, %v1600
  %v1602 = vsel %vm1599, %v1601, %v1597
  %v1603 = vmul.f32 1.0, %v1602
  %v1604 = vtanh.pop %v1565
  %1606 = vrot.lane.b32.xlu0 %v1514, 64
  %v1607 = vpop.permute.xlu0 %1606
  %v1609 = vmul.f32 %v1588, %v1607
  %v1610 = vmul.f32 %v1588, %v1604
  %1612 = vrot.lane.b32.xlu0 %v1610, 64
  %v1613 = vpop.permute.xlu0 %1612
  %v1615 = vadd.f32 %v1609, %v1613
  %v1616 = vtanh.pop %v1615
  %v1617 = vmul.f32 %v1603, %v1616
  %s1618 = scalar_lea.vmem %s1, 80
  %v1619 = vld [vmem:[%s1618] sm:$0xff]
  %vm1620 = vcmp.ne.s32.totalorder %v1619, 0
  %1622 = vrot.lane.b32.xlu0 %v1617, 64
  %v1623 = vpop.permute.xlu0 %1622
  %v1625 = vsel %vm1620, %v1623, 0.0
  %1626 = vst.msk [vmem:[%s1023] sm:$0xff] %vm406, %v1625
  %1627 = vst.msk [vmem:[%s1021] sm:$0xff] %vm409, %v1625
  %v1628 = vsel %vm1620, %v1623, %v1509
  %1630 = vrot.lane.b32.xlu0 %v1615, 64
  %v1631 = vpop.permute.xlu0 %1630
  %v1633 = vsel %vm1620, %v1631, %v1514
  %v1634 = vld [vmem:[%s788] sm:$0xff]
  %v1635 = vld [vmem:[%s788 + $0x8] sm:$0xff]
  %v1636 = vld [vmem:[%s785] sm:$0xff]
  %v1637 = vld [vmem:[%s785 + $0x8] sm:$0xff]
  %v1638 = vsel %vm43, %v1634, %v1636
  %v1639 = vsel %vm44, %v1635, %v1637
  %v1641 = vsel %vm305, %v1628, 0
  %1643 = vmatpush.msra.mxu0 0.0
  %1644 = vmatpush.msra.mxu0 0.0
  %1645 = vmatpush.msra.mxu0 0.0
  %1646 = vmatpush.msra.mxu0 0.0
  %1647 = vmatpush.msra.mxu0 0.0
  %1648 = vmatpush.msra.mxu0 0.0
  %1649 = vmatpush.msra.mxu0 0.0
  %1650 = vmatpush.msra.mxu0 0.0
  %1651 = vmatpush.msra.mxu0 %v296
  %1652 = vmatpush.msra.mxu0 %v294
  %1653 = vmatpush.msra.mxu0 %v292
  %1654 = vmatpush.msra.mxu0 %v290
  %1655 = vmatpush.msra.mxu0 %v288
  %1656 = vmatpush.msra.mxu0 %v286
  %1657 = vmatpush.msra.mxu0 %v284
  %1658 = vmatpush.msra.mxu0 %v282
  %1659 = vmatmul.f32.gmra.mxu0 %v1641
  %v1660 = vpop.f32.mrf.mxu0
  %v1661 = vadd.f32 0.0, %v1660
  %1662 = vdwg.mxu0
  %1663 = vmatpush.msra.mxu0 0.0
  %1664 = vmatpush.msra.mxu0 0.0
  %1665 = vmatpush.msra.mxu0 0.0
  %1666 = vmatpush.msra.mxu0 0.0
  %1667 = vmatpush.msra.mxu0 0.0
  %1668 = vmatpush.msra.mxu0 0.0
  %1669 = vmatpush.msra.mxu0 0.0
  %1670 = vmatpush.msra.mxu0 0.0
  %1671 = vmatpush.msra.mxu0 %v297
  %1672 = vmatpush.msra.mxu0 %v295
  %1673 = vmatpush.msra.mxu0 %v293
  %1674 = vmatpush.msra.mxu0 %v291
  %1675 = vmatpush.msra.mxu0 %v289
  %1676 = vmatpush.msra.mxu0 %v287
  %1677 = vmatpush.msra.mxu0 %v285
  %1678 = vmatpush.msra.mxu0 %v283
  %1679 = vmatmul.f32.gmra.mxu0 %v1641
  %v1680 = vpop.f32.mrf.mxu0
  %v1681 = vadd.f32 0.0, %v1680
  %1682 = vdwg.mxu0
  %v1683 = vadd.f32 %v1638, %v1661
  %v1684 = vadd.f32 %v1639, %v1681
  %v1685 = vxor.u32 %v1683, 2147483648
  %v1686 = vxor.u32 %v1684, 2147483648
  %v1687 = vmul.f32 %v1685, 1.442695
  %v1688 = vpow.pop %v1687
  %v1689 = vmul.f32 %v1686, 1.442695
  %v1690 = vpow.pop %v1689
  %v1691 = vadd.f32 %v1688, 1.0
  %v1692 = vadd.f32 %v1690, 1.0
  %v1693 = vrcp.pop %v1691
  %v1694 = vmul.f32 %v1691, %v1693
  %v1695 = vsub.f32 1.0, %v1694
  %v1696 = vmul.f32 %v1693, %v1695
  %v1697 = vadd.f32 %v1693, %v1696
  %vm1698 = vweird.f32 %v1691
  %vm1699 = vweird.f32 %v1693
  %vm1700 = vmor %vm1698, %vm1699
  %v1701 = vsel %vm1700, %v1693, %v1697
  %v1702 = vand.u32 2147483647, %v1691
  %vm1703 = vcmp.eq.f32.partialorder %v1702, 8.507059e+37
  %v1704 = vand.u32 %v1691, 2147483648
  %v1705 = vor.u32 1.1754944e-38, %v1704
  %v1706 = vsel %vm1703, %v1705, %v1701
  %v1707 = vmul.f32 1.0, %v1706
  %v1708 = vrcp.pop %v1692
  %v1709 = vmul.f32 %v1692, %v1708
  %v1710 = vsub.f32 1.0, %v1709
  %v1711 = vmul.f32 %v1708, %v1710
  %v1712 = vadd.f32 %v1708, %v1711
  %vm1713 = vweird.f32 %v1692
  %vm1714 = vweird.f32 %v1708
  %vm1715 = vmor %vm1713, %vm1714
  %v1716 = vsel %vm1715, %v1708, %v1712
  %v1717 = vand.u32 2147483647, %v1692
  %vm1718 = vcmp.eq.f32.partialorder %v1717, 8.507059e+37
  %v1719 = vand.u32 %v1692, 2147483648
  %v1720 = vor.u32 1.1754944e-38, %v1719
  %v1721 = vsel %vm1718, %v1720, %v1716
  %v1722 = vmul.f32 1.0, %v1721
  %v1723 = vtanh.pop %v1684
  %1725 = vrot.lane.b32.xlu0 %v1633, 64
  %v1726 = vpop.permute.xlu0 %1725
  %v1728 = vmul.f32 %v1707, %v1726
  %v1729 = vmul.f32 %v1707, %v1723
  %1731 = vrot.lane.b32.xlu0 %v1729, 64
  %v1732 = vpop.permute.xlu0 %1731
  %v1734 = vadd.f32 %v1728, %v1732
  %v1735 = vtanh.pop %v1734
  %v1736 = vmul.f32 %v1722, %v1735
  %s1737 = scalar_lea.vmem %s1, 88
  %v1738 = vld [vmem:[%s1737] sm:$0xff]
  %vm1739 = vcmp.ne.s32.totalorder %v1738, 0
  %1741 = vrot.lane.b32.xlu0 %v1736, 64
  %v1742 = vpop.permute.xlu0 %1741
  %v1744 = vsel %vm1739, %v1742, 0.0
  %1745 = vst.msk [vmem:[%s900] sm:$0xff] %vm406, %v1744
  %1746 = vst.msk [vmem:[%s898] sm:$0xff] %vm409, %v1744
  %v1747 = vsel %vm1739, %v1742, %v1628
  %1749 = vrot.lane.b32.xlu0 %v1734, 64
  %v1750 = vpop.permute.xlu0 %1749
  %v1752 = vsel %vm1739, %v1750, %v1633
  %v1753 = vld [vmem:[%s665] sm:$0xff]
  %v1754 = vld [vmem:[%s665 + $0x8] sm:$0xff]
  %v1755 = vld [vmem:[%s662] sm:$0xff]
  %v1756 = vld [vmem:[%s662 + $0x8] sm:$0xff]
  %v1757 = vsel %vm43, %v1753, %v1755
  %v1758 = vsel %vm44, %v1754, %v1756
  %v1760 = vsel %vm305, %v1747, 0
  %1762 = vmatpush.msra.mxu0 0.0
  %1763 = vmatpush.msra.mxu0 0.0
  %1764 = vmatpush.msra.mxu0 0.0
  %1765 = vmatpush.msra.mxu0 0.0
  %1766 = vmatpush.msra.mxu0 0.0
  %1767 = vmatpush.msra.mxu0 0.0
  %1768 = vmatpush.msra.mxu0 0.0
  %1769 = vmatpush.msra.mxu0 0.0
  %1770 = vmatpush.msra.mxu0 %v296
  %1771 = vmatpush.msra.mxu0 %v294
  %1772 = vmatpush.msra.mxu0 %v292
  %1773 = vmatpush.msra.mxu0 %v290
  %1774 = vmatpush.msra.mxu0 %v288
  %1775 = vmatpush.msra.mxu0 %v286
  %1776 = vmatpush.msra.mxu0 %v284
  %1777 = vmatpush.msra.mxu0 %v282
  %1778 = vmatmul.f32.gmra.mxu0 %v1760
  %v1779 = vpop.f32.mrf.mxu0
  %v1780 = vadd.f32 0.0, %v1779
  %1781 = vdwg.mxu0
  %1782 = vmatpush.msra.mxu0 0.0
  %1783 = vmatpush.msra.mxu0 0.0
  %1784 = vmatpush.msra.mxu0 0.0
  %1785 = vmatpush.msra.mxu0 0.0
  %1786 = vmatpush.msra.mxu0 0.0
  %1787 = vmatpush.msra.mxu0 0.0
  %1788 = vmatpush.msra.mxu0 0.0
  %1789 = vmatpush.msra.mxu0 0.0
  %1790 = vmatpush.msra.mxu0 %v297
  %1791 = vmatpush.msra.mxu0 %v295
  %1792 = vmatpush.msra.mxu0 %v293
  %1793 = vmatpush.msra.mxu0 %v291
  %1794 = vmatpush.msra.mxu0 %v289
  %1795 = vmatpush.msra.mxu0 %v287
  %1796 = vmatpush.msra.mxu0 %v285
  %1797 = vmatpush.msra.mxu0 %v283
  %1798 = vmatmul.f32.gmra.mxu0 %v1760
  %v1799 = vpop.f32.mrf.mxu0
  %v1800 = vadd.f32 0.0, %v1799
  %1801 = vdwg.mxu0
  %v1802 = vadd.f32 %v1757, %v1780
  %v1803 = vadd.f32 %v1758, %v1800
  %v1804 = vxor.u32 %v1802, 2147483648
  %v1805 = vxor.u32 %v1803, 2147483648
  %v1806 = vmul.f32 %v1804, 1.442695
  %v1807 = vpow.pop %v1806
  %v1808 = vmul.f32 %v1805, 1.442695
  %v1809 = vpow.pop %v1808
  %v1810 = vadd.f32 %v1807, 1.0
  %v1811 = vadd.f32 %v1809, 1.0
  %v1812 = vrcp.pop %v1810
  %v1813 = vmul.f32 %v1810, %v1812
  %v1814 = vsub.f32 1.0, %v1813
  %v1815 = vmul.f32 %v1812, %v1814
  %v1816 = vadd.f32 %v1812, %v1815
  %vm1817 = vweird.f32 %v1810
  %vm1818 = vweird.f32 %v1812
  %vm1819 = vmor %vm1817, %vm1818
  %v1820 = vsel %vm1819, %v1812, %v1816
  %v1821 = vand.u32 2147483647, %v1810
  %vm1822 = vcmp.eq.f32.partialorder %v1821, 8.507059e+37
  %v1823 = vand.u32 %v1810, 2147483648
  %v1824 = vor.u32 1.1754944e-38, %v1823
  %v1825 = vsel %vm1822, %v1824, %v1820
  %v1826 = vmul.f32 1.0, %v1825
  %v1827 = vrcp.pop %v1811
  %v1828 = vmul.f32 %v1811, %v1827
  %v1829 = vsub.f32 1.0, %v1828
  %v1830 = vmul.f32 %v1827, %v1829
  %v1831 = vadd.f32 %v1827, %v1830
  %vm1832 = vweird.f32 %v1811
  %vm1833 = vweird.f32 %v1827
  %vm1834 = vmor %vm1832, %vm1833
  %v1835 = vsel %vm1834, %v1827, %v1831
  %v1836 = vand.u32 2147483647, %v1811
  %vm1837 = vcmp.eq.f32.partialorder %v1836, 8.507059e+37
  %v1838 = vand.u32 %v1811, 2147483648
  %v1839 = vor.u32 1.1754944e-38, %v1838
  %v1840 = vsel %vm1837, %v1839, %v1835
  %v1841 = vmul.f32 1.0, %v1840
  %v1842 = vtanh.pop %v1803
  %1844 = vrot.lane.b32.xlu0 %v1752, 64
  %v1845 = vpop.permute.xlu0 %1844
  %v1847 = vmul.f32 %v1826, %v1845
  %v1848 = vmul.f32 %v1826, %v1842
  %1850 = vrot.lane.b32.xlu0 %v1848, 64
  %v1851 = vpop.permute.xlu0 %1850
  %v1853 = vadd.f32 %v1847, %v1851
  %v1854 = vtanh.pop %v1853
  %v1855 = vmul.f32 %v1841, %v1854
  %s1856 = scalar_lea.vmem %s1, 96
  %v1857 = vld [vmem:[%s1856] sm:$0xff]
  %vm1858 = vcmp.ne.s32.totalorder %v1857, 0
  %1860 = vrot.lane.b32.xlu0 %v1855, 64
  %v1861 = vpop.permute.xlu0 %1860
  %v1863 = vsel %vm1858, %v1861, 0.0
  %1864 = vst.msk [vmem:[%s777] sm:$0xff] %vm406, %v1863
  %1865 = vst.msk [vmem:[%s775] sm:$0xff] %vm409, %v1863
  %v1866 = vsel %vm1858, %v1861, %v1747
  %1868 = vrot.lane.b32.xlu0 %v1853, 64
  %v1869 = vpop.permute.xlu0 %1868
  %v1871 = vsel %vm1858, %v1869, %v1752
  %v1872 = vld [vmem:[%s542] sm:$0xff]
  %v1873 = vld [vmem:[%s542 + $0x8] sm:$0xff]
  %v1874 = vld [vmem:[%s539] sm:$0xff]
  %v1875 = vld [vmem:[%s539 + $0x8] sm:$0xff]
  %v1876 = vsel %vm43, %v1872, %v1874
  %v1877 = vsel %vm44, %v1873, %v1875
  %v1879 = vsel %vm305, %v1866, 0
  %1881 = vmatpush.msra.mxu0 0.0
  %1882 = vmatpush.msra.mxu0 0.0
  %1883 = vmatpush.msra.mxu0 0.0
  %1884 = vmatpush.msra.mxu0 0.0
  %1885 = vmatpush.msra.mxu0 0.0
  %1886 = vmatpush.msra.mxu0 0.0
  %1887 = vmatpush.msra.mxu0 0.0
  %1888 = vmatpush.msra.mxu0 0.0
  %1889 = vmatpush.msra.mxu0 %v296
  %1890 = vmatpush.msra.mxu0 %v294
  %1891 = vmatpush.msra.mxu0 %v292
  %1892 = vmatpush.msra.mxu0 %v290
  %1893 = vmatpush.msra.mxu0 %v288
  %1894 = vmatpush.msra.mxu0 %v286
  %1895 = vmatpush.msra.mxu0 %v284
  %1896 = vmatpush.msra.mxu0 %v282
  %1897 = vmatmul.f32.gmra.mxu0 %v1879
  %v1898 = vpop.f32.mrf.mxu0
  %v1899 = vadd.f32 0.0, %v1898
  %1900 = vdwg.mxu0
  %1901 = vmatpush.msra.mxu0 0.0
  %1902 = vmatpush.msra.mxu0 0.0
  %1903 = vmatpush.msra.mxu0 0.0
  %1904 = vmatpush.msra.mxu0 0.0
  %1905 = vmatpush.msra.mxu0 0.0
  %1906 = vmatpush.msra.mxu0 0.0
  %1907 = vmatpush.msra.mxu0 0.0
  %1908 = vmatpush.msra.mxu0 0.0
  %1909 = vmatpush.msra.mxu0 %v297
  %1910 = vmatpush.msra.mxu0 %v295
  %1911 = vmatpush.msra.mxu0 %v293
  %1912 = vmatpush.msra.mxu0 %v291
  %1913 = vmatpush.msra.mxu0 %v289
  %1914 = vmatpush.msra.mxu0 %v287
  %1915 = vmatpush.msra.mxu0 %v285
  %1916 = vmatpush.msra.mxu0 %v283
  %1917 = vmatmul.f32.gmra.mxu0 %v1879
  %v1918 = vpop.f32.mrf.mxu0
  %v1919 = vadd.f32 0.0, %v1918
  %1920 = vdwg.mxu0
  %v1921 = vadd.f32 %v1876, %v1899
  %v1922 = vadd.f32 %v1877, %v1919
  %v1923 = vxor.u32 %v1921, 2147483648
  %v1924 = vxor.u32 %v1922, 2147483648
  %v1925 = vmul.f32 %v1923, 1.442695
  %v1926 = vpow.pop %v1925
  %v1927 = vmul.f32 %v1924, 1.442695
  %v1928 = vpow.pop %v1927
  %v1929 = vadd.f32 %v1926, 1.0
  %v1930 = vadd.f32 %v1928, 1.0
  %v1931 = vrcp.pop %v1929
  %v1932 = vmul.f32 %v1929, %v1931
  %v1933 = vsub.f32 1.0, %v1932
  %v1934 = vmul.f32 %v1931, %v1933
  %v1935 = vadd.f32 %v1931, %v1934
  %vm1936 = vweird.f32 %v1929
  %vm1937 = vweird.f32 %v1931
  %vm1938 = vmor %vm1936, %vm1937
  %v1939 = vsel %vm1938, %v1931, %v1935
  %v1940 = vand.u32 2147483647, %v1929
  %vm1941 = vcmp.eq.f32.partialorder %v1940, 8.507059e+37
  %v1942 = vand.u32 %v1929, 2147483648
  %v1943 = vor.u32 1.1754944e-38, %v1942
  %v1944 = vsel %vm1941, %v1943, %v1939
  %v1945 = vmul.f32 1.0, %v1944
  %v1946 = vrcp.pop %v1930
  %v1947 = vmul.f32 %v1930, %v1946
  %v1948 = vsub.f32 1.0, %v1947
  %v1949 = vmul.f32 %v1946, %v1948
  %v1950 = vadd.f32 %v1946, %v1949
  %vm1951 = vweird.f32 %v1930
  %vm1952 = vweird.f32 %v1946
  %vm1953 = vmor %vm1951, %vm1952
  %v1954 = vsel %vm1953, %v1946, %v1950
  %v1955 = vand.u32 2147483647, %v1930
  %vm1956 = vcmp.eq.f32.partialorder %v1955, 8.507059e+37
  %v1957 = vand.u32 %v1930, 2147483648
  %v1958 = vor.u32 1.1754944e-38, %v1957
  %v1959 = vsel %vm1956, %v1958, %v1954
  %v1960 = vmul.f32 1.0, %v1959
  %v1961 = vtanh.pop %v1922
  %1963 = vrot.lane.b32.xlu0 %v1871, 64
  %v1964 = vpop.permute.xlu0 %1963
  %v1966 = vmul.f32 %v1945, %v1964
  %v1967 = vmul.f32 %v1945, %v1961
  %1969 = vrot.lane.b32.xlu0 %v1967, 64
  %v1970 = vpop.permute.xlu0 %1969
  %v1972 = vadd.f32 %v1966, %v1970
  %v1973 = vtanh.pop %v1972
  %v1974 = vmul.f32 %v1960, %v1973
  %s1975 = scalar_lea.vmem %s1, 104
  %v1976 = vld [vmem:[%s1975] sm:$0xff]
  %vm1977 = vcmp.ne.s32.totalorder %v1976, 0
  %1979 = vrot.lane.b32.xlu0 %v1974, 64
  %v1980 = vpop.permute.xlu0 %1979
  %v1982 = vsel %vm1977, %v1980, 0.0
  %1983 = vst.msk [vmem:[%s654] sm:$0xff] %vm406, %v1982
  %1984 = vst.msk [vmem:[%s652] sm:$0xff] %vm409, %v1982
  %v1985 = vsel %vm1977, %v1980, %v1866
  %1987 = vrot.lane.b32.xlu0 %v1972, 64
  %v1988 = vpop.permute.xlu0 %1987
  %v1990 = vsel %vm1977, %v1988, %v1871
  %v1991 = vld [vmem:[%s419] sm:$0xff]
  %v1992 = vld [vmem:[%s419 + $0x8] sm:$0xff]
  %v1993 = vld [vmem:[%s416] sm:$0xff]
  %v1994 = vld [vmem:[%s416 + $0x8] sm:$0xff]
  %v1995 = vsel %vm43, %v1991, %v1993
  %v1996 = vsel %vm44, %v1992, %v1994
  %v1998 = vsel %vm305, %v1985, 0
  %2000 = vmatpush.msra.mxu0 0.0
  %2001 = vmatpush.msra.mxu0 0.0
  %2002 = vmatpush.msra.mxu0 0.0
  %2003 = vmatpush.msra.mxu0 0.0
  %2004 = vmatpush.msra.mxu0 0.0
  %2005 = vmatpush.msra.mxu0 0.0
  %2006 = vmatpush.msra.mxu0 0.0
  %2007 = vmatpush.msra.mxu0 0.0
  %2008 = vmatpush.msra.mxu0 %v296
  %2009 = vmatpush.msra.mxu0 %v294
  %2010 = vmatpush.msra.mxu0 %v292
  %2011 = vmatpush.msra.mxu0 %v290
  %2012 = vmatpush.msra.mxu0 %v288
  %2013 = vmatpush.msra.mxu0 %v286
  %2014 = vmatpush.msra.mxu0 %v284
  %2015 = vmatpush.msra.mxu0 %v282
  %2016 = vmatmul.f32.gmra.mxu0 %v1998
  %v2017 = vpop.f32.mrf.mxu0
  %v2018 = vadd.f32 0.0, %v2017
  %2019 = vdwg.mxu0
  %2020 = vmatpush.msra.mxu0 0.0
  %2021 = vmatpush.msra.mxu0 0.0
  %2022 = vmatpush.msra.mxu0 0.0
  %2023 = vmatpush.msra.mxu0 0.0
  %2024 = vmatpush.msra.mxu0 0.0
  %2025 = vmatpush.msra.mxu0 0.0
  %2026 = vmatpush.msra.mxu0 0.0
  %2027 = vmatpush.msra.mxu0 0.0
  %2028 = vmatpush.msra.mxu0 %v297
  %2029 = vmatpush.msra.mxu0 %v295
  %2030 = vmatpush.msra.mxu0 %v293
  %2031 = vmatpush.msra.mxu0 %v291
  %2032 = vmatpush.msra.mxu0 %v289
  %2033 = vmatpush.msra.mxu0 %v287
  %2034 = vmatpush.msra.mxu0 %v285
  %2035 = vmatpush.msra.mxu0 %v283
  %2036 = vmatmul.f32.gmra.mxu0 %v1998
  %v2037 = vpop.f32.mrf.mxu0
  %v2038 = vadd.f32 0.0, %v2037
  %2039 = vdwg.mxu0
  %v2040 = vadd.f32 %v1995, %v2018
  %v2041 = vadd.f32 %v1996, %v2038
  %v2042 = vxor.u32 %v2040, 2147483648
  %v2043 = vxor.u32 %v2041, 2147483648
  %v2044 = vmul.f32 %v2042, 1.442695
  %v2045 = vpow.pop %v2044
  %v2046 = vmul.f32 %v2043, 1.442695
  %v2047 = vpow.pop %v2046
  %v2048 = vadd.f32 %v2045, 1.0
  %v2049 = vadd.f32 %v2047, 1.0
  %v2050 = vrcp.pop %v2048
  %v2051 = vmul.f32 %v2048, %v2050
  %v2052 = vsub.f32 1.0, %v2051
  %v2053 = vmul.f32 %v2050, %v2052
  %v2054 = vadd.f32 %v2050, %v2053
  %vm2055 = vweird.f32 %v2048
  %vm2056 = vweird.f32 %v2050
  %vm2057 = vmor %vm2055, %vm2056
  %v2058 = vsel %vm2057, %v2050, %v2054
  %v2059 = vand.u32 2147483647, %v2048
  %vm2060 = vcmp.eq.f32.partialorder %v2059, 8.507059e+37
  %v2061 = vand.u32 %v2048, 2147483648
  %v2062 = vor.u32 1.1754944e-38, %v2061
  %v2063 = vsel %vm2060, %v2062, %v2058
  %v2064 = vmul.f32 1.0, %v2063
  %v2065 = vrcp.pop %v2049
  %v2066 = vmul.f32 %v2049, %v2065
  %v2067 = vsub.f32 1.0, %v2066
  %v2068 = vmul.f32 %v2065, %v2067
  %v2069 = vadd.f32 %v2065, %v2068
  %vm2070 = vweird.f32 %v2049
  %vm2071 = vweird.f32 %v2065
  %vm2072 = vmor %vm2070, %vm2071
  %v2073 = vsel %vm2072, %v2065, %v2069
  %v2074 = vand.u32 2147483647, %v2049
  %vm2075 = vcmp.eq.f32.partialorder %v2074, 8.507059e+37
  %v2076 = vand.u32 %v2049, 2147483648
  %v2077 = vor.u32 1.1754944e-38, %v2076
  %v2078 = vsel %vm2075, %v2077, %v2073
  %v2079 = vmul.f32 1.0, %v2078
  %v2080 = vtanh.pop %v2041
  %2082 = vrot.lane.b32.xlu0 %v1990, 64
  %v2083 = vpop.permute.xlu0 %2082
  %v2085 = vmul.f32 %v2064, %v2083
  %v2086 = vmul.f32 %v2064, %v2080
  %2088 = vrot.lane.b32.xlu0 %v2086, 64
  %v2089 = vpop.permute.xlu0 %2088
  %v2091 = vadd.f32 %v2085, %v2089
  %v2092 = vtanh.pop %v2091
  %v2093 = vmul.f32 %v2079, %v2092
  %s2094 = scalar_lea.vmem %s1, 112
  %v2095 = vld [vmem:[%s2094] sm:$0xff]
  %vm2096 = vcmp.ne.s32.totalorder %v2095, 0
  %2098 = vrot.lane.b32.xlu0 %v2093, 64
  %v2099 = vpop.permute.xlu0 %2098
  %v2101 = vsel %vm2096, %v2099, 0.0
  %2102 = vst.msk [vmem:[%s531] sm:$0xff] %vm406, %v2101
  %2103 = vst.msk [vmem:[%s529] sm:$0xff] %vm409, %v2101
  %v2104 = vsel %vm2096, %v2099, %v1985
  %2106 = vrot.lane.b32.xlu0 %v2091, 64
  %v2107 = vpop.permute.xlu0 %2106
  %v2109 = vsel %vm2096, %v2107, %v1990
  %v2110 = vld [vmem:[%s300] sm:$0xff]
  %v2111 = vld [vmem:[%s300 + $0x8] sm:$0xff]
  %v2112 = vld [vmem:[#allocation2] sm:$0xff]
  %v2113 = vld [vmem:[#allocation2 + $0x8] sm:$0xff]
  %v2114 = vsel %vm43, %v2110, %v2112
  %v2115 = vsel %vm44, %v2111, %v2113
  %v2117 = vsel %vm305, %v2104, 0
  %2119 = vmatpush.msra.mxu0 0.0
  %2120 = vmatpush.msra.mxu0 0.0
  %2121 = vmatpush.msra.mxu0 0.0
  %2122 = vmatpush.msra.mxu0 0.0
  %2123 = vmatpush.msra.mxu0 0.0
  %2124 = vmatpush.msra.mxu0 0.0
  %2125 = vmatpush.msra.mxu0 0.0
  %2126 = vmatpush.msra.mxu0 0.0
  %2127 = vmatpush.msra.mxu0 %v296
  %2128 = vmatpush.msra.mxu0 %v294
  %2129 = vmatpush.msra.mxu0 %v292
  %2130 = vmatpush.msra.mxu0 %v290
  %2131 = vmatpush.msra.mxu0 %v288
  %2132 = vmatpush.msra.mxu0 %v286
  %2133 = vmatpush.msra.mxu0 %v284
  %2134 = vmatpush.msra.mxu0 %v282
  %2135 = vmatmul.f32.gmra.mxu0 %v2117
  %v2136 = vpop.f32.mrf.mxu0
  %v2137 = vadd.f32 0.0, %v2136
  %2138 = vdwg.mxu0
  %2139 = vmatpush.msra.mxu0 0.0
  %2140 = vmatpush.msra.mxu0 0.0
  %2141 = vmatpush.msra.mxu0 0.0
  %2142 = vmatpush.msra.mxu0 0.0
  %2143 = vmatpush.msra.mxu0 0.0
  %2144 = vmatpush.msra.mxu0 0.0
  %2145 = vmatpush.msra.mxu0 0.0
  %2146 = vmatpush.msra.mxu0 0.0
  %2147 = vmatpush.msra.mxu0 %v297
  %2148 = vmatpush.msra.mxu0 %v295
  %2149 = vmatpush.msra.mxu0 %v293
  %2150 = vmatpush.msra.mxu0 %v291
  %2151 = vmatpush.msra.mxu0 %v289
  %2152 = vmatpush.msra.mxu0 %v287
  %2153 = vmatpush.msra.mxu0 %v285
  %2154 = vmatpush.msra.mxu0 %v283
  %2155 = vmatmul.f32.gmra.mxu0 %v2117
  %v2156 = vpop.f32.mrf.mxu0
  %v2157 = vadd.f32 0.0, %v2156
  %2158 = vdwg.mxu0
  %v2159 = vadd.f32 %v2114, %v2137
  %v2160 = vadd.f32 %v2115, %v2157
  %v2161 = vxor.u32 %v2159, 2147483648
  %v2162 = vxor.u32 %v2160, 2147483648
  %v2163 = vmul.f32 %v2161, 1.442695
  %v2164 = vpow.pop %v2163
  %v2165 = vmul.f32 %v2162, 1.442695
  %v2166 = vpow.pop %v2165
  %v2167 = vadd.f32 %v2164, 1.0
  %v2168 = vadd.f32 %v2166, 1.0
  %v2169 = vrcp.pop %v2167
  %v2170 = vmul.f32 %v2167, %v2169
  %v2171 = vsub.f32 1.0, %v2170
  %v2172 = vmul.f32 %v2169, %v2171
  %v2173 = vadd.f32 %v2169, %v2172
  %vm2174 = vweird.f32 %v2167
  %vm2175 = vweird.f32 %v2169
  %vm2176 = vmor %vm2174, %vm2175
  %v2177 = vsel %vm2176, %v2169, %v2173
  %v2178 = vand.u32 2147483647, %v2167
  %vm2179 = vcmp.eq.f32.partialorder %v2178, 8.507059e+37
  %v2180 = vand.u32 %v2167, 2147483648
  %v2181 = vor.u32 1.1754944e-38, %v2180
  %v2182 = vsel %vm2179, %v2181, %v2177
  %v2183 = vmul.f32 1.0, %v2182
  %v2184 = vrcp.pop %v2168
  %v2185 = vmul.f32 %v2168, %v2184
  %v2186 = vsub.f32 1.0, %v2185
  %v2187 = vmul.f32 %v2184, %v2186
  %v2188 = vadd.f32 %v2184, %v2187
  %vm2189 = vweird.f32 %v2168
  %vm2190 = vweird.f32 %v2184
  %vm2191 = vmor %vm2189, %vm2190
  %v2192 = vsel %vm2191, %v2184, %v2188
  %v2193 = vand.u32 2147483647, %v2168
  %vm2194 = vcmp.eq.f32.partialorder %v2193, 8.507059e+37
  %v2195 = vand.u32 %v2168, 2147483648
  %v2196 = vor.u32 1.1754944e-38, %v2195
  %v2197 = vsel %vm2194, %v2196, %v2192
  %v2198 = vmul.f32 1.0, %v2197
  %v2199 = vtanh.pop %v2160
  %2201 = vrot.lane.b32.xlu0 %v2109, 64
  %v2202 = vpop.permute.xlu0 %2201
  %v2204 = vmul.f32 %v2183, %v2202
  %v2205 = vmul.f32 %v2183, %v2199
  %2207 = vrot.lane.b32.xlu0 %v2205, 64
  %v2208 = vpop.permute.xlu0 %2207
  %v2210 = vadd.f32 %v2204, %v2208
  %v2211 = vtanh.pop %v2210
  %v2212 = vmul.f32 %v2198, %v2211
  %s2213 = scalar_lea.vmem %s1, 120
  %v2214 = vld [vmem:[%s2213] sm:$0xff]
  %vm2215 = vcmp.ne.s32.totalorder %v2214, 0
  %2217 = vrot.lane.b32.xlu0 %v2212, 64
  %v2218 = vpop.permute.xlu0 %2217
  %v2220 = vsel %vm2215, %v2218, 0.0
  %2221 = vst.msk [vmem:[%s408] sm:$0xff] %vm406, %v2220
  %2222 = vst.msk [vmem:[#allocation3] sm:$0xff] %vm409, %v2220
  %v2223 = vld [vmem:[#allocation3] sm:$0xff]
  %v2224 = vld [vmem:[#allocation3 + $0x8] sm:$0xff]
  %v2225 = vld [vmem:[#allocation3 + $0x10] sm:$0xff]
  %v2226 = vld [vmem:[#allocation3 + $0x18] sm:$0xff]
  %v2227 = vld [vmem:[#allocation3 + $0x20] sm:$0xff]
  %v2228 = vld [vmem:[#allocation3 + $0x28] sm:$0xff]
  %v2229 = vld [vmem:[#allocation3 + $0x30] sm:$0xff]
  %v2230 = vld [vmem:[#allocation3 + $0x38] sm:$0xff]
  %v2231 = vld [vmem:[#allocation3 + $0x40] sm:$0xff]
  %v2232 = vld [vmem:[#allocation3 + $0x48] sm:$0xff]
  %v2233 = vld [vmem:[#allocation3 + $0x50] sm:$0xff]
  %v2234 = vld [vmem:[#allocation3 + $0x58] sm:$0xff]
  %v2235 = vld [vmem:[#allocation3 + $0x60] sm:$0xff]
  %v2236 = vld [vmem:[#allocation3 + $0x68] sm:$0xff]
  %v2237 = vld [vmem:[#allocation3 + $0x70] sm:$0xff]
  %v2238 = vld [vmem:[#allocation3 + $0x78] sm:$0xff]
  %v2239 = vld [vmem:[%s6] sm:$0xff]
  %v2240 = vld [vmem:[%s6 + $0x8] sm:$0xff]
  %v2241 = vld [vmem:[%s6 + $0x10] sm:$0xff]
  %v2242 = vld [vmem:[%s6 + $0x18] sm:$0xff]
  %v2243 = vld [vmem:[%s6 + $0x20] sm:$0xff]
  %v2244 = vld [vmem:[%s6 + $0x28] sm:$0xff]
  %v2245 = vld [vmem:[%s6 + $0x30] sm:$0xff]
  %v2246 = vld [vmem:[%s6 + $0x38] sm:$0xff]
  %v2247 = vld [vmem:[%s6 + $0x40] sm:$0xff]
  %v2248 = vld [vmem:[%s6 + $0x48] sm:$0xff]
  %v2249 = vld [vmem:[%s6 + $0x50] sm:$0xff]
  %v2250 = vld [vmem:[%s6 + $0x58] sm:$0xff]
  %v2251 = vld [vmem:[%s6 + $0x60] sm:$0xff]
  %v2252 = vld [vmem:[%s6 + $0x68] sm:$0xff]
  %v2253 = vld [vmem:[%s6 + $0x70] sm:$0xff]
  %v2254 = vld [vmem:[%s6 + $0x78] sm:$0xff]
  %v2255 = vld [vmem:[%s8] sm:$0x3]
  %v2257 = vperm.slane %v2255, 0
  %v2258 = vperm.slane %v2255, 1
  %v2262 = vsel %vm305, %v2223, 0
  %v2265 = vsel %vm305, %v2224, 0
  %v2268 = vsel %vm305, %v2225, 0
  %v2271 = vsel %vm305, %v2226, 0
  %v2274 = vsel %vm305, %v2227, 0
  %v2277 = vsel %vm305, %v2228, 0
  %v2280 = vsel %vm305, %v2229, 0
  %v2283 = vsel %vm305, %v2230, 0
  %v2286 = vsel %vm305, %v2231, 0
  %v2289 = vsel %vm305, %v2232, 0
  %v2292 = vsel %vm305, %v2233, 0
  %v2295 = vsel %vm305, %v2234, 0
  %v2298 = vsel %vm305, %v2235, 0
  %v2301 = vsel %vm305, %v2236, 0
  %v2304 = vsel %vm305, %v2237, 0
  %v2307 = vsel %vm305, %v2238, 0
  %2309 = vmatpush.msra.mxu0 0.0
  %2310 = vmatpush.msra.mxu0 0.0
  %2311 = vmatpush.msra.mxu0 0.0
  %2312 = vmatpush.msra.mxu0 0.0
  %2313 = vmatpush.msra.mxu0 0.0
  %2314 = vmatpush.msra.mxu0 0.0
  %2315 = vmatpush.msra.mxu0 0.0
  %2316 = vmatpush.msra.mxu0 0.0
  %2317 = vmatpush.msra.mxu0 %v2253
  %2318 = vmatpush.msra.mxu0 %v2251
  %2319 = vmatpush.msra.mxu0 %v2249
  %2320 = vmatpush.msra.mxu0 %v2247
  %2321 = vmatpush.msra.mxu0 %v2245
  %2322 = vmatpush.msra.mxu0 %v2243
  %2323 = vmatpush.msra.mxu0 %v2241
  %2324 = vmatpush.msra.mxu0 %v2239
  %2325 = vmatmul.f32.gmra.mxu0 %v2262
  %v2326 = vpop.f32.mrf.mxu0
  %v2327 = vadd.f32 %v2257, %v2326
  %2328 = vmatmul.f32.gmra.mxu0 %v2265
  %v2329 = vpop.f32.mrf.mxu0
  %v2330 = vadd.f32 %v2257, %v2329
  %2331 = vmatmul.f32.gmra.mxu0 %v2268
  %v2332 = vpop.f32.mrf.mxu0
  %v2333 = vadd.f32 %v2257, %v2332
  %2334 = vmatmul.f32.gmra.mxu0 %v2271
  %v2335 = vpop.f32.mrf.mxu0
  %v2336 = vadd.f32 %v2257, %v2335
  %2337 = vmatmul.f32.gmra.mxu0 %v2274
  %v2338 = vpop.f32.mrf.mxu0
  %v2339 = vadd.f32 %v2257, %v2338
  %2340 = vmatmul.f32.gmra.mxu0 %v2277
  %v2341 = vpop.f32.mrf.mxu0
  %v2342 = vadd.f32 %v2257, %v2341
  %2343 = vmatmul.f32.gmra.mxu0 %v2280
  %v2344 = vpop.f32.mrf.mxu0
  %v2345 = vadd.f32 %v2257, %v2344
  %2346 = vmatmul.f32.gmra.mxu0 %v2283
  %v2347 = vpop.f32.mrf.mxu0
  %v2348 = vadd.f32 %v2257, %v2347
  %2349 = vmatmul.f32.gmra.mxu0 %v2286
  %v2350 = vpop.f32.mrf.mxu0
  %v2351 = vadd.f32 %v2257, %v2350
  %2352 = vmatmul.f32.gmra.mxu0 %v2289
  %v2353 = vpop.f32.mrf.mxu0
  %v2354 = vadd.f32 %v2257, %v2353
  %2355 = vmatmul.f32.gmra.mxu0 %v2292
  %v2356 = vpop.f32.mrf.mxu0
  %v2357 = vadd.f32 %v2257, %v2356
  %2358 = vmatmul.f32.gmra.mxu0 %v2295
  %v2359 = vpop.f32.mrf.mxu0
  %v2360 = vadd.f32 %v2257, %v2359
  %2361 = vmatmul.f32.gmra.mxu0 %v2298
  %v2362 = vpop.f32.mrf.mxu0
  %v2363 = vadd.f32 %v2257, %v2362
  %2364 = vmatmul.f32.gmra.mxu0 %v2301
  %v2365 = vpop.f32.mrf.mxu0
  %v2366 = vadd.f32 %v2257, %v2365
  %2367 = vmatmul.f32.gmra.mxu0 %v2304
  %v2368 = vpop.f32.mrf.mxu0
  %v2369 = vadd.f32 %v2257, %v2368
  %2370 = vmatmul.f32.gmra.mxu0 %v2307
  %v2371 = vpop.f32.mrf.mxu0
  %v2372 = vadd.f32 %v2257, %v2371
  %2373 = vdwg.mxu0
  %2374 = vmatpush.msra.mxu0 0.0
  %2375 = vmatpush.msra.mxu0 0.0
  %2376 = vmatpush.msra.mxu0 0.0
  %2377 = vmatpush.msra.mxu0 0.0
  %2378 = vmatpush.msra.mxu0 0.0
  %2379 = vmatpush.msra.mxu0 0.0
  %2380 = vmatpush.msra.mxu0 0.0
  %2381 = vmatpush.msra.mxu0 0.0
  %2382 = vmatpush.msra.mxu0 %v2254
  %2383 = vmatpush.msra.mxu0 %v2252
  %2384 = vmatpush.msra.mxu0 %v2250
  %2385 = vmatpush.msra.mxu0 %v2248
  %2386 = vmatpush.msra.mxu0 %v2246
  %2387 = vmatpush.msra.mxu0 %v2244
  %2388 = vmatpush.msra.mxu0 %v2242
  %2389 = vmatpush.msra.mxu0 %v2240
  %2390 = vmatmul.f32.gmra.mxu0 %v2262
  %v2391 = vpop.f32.mrf.mxu0
  %v2392 = vadd.f32 %v2258, %v2391
  %2393 = vmatmul.f32.gmra.mxu0 %v2265
  %v2394 = vpop.f32.mrf.mxu0
  %v2395 = vadd.f32 %v2258, %v2394
  %2396 = vmatmul.f32.gmra.mxu0 %v2268
  %v2397 = vpop.f32.mrf.mxu0
  %v2398 = vadd.f32 %v2258, %v2397
  %2399 = vmatmul.f32.gmra.mxu0 %v2271
  %v2400 = vpop.f32.mrf.mxu0
  %v2401 = vadd.f32 %v2258, %v2400
  %2402 = vmatmul.f32.gmra.mxu0 %v2274
  %v2403 = vpop.f32.mrf.mxu0
  %v2404 = vadd.f32 %v2258, %v2403
  %2405 = vmatmul.f32.gmra.mxu0 %v2277
  %v2406 = vpop.f32.mrf.mxu0
  %v2407 = vadd.f32 %v2258, %v2406
  %2408 = vmatmul.f32.gmra.mxu0 %v2280
  %v2409 = vpop.f32.mrf.mxu0
  %v2410 = vadd.f32 %v2258, %v2409
  %2411 = vmatmul.f32.gmra.mxu0 %v2283
  %v2412 = vpop.f32.mrf.mxu0
  %v2413 = vadd.f32 %v2258, %v2412
  %2414 = vmatmul.f32.gmra.mxu0 %v2286
  %v2415 = vpop.f32.mrf.mxu0
  %v2416 = vadd.f32 %v2258, %v2415
  %2417 = vmatmul.f32.gmra.mxu0 %v2289
  %v2418 = vpop.f32.mrf.mxu0
  %v2419 = vadd.f32 %v2258, %v2418
  %2420 = vmatmul.f32.gmra.mxu0 %v2292
  %v2421 = vpop.f32.mrf.mxu0
  %v2422 = vadd.f32 %v2258, %v2421
  %2423 = vmatmul.f32.gmra.mxu0 %v2295
  %v2424 = vpop.f32.mrf.mxu0
  %v2425 = vadd.f32 %v2258, %v2424
  %2426 = vmatmul.f32.gmra.mxu0 %v2298
  %v2427 = vpop.f32.mrf.mxu0
  %v2428 = vadd.f32 %v2258, %v2427
  %2429 = vmatmul.f32.gmra.mxu0 %v2301
  %v2430 = vpop.f32.mrf.mxu0
  %v2431 = vadd.f32 %v2258, %v2430
  %2432 = vmatmul.f32.gmra.mxu0 %v2304
  %v2433 = vpop.f32.mrf.mxu0
  %v2434 = vadd.f32 %v2258, %v2433
  %2435 = vmatmul.f32.gmra.mxu0 %v2307
  %v2436 = vpop.f32.mrf.mxu0
  %v2437 = vadd.f32 %v2258, %v2436
  %2438 = vdwg.mxu0
  %2439 = vst [vmem:[#allocation2] sm:$0xff] %v2327
  %2440 = vst [vmem:[#allocation2 + $0x8] sm:$0xff] %v2392
  %2441 = vst [vmem:[#allocation2 + $0x10] sm:$0xff] %v2330
  %2442 = vst [vmem:[#allocation2 + $0x18] sm:$0xff] %v2395
  %2443 = vst [vmem:[#allocation2 + $0x20] sm:$0xff] %v2333
  %2444 = vst [vmem:[#allocation2 + $0x28] sm:$0xff] %v2398
  %2445 = vst [vmem:[#allocation2 + $0x30] sm:$0xff] %v2336
  %2446 = vst [vmem:[#allocation2 + $0x38] sm:$0xff] %v2401
  %2447 = vst [vmem:[#allocation2 + $0x40] sm:$0xff] %v2339
  %2448 = vst [vmem:[#allocation2 + $0x48] sm:$0xff] %v2404
  %2449 = vst [vmem:[#allocation2 + $0x50] sm:$0xff] %v2342
  %2450 = vst [vmem:[#allocation2 + $0x58] sm:$0xff] %v2407
  %2451 = vst [vmem:[#allocation2 + $0x60] sm:$0xff] %v2345
  %2452 = vst [vmem:[#allocation2 + $0x68] sm:$0xff] %v2410
  %2453 = vst [vmem:[#allocation2 + $0x70] sm:$0xff] %v2348
  %2454 = vst [vmem:[#allocation2 + $0x78] sm:$0xff] %v2413
  %2455 = vst [vmem:[#allocation2 + $0x80] sm:$0xff] %v2351
  %2456 = vst [vmem:[#allocation2 + $0x88] sm:$0xff] %v2416
  %2457 = vst [vmem:[#allocation2 + $0x90] sm:$0xff] %v2354
  %2458 = vst [vmem:[#allocation2 + $0x98] sm:$0xff] %v2419
  %2459 = vst [vmem:[#allocation2 + $0xa0] sm:$0xff] %v2357
  %2460 = vst [vmem:[#allocation2 + $0xa8] sm:$0xff] %v2422
  %2461 = vst [vmem:[#allocation2 + $0xb0] sm:$0xff] %v2360
  %2462 = vst [vmem:[#allocation2 + $0xb8] sm:$0xff] %v2425
  %2463 = vst [vmem:[#allocation2 + $0xc0] sm:$0xff] %v2363
  %2464 = vst [vmem:[#allocation2 + $0xc8] sm:$0xff] %v2428
  %2465 = vst [vmem:[#allocation2 + $0xd0] sm:$0xff] %v2366
  %2466 = vst [vmem:[#allocation2 + $0xd8] sm:$0xff] %v2431
  %2467 = vst [vmem:[#allocation2 + $0xe0] sm:$0xff] %v2369
  %2468 = vst [vmem:[#allocation2 + $0xe8] sm:$0xff] %v2434
  %2469 = vst [vmem:[#allocation2 + $0xf0] sm:$0xff] %v2372
  %2470 = vst [vmem:[#allocation2 + $0xf8] sm:$0xff] %v2437
  %v2471 = vld [vmem:[%s7] sm:$0xff]
  %v2472 = vld [vmem:[%s7 + $0x8] sm:$0xff]
  %v2473 = vld [vmem:[%s7 + $0x10] sm:$0xff]
  %v2474 = vld [vmem:[%s7 + $0x18] sm:$0xff]
  %v2475 = vld [vmem:[%s7 + $0x20] sm:$0xff]
  %v2476 = vld [vmem:[%s7 + $0x28] sm:$0xff]
  %v2477 = vld [vmem:[%s7 + $0x30] sm:$0xff]
  %v2478 = vld [vmem:[%s7 + $0x38] sm:$0xff]
  %v2479 = vld [vmem:[%s7 + $0x40] sm:$0xff]
  %v2480 = vld [vmem:[%s7 + $0x48] sm:$0xff]
  %v2481 = vld [vmem:[%s7 + $0x50] sm:$0xff]
  %v2482 = vld [vmem:[%s7 + $0x58] sm:$0xff]
  %v2483 = vld [vmem:[%s7 + $0x60] sm:$0xff]
  %v2484 = vld [vmem:[%s7 + $0x68] sm:$0xff]
  %v2485 = vld [vmem:[%s7 + $0x70] sm:$0xff]
  %v2486 = vld [vmem:[%s7 + $0x78] sm:$0xff]
  %v2487 = vld [vmem:[#allocation2] sm:$0xff]
  %v2488 = vld [vmem:[#allocation2 + $0x8] sm:$0xff]
  %v2489 = vld [vmem:[%s300] sm:$0xff]
  %v2490 = vld [vmem:[%s300 + $0x8] sm:$0xff]
  %v2491 = vsel %vm43, %v2487, %v2489
  %v2492 = vsel %vm44, %v2488, %v2490
  %2493 = vmatpush.msra.mxu0 0.0
  %2494 = vmatpush.msra.mxu0 0.0
  %2495 = vmatpush.msra.mxu0 0.0
  %2496 = vmatpush.msra.mxu0 0.0
  %2497 = vmatpush.msra.mxu0 0.0
  %2498 = vmatpush.msra.mxu0 0.0
  %2499 = vmatpush.msra.mxu0 0.0
  %2500 = vmatpush.msra.mxu0 0.0
  %2501 = vmatpush.msra.mxu0 %v2485
  %2502 = vmatpush.msra.mxu0 %v2483
  %2503 = vmatpush.msra.mxu0 %v2481
  %2504 = vmatpush.msra.mxu0 %v2479
  %2505 = vmatpush.msra.mxu0 %v2477
  %2506 = vmatpush.msra.mxu0 %v2475
  %2507 = vmatpush.msra.mxu0 %v2473
  %2508 = vmatpush.msra.mxu0 %v2471
  %2509 = vmatmul.f32.gmra.mxu0 %v307
  %v2510 = vpop.f32.mrf.mxu0
  %v2511 = vadd.f32 0.0, %v2510
  %2512 = vdwg.mxu0
  %2513 = vmatpush.msra.mxu0 0.0
  %2514 = vmatpush.msra.mxu0 0.0
  %2515 = vmatpush.msra.mxu0 0.0
  %2516 = vmatpush.msra.mxu0 0.0
  %2517 = vmatpush.msra.mxu0 0.0
  %2518 = vmatpush.msra.mxu0 0.0
  %2519 = vmatpush.msra.mxu0 0.0
  %2520 = vmatpush.msra.mxu0 0.0
  %2521 = vmatpush.msra.mxu0 %v2486
  %2522 = vmatpush.msra.mxu0 %v2484
  %2523 = vmatpush.msra.mxu0 %v2482
  %2524 = vmatpush.msra.mxu0 %v2480
  %2525 = vmatpush.msra.mxu0 %v2478
  %2526 = vmatpush.msra.mxu0 %v2476
  %2527 = vmatpush.msra.mxu0 %v2474
  %2528 = vmatpush.msra.mxu0 %v2472
  %2529 = vmatmul.f32.gmra.mxu0 %v307
  %v2530 = vpop.f32.mrf.mxu0
  %v2531 = vadd.f32 0.0, %v2530
  %2532 = vdwg.mxu0
  %v2533 = vadd.f32 %v2491, %v2511
  %v2534 = vadd.f32 %v2492, %v2531
  %v2535 = vxor.u32 %v2533, 2147483648
  %v2536 = vxor.u32 %v2534, 2147483648
  %v2537 = vmul.f32 %v2535, 1.442695
  %v2538 = vpow.pop %v2537
  %v2539 = vmul.f32 %v2536, 1.442695
  %v2540 = vpow.pop %v2539
  %v2541 = vadd.f32 %v2538, 1.0
  %v2542 = vadd.f32 %v2540, 1.0
  %v2543 = vrcp.pop %v2541
  %v2544 = vmul.f32 %v2541, %v2543
  %v2545 = vsub.f32 1.0, %v2544
  %v2546 = vmul.f32 %v2543, %v2545
  %v2547 = vadd.f32 %v2543, %v2546
  %vm2548 = vweird.f32 %v2541
  %vm2549 = vweird.f32 %v2543
  %vm2550 = vmor %vm2548, %vm2549
  %v2551 = vsel %vm2550, %v2543, %v2547
  %v2552 = vand.u32 2147483647, %v2541
  %vm2553 = vcmp.eq.f32.partialorder %v2552, 8.507059e+37
  %v2554 = vand.u32 %v2541, 2147483648
  %v2555 = vor.u32 1.1754944e-38, %v2554
  %v2556 = vsel %vm2553, %v2555, %v2551
  %v2557 = vmul.f32 1.0, %v2556
  %v2558 = vrcp.pop %v2542
  %v2559 = vmul.f32 %v2542, %v2558
  %v2560 = vsub.f32 1.0, %v2559
  %v2561 = vmul.f32 %v2558, %v2560
  %v2562 = vadd.f32 %v2558, %v2561
  %vm2563 = vweird.f32 %v2542
  %vm2564 = vweird.f32 %v2558
  %vm2565 = vmor %vm2563, %vm2564
  %v2566 = vsel %vm2565, %v2558, %v2562
  %v2567 = vand.u32 2147483647, %v2542
  %vm2568 = vcmp.eq.f32.partialorder %v2567, 8.507059e+37
  %v2569 = vand.u32 %v2542, 2147483648
  %v2570 = vor.u32 1.1754944e-38, %v2569
  %v2571 = vsel %vm2568, %v2570, %v2566
  %v2572 = vmul.f32 1.0, %v2571
  %v2573 = vtanh.pop %v2534
  %v2574 = vmul.f32 %v2557, 0.0
  %v2575 = vmul.f32 %v2557, %v2573
  %2577 = vrot.lane.b32.xlu0 %v2575, 64
  %v2578 = vpop.permute.xlu0 %2577
  %v2580 = vadd.f32 %v2574, %v2578
  %v2581 = vtanh.pop %v2580
  %v2582 = vmul.f32 %v2572, %v2581
  %v2583 = vld [vmem:[%s1] sm:$0xff]
  %vm2584 = vcmp.ne.s32.totalorder %v2583, 0
  %2586 = vrot.lane.b32.xlu0 %v2582, 64
  %v2587 = vpop.permute.xlu0 %2586
  %v2589 = vsel %vm2584, %v2587, 0.0
  %2590 = vst.msk [vmem:[#allocation3] sm:$0xff] %vm406, %v2589
  %2591 = vst.msk [vmem:[%s408] sm:$0xff] %vm409, %v2589
  %2593 = vrot.lane.b32.xlu0 %v2580, 64
  %v2594 = vpop.permute.xlu0 %2593
  %v2596 = vsel %vm2584, %v2594, 0.0
  %v2597 = vld [vmem:[%s416] sm:$0xff]
  %v2598 = vld [vmem:[%s416 + $0x8] sm:$0xff]
  %v2599 = vld [vmem:[%s419] sm:$0xff]
  %v2600 = vld [vmem:[%s419 + $0x8] sm:$0xff]
  %v2601 = vsel %vm43, %v2597, %v2599
  %v2602 = vsel %vm44, %v2598, %v2600
  %v2604 = vsel %vm305, %v2589, 0
  %2606 = vmatpush.msra.mxu0 0.0
  %2607 = vmatpush.msra.mxu0 0.0
  %2608 = vmatpush.msra.mxu0 0.0
  %2609 = vmatpush.msra.mxu0 0.0
  %2610 = vmatpush.msra.mxu0 0.0
  %2611 = vmatpush.msra.mxu0 0.0
  %2612 = vmatpush.msra.mxu0 0.0
  %2613 = vmatpush.msra.mxu0 0.0
  %2614 = vmatpush.msra.mxu0 %v2485
  %2615 = vmatpush.msra.mxu0 %v2483
  %2616 = vmatpush.msra.mxu0 %v2481
  %2617 = vmatpush.msra.mxu0 %v2479
  %2618 = vmatpush.msra.mxu0 %v2477
  %2619 = vmatpush.msra.mxu0 %v2475
  %2620 = vmatpush.msra.mxu0 %v2473
  %2621 = vmatpush.msra.mxu0 %v2471
  %2622 = vmatmul.f32.gmra.mxu0 %v2604
  %v2623 = vpop.f32.mrf.mxu0
  %v2624 = vadd.f32 0.0, %v2623
  %2625 = vdwg.mxu0
  %2626 = vmatpush.msra.mxu0 0.0
  %2627 = vmatpush.msra.mxu0 0.0
  %2628 = vmatpush.msra.mxu0 0.0
  %2629 = vmatpush.msra.mxu0 0.0
  %2630 = vmatpush.msra.mxu0 0.0
  %2631 = vmatpush.msra.mxu0 0.0
  %2632 = vmatpush.msra.mxu0 0.0
  %2633 = vmatpush.msra.mxu0 0.0
  %2634 = vmatpush.msra.mxu0 %v2486
  %2635 = vmatpush.msra.mxu0 %v2484
  %2636 = vmatpush.msra.mxu0 %v2482
  %2637 = vmatpush.msra.mxu0 %v2480
  %2638 = vmatpush.msra.mxu0 %v2478
  %2639 = vmatpush.msra.mxu0 %v2476
  %2640 = vmatpush.msra.mxu0 %v2474
  %2641 = vmatpush.msra.mxu0 %v2472
  %2642 = vmatmul.f32.gmra.mxu0 %v2604
  %v2643 = vpop.f32.mrf.mxu0
  %v2644 = vadd.f32 0.0, %v2643
  %2645 = vdwg.mxu0
  %v2646 = vadd.f32 %v2601, %v2624
  %v2647 = vadd.f32 %v2602, %v2644
  %v2648 = vxor.u32 %v2646, 2147483648
  %v2649 = vxor.u32 %v2647, 2147483648
  %v2650 = vmul.f32 %v2648, 1.442695
  %v2651 = vpow.pop %v2650
  %v2652 = vmul.f32 %v2649, 1.442695
  %v2653 = vpow.pop %v2652
  %v2654 = vadd.f32 %v2651, 1.0
  %v2655 = vadd.f32 %v2653, 1.0
  %v2656 = vrcp.pop %v2654
  %v2657 = vmul.f32 %v2654, %v2656
  %v2658 = vsub.f32 1.0, %v2657
  %v2659 = vmul.f32 %v2656, %v2658
  %v2660 = vadd.f32 %v2656, %v2659
  %vm2661 = vweird.f32 %v2654
  %vm2662 = vweird.f32 %v2656
  %vm2663 = vmor %vm2661, %vm2662
  %v2664 = vsel %vm2663, %v2656, %v2660
  %v2665 = vand.u32 2147483647, %v2654
  %vm2666 = vcmp.eq.f32.partialorder %v2665, 8.507059e+37
  %v2667 = vand.u32 %v2654, 2147483648
  %v2668 = vor.u32 1.1754944e-38, %v2667
  %v2669 = vsel %vm2666, %v2668, %v2664
  %v2670 = vmul.f32 1.0, %v2669
  %v2671 = vrcp.pop %v2655
  %v2672 = vmul.f32 %v2655, %v2671
  %v2673 = vsub.f32 1.0, %v2672
  %v2674 = vmul.f32 %v2671, %v2673
  %v2675 = vadd.f32 %v2671, %v2674
  %vm2676 = vweird.f32 %v2655
  %vm2677 = vweird.f32 %v2671
  %vm2678 = vmor %vm2676, %vm2677
  %v2679 = vsel %vm2678, %v2671, %v2675
  %v2680 = vand.u32 2147483647, %v2655
  %vm2681 = vcmp.eq.f32.partialorder %v2680, 8.507059e+37
  %v2682 = vand.u32 %v2655, 2147483648
  %v2683 = vor.u32 1.1754944e-38, %v2682
  %v2684 = vsel %vm2681, %v2683, %v2679
  %v2685 = vmul.f32 1.0, %v2684
  %v2686 = vtanh.pop %v2647
  %2688 = vrot.lane.b32.xlu0 %v2596, 64
  %v2689 = vpop.permute.xlu0 %2688
  %v2691 = vmul.f32 %v2670, %v2689
  %v2692 = vmul.f32 %v2670, %v2686
  %2694 = vrot.lane.b32.xlu0 %v2692, 64
  %v2695 = vpop.permute.xlu0 %2694
  %v2697 = vadd.f32 %v2691, %v2695
  %v2698 = vtanh.pop %v2697
  %v2699 = vmul.f32 %v2685, %v2698
  %v2700 = vld [vmem:[%s521] sm:$0xff]
  %vm2701 = vcmp.ne.s32.totalorder %v2700, 0
  %2703 = vrot.lane.b32.xlu0 %v2699, 64
  %v2704 = vpop.permute.xlu0 %2703
  %v2706 = vsel %vm2701, %v2704, 0.0
  %2707 = vst.msk [vmem:[%s529] sm:$0xff] %vm406, %v2706
  %2708 = vst.msk [vmem:[%s531] sm:$0xff] %vm409, %v2706
  %v2709 = vsel %vm2701, %v2704, %v2589
  %2711 = vrot.lane.b32.xlu0 %v2697, 64
  %v2712 = vpop.permute.xlu0 %2711
  %v2714 = vsel %vm2701, %v2712, %v2596
  %v2715 = vld [vmem:[%s539] sm:$0xff]
  %v2716 = vld [vmem:[%s539 + $0x8] sm:$0xff]
  %v2717 = vld [vmem:[%s542] sm:$0xff]
  %v2718 = vld [vmem:[%s542 + $0x8] sm:$0xff]
  %v2719 = vsel %vm43, %v2715, %v2717
  %v2720 = vsel %vm44, %v2716, %v2718
  %v2722 = vsel %vm305, %v2709, 0
  %2724 = vmatpush.msra.mxu0 0.0
  %2725 = vmatpush.msra.mxu0 0.0
  %2726 = vmatpush.msra.mxu0 0.0
  %2727 = vmatpush.msra.mxu0 0.0
  %2728 = vmatpush.msra.mxu0 0.0
  %2729 = vmatpush.msra.mxu0 0.0
  %2730 = vmatpush.msra.mxu0 0.0
  %2731 = vmatpush.msra.mxu0 0.0
  %2732 = vmatpush.msra.mxu0 %v2485
  %2733 = vmatpush.msra.mxu0 %v2483
  %2734 = vmatpush.msra.mxu0 %v2481
  %2735 = vmatpush.msra.mxu0 %v2479
  %2736 = vmatpush.msra.mxu0 %v2477
  %2737 = vmatpush.msra.mxu0 %v2475
  %2738 = vmatpush.msra.mxu0 %v2473
  %2739 = vmatpush.msra.mxu0 %v2471
  %2740 = vmatmul.f32.gmra.mxu0 %v2722
  %v2741 = vpop.f32.mrf.mxu0
  %v2742 = vadd.f32 0.0, %v2741
  %2743 = vdwg.mxu0
  %2744 = vmatpush.msra.mxu0 0.0
  %2745 = vmatpush.msra.mxu0 0.0
  %2746 = vmatpush.msra.mxu0 0.0
  %2747 = vmatpush.msra.mxu0 0.0
  %2748 = vmatpush.msra.mxu0 0.0
  %2749 = vmatpush.msra.mxu0 0.0
  %2750 = vmatpush.msra.mxu0 0.0
  %2751 = vmatpush.msra.mxu0 0.0
  %2752 = vmatpush.msra.mxu0 %v2486
  %2753 = vmatpush.msra.mxu0 %v2484
  %2754 = vmatpush.msra.mxu0 %v2482
  %2755 = vmatpush.msra.mxu0 %v2480
  %2756 = vmatpush.msra.mxu0 %v2478
  %2757 = vmatpush.msra.mxu0 %v2476
  %2758 = vmatpush.msra.mxu0 %v2474
  %2759 = vmatpush.msra.mxu0 %v2472
  %2760 = vmatmul.f32.gmra.mxu0 %v2722
  %v2761 = vpop.f32.mrf.mxu0
  %v2762 = vadd.f32 0.0, %v2761
  %2763 = vdwg.mxu0
  %v2764 = vadd.f32 %v2719, %v2742
  %v2765 = vadd.f32 %v2720, %v2762
  %v2766 = vxor.u32 %v2764, 2147483648
  %v2767 = vxor.u32 %v2765, 2147483648
  %v2768 = vmul.f32 %v2766, 1.442695
  %v2769 = vpow.pop %v2768
  %v2770 = vmul.f32 %v2767, 1.442695
  %v2771 = vpow.pop %v2770
  %v2772 = vadd.f32 %v2769, 1.0
  %v2773 = vadd.f32 %v2771, 1.0
  %v2774 = vrcp.pop %v2772
  %v2775 = vmul.f32 %v2772, %v2774
  %v2776 = vsub.f32 1.0, %v2775
  %v2777 = vmul.f32 %v2774, %v2776
  %v2778 = vadd.f32 %v2774, %v2777
  %vm2779 = vweird.f32 %v2772
  %vm2780 = vweird.f32 %v2774
  %vm2781 = vmor %vm2779, %vm2780
  %v2782 = vsel %vm2781, %v2774, %v2778
  %v2783 = vand.u32 2147483647, %v2772
  %vm2784 = vcmp.eq.f32.partialorder %v2783, 8.507059e+37
  %v2785 = vand.u32 %v2772, 2147483648
  %v2786 = vor.u32 1.1754944e-38, %v2785
  %v2787 = vsel %vm2784, %v2786, %v2782
  %v2788 = vmul.f32 1.0, %v2787
  %v2789 = vrcp.pop %v2773
  %v2790 = vmul.f32 %v2773, %v2789
  %v2791 = vsub.f32 1.0, %v2790
  %v2792 = vmul.f32 %v2789, %v2791
  %v2793 = vadd.f32 %v2789, %v2792
  %vm2794 = vweird.f32 %v2773
  %vm2795 = vweird.f32 %v2789
  %vm2796 = vmor %vm2794, %vm2795
  %v2797 = vsel %vm2796, %v2789, %v2793
  %v2798 = vand.u32 2147483647, %v2773
  %vm2799 = vcmp.eq.f32.partialorder %v2798, 8.507059e+37
  %v2800 = vand.u32 %v2773, 2147483648
  %v2801 = vor.u32 1.1754944e-38, %v2800
  %v2802 = vsel %vm2799, %v2801, %v2797
  %v2803 = vmul.f32 1.0, %v2802
  %v2804 = vtanh.pop %v2765
  %2806 = vrot.lane.b32.xlu0 %v2714, 64
  %v2807 = vpop.permute.xlu0 %2806
  %v2809 = vmul.f32 %v2788, %v2807
  %v2810 = vmul.f32 %v2788, %v2804
  %2812 = vrot.lane.b32.xlu0 %v2810, 64
  %v2813 = vpop.permute.xlu0 %2812
  %v2815 = vadd.f32 %v2809, %v2813
  %v2816 = vtanh.pop %v2815
  %v2817 = vmul.f32 %v2803, %v2816
  %v2818 = vld [vmem:[%s644] sm:$0xff]
  %vm2819 = vcmp.ne.s32.totalorder %v2818, 0
  %2821 = vrot.lane.b32.xlu0 %v2817, 64
  %v2822 = vpop.permute.xlu0 %2821
  %v2824 = vsel %vm2819, %v2822, 0.0
  %2825 = vst.msk [vmem:[%s652] sm:$0xff] %vm406, %v2824
  %2826 = vst.msk [vmem:[%s654] sm:$0xff] %vm409, %v2824
  %v2827 = vsel %vm2819, %v2822, %v2709
  %2829 = vrot.lane.b32.xlu0 %v2815, 64
  %v2830 = vpop.permute.xlu0 %2829
  %v2832 = vsel %vm2819, %v2830, %v2714
  %v2833 = vld [vmem:[%s662] sm:$0xff]
  %v2834 = vld [vmem:[%s662 + $0x8] sm:$0xff]
  %v2835 = vld [vmem:[%s665] sm:$0xff]
  %v2836 = vld [vmem:[%s665 + $0x8] sm:$0xff]
  %v2837 = vsel %vm43, %v2833, %v2835
  %v2838 = vsel %vm44, %v2834, %v2836
  %v2840 = vsel %vm305, %v2827, 0
  %2842 = vmatpush.msra.mxu0 0.0
  %2843 = vmatpush.msra.mxu0 0.0
  %2844 = vmatpush.msra.mxu0 0.0
  %2845 = vmatpush.msra.mxu0 0.0
  %2846 = vmatpush.msra.mxu0 0.0
  %2847 = vmatpush.msra.mxu0 0.0
  %2848 = vmatpush.msra.mxu0 0.0
  %2849 = vmatpush.msra.mxu0 0.0
  %2850 = vmatpush.msra.mxu0 %v2485
  %2851 = vmatpush.msra.mxu0 %v2483
  %2852 = vmatpush.msra.mxu0 %v2481
  %2853 = vmatpush.msra.mxu0 %v2479
  %2854 = vmatpush.msra.mxu0 %v2477
  %2855 = vmatpush.msra.mxu0 %v2475
  %2856 = vmatpush.msra.mxu0 %v2473
  %2857 = vmatpush.msra.mxu0 %v2471
  %2858 = vmatmul.f32.gmra.mxu0 %v2840
  %v2859 = vpop.f32.mrf.mxu0
  %v2860 = vadd.f32 0.0, %v2859
  %2861 = vdwg.mxu0
  %2862 = vmatpush.msra.mxu0 0.0
  %2863 = vmatpush.msra.mxu0 0.0
  %2864 = vmatpush.msra.mxu0 0.0
  %2865 = vmatpush.msra.mxu0 0.0
  %2866 = vmatpush.msra.mxu0 0.0
  %2867 = vmatpush.msra.mxu0 0.0
  %2868 = vmatpush.msra.mxu0 0.0
  %2869 = vmatpush.msra.mxu0 0.0
  %2870 = vmatpush.msra.mxu0 %v2486
  %2871 = vmatpush.msra.mxu0 %v2484
  %2872 = vmatpush.msra.mxu0 %v2482
  %2873 = vmatpush.msra.mxu0 %v2480
  %2874 = vmatpush.msra.mxu0 %v2478
  %2875 = vmatpush.msra.mxu0 %v2476
  %2876 = vmatpush.msra.mxu0 %v2474
  %2877 = vmatpush.msra.mxu0 %v2472
  %2878 = vmatmul.f32.gmra.mxu0 %v2840
  %v2879 = vpop.f32.mrf.mxu0
  %v2880 = vadd.f32 0.0, %v2879
  %2881 = vdwg.mxu0
  %v2882 = vadd.f32 %v2837, %v2860
  %v2883 = vadd.f32 %v2838, %v2880
  %v2884 = vxor.u32 %v2882, 2147483648
  %v2885 = vxor.u32 %v2883, 2147483648
  %v2886 = vmul.f32 %v2884, 1.442695
  %v2887 = vpow.pop %v2886
  %v2888 = vmul.f32 %v2885, 1.442695
  %v2889 = vpow.pop %v2888
  %v2890 = vadd.f32 %v2887, 1.0
  %v2891 = vadd.f32 %v2889, 1.0
  %v2892 = vrcp.pop %v2890
  %v2893 = vmul.f32 %v2890, %v2892
  %v2894 = vsub.f32 1.0, %v2893
  %v2895 = vmul.f32 %v2892, %v2894
  %v2896 = vadd.f32 %v2892, %v2895
  %vm2897 = vweird.f32 %v2890
  %vm2898 = vweird.f32 %v2892
  %vm2899 = vmor %vm2897, %vm2898
  %v2900 = vsel %vm2899, %v2892, %v2896
  %v2901 = vand.u32 2147483647, %v2890
  %vm2902 = vcmp.eq.f32.partialorder %v2901, 8.507059e+37
  %v2903 = vand.u32 %v2890, 2147483648
  %v2904 = vor.u32 1.1754944e-38, %v2903
  %v2905 = vsel %vm2902, %v2904, %v2900
  %v2906 = vmul.f32 1.0, %v2905
  %v2907 = vrcp.pop %v2891
  %v2908 = vmul.f32 %v2891, %v2907
  %v2909 = vsub.f32 1.0, %v2908
  %v2910 = vmul.f32 %v2907, %v2909
  %v2911 = vadd.f32 %v2907, %v2910
  %vm2912 = vweird.f32 %v2891
  %vm2913 = vweird.f32 %v2907
  %vm2914 = vmor %vm2912, %vm2913
  %v2915 = vsel %vm2914, %v2907, %v2911
  %v2916 = vand.u32 2147483647, %v2891
  %vm2917 = vcmp.eq.f32.partialorder %v2916, 8.507059e+37
  %v2918 = vand.u32 %v2891, 2147483648
  %v2919 = vor.u32 1.1754944e-38, %v2918
  %v2920 = vsel %vm2917, %v2919, %v2915
  %v2921 = vmul.f32 1.0, %v2920
  %v2922 = vtanh.pop %v2883
  %2924 = vrot.lane.b32.xlu0 %v2832, 64
  %v2925 = vpop.permute.xlu0 %2924
  %v2927 = vmul.f32 %v2906, %v2925
  %v2928 = vmul.f32 %v2906, %v2922
  %2930 = vrot.lane.b32.xlu0 %v2928, 64
  %v2931 = vpop.permute.xlu0 %2930
  %v2933 = vadd.f32 %v2927, %v2931
  %v2934 = vtanh.pop %v2933
  %v2935 = vmul.f32 %v2921, %v2934
  %v2936 = vld [vmem:[%s767] sm:$0xff]
  %vm2937 = vcmp.ne.s32.totalorder %v2936, 0
  %2939 = vrot.lane.b32.xlu0 %v2935, 64
  %v2940 = vpop.permute.xlu0 %2939
  %v2942 = vsel %vm2937, %v2940, 0.0
  %2943 = vst.msk [vmem:[%s775] sm:$0xff] %vm406, %v2942
  %2944 = vst.msk [vmem:[%s777] sm:$0xff] %vm409, %v2942
  %v2945 = vsel %vm2937, %v2940, %v2827
  %2947 = vrot.lane.b32.xlu0 %v2933, 64
  %v2948 = vpop.permute.xlu0 %2947
  %v2950 = vsel %vm2937, %v2948, %v2832
  %v2951 = vld [vmem:[%s785] sm:$0xff]
  %v2952 = vld [vmem:[%s785 + $0x8] sm:$0xff]
  %v2953 = vld [vmem:[%s788] sm:$0xff]
  %v2954 = vld [vmem:[%s788 + $0x8] sm:$0xff]
  %v2955 = vsel %vm43, %v2951, %v2953
  %v2956 = vsel %vm44, %v2952, %v2954
  %v2958 = vsel %vm305, %v2945, 0
  %2960 = vmatpush.msra.mxu0 0.0
  %2961 = vmatpush.msra.mxu0 0.0
  %2962 = vmatpush.msra.mxu0 0.0
  %2963 = vmatpush.msra.mxu0 0.0
  %2964 = vmatpush.msra.mxu0 0.0
  %2965 = vmatpush.msra.mxu0 0.0
  %2966 = vmatpush.msra.mxu0 0.0
  %2967 = vmatpush.msra.mxu0 0.0
  %2968 = vmatpush.msra.mxu0 %v2485
  %2969 = vmatpush.msra.mxu0 %v2483
  %2970 = vmatpush.msra.mxu0 %v2481
  %2971 = vmatpush.msra.mxu0 %v2479
  %2972 = vmatpush.msra.mxu0 %v2477
  %2973 = vmatpush.msra.mxu0 %v2475
  %2974 = vmatpush.msra.mxu0 %v2473
  %2975 = vmatpush.msra.mxu0 %v2471
  %2976 = vmatmul.f32.gmra.mxu0 %v2958
  %v2977 = vpop.f32.mrf.mxu0
  %v2978 = vadd.f32 0.0, %v2977
  %2979 = vdwg.mxu0
  %2980 = vmatpush.msra.mxu0 0.0
  %2981 = vmatpush.msra.mxu0 0.0
  %2982 = vmatpush.msra.mxu0 0.0
  %2983 = vmatpush.msra.mxu0 0.0
  %2984 = vmatpush.msra.mxu0 0.0
  %2985 = vmatpush.msra.mxu0 0.0
  %2986 = vmatpush.msra.mxu0 0.0
  %2987 = vmatpush.msra.mxu0 0.0
  %2988 = vmatpush.msra.mxu0 %v2486
  %2989 = vmatpush.msra.mxu0 %v2484
  %2990 = vmatpush.msra.mxu0 %v2482
  %2991 = vmatpush.msra.mxu0 %v2480
  %2992 = vmatpush.msra.mxu0 %v2478
  %2993 = vmatpush.msra.mxu0 %v2476
  %2994 = vmatpush.msra.mxu0 %v2474
  %2995 = vmatpush.msra.mxu0 %v2472
  %2996 = vmatmul.f32.gmra.mxu0 %v2958
  %v2997 = vpop.f32.mrf.mxu0
  %v2998 = vadd.f32 0.0, %v2997
  %2999 = vdwg.mxu0
  %v3000 = vadd.f32 %v2955, %v2978
  %v3001 = vadd.f32 %v2956, %v2998
  %v3002 = vxor.u32 %v3000, 2147483648
  %v3003 = vxor.u32 %v3001, 2147483648
  %v3004 = vmul.f32 %v3002, 1.442695
  %v3005 = vpow.pop %v3004
  %v3006 = vmul.f32 %v3003, 1.442695
  %v3007 = vpow.pop %v3006
  %v3008 = vadd.f32 %v3005, 1.0
  %v3009 = vadd.f32 %v3007, 1.0
  %v3010 = vrcp.pop %v3008
  %v3011 = vmul.f32 %v3008, %v3010
  %v3012 = vsub.f32 1.0, %v3011
  %v3013 = vmul.f32 %v3010, %v3012
  %v3014 = vadd.f32 %v3010, %v3013
  %vm3015 = vweird.f32 %v3008
  %vm3016 = vweird.f32 %v3010
  %vm3017 = vmor %vm3015, %vm3016
  %v3018 = vsel %vm3017, %v3010, %v3014
  %v3019 = vand.u32 2147483647, %v3008
  %vm3020 = vcmp.eq.f32.partialorder %v3019, 8.507059e+37
  %v3021 = vand.u32 %v3008, 2147483648
  %v3022 = vor.u32 1.1754944e-38, %v3021
  %v3023 = vsel %vm3020, %v3022, %v3018
  %v3024 = vmul.f32 1.0, %v3023
  %v3025 = vrcp.pop %v3009
  %v3026 = vmul.f32 %v3009, %v3025
  %v3027 = vsub.f32 1.0, %v3026
  %v3028 = vmul.f32 %v3025, %v3027
  %v3029 = vadd.f32 %v3025, %v3028
  %vm3030 = vweird.f32 %v3009
  %vm3031 = vweird.f32 %v3025
  %vm3032 = vmor %vm3030, %vm3031
  %v3033 = vsel %vm3032, %v3025, %v3029
  %v3034 = vand.u32 2147483647, %v3009
  %vm3035 = vcmp.eq.f32.partialorder %v3034, 8.507059e+37
  %v3036 = vand.u32 %v3009, 2147483648
  %v3037 = vor.u32 1.1754944e-38, %v3036
  %v3038 = vsel %vm3035, %v3037, %v3033
  %v3039 = vmul.f32 1.0, %v3038
  %v3040 = vtanh.pop %v3001
  %3042 = vrot.lane.b32.xlu0 %v2950, 64
  %v3043 = vpop.permute.xlu0 %3042
  %v3045 = vmul.f32 %v3024, %v3043
  %v3046 = vmul.f32 %v3024, %v3040
  %3048 = vrot.lane.b32.xlu0 %v3046, 64
  %v3049 = vpop.permute.xlu0 %3048
  %v3051 = vadd.f32 %v3045, %v3049
  %v3052 = vtanh.pop %v3051
  %v3053 = vmul.f32 %v3039, %v3052
  %v3054 = vld [vmem:[%s890] sm:$0xff]
  %vm3055 = vcmp.ne.s32.totalorder %v3054, 0
  %3057 = vrot.lane.b32.xlu0 %v3053, 64
  %v3058 = vpop.permute.xlu0 %3057
  %v3060 = vsel %vm3055, %v3058, 0.0
  %3061 = vst.msk [vmem:[%s898] sm:$0xff] %vm406, %v3060
  %3062 = vst.msk [vmem:[%s900] sm:$0xff] %vm409, %v3060
  %v3063 = vsel %vm3055, %v3058, %v2945
  %3065 = vrot.lane.b32.xlu0 %v3051, 64
  %v3066 = vpop.permute.xlu0 %3065
  %v3068 = vsel %vm3055, %v3066, %v2950
  %v3069 = vld [vmem:[%s908] sm:$0xff]
  %v3070 = vld [vmem:[%s908 + $0x8] sm:$0xff]
  %v3071 = vld [vmem:[%s911] sm:$0xff]
  %v3072 = vld [vmem:[%s911 + $0x8] sm:$0xff]
  %v3073 = vsel %vm43, %v3069, %v3071
  %v3074 = vsel %vm44, %v3070, %v3072
  %v3076 = vsel %vm305, %v3063, 0
  %3078 = vmatpush.msra.mxu0 0.0
  %3079 = vmatpush.msra.mxu0 0.0
  %3080 = vmatpush.msra.mxu0 0.0
  %3081 = vmatpush.msra.mxu0 0.0
  %3082 = vmatpush.msra.mxu0 0.0
  %3083 = vmatpush.msra.mxu0 0.0
  %3084 = vmatpush.msra.mxu0 0.0
  %3085 = vmatpush.msra.mxu0 0.0
  %3086 = vmatpush.msra.mxu0 %v2485
  %3087 = vmatpush.msra.mxu0 %v2483
  %3088 = vmatpush.msra.mxu0 %v2481
  %3089 = vmatpush.msra.mxu0 %v2479
  %3090 = vmatpush.msra.mxu0 %v2477
  %3091 = vmatpush.msra.mxu0 %v2475
  %3092 = vmatpush.msra.mxu0 %v2473
  %3093 = vmatpush.msra.mxu0 %v2471
  %3094 = vmatmul.f32.gmra.mxu0 %v3076
  %v3095 = vpop.f32.mrf.mxu0
  %v3096 = vadd.f32 0.0, %v3095
  %3097 = vdwg.mxu0
  %3098 = vmatpush.msra.mxu0 0.0
  %3099 = vmatpush.msra.mxu0 0.0
  %3100 = vmatpush.msra.mxu0 0.0
  %3101 = vmatpush.msra.mxu0 0.0
  %3102 = vmatpush.msra.mxu0 0.0
  %3103 = vmatpush.msra.mxu0 0.0
  %3104 = vmatpush.msra.mxu0 0.0
  %3105 = vmatpush.msra.mxu0 0.0
  %3106 = vmatpush.msra.mxu0 %v2486
  %3107 = vmatpush.msra.mxu0 %v2484
  %3108 = vmatpush.msra.mxu0 %v2482
  %3109 = vmatpush.msra.mxu0 %v2480
  %3110 = vmatpush.msra.mxu0 %v2478
  %3111 = vmatpush.msra.mxu0 %v2476
  %3112 = vmatpush.msra.mxu0 %v2474
  %3113 = vmatpush.msra.mxu0 %v2472
  %3114 = vmatmul.f32.gmra.mxu0 %v3076
  %v3115 = vpop.f32.mrf.mxu0
  %v3116 = vadd.f32 0.0, %v3115
  %3117 = vdwg.mxu0
  %v3118 = vadd.f32 %v3073, %v3096
  %v3119 = vadd.f32 %v3074, %v3116
  %v3120 = vxor.u32 %v3118, 2147483648
  %v3121 = vxor.u32 %v3119, 2147483648
  %v3122 = vmul.f32 %v3120, 1.442695
  %v3123 = vpow.pop %v3122
  %v3124 = vmul.f32 %v3121, 1.442695
  %v3125 = vpow.pop %v3124
  %v3126 = vadd.f32 %v3123, 1.0
  %v3127 = vadd.f32 %v3125, 1.0
  %v3128 = vrcp.pop %v3126
  %v3129 = vmul.f32 %v3126, %v3128
  %v3130 = vsub.f32 1.0, %v3129
  %v3131 = vmul.f32 %v3128, %v3130
  %v3132 = vadd.f32 %v3128, %v3131
  %vm3133 = vweird.f32 %v3126
  %vm3134 = vweird.f32 %v3128
  %vm3135 = vmor %vm3133, %vm3134
  %v3136 = vsel %vm3135, %v3128, %v3132
  %v3137 = vand.u32 2147483647, %v3126
  %vm3138 = vcmp.eq.f32.partialorder %v3137, 8.507059e+37
  %v3139 = vand.u32 %v3126, 2147483648
  %v3140 = vor.u32 1.1754944e-38, %v3139
  %v3141 = vsel %vm3138, %v3140, %v3136
  %v3142 = vmul.f32 1.0, %v3141
  %v3143 = vrcp.pop %v3127
  %v3144 = vmul.f32 %v3127, %v3143
  %v3145 = vsub.f32 1.0, %v3144
  %v3146 = vmul.f32 %v3143, %v3145
  %v3147 = vadd.f32 %v3143, %v3146
  %vm3148 = vweird.f32 %v3127
  %vm3149 = vweird.f32 %v3143
  %vm3150 = vmor %vm3148, %vm3149
  %v3151 = vsel %vm3150, %v3143, %v3147
  %v3152 = vand.u32 2147483647, %v3127
  %vm3153 = vcmp.eq.f32.partialorder %v3152, 8.507059e+37
  %v3154 = vand.u32 %v3127, 2147483648
  %v3155 = vor.u32 1.1754944e-38, %v3154
  %v3156 = vsel %vm3153, %v3155, %v3151
  %v3157 = vmul.f32 1.0, %v3156
  %v3158 = vtanh.pop %v3119
  %3160 = vrot.lane.b32.xlu0 %v3068, 64
  %v3161 = vpop.permute.xlu0 %3160
  %v3163 = vmul.f32 %v3142, %v3161
  %v3164 = vmul.f32 %v3142, %v3158
  %3166 = vrot.lane.b32.xlu0 %v3164, 64
  %v3167 = vpop.permute.xlu0 %3166
  %v3169 = vadd.f32 %v3163, %v3167
  %v3170 = vtanh.pop %v3169
  %v3171 = vmul.f32 %v3157, %v3170
  %v3172 = vld [vmem:[%s1013] sm:$0xff]
  %vm3173 = vcmp.ne.s32.totalorder %v3172, 0
  %3175 = vrot.lane.b32.xlu0 %v3171, 64
  %v3176 = vpop.permute.xlu0 %3175
  %v3178 = vsel %vm3173, %v3176, 0.0
  %3179 = vst.msk [vmem:[%s1021] sm:$0xff] %vm406, %v3178
  %3180 = vst.msk [vmem:[%s1023] sm:$0xff] %vm409, %v3178
  %v3181 = vsel %vm3173, %v3176, %v3063
  %3183 = vrot.lane.b32.xlu0 %v3169, 64
  %v3184 = vpop.permute.xlu0 %3183
  %v3186 = vsel %vm3173, %v3184, %v3068
  %v3187 = vld [vmem:[%s1031] sm:$0xff]
  %v3188 = vld [vmem:[%s1031 + $0x8] sm:$0xff]
  %v3189 = vld [vmem:[%s1034] sm:$0xff]
  %v3190 = vld [vmem:[%s1034 + $0x8] sm:$0xff]
  %v3191 = vsel %vm43, %v3187, %v3189
  %v3192 = vsel %vm44, %v3188, %v3190
  %v3194 = vsel %vm305, %v3181, 0
  %3196 = vmatpush.msra.mxu0 0.0
  %3197 = vmatpush.msra.mxu0 0.0
  %3198 = vmatpush.msra.mxu0 0.0
  %3199 = vmatpush.msra.mxu0 0.0
  %3200 = vmatpush.msra.mxu0 0.0
  %3201 = vmatpush.msra.mxu0 0.0
  %3202 = vmatpush.msra.mxu0 0.0
  %3203 = vmatpush.msra.mxu0 0.0
  %3204 = vmatpush.msra.mxu0 %v2485
  %3205 = vmatpush.msra.mxu0 %v2483
  %3206 = vmatpush.msra.mxu0 %v2481
  %3207 = vmatpush.msra.mxu0 %v2479
  %3208 = vmatpush.msra.mxu0 %v2477
  %3209 = vmatpush.msra.mxu0 %v2475
  %3210 = vmatpush.msra.mxu0 %v2473
  %3211 = vmatpush.msra.mxu0 %v2471
  %3212 = vmatmul.f32.gmra.mxu0 %v3194
  %v3213 = vpop.f32.mrf.mxu0
  %v3214 = vadd.f32 0.0, %v3213
  %3215 = vdwg.mxu0
  %3216 = vmatpush.msra.mxu0 0.0
  %3217 = vmatpush.msra.mxu0 0.0
  %3218 = vmatpush.msra.mxu0 0.0
  %3219 = vmatpush.msra.mxu0 0.0
  %3220 = vmatpush.msra.mxu0 0.0
  %3221 = vmatpush.msra.mxu0 0.0
  %3222 = vmatpush.msra.mxu0 0.0
  %3223 = vmatpush.msra.mxu0 0.0
  %3224 = vmatpush.msra.mxu0 %v2486
  %3225 = vmatpush.msra.mxu0 %v2484
  %3226 = vmatpush.msra.mxu0 %v2482
  %3227 = vmatpush.msra.mxu0 %v2480
  %3228 = vmatpush.msra.mxu0 %v2478
  %3229 = vmatpush.msra.mxu0 %v2476
  %3230 = vmatpush.msra.mxu0 %v2474
  %3231 = vmatpush.msra.mxu0 %v2472
  %3232 = vmatmul.f32.gmra.mxu0 %v3194
  %v3233 = vpop.f32.mrf.mxu0
  %v3234 = vadd.f32 0.0, %v3233
  %3235 = vdwg.mxu0
  %v3236 = vadd.f32 %v3191, %v3214
  %v3237 = vadd.f32 %v3192, %v3234
  %v3238 = vxor.u32 %v3236, 2147483648
  %v3239 = vxor.u32 %v3237, 2147483648
  %v3240 = vmul.f32 %v3238, 1.442695
  %v3241 = vpow.pop %v3240
  %v3242 = vmul.f32 %v3239, 1.442695
  %v3243 = vpow.pop %v3242
  %v3244 = vadd.f32 %v3241, 1.0
  %v3245 = vadd.f32 %v3243, 1.0
  %v3246 = vrcp.pop %v3244
  %v3247 = vmul.f32 %v3244, %v3246
  %v3248 = vsub.f32 1.0, %v3247
  %v3249 = vmul.f32 %v3246, %v3248
  %v3250 = vadd.f32 %v3246, %v3249
  %vm3251 = vweird.f32 %v3244
  %vm3252 = vweird.f32 %v3246
  %vm3253 = vmor %vm3251, %vm3252
  %v3254 = vsel %vm3253, %v3246, %v3250
  %v3255 = vand.u32 2147483647, %v3244
  %vm3256 = vcmp.eq.f32.partialorder %v3255, 8.507059e+37
  %v3257 = vand.u32 %v3244, 2147483648
  %v3258 = vor.u32 1.1754944e-38, %v3257
  %v3259 = vsel %vm3256, %v3258, %v3254
  %v3260 = vmul.f32 1.0, %v3259
  %v3261 = vrcp.pop %v3245
  %v3262 = vmul.f32 %v3245, %v3261
  %v3263 = vsub.f32 1.0, %v3262
  %v3264 = vmul.f32 %v3261, %v3263
  %v3265 = vadd.f32 %v3261, %v3264
  %vm3266 = vweird.f32 %v3245
  %vm3267 = vweird.f32 %v3261
  %vm3268 = vmor %vm3266, %vm3267
  %v3269 = vsel %vm3268, %v3261, %v3265
  %v3270 = vand.u32 2147483647, %v3245
  %vm3271 = vcmp.eq.f32.partialorder %v3270, 8.507059e+37
  %v3272 = vand.u32 %v3245, 2147483648
  %v3273 = vor.u32 1.1754944e-38, %v3272
  %v3274 = vsel %vm3271, %v3273, %v3269
  %v3275 = vmul.f32 1.0, %v3274
  %v3276 = vtanh.pop %v3237
  %3278 = vrot.lane.b32.xlu0 %v3186, 64
  %v3279 = vpop.permute.xlu0 %3278
  %v3281 = vmul.f32 %v3260, %v3279
  %v3282 = vmul.f32 %v3260, %v3276
  %3284 = vrot.lane.b32.xlu0 %v3282, 64
  %v3285 = vpop.permute.xlu0 %3284
  %v3287 = vadd.f32 %v3281, %v3285
  %v3288 = vtanh.pop %v3287
  %v3289 = vmul.f32 %v3275, %v3288
  %v3290 = vld [vmem:[%s1136] sm:$0xff]
  %vm3291 = vcmp.ne.s32.totalorder %v3290, 0
  %3293 = vrot.lane.b32.xlu0 %v3289, 64
  %v3294 = vpop.permute.xlu0 %3293
  %v3296 = vsel %vm3291, %v3294, 0.0
  %3297 = vst.msk [vmem:[%s1144] sm:$0xff] %vm406, %v3296
  %3298 = vst.msk [vmem:[%s1146] sm:$0xff] %vm409, %v3296
  %v3299 = vsel %vm3291, %v3294, %v3181
  %3301 = vrot.lane.b32.xlu0 %v3287, 64
  %v3302 = vpop.permute.xlu0 %3301
  %v3304 = vsel %vm3291, %v3302, %v3186
  %v3305 = vld [vmem:[%s1154] sm:$0xff]
  %v3306 = vld [vmem:[%s1154 + $0x8] sm:$0xff]
  %v3307 = vld [vmem:[%s1157] sm:$0xff]
  %v3308 = vld [vmem:[%s1157 + $0x8] sm:$0xff]
  %v3309 = vsel %vm43, %v3305, %v3307
  %v3310 = vsel %vm44, %v3306, %v3308
  %v3312 = vsel %vm305, %v3299, 0
  %3314 = vmatpush.msra.mxu0 0.0
  %3315 = vmatpush.msra.mxu0 0.0
  %3316 = vmatpush.msra.mxu0 0.0
  %3317 = vmatpush.msra.mxu0 0.0
  %3318 = vmatpush.msra.mxu0 0.0
  %3319 = vmatpush.msra.mxu0 0.0
  %3320 = vmatpush.msra.mxu0 0.0
  %3321 = vmatpush.msra.mxu0 0.0
  %3322 = vmatpush.msra.mxu0 %v2485
  %3323 = vmatpush.msra.mxu0 %v2483
  %3324 = vmatpush.msra.mxu0 %v2481
  %3325 = vmatpush.msra.mxu0 %v2479
  %3326 = vmatpush.msra.mxu0 %v2477
  %3327 = vmatpush.msra.mxu0 %v2475
  %3328 = vmatpush.msra.mxu0 %v2473
  %3329 = vmatpush.msra.mxu0 %v2471
  %3330 = vmatmul.f32.gmra.mxu0 %v3312
  %v3331 = vpop.f32.mrf.mxu0
  %v3332 = vadd.f32 0.0, %v3331
  %3333 = vdwg.mxu0
  %3334 = vmatpush.msra.mxu0 0.0
  %3335 = vmatpush.msra.mxu0 0.0
  %3336 = vmatpush.msra.mxu0 0.0
  %3337 = vmatpush.msra.mxu0 0.0
  %3338 = vmatpush.msra.mxu0 0.0
  %3339 = vmatpush.msra.mxu0 0.0
  %3340 = vmatpush.msra.mxu0 0.0
  %3341 = vmatpush.msra.mxu0 0.0
  %3342 = vmatpush.msra.mxu0 %v2486
  %3343 = vmatpush.msra.mxu0 %v2484
  %3344 = vmatpush.msra.mxu0 %v2482
  %3345 = vmatpush.msra.mxu0 %v2480
  %3346 = vmatpush.msra.mxu0 %v2478
  %3347 = vmatpush.msra.mxu0 %v2476
  %3348 = vmatpush.msra.mxu0 %v2474
  %3349 = vmatpush.msra.mxu0 %v2472
  %3350 = vmatmul.f32.gmra.mxu0 %v3312
  %v3351 = vpop.f32.mrf.mxu0
  %v3352 = vadd.f32 0.0, %v3351
  %3353 = vdwg.mxu0
  %v3354 = vadd.f32 %v3309, %v3332
  %v3355 = vadd.f32 %v3310, %v3352
  %v3356 = vxor.u32 %v3354, 2147483648
  %v3357 = vxor.u32 %v3355, 2147483648
  %v3358 = vmul.f32 %v3356, 1.442695
  %v3359 = vpow.pop %v3358
  %v3360 = vmul.f32 %v3357, 1.442695
  %v3361 = vpow.pop %v3360
  %v3362 = vadd.f32 %v3359, 1.0
  %v3363 = vadd.f32 %v3361, 1.0
  %v3364 = vrcp.pop %v3362
  %v3365 = vmul.f32 %v3362, %v3364
  %v3366 = vsub.f32 1.0, %v3365
  %v3367 = vmul.f32 %v3364, %v3366
  %v3368 = vadd.f32 %v3364, %v3367
  %vm3369 = vweird.f32 %v3362
  %vm3370 = vweird.f32 %v3364
  %vm3371 = vmor %vm3369, %vm3370
  %v3372 = vsel %vm3371, %v3364, %v3368
  %v3373 = vand.u32 2147483647, %v3362
  %vm3374 = vcmp.eq.f32.partialorder %v3373, 8.507059e+37
  %v3375 = vand.u32 %v3362, 2147483648
  %v3376 = vor.u32 1.1754944e-38, %v3375
  %v3377 = vsel %vm3374, %v3376, %v3372
  %v3378 = vmul.f32 1.0, %v3377
  %v3379 = vrcp.pop %v3363
  %v3380 = vmul.f32 %v3363, %v3379
  %v3381 = vsub.f32 1.0, %v3380
  %v3382 = vmul.f32 %v3379, %v3381
  %v3383 = vadd.f32 %v3379, %v3382
  %vm3384 = vweird.f32 %v3363
  %vm3385 = vweird.f32 %v3379
  %vm3386 = vmor %vm3384, %vm3385
  %v3387 = vsel %vm3386, %v3379, %v3383
  %v3388 = vand.u32 2147483647, %v3363
  %vm3389 = vcmp.eq.f32.partialorder %v3388, 8.507059e+37
  %v3390 = vand.u32 %v3363, 2147483648
  %v3391 = vor.u32 1.1754944e-38, %v3390
  %v3392 = vsel %vm3389, %v3391, %v3387
  %v3393 = vmul.f32 1.0, %v3392
  %v3394 = vtanh.pop %v3355
  %3396 = vrot.lane.b32.xlu0 %v3304, 64
  %v3397 = vpop.permute.xlu0 %3396
  %v3399 = vmul.f32 %v3378, %v3397
  %v3400 = vmul.f32 %v3378, %v3394
  %3402 = vrot.lane.b32.xlu0 %v3400, 64
  %v3403 = vpop.permute.xlu0 %3402
  %v3405 = vadd.f32 %v3399, %v3403
  %v3406 = vtanh.pop %v3405
  %v3407 = vmul.f32 %v3393, %v3406
  %v3408 = vld [vmem:[%s1259] sm:$0xff]
  %vm3409 = vcmp.ne.s32.totalorder %v3408, 0
  %3411 = vrot.lane.b32.xlu0 %v3407, 64
  %v3412 = vpop.permute.xlu0 %3411
  %v3414 = vsel %vm3409, %v3412, 0.0
  %3415 = vst.msk [vmem:[%s1267] sm:$0xff] %vm406, %v3414
  %3416 = vst.msk [vmem:[%s1269] sm:$0xff] %vm409, %v3414
  %v3417 = vsel %vm3409, %v3412, %v3299
  %3419 = vrot.lane.b32.xlu0 %v3405, 64
  %v3420 = vpop.permute.xlu0 %3419
  %v3422 = vsel %vm3409, %v3420, %v3304
  %v3423 = vld [vmem:[%s1157] sm:$0xff]
  %v3424 = vld [vmem:[%s1157 + $0x8] sm:$0xff]
  %v3425 = vld [vmem:[%s1154] sm:$0xff]
  %v3426 = vld [vmem:[%s1154 + $0x8] sm:$0xff]
  %v3427 = vsel %vm43, %v3423, %v3425
  %v3428 = vsel %vm44, %v3424, %v3426
  %v3430 = vsel %vm305, %v3417, 0
  %3432 = vmatpush.msra.mxu0 0.0
  %3433 = vmatpush.msra.mxu0 0.0
  %3434 = vmatpush.msra.mxu0 0.0
  %3435 = vmatpush.msra.mxu0 0.0
  %3436 = vmatpush.msra.mxu0 0.0
  %3437 = vmatpush.msra.mxu0 0.0
  %3438 = vmatpush.msra.mxu0 0.0
  %3439 = vmatpush.msra.mxu0 0.0
  %3440 = vmatpush.msra.mxu0 %v2485
  %3441 = vmatpush.msra.mxu0 %v2483
  %3442 = vmatpush.msra.mxu0 %v2481
  %3443 = vmatpush.msra.mxu0 %v2479
  %3444 = vmatpush.msra.mxu0 %v2477
  %3445 = vmatpush.msra.mxu0 %v2475
  %3446 = vmatpush.msra.mxu0 %v2473
  %3447 = vmatpush.msra.mxu0 %v2471
  %3448 = vmatmul.f32.gmra.mxu0 %v3430
  %v3449 = vpop.f32.mrf.mxu0
  %v3450 = vadd.f32 0.0, %v3449
  %3451 = vdwg.mxu0
  %3452 = vmatpush.msra.mxu0 0.0
  %3453 = vmatpush.msra.mxu0 0.0
  %3454 = vmatpush.msra.mxu0 0.0
  %3455 = vmatpush.msra.mxu0 0.0
  %3456 = vmatpush.msra.mxu0 0.0
  %3457 = vmatpush.msra.mxu0 0.0
  %3458 = vmatpush.msra.mxu0 0.0
  %3459 = vmatpush.msra.mxu0 0.0
  %3460 = vmatpush.msra.mxu0 %v2486
  %3461 = vmatpush.msra.mxu0 %v2484
  %3462 = vmatpush.msra.mxu0 %v2482
  %3463 = vmatpush.msra.mxu0 %v2480
  %3464 = vmatpush.msra.mxu0 %v2478
  %3465 = vmatpush.msra.mxu0 %v2476
  %3466 = vmatpush.msra.mxu0 %v2474
  %3467 = vmatpush.msra.mxu0 %v2472
  %3468 = vmatmul.f32.gmra.mxu0 %v3430
  %v3469 = vpop.f32.mrf.mxu0
  %v3470 = vadd.f32 0.0, %v3469
  %3471 = vdwg.mxu0
  %v3472 = vadd.f32 %v3427, %v3450
  %v3473 = vadd.f32 %v3428, %v3470
  %v3474 = vxor.u32 %v3472, 2147483648
  %v3475 = vxor.u32 %v3473, 2147483648
  %v3476 = vmul.f32 %v3474, 1.442695
  %v3477 = vpow.pop %v3476
  %v3478 = vmul.f32 %v3475, 1.442695
  %v3479 = vpow.pop %v3478
  %v3480 = vadd.f32 %v3477, 1.0
  %v3481 = vadd.f32 %v3479, 1.0
  %v3482 = vrcp.pop %v3480
  %v3483 = vmul.f32 %v3480, %v3482
  %v3484 = vsub.f32 1.0, %v3483
  %v3485 = vmul.f32 %v3482, %v3484
  %v3486 = vadd.f32 %v3482, %v3485
  %vm3487 = vweird.f32 %v3480
  %vm3488 = vweird.f32 %v3482
  %vm3489 = vmor %vm3487, %vm3488
  %v3490 = vsel %vm3489, %v3482, %v3486
  %v3491 = vand.u32 2147483647, %v3480
  %vm3492 = vcmp.eq.f32.partialorder %v3491, 8.507059e+37
  %v3493 = vand.u32 %v3480, 2147483648
  %v3494 = vor.u32 1.1754944e-38, %v3493
  %v3495 = vsel %vm3492, %v3494, %v3490
  %v3496 = vmul.f32 1.0, %v3495
  %v3497 = vrcp.pop %v3481
  %v3498 = vmul.f32 %v3481, %v3497
  %v3499 = vsub.f32 1.0, %v3498
  %v3500 = vmul.f32 %v3497, %v3499
  %v3501 = vadd.f32 %v3497, %v3500
  %vm3502 = vweird.f32 %v3481
  %vm3503 = vweird.f32 %v3497
  %vm3504 = vmor %vm3502, %vm3503
  %v3505 = vsel %vm3504, %v3497, %v3501
  %v3506 = vand.u32 2147483647, %v3481
  %vm3507 = vcmp.eq.f32.partialorder %v3506, 8.507059e+37
  %v3508 = vand.u32 %v3481, 2147483648
  %v3509 = vor.u32 1.1754944e-38, %v3508
  %v3510 = vsel %vm3507, %v3509, %v3505
  %v3511 = vmul.f32 1.0, %v3510
  %v3512 = vtanh.pop %v3473
  %3514 = vrot.lane.b32.xlu0 %v3422, 64
  %v3515 = vpop.permute.xlu0 %3514
  %v3517 = vmul.f32 %v3496, %v3515
  %v3518 = vmul.f32 %v3496, %v3512
  %3520 = vrot.lane.b32.xlu0 %v3518, 64
  %v3521 = vpop.permute.xlu0 %3520
  %v3523 = vadd.f32 %v3517, %v3521
  %v3524 = vtanh.pop %v3523
  %v3525 = vmul.f32 %v3511, %v3524
  %v3526 = vld [vmem:[%s1380] sm:$0xff]
  %vm3527 = vcmp.ne.s32.totalorder %v3526, 0
  %3529 = vrot.lane.b32.xlu0 %v3525, 64
  %v3530 = vpop.permute.xlu0 %3529
  %v3532 = vsel %vm3527, %v3530, 0.0
  %3533 = vst.msk [vmem:[%s1269] sm:$0xff] %vm406, %v3532
  %3534 = vst.msk [vmem:[%s1267] sm:$0xff] %vm409, %v3532
  %v3535 = vsel %vm3527, %v3530, %v3417
  %3537 = vrot.lane.b32.xlu0 %v3523, 64
  %v3538 = vpop.permute.xlu0 %3537
  %v3540 = vsel %vm3527, %v3538, %v3422
  %v3541 = vld [vmem:[%s1034] sm:$0xff]
  %v3542 = vld [vmem:[%s1034 + $0x8] sm:$0xff]
  %v3543 = vld [vmem:[%s1031] sm:$0xff]
  %v3544 = vld [vmem:[%s1031 + $0x8] sm:$0xff]
  %v3545 = vsel %vm43, %v3541, %v3543
  %v3546 = vsel %vm44, %v3542, %v3544
  %v3548 = vsel %vm305, %v3535, 0
  %3550 = vmatpush.msra.mxu0 0.0
  %3551 = vmatpush.msra.mxu0 0.0
  %3552 = vmatpush.msra.mxu0 0.0
  %3553 = vmatpush.msra.mxu0 0.0
  %3554 = vmatpush.msra.mxu0 0.0
  %3555 = vmatpush.msra.mxu0 0.0
  %3556 = vmatpush.msra.mxu0 0.0
  %3557 = vmatpush.msra.mxu0 0.0
  %3558 = vmatpush.msra.mxu0 %v2485
  %3559 = vmatpush.msra.mxu0 %v2483
  %3560 = vmatpush.msra.mxu0 %v2481
  %3561 = vmatpush.msra.mxu0 %v2479
  %3562 = vmatpush.msra.mxu0 %v2477
  %3563 = vmatpush.msra.mxu0 %v2475
  %3564 = vmatpush.msra.mxu0 %v2473
  %3565 = vmatpush.msra.mxu0 %v2471
  %3566 = vmatmul.f32.gmra.mxu0 %v3548
  %v3567 = vpop.f32.mrf.mxu0
  %v3568 = vadd.f32 0.0, %v3567
  %3569 = vdwg.mxu0
  %3570 = vmatpush.msra.mxu0 0.0
  %3571 = vmatpush.msra.mxu0 0.0
  %3572 = vmatpush.msra.mxu0 0.0
  %3573 = vmatpush.msra.mxu0 0.0
  %3574 = vmatpush.msra.mxu0 0.0
  %3575 = vmatpush.msra.mxu0 0.0
  %3576 = vmatpush.msra.mxu0 0.0
  %3577 = vmatpush.msra.mxu0 0.0
  %3578 = vmatpush.msra.mxu0 %v2486
  %3579 = vmatpush.msra.mxu0 %v2484
  %3580 = vmatpush.msra.mxu0 %v2482
  %3581 = vmatpush.msra.mxu0 %v2480
  %3582 = vmatpush.msra.mxu0 %v2478
  %3583 = vmatpush.msra.mxu0 %v2476
  %3584 = vmatpush.msra.mxu0 %v2474
  %3585 = vmatpush.msra.mxu0 %v2472
  %3586 = vmatmul.f32.gmra.mxu0 %v3548
  %v3587 = vpop.f32.mrf.mxu0
  %v3588 = vadd.f32 0.0, %v3587
  %3589 = vdwg.mxu0
  %v3590 = vadd.f32 %v3545, %v3568
  %v3591 = vadd.f32 %v3546, %v3588
  %v3592 = vxor.u32 %v3590, 2147483648
  %v3593 = vxor.u32 %v3591, 2147483648
  %v3594 = vmul.f32 %v3592, 1.442695
  %v3595 = vpow.pop %v3594
  %v3596 = vmul.f32 %v3593, 1.442695
  %v3597 = vpow.pop %v3596
  %v3598 = vadd.f32 %v3595, 1.0
  %v3599 = vadd.f32 %v3597, 1.0
  %v3600 = vrcp.pop %v3598
  %v3601 = vmul.f32 %v3598, %v3600
  %v3602 = vsub.f32 1.0, %v3601
  %v3603 = vmul.f32 %v3600, %v3602
  %v3604 = vadd.f32 %v3600, %v3603
  %vm3605 = vweird.f32 %v3598
  %vm3606 = vweird.f32 %v3600
  %vm3607 = vmor %vm3605, %vm3606
  %v3608 = vsel %vm3607, %v3600, %v3604
  %v3609 = vand.u32 2147483647, %v3598
  %vm3610 = vcmp.eq.f32.partialorder %v3609, 8.507059e+37
  %v3611 = vand.u32 %v3598, 2147483648
  %v3612 = vor.u32 1.1754944e-38, %v3611
  %v3613 = vsel %vm3610, %v3612, %v3608
  %v3614 = vmul.f32 1.0, %v3613
  %v3615 = vrcp.pop %v3599
  %v3616 = vmul.f32 %v3599, %v3615
  %v3617 = vsub.f32 1.0, %v3616
  %v3618 = vmul.f32 %v3615, %v3617
  %v3619 = vadd.f32 %v3615, %v3618
  %vm3620 = vweird.f32 %v3599
  %vm3621 = vweird.f32 %v3615
  %vm3622 = vmor %vm3620, %vm3621
  %v3623 = vsel %vm3622, %v3615, %v3619
  %v3624 = vand.u32 2147483647, %v3599
  %vm3625 = vcmp.eq.f32.partialorder %v3624, 8.507059e+37
  %v3626 = vand.u32 %v3599, 2147483648
  %v3627 = vor.u32 1.1754944e-38, %v3626
  %v3628 = vsel %vm3625, %v3627, %v3623
  %v3629 = vmul.f32 1.0, %v3628
  %v3630 = vtanh.pop %v3591
  %3632 = vrot.lane.b32.xlu0 %v3540, 64
  %v3633 = vpop.permute.xlu0 %3632
  %v3635 = vmul.f32 %v3614, %v3633
  %v3636 = vmul.f32 %v3614, %v3630
  %3638 = vrot.lane.b32.xlu0 %v3636, 64
  %v3639 = vpop.permute.xlu0 %3638
  %v3641 = vadd.f32 %v3635, %v3639
  %v3642 = vtanh.pop %v3641
  %v3643 = vmul.f32 %v3629, %v3642
  %v3644 = vld [vmem:[%s1499] sm:$0xff]
  %vm3645 = vcmp.ne.s32.totalorder %v3644, 0
  %3647 = vrot.lane.b32.xlu0 %v3643, 64
  %v3648 = vpop.permute.xlu0 %3647
  %v3650 = vsel %vm3645, %v3648, 0.0
  %3651 = vst.msk [vmem:[%s1146] sm:$0xff] %vm406, %v3650
  %3652 = vst.msk [vmem:[%s1144] sm:$0xff] %vm409, %v3650
  %v3653 = vsel %vm3645, %v3648, %v3535
  %3655 = vrot.lane.b32.xlu0 %v3641, 64
  %v3656 = vpop.permute.xlu0 %3655
  %v3658 = vsel %vm3645, %v3656, %v3540
  %v3659 = vld [vmem:[%s911] sm:$0xff]
  %v3660 = vld [vmem:[%s911 + $0x8] sm:$0xff]
  %v3661 = vld [vmem:[%s908] sm:$0xff]
  %v3662 = vld [vmem:[%s908 + $0x8] sm:$0xff]
  %v3663 = vsel %vm43, %v3659, %v3661
  %v3664 = vsel %vm44, %v3660, %v3662
  %v3666 = vsel %vm305, %v3653, 0
  %3668 = vmatpush.msra.mxu0 0.0
  %3669 = vmatpush.msra.mxu0 0.0
  %3670 = vmatpush.msra.mxu0 0.0
  %3671 = vmatpush.msra.mxu0 0.0
  %3672 = vmatpush.msra.mxu0 0.0
  %3673 = vmatpush.msra.mxu0 0.0
  %3674 = vmatpush.msra.mxu0 0.0
  %3675 = vmatpush.msra.mxu0 0.0
  %3676 = vmatpush.msra.mxu0 %v2485
  %3677 = vmatpush.msra.mxu0 %v2483
  %3678 = vmatpush.msra.mxu0 %v2481
  %3679 = vmatpush.msra.mxu0 %v2479
  %3680 = vmatpush.msra.mxu0 %v2477
  %3681 = vmatpush.msra.mxu0 %v2475
  %3682 = vmatpush.msra.mxu0 %v2473
  %3683 = vmatpush.msra.mxu0 %v2471
  %3684 = vmatmul.f32.gmra.mxu0 %v3666
  %v3685 = vpop.f32.mrf.mxu0
  %v3686 = vadd.f32 0.0, %v3685
  %3687 = vdwg.mxu0
  %3688 = vmatpush.msra.mxu0 0.0
  %3689 = vmatpush.msra.mxu0 0.0
  %3690 = vmatpush.msra.mxu0 0.0
  %3691 = vmatpush.msra.mxu0 0.0
  %3692 = vmatpush.msra.mxu0 0.0
  %3693 = vmatpush.msra.mxu0 0.0
  %3694 = vmatpush.msra.mxu0 0.0
  %3695 = vmatpush.msra.mxu0 0.0
  %3696 = vmatpush.msra.mxu0 %v2486
  %3697 = vmatpush.msra.mxu0 %v2484
  %3698 = vmatpush.msra.mxu0 %v2482
  %3699 = vmatpush.msra.mxu0 %v2480
  %3700 = vmatpush.msra.mxu0 %v2478
  %3701 = vmatpush.msra.mxu0 %v2476
  %3702 = vmatpush.msra.mxu0 %v2474
  %3703 = vmatpush.msra.mxu0 %v2472
  %3704 = vmatmul.f32.gmra.mxu0 %v3666
  %v3705 = vpop.f32.mrf.mxu0
  %v3706 = vadd.f32 0.0, %v3705
  %3707 = vdwg.mxu0
  %v3708 = vadd.f32 %v3663, %v3686
  %v3709 = vadd.f32 %v3664, %v3706
  %v3710 = vxor.u32 %v3708, 2147483648
  %v3711 = vxor.u32 %v3709, 2147483648
  %v3712 = vmul.f32 %v3710, 1.442695
  %v3713 = vpow.pop %v3712
  %v3714 = vmul.f32 %v3711, 1.442695
  %v3715 = vpow.pop %v3714
  %v3716 = vadd.f32 %v3713, 1.0
  %v3717 = vadd.f32 %v3715, 1.0
  %v3718 = vrcp.pop %v3716
  %v3719 = vmul.f32 %v3716, %v3718
  %v3720 = vsub.f32 1.0, %v3719
  %v3721 = vmul.f32 %v3718, %v3720
  %v3722 = vadd.f32 %v3718, %v3721
  %vm3723 = vweird.f32 %v3716
  %vm3724 = vweird.f32 %v3718
  %vm3725 = vmor %vm3723, %vm3724
  %v3726 = vsel %vm3725, %v3718, %v3722
  %v3727 = vand.u32 2147483647, %v3716
  %vm3728 = vcmp.eq.f32.partialorder %v3727, 8.507059e+37
  %v3729 = vand.u32 %v3716, 2147483648
  %v3730 = vor.u32 1.1754944e-38, %v3729
  %v3731 = vsel %vm3728, %v3730, %v3726
  %v3732 = vmul.f32 1.0, %v3731
  %v3733 = vrcp.pop %v3717
  %v3734 = vmul.f32 %v3717, %v3733
  %v3735 = vsub.f32 1.0, %v3734
  %v3736 = vmul.f32 %v3733, %v3735
  %v3737 = vadd.f32 %v3733, %v3736
  %vm3738 = vweird.f32 %v3717
  %vm3739 = vweird.f32 %v3733
  %vm3740 = vmor %vm3738, %vm3739
  %v3741 = vsel %vm3740, %v3733, %v3737
  %v3742 = vand.u32 2147483647, %v3717
  %vm3743 = vcmp.eq.f32.partialorder %v3742, 8.507059e+37
  %v3744 = vand.u32 %v3717, 2147483648
  %v3745 = vor.u32 1.1754944e-38, %v3744
  %v3746 = vsel %vm3743, %v3745, %v3741
  %v3747 = vmul.f32 1.0, %v3746
  %v3748 = vtanh.pop %v3709
  %3750 = vrot.lane.b32.xlu0 %v3658, 64
  %v3751 = vpop.permute.xlu0 %3750
  %v3753 = vmul.f32 %v3732, %v3751
  %v3754 = vmul.f32 %v3732, %v3748
  %3756 = vrot.lane.b32.xlu0 %v3754, 64
  %v3757 = vpop.permute.xlu0 %3756
  %v3759 = vadd.f32 %v3753, %v3757
  %v3760 = vtanh.pop %v3759
  %v3761 = vmul.f32 %v3747, %v3760
  %v3762 = vld [vmem:[%s1618] sm:$0xff]
  %vm3763 = vcmp.ne.s32.totalorder %v3762, 0
  %3765 = vrot.lane.b32.xlu0 %v3761, 64
  %v3766 = vpop.permute.xlu0 %3765
  %v3768 = vsel %vm3763, %v3766, 0.0
  %3769 = vst.msk [vmem:[%s1023] sm:$0xff] %vm406, %v3768
  %3770 = vst.msk [vmem:[%s1021] sm:$0xff] %vm409, %v3768
  %v3771 = vsel %vm3763, %v3766, %v3653
  %3773 = vrot.lane.b32.xlu0 %v3759, 64
  %v3774 = vpop.permute.xlu0 %3773
  %v3776 = vsel %vm3763, %v3774, %v3658
  %v3777 = vld [vmem:[%s788] sm:$0xff]
  %v3778 = vld [vmem:[%s788 + $0x8] sm:$0xff]
  %v3779 = vld [vmem:[%s785] sm:$0xff]
  %v3780 = vld [vmem:[%s785 + $0x8] sm:$0xff]
  %v3781 = vsel %vm43, %v3777, %v3779
  %v3782 = vsel %vm44, %v3778, %v3780
  %v3784 = vsel %vm305, %v3771, 0
  %3786 = vmatpush.msra.mxu0 0.0
  %3787 = vmatpush.msra.mxu0 0.0
  %3788 = vmatpush.msra.mxu0 0.0
  %3789 = vmatpush.msra.mxu0 0.0
  %3790 = vmatpush.msra.mxu0 0.0
  %3791 = vmatpush.msra.mxu0 0.0
  %3792 = vmatpush.msra.mxu0 0.0
  %3793 = vmatpush.msra.mxu0 0.0
  %3794 = vmatpush.msra.mxu0 %v2485
  %3795 = vmatpush.msra.mxu0 %v2483
  %3796 = vmatpush.msra.mxu0 %v2481
  %3797 = vmatpush.msra.mxu0 %v2479
  %3798 = vmatpush.msra.mxu0 %v2477
  %3799 = vmatpush.msra.mxu0 %v2475
  %3800 = vmatpush.msra.mxu0 %v2473
  %3801 = vmatpush.msra.mxu0 %v2471
  %3802 = vmatmul.f32.gmra.mxu0 %v3784
  %v3803 = vpop.f32.mrf.mxu0
  %v3804 = vadd.f32 0.0, %v3803
  %3805 = vdwg.mxu0
  %3806 = vmatpush.msra.mxu0 0.0
  %3807 = vmatpush.msra.mxu0 0.0
  %3808 = vmatpush.msra.mxu0 0.0
  %3809 = vmatpush.msra.mxu0 0.0
  %3810 = vmatpush.msra.mxu0 0.0
  %3811 = vmatpush.msra.mxu0 0.0
  %3812 = vmatpush.msra.mxu0 0.0
  %3813 = vmatpush.msra.mxu0 0.0
  %3814 = vmatpush.msra.mxu0 %v2486
  %3815 = vmatpush.msra.mxu0 %v2484
  %3816 = vmatpush.msra.mxu0 %v2482
  %3817 = vmatpush.msra.mxu0 %v2480
  %3818 = vmatpush.msra.mxu0 %v2478
  %3819 = vmatpush.msra.mxu0 %v2476
  %3820 = vmatpush.msra.mxu0 %v2474
  %3821 = vmatpush.msra.mxu0 %v2472
  %3822 = vmatmul.f32.gmra.mxu0 %v3784
  %v3823 = vpop.f32.mrf.mxu0
  %v3824 = vadd.f32 0.0, %v3823
  %3825 = vdwg.mxu0
  %v3826 = vadd.f32 %v3781, %v3804
  %v3827 = vadd.f32 %v3782, %v3824
  %v3828 = vxor.u32 %v3826, 2147483648
  %v3829 = vxor.u32 %v3827, 2147483648
  %v3830 = vmul.f32 %v3828, 1.442695
  %v3831 = vpow.pop %v3830
  %v3832 = vmul.f32 %v3829, 1.442695
  %v3833 = vpow.pop %v3832
  %v3834 = vadd.f32 %v3831, 1.0
  %v3835 = vadd.f32 %v3833, 1.0
  %v3836 = vrcp.pop %v3834
  %v3837 = vmul.f32 %v3834, %v3836
  %v3838 = vsub.f32 1.0, %v3837
  %v3839 = vmul.f32 %v3836, %v3838
  %v3840 = vadd.f32 %v3836, %v3839
  %vm3841 = vweird.f32 %v3834
  %vm3842 = vweird.f32 %v3836
  %vm3843 = vmor %vm3841, %vm3842
  %v3844 = vsel %vm3843, %v3836, %v3840
  %v3845 = vand.u32 2147483647, %v3834
  %vm3846 = vcmp.eq.f32.partialorder %v3845, 8.507059e+37
  %v3847 = vand.u32 %v3834, 2147483648
  %v3848 = vor.u32 1.1754944e-38, %v3847
  %v3849 = vsel %vm3846, %v3848, %v3844
  %v3850 = vmul.f32 1.0, %v3849
  %v3851 = vrcp.pop %v3835
  %v3852 = vmul.f32 %v3835, %v3851
  %v3853 = vsub.f32 1.0, %v3852
  %v3854 = vmul.f32 %v3851, %v3853
  %v3855 = vadd.f32 %v3851, %v3854
  %vm3856 = vweird.f32 %v3835
  %vm3857 = vweird.f32 %v3851
  %vm3858 = vmor %vm3856, %vm3857
  %v3859 = vsel %vm3858, %v3851, %v3855
  %v3860 = vand.u32 2147483647, %v3835
  %vm3861 = vcmp.eq.f32.partialorder %v3860, 8.507059e+37
  %v3862 = vand.u32 %v3835, 2147483648
  %v3863 = vor.u32 1.1754944e-38, %v3862
  %v3864 = vsel %vm3861, %v3863, %v3859
  %v3865 = vmul.f32 1.0, %v3864
  %v3866 = vtanh.pop %v3827
  %3868 = vrot.lane.b32.xlu0 %v3776, 64
  %v3869 = vpop.permute.xlu0 %3868
  %v3871 = vmul.f32 %v3850, %v3869
  %v3872 = vmul.f32 %v3850, %v3866
  %3874 = vrot.lane.b32.xlu0 %v3872, 64
  %v3875 = vpop.permute.xlu0 %3874
  %v3877 = vadd.f32 %v3871, %v3875
  %v3878 = vtanh.pop %v3877
  %v3879 = vmul.f32 %v3865, %v3878
  %v3880 = vld [vmem:[%s1737] sm:$0xff]
  %vm3881 = vcmp.ne.s32.totalorder %v3880, 0
  %3883 = vrot.lane.b32.xlu0 %v3879, 64
  %v3884 = vpop.permute.xlu0 %3883
  %v3886 = vsel %vm3881, %v3884, 0.0
  %3887 = vst.msk [vmem:[%s900] sm:$0xff] %vm406, %v3886
  %3888 = vst.msk [vmem:[%s898] sm:$0xff] %vm409, %v3886
  %v3889 = vsel %vm3881, %v3884, %v3771
  %3891 = vrot.lane.b32.xlu0 %v3877, 64
  %v3892 = vpop.permute.xlu0 %3891
  %v3894 = vsel %vm3881, %v3892, %v3776
  %v3895 = vld [vmem:[%s665] sm:$0xff]
  %v3896 = vld [vmem:[%s665 + $0x8] sm:$0xff]
  %v3897 = vld [vmem:[%s662] sm:$0xff]
  %v3898 = vld [vmem:[%s662 + $0x8] sm:$0xff]
  %v3899 = vsel %vm43, %v3895, %v3897
  %v3900 = vsel %vm44, %v3896, %v3898
  %v3902 = vsel %vm305, %v3889, 0
  %3904 = vmatpush.msra.mxu0 0.0
  %3905 = vmatpush.msra.mxu0 0.0
  %3906 = vmatpush.msra.mxu0 0.0
  %3907 = vmatpush.msra.mxu0 0.0
  %3908 = vmatpush.msra.mxu0 0.0
  %3909 = vmatpush.msra.mxu0 0.0
  %3910 = vmatpush.msra.mxu0 0.0
  %3911 = vmatpush.msra.mxu0 0.0
  %3912 = vmatpush.msra.mxu0 %v2485
  %3913 = vmatpush.msra.mxu0 %v2483
  %3914 = vmatpush.msra.mxu0 %v2481
  %3915 = vmatpush.msra.mxu0 %v2479
  %3916 = vmatpush.msra.mxu0 %v2477
  %3917 = vmatpush.msra.mxu0 %v2475
  %3918 = vmatpush.msra.mxu0 %v2473
  %3919 = vmatpush.msra.mxu0 %v2471
  %3920 = vmatmul.f32.gmra.mxu0 %v3902
  %v3921 = vpop.f32.mrf.mxu0
  %v3922 = vadd.f32 0.0, %v3921
  %3923 = vdwg.mxu0
  %3924 = vmatpush.msra.mxu0 0.0
  %3925 = vmatpush.msra.mxu0 0.0
  %3926 = vmatpush.msra.mxu0 0.0
  %3927 = vmatpush.msra.mxu0 0.0
  %3928 = vmatpush.msra.mxu0 0.0
  %3929 = vmatpush.msra.mxu0 0.0
  %3930 = vmatpush.msra.mxu0 0.0
  %3931 = vmatpush.msra.mxu0 0.0
  %3932 = vmatpush.msra.mxu0 %v2486
  %3933 = vmatpush.msra.mxu0 %v2484
  %3934 = vmatpush.msra.mxu0 %v2482
  %3935 = vmatpush.msra.mxu0 %v2480
  %3936 = vmatpush.msra.mxu0 %v2478
  %3937 = vmatpush.msra.mxu0 %v2476
  %3938 = vmatpush.msra.mxu0 %v2474
  %3939 = vmatpush.msra.mxu0 %v2472
  %3940 = vmatmul.f32.gmra.mxu0 %v3902
  %v3941 = vpop.f32.mrf.mxu0
  %v3942 = vadd.f32 0.0, %v3941
  %3943 = vdwg.mxu0
  %v3944 = vadd.f32 %v3899, %v3922
  %v3945 = vadd.f32 %v3900, %v3942
  %v3946 = vxor.u32 %v3944, 2147483648
  %v3947 = vxor.u32 %v3945, 2147483648
  %v3948 = vmul.f32 %v3946, 1.442695
  %v3949 = vpow.pop %v3948
  %v3950 = vmul.f32 %v3947, 1.442695
  %v3951 = vpow.pop %v3950
  %v3952 = vadd.f32 %v3949, 1.0
  %v3953 = vadd.f32 %v3951, 1.0
  %v3954 = vrcp.pop %v3952
  %v3955 = vmul.f32 %v3952, %v3954
  %v3956 = vsub.f32 1.0, %v3955
  %v3957 = vmul.f32 %v3954, %v3956
  %v3958 = vadd.f32 %v3954, %v3957
  %vm3959 = vweird.f32 %v3952
  %vm3960 = vweird.f32 %v3954
  %vm3961 = vmor %vm3959, %vm3960
  %v3962 = vsel %vm3961, %v3954, %v3958
  %v3963 = vand.u32 2147483647, %v3952
  %vm3964 = vcmp.eq.f32.partialorder %v3963, 8.507059e+37
  %v3965 = vand.u32 %v3952, 2147483648
  %v3966 = vor.u32 1.1754944e-38, %v3965
  %v3967 = vsel %vm3964, %v3966, %v3962
  %v3968 = vmul.f32 1.0, %v3967
  %v3969 = vrcp.pop %v3953
  %v3970 = vmul.f32 %v3953, %v3969
  %v3971 = vsub.f32 1.0, %v3970
  %v3972 = vmul.f32 %v3969, %v3971
  %v3973 = vadd.f32 %v3969, %v3972
  %vm3974 = vweird.f32 %v3953
  %vm3975 = vweird.f32 %v3969
  %vm3976 = vmor %vm3974, %vm3975
  %v3977 = vsel %vm3976, %v3969, %v3973
  %v3978 = vand.u32 2147483647, %v3953
  %vm3979 = vcmp.eq.f32.partialorder %v3978, 8.507059e+37
  %v3980 = vand.u32 %v3953, 2147483648
  %v3981 = vor.u32 1.1754944e-38, %v3980
  %v3982 = vsel %vm3979, %v3981, %v3977
  %v3983 = vmul.f32 1.0, %v3982
  %v3984 = vtanh.pop %v3945
  %3986 = vrot.lane.b32.xlu0 %v3894, 64
  %v3987 = vpop.permute.xlu0 %3986
  %v3989 = vmul.f32 %v3968, %v3987
  %v3990 = vmul.f32 %v3968, %v3984
  %3992 = vrot.lane.b32.xlu0 %v3990, 64
  %v3993 = vpop.permute.xlu0 %3992
  %v3995 = vadd.f32 %v3989, %v3993
  %v3996 = vtanh.pop %v3995
  %v3997 = vmul.f32 %v3983, %v3996
  %v3998 = vld [vmem:[%s1856] sm:$0xff]
  %vm3999 = vcmp.ne.s32.totalorder %v3998, 0
  %4001 = vrot.lane.b32.xlu0 %v3997, 64
  %v4002 = vpop.permute.xlu0 %4001
  %v4004 = vsel %vm3999, %v4002, 0.0
  %4005 = vst.msk [vmem:[%s777] sm:$0xff] %vm406, %v4004
  %4006 = vst.msk [vmem:[%s775] sm:$0xff] %vm409, %v4004
  %v4007 = vsel %vm3999, %v4002, %v3889
  %4009 = vrot.lane.b32.xlu0 %v3995, 64
  %v4010 = vpop.permute.xlu0 %4009
  %v4012 = vsel %vm3999, %v4010, %v3894
  %v4013 = vld [vmem:[%s542] sm:$0xff]
  %v4014 = vld [vmem:[%s542 + $0x8] sm:$0xff]
  %v4015 = vld [vmem:[%s539] sm:$0xff]
  %v4016 = vld [vmem:[%s539 + $0x8] sm:$0xff]
  %v4017 = vsel %vm43, %v4013, %v4015
  %v4018 = vsel %vm44, %v4014, %v4016
  %v4020 = vsel %vm305, %v4007, 0
  %4022 = vmatpush.msra.mxu0 0.0
  %4023 = vmatpush.msra.mxu0 0.0
  %4024 = vmatpush.msra.mxu0 0.0
  %4025 = vmatpush.msra.mxu0 0.0
  %4026 = vmatpush.msra.mxu0 0.0
  %4027 = vmatpush.msra.mxu0 0.0
  %4028 = vmatpush.msra.mxu0 0.0
  %4029 = vmatpush.msra.mxu0 0.0
  %4030 = vmatpush.msra.mxu0 %v2485
  %4031 = vmatpush.msra.mxu0 %v2483
  %4032 = vmatpush.msra.mxu0 %v2481
  %4033 = vmatpush.msra.mxu0 %v2479
  %4034 = vmatpush.msra.mxu0 %v2477
  %4035 = vmatpush.msra.mxu0 %v2475
  %4036 = vmatpush.msra.mxu0 %v2473
  %4037 = vmatpush.msra.mxu0 %v2471
  %4038 = vmatmul.f32.gmra.mxu0 %v4020
  %v4039 = vpop.f32.mrf.mxu0
  %v4040 = vadd.f32 0.0, %v4039
  %4041 = vdwg.mxu0
  %4042 = vmatpush.msra.mxu0 0.0
  %4043 = vmatpush.msra.mxu0 0.0
  %4044 = vmatpush.msra.mxu0 0.0
  %4045 = vmatpush.msra.mxu0 0.0
  %4046 = vmatpush.msra.mxu0 0.0
  %4047 = vmatpush.msra.mxu0 0.0
  %4048 = vmatpush.msra.mxu0 0.0
  %4049 = vmatpush.msra.mxu0 0.0
  %4050 = vmatpush.msra.mxu0 %v2486
  %4051 = vmatpush.msra.mxu0 %v2484
  %4052 = vmatpush.msra.mxu0 %v2482
  %4053 = vmatpush.msra.mxu0 %v2480
  %4054 = vmatpush.msra.mxu0 %v2478
  %4055 = vmatpush.msra.mxu0 %v2476
  %4056 = vmatpush.msra.mxu0 %v2474
  %4057 = vmatpush.msra.mxu0 %v2472
  %4058 = vmatmul.f32.gmra.mxu0 %v4020
  %v4059 = vpop.f32.mrf.mxu0
  %v4060 = vadd.f32 0.0, %v4059
  %4061 = vdwg.mxu0
  %v4062 = vadd.f32 %v4017, %v4040
  %v4063 = vadd.f32 %v4018, %v4060
  %v4064 = vxor.u32 %v4062, 2147483648
  %v4065 = vxor.u32 %v4063, 2147483648
  %v4066 = vmul.f32 %v4064, 1.442695
  %v4067 = vpow.pop %v4066
  %v4068 = vmul.f32 %v4065, 1.442695
  %v4069 = vpow.pop %v4068
  %v4070 = vadd.f32 %v4067, 1.0
  %v4071 = vadd.f32 %v4069, 1.0
  %v4072 = vrcp.pop %v4070
  %v4073 = vmul.f32 %v4070, %v4072
  %v4074 = vsub.f32 1.0, %v4073
  %v4075 = vmul.f32 %v4072, %v4074
  %v4076 = vadd.f32 %v4072, %v4075
  %vm4077 = vweird.f32 %v4070
  %vm4078 = vweird.f32 %v4072
  %vm4079 = vmor %vm4077, %vm4078
  %v4080 = vsel %vm4079, %v4072, %v4076
  %v4081 = vand.u32 2147483647, %v4070
  %vm4082 = vcmp.eq.f32.partialorder %v4081, 8.507059e+37
  %v4083 = vand.u32 %v4070, 2147483648
  %v4084 = vor.u32 1.1754944e-38, %v4083
  %v4085 = vsel %vm4082, %v4084, %v4080
  %v4086 = vmul.f32 1.0, %v4085
  %v4087 = vrcp.pop %v4071
  %v4088 = vmul.f32 %v4071, %v4087
  %v4089 = vsub.f32 1.0, %v4088
  %v4090 = vmul.f32 %v4087, %v4089
  %v4091 = vadd.f32 %v4087, %v4090
  %vm4092 = vweird.f32 %v4071
  %vm4093 = vweird.f32 %v4087
  %vm4094 = vmor %vm4092, %vm4093
  %v4095 = vsel %vm4094, %v4087, %v4091
  %v4096 = vand.u32 2147483647, %v4071
  %vm4097 = vcmp.eq.f32.partialorder %v4096, 8.507059e+37
  %v4098 = vand.u32 %v4071, 2147483648
  %v4099 = vor.u32 1.1754944e-38, %v4098
  %v4100 = vsel %vm4097, %v4099, %v4095
  %v4101 = vmul.f32 1.0, %v4100
  %v4102 = vtanh.pop %v4063
  %4104 = vrot.lane.b32.xlu0 %v4012, 64
  %v4105 = vpop.permute.xlu0 %4104
  %v4107 = vmul.f32 %v4086, %v4105
  %v4108 = vmul.f32 %v4086, %v4102
  %4110 = vrot.lane.b32.xlu0 %v4108, 64
  %v4111 = vpop.permute.xlu0 %4110
  %v4113 = vadd.f32 %v4107, %v4111
  %v4114 = vtanh.pop %v4113
  %v4115 = vmul.f32 %v4101, %v4114
  %v4116 = vld [vmem:[%s1975] sm:$0xff]
  %vm4117 = vcmp.ne.s32.totalorder %v4116, 0
  %4119 = vrot.lane.b32.xlu0 %v4115, 64
  %v4120 = vpop.permute.xlu0 %4119
  %v4122 = vsel %vm4117, %v4120, 0.0
  %4123 = vst.msk [vmem:[%s654] sm:$0xff] %vm406, %v4122
  %4124 = vst.msk [vmem:[%s652] sm:$0xff] %vm409, %v4122
  %v4125 = vsel %vm4117, %v4120, %v4007
  %4127 = vrot.lane.b32.xlu0 %v4113, 64
  %v4128 = vpop.permute.xlu0 %4127
  %v4130 = vsel %vm4117, %v4128, %v4012
  %v4131 = vld [vmem:[%s419] sm:$0xff]
  %v4132 = vld [vmem:[%s419 + $0x8] sm:$0xff]
  %v4133 = vld [vmem:[%s416] sm:$0xff]
  %v4134 = vld [vmem:[%s416 + $0x8] sm:$0xff]
  %v4135 = vsel %vm43, %v4131, %v4133
  %v4136 = vsel %vm44, %v4132, %v4134
  %v4138 = vsel %vm305, %v4125, 0
  %4140 = vmatpush.msra.mxu0 0.0
  %4141 = vmatpush.msra.mxu0 0.0
  %4142 = vmatpush.msra.mxu0 0.0
  %4143 = vmatpush.msra.mxu0 0.0
  %4144 = vmatpush.msra.mxu0 0.0
  %4145 = vmatpush.msra.mxu0 0.0
  %4146 = vmatpush.msra.mxu0 0.0
  %4147 = vmatpush.msra.mxu0 0.0
  %4148 = vmatpush.msra.mxu0 %v2485
  %4149 = vmatpush.msra.mxu0 %v2483
  %4150 = vmatpush.msra.mxu0 %v2481
  %4151 = vmatpush.msra.mxu0 %v2479
  %4152 = vmatpush.msra.mxu0 %v2477
  %4153 = vmatpush.msra.mxu0 %v2475
  %4154 = vmatpush.msra.mxu0 %v2473
  %4155 = vmatpush.msra.mxu0 %v2471
  %4156 = vmatmul.f32.gmra.mxu0 %v4138
  %v4157 = vpop.f32.mrf.mxu0
  %v4158 = vadd.f32 0.0, %v4157
  %4159 = vdwg.mxu0
  %4160 = vmatpush.msra.mxu0 0.0
  %4161 = vmatpush.msra.mxu0 0.0
  %4162 = vmatpush.msra.mxu0 0.0
  %4163 = vmatpush.msra.mxu0 0.0
  %4164 = vmatpush.msra.mxu0 0.0
  %4165 = vmatpush.msra.mxu0 0.0
  %4166 = vmatpush.msra.mxu0 0.0
  %4167 = vmatpush.msra.mxu0 0.0
  %4168 = vmatpush.msra.mxu0 %v2486
  %4169 = vmatpush.msra.mxu0 %v2484
  %4170 = vmatpush.msra.mxu0 %v2482
  %4171 = vmatpush.msra.mxu0 %v2480
  %4172 = vmatpush.msra.mxu0 %v2478
  %4173 = vmatpush.msra.mxu0 %v2476
  %4174 = vmatpush.msra.mxu0 %v2474
  %4175 = vmatpush.msra.mxu0 %v2472
  %4176 = vmatmul.f32.gmra.mxu0 %v4138
  %v4177 = vpop.f32.mrf.mxu0
  %v4178 = vadd.f32 0.0, %v4177
  %4179 = vdwg.mxu0
  %v4180 = vadd.f32 %v4135, %v4158
  %v4181 = vadd.f32 %v4136, %v4178
  %v4182 = vxor.u32 %v4180, 2147483648
  %v4183 = vxor.u32 %v4181, 2147483648
  %v4184 = vmul.f32 %v4182, 1.442695
  %v4185 = vpow.pop %v4184
  %v4186 = vmul.f32 %v4183, 1.442695
  %v4187 = vpow.pop %v4186
  %v4188 = vadd.f32 %v4185, 1.0
  %v4189 = vadd.f32 %v4187, 1.0
  %v4190 = vrcp.pop %v4188
  %v4191 = vmul.f32 %v4188, %v4190
  %v4192 = vsub.f32 1.0, %v4191
  %v4193 = vmul.f32 %v4190, %v4192
  %v4194 = vadd.f32 %v4190, %v4193
  %vm4195 = vweird.f32 %v4188
  %vm4196 = vweird.f32 %v4190
  %vm4197 = vmor %vm4195, %vm4196
  %v4198 = vsel %vm4197, %v4190, %v4194
  %v4199 = vand.u32 2147483647, %v4188
  %vm4200 = vcmp.eq.f32.partialorder %v4199, 8.507059e+37
  %v4201 = vand.u32 %v4188, 2147483648
  %v4202 = vor.u32 1.1754944e-38, %v4201
  %v4203 = vsel %vm4200, %v4202, %v4198
  %v4204 = vmul.f32 1.0, %v4203
  %v4205 = vrcp.pop %v4189
  %v4206 = vmul.f32 %v4189, %v4205
  %v4207 = vsub.f32 1.0, %v4206
  %v4208 = vmul.f32 %v4205, %v4207
  %v4209 = vadd.f32 %v4205, %v4208
  %vm4210 = vweird.f32 %v4189
  %vm4211 = vweird.f32 %v4205
  %vm4212 = vmor %vm4210, %vm4211
  %v4213 = vsel %vm4212, %v4205, %v4209
  %v4214 = vand.u32 2147483647, %v4189
  %vm4215 = vcmp.eq.f32.partialorder %v4214, 8.507059e+37
  %v4216 = vand.u32 %v4189, 2147483648
  %v4217 = vor.u32 1.1754944e-38, %v4216
  %v4218 = vsel %vm4215, %v4217, %v4213
  %v4219 = vmul.f32 1.0, %v4218
  %v4220 = vtanh.pop %v4181
  %4222 = vrot.lane.b32.xlu0 %v4130, 64
  %v4223 = vpop.permute.xlu0 %4222
  %v4225 = vmul.f32 %v4204, %v4223
  %v4226 = vmul.f32 %v4204, %v4220
  %4228 = vrot.lane.b32.xlu0 %v4226, 64
  %v4229 = vpop.permute.xlu0 %4228
  %v4231 = vadd.f32 %v4225, %v4229
  %v4232 = vtanh.pop %v4231
  %v4233 = vmul.f32 %v4219, %v4232
  %v4234 = vld [vmem:[%s2094] sm:$0xff]
  %vm4235 = vcmp.ne.s32.totalorder %v4234, 0
  %4237 = vrot.lane.b32.xlu0 %v4233, 64
  %v4238 = vpop.permute.xlu0 %4237
  %v4240 = vsel %vm4235, %v4238, 0.0
  %4241 = vst.msk [vmem:[%s531] sm:$0xff] %vm406, %v4240
  %4242 = vst.msk [vmem:[%s529] sm:$0xff] %vm409, %v4240
  %v4243 = vsel %vm4235, %v4238, %v4125
  %4245 = vrot.lane.b32.xlu0 %v4231, 64
  %v4246 = vpop.permute.xlu0 %4245
  %v4248 = vsel %vm4235, %v4246, %v4130
  %v4249 = vld [vmem:[%s300] sm:$0xff]
  %v4250 = vld [vmem:[%s300 + $0x8] sm:$0xff]
  %v4251 = vld [vmem:[#allocation2] sm:$0xff]
  %v4252 = vld [vmem:[#allocation2 + $0x8] sm:$0xff]
  %v4253 = vsel %vm43, %v4249, %v4251
  %v4254 = vsel %vm44, %v4250, %v4252
  %v4256 = vsel %vm305, %v4243, 0
  %4258 = vmatpush.msra.mxu0 0.0
  %4259 = vmatpush.msra.mxu0 0.0
  %4260 = vmatpush.msra.mxu0 0.0
  %4261 = vmatpush.msra.mxu0 0.0
  %4262 = vmatpush.msra.mxu0 0.0
  %4263 = vmatpush.msra.mxu0 0.0
  %4264 = vmatpush.msra.mxu0 0.0
  %4265 = vmatpush.msra.mxu0 0.0
  %4266 = vmatpush.msra.mxu0 %v2485
  %4267 = vmatpush.msra.mxu0 %v2483
  %4268 = vmatpush.msra.mxu0 %v2481
  %4269 = vmatpush.msra.mxu0 %v2479
  %4270 = vmatpush.msra.mxu0 %v2477
  %4271 = vmatpush.msra.mxu0 %v2475
  %4272 = vmatpush.msra.mxu0 %v2473
  %4273 = vmatpush.msra.mxu0 %v2471
  %4274 = vmatmul.f32.gmra.mxu0 %v4256
  %v4275 = vpop.f32.mrf.mxu0
  %v4276 = vadd.f32 0.0, %v4275
  %4277 = vdwg.mxu0
  %4278 = vmatpush.msra.mxu0 0.0
  %4279 = vmatpush.msra.mxu0 0.0
  %4280 = vmatpush.msra.mxu0 0.0
  %4281 = vmatpush.msra.mxu0 0.0
  %4282 = vmatpush.msra.mxu0 0.0
  %4283 = vmatpush.msra.mxu0 0.0
  %4284 = vmatpush.msra.mxu0 0.0
  %4285 = vmatpush.msra.mxu0 0.0
  %4286 = vmatpush.msra.mxu0 %v2486
  %4287 = vmatpush.msra.mxu0 %v2484
  %4288 = vmatpush.msra.mxu0 %v2482
  %4289 = vmatpush.msra.mxu0 %v2480
  %4290 = vmatpush.msra.mxu0 %v2478
  %4291 = vmatpush.msra.mxu0 %v2476
  %4292 = vmatpush.msra.mxu0 %v2474
  %4293 = vmatpush.msra.mxu0 %v2472
  %4294 = vmatmul.f32.gmra.mxu0 %v4256
  %v4295 = vpop.f32.mrf.mxu0
  %v4296 = vadd.f32 0.0, %v4295
  %4297 = vdwg.mxu0
  %v4298 = vadd.f32 %v4253, %v4276
  %v4299 = vadd.f32 %v4254, %v4296
  %v4300 = vxor.u32 %v4298, 2147483648
  %v4301 = vxor.u32 %v4299, 2147483648
  %v4302 = vmul.f32 %v4300, 1.442695
  %v4303 = vpow.pop %v4302
  %v4304 = vmul.f32 %v4301, 1.442695
  %v4305 = vpow.pop %v4304
  %v4306 = vadd.f32 %v4303, 1.0
  %v4307 = vadd.f32 %v4305, 1.0
  %v4308 = vrcp.pop %v4306
  %v4309 = vmul.f32 %v4306, %v4308
  %v4310 = vsub.f32 1.0, %v4309
  %v4311 = vmul.f32 %v4308, %v4310
  %v4312 = vadd.f32 %v4308, %v4311
  %vm4313 = vweird.f32 %v4306
  %vm4314 = vweird.f32 %v4308
  %vm4315 = vmor %vm4313, %vm4314
  %v4316 = vsel %vm4315, %v4308, %v4312
  %v4317 = vand.u32 2147483647, %v4306
  %vm4318 = vcmp.eq.f32.partialorder %v4317, 8.507059e+37
  %v4319 = vand.u32 %v4306, 2147483648
  %v4320 = vor.u32 1.1754944e-38, %v4319
  %v4321 = vsel %vm4318, %v4320, %v4316
  %v4322 = vmul.f32 1.0, %v4321
  %v4323 = vrcp.pop %v4307
  %v4324 = vmul.f32 %v4307, %v4323
  %v4325 = vsub.f32 1.0, %v4324
  %v4326 = vmul.f32 %v4323, %v4325
  %v4327 = vadd.f32 %v4323, %v4326
  %vm4328 = vweird.f32 %v4307
  %vm4329 = vweird.f32 %v4323
  %vm4330 = vmor %vm4328, %vm4329
  %v4331 = vsel %vm4330, %v4323, %v4327
  %v4332 = vand.u32 2147483647, %v4307
  %vm4333 = vcmp.eq.f32.partialorder %v4332, 8.507059e+37
  %v4334 = vand.u32 %v4307, 2147483648
  %v4335 = vor.u32 1.1754944e-38, %v4334
  %v4336 = vsel %vm4333, %v4335, %v4331
  %v4337 = vmul.f32 1.0, %v4336
  %v4338 = vtanh.pop %v4299
  %4340 = vrot.lane.b32.xlu0 %v4248, 64
  %v4341 = vpop.permute.xlu0 %4340
  %v4343 = vmul.f32 %v4322, %v4341
  %v4344 = vmul.f32 %v4322, %v4338
  %4346 = vrot.lane.b32.xlu0 %v4344, 64
  %v4347 = vpop.permute.xlu0 %4346
  %v4349 = vadd.f32 %v4343, %v4347
  %v4350 = vtanh.pop %v4349
  %v4351 = vmul.f32 %v4337, %v4350
  %v4352 = vld [vmem:[%s2213] sm:$0xff]
  %vm4353 = vcmp.ne.s32.totalorder %v4352, 0
  %4355 = vrot.lane.b32.xlu0 %v4351, 64
  %v4356 = vpop.permute.xlu0 %4355
  %v4358 = vsel %vm4353, %v4356, 0.0
  %4359 = vst.msk [vmem:[%s408] sm:$0xff] %vm406, %v4358
  %4360 = vst.msk [vmem:[#allocation3] sm:$0xff] %vm409, %v4358
  %v4361 = vld [vmem:[#allocation3] sm:$0xff]
  %v4362 = vld [vmem:[#allocation3 + $0x8] sm:$0xff]
  %v4363 = vld [vmem:[#allocation3 + $0x10] sm:$0xff]
  %v4364 = vld [vmem:[#allocation3 + $0x18] sm:$0xff]
  %v4365 = vld [vmem:[#allocation3 + $0x20] sm:$0xff]
  %v4366 = vld [vmem:[#allocation3 + $0x28] sm:$0xff]
  %v4367 = vld [vmem:[#allocation3 + $0x30] sm:$0xff]
  %v4368 = vld [vmem:[#allocation3 + $0x38] sm:$0xff]
  %v4369 = vld [vmem:[#allocation3 + $0x40] sm:$0xff]
  %v4370 = vld [vmem:[#allocation3 + $0x48] sm:$0xff]
  %v4371 = vld [vmem:[#allocation3 + $0x50] sm:$0xff]
  %v4372 = vld [vmem:[#allocation3 + $0x58] sm:$0xff]
  %v4373 = vld [vmem:[#allocation3 + $0x60] sm:$0xff]
  %v4374 = vld [vmem:[#allocation3 + $0x68] sm:$0xff]
  %v4375 = vld [vmem:[#allocation3 + $0x70] sm:$0xff]
  %v4376 = vld [vmem:[#allocation3 + $0x78] sm:$0xff]
  %v4377 = vld [vmem:[%s9] sm:$0xff]
  %v4378 = vld [vmem:[%s9 + $0x8] sm:$0xff]
  %v4379 = vld [vmem:[%s9 + $0x10] sm:$0xff]
  %v4380 = vld [vmem:[%s9 + $0x18] sm:$0xff]
  %v4381 = vld [vmem:[%s9 + $0x20] sm:$0xff]
  %v4382 = vld [vmem:[%s9 + $0x28] sm:$0xff]
  %v4383 = vld [vmem:[%s9 + $0x30] sm:$0xff]
  %v4384 = vld [vmem:[%s9 + $0x38] sm:$0xff]
  %v4385 = vld [vmem:[%s10] sm:$0x1]
  %v4387 = vperm.slane %v4385, 0
  %v4390 = vsel %vm305, %v4361, 0
  %v4393 = vsel %vm305, %v4362, 0
  %v4396 = vsel %vm305, %v4363, 0
  %v4399 = vsel %vm305, %v4364, 0
  %v4402 = vsel %vm305, %v4365, 0
  %v4405 = vsel %vm305, %v4366, 0
  %v4408 = vsel %vm305, %v4367, 0
  %v4411 = vsel %vm305, %v4368, 0
  %v4414 = vsel %vm305, %v4369, 0
  %v4417 = vsel %vm305, %v4370, 0
  %v4420 = vsel %vm305, %v4371, 0
  %v4423 = vsel %vm305, %v4372, 0
  %v4426 = vsel %vm305, %v4373, 0
  %v4429 = vsel %vm305, %v4374, 0
  %v4432 = vsel %vm305, %v4375, 0
  %v4435 = vsel %vm305, %v4376, 0
  %4437 = vmatpush.msra.mxu0 0.0
  %4438 = vmatpush.msra.mxu0 0.0
  %4439 = vmatpush.msra.mxu0 0.0
  %4440 = vmatpush.msra.mxu0 0.0
  %4441 = vmatpush.msra.mxu0 0.0
  %4442 = vmatpush.msra.mxu0 0.0
  %4443 = vmatpush.msra.mxu0 0.0
  %4444 = vmatpush.msra.mxu0 0.0
  %4445 = vmatpush.msra.mxu0 %v4384
  %4446 = vmatpush.msra.mxu0 %v4383
  %4447 = vmatpush.msra.mxu0 %v4382
  %4448 = vmatpush.msra.mxu0 %v4381
  %4449 = vmatpush.msra.mxu0 %v4380
  %4450 = vmatpush.msra.mxu0 %v4379
  %4451 = vmatpush.msra.mxu0 %v4378
  %4452 = vmatpush.msra.mxu0 %v4377
  %4453 = vmatmul.f32.gmra.mxu0 %v4390
  %v4454 = vpop.f32.mrf.mxu0
  %v4455 = vadd.f32 %v4387, %v4454
  %4456 = vmatmul.f32.gmra.mxu0 %v4393
  %v4457 = vpop.f32.mrf.mxu0
  %v4458 = vadd.f32 %v4387, %v4457
  %4459 = vmatmul.f32.gmra.mxu0 %v4396
  %v4460 = vpop.f32.mrf.mxu0
  %v4461 = vadd.f32 %v4387, %v4460
  %4462 = vmatmul.f32.gmra.mxu0 %v4399
  %v4463 = vpop.f32.mrf.mxu0
  %v4464 = vadd.f32 %v4387, %v4463
  %4465 = vmatmul.f32.gmra.mxu0 %v4402
  %v4466 = vpop.f32.mrf.mxu0
  %v4467 = vadd.f32 %v4387, %v4466
  %4468 = vmatmul.f32.gmra.mxu0 %v4405
  %v4469 = vpop.f32.mrf.mxu0
  %v4470 = vadd.f32 %v4387, %v4469
  %4471 = vmatmul.f32.gmra.mxu0 %v4408
  %v4472 = vpop.f32.mrf.mxu0
  %v4473 = vadd.f32 %v4387, %v4472
  %4474 = vmatmul.f32.gmra.mxu0 %v4411
  %v4475 = vpop.f32.mrf.mxu0
  %v4476 = vadd.f32 %v4387, %v4475
  %4477 = vmatmul.f32.gmra.mxu0 %v4414
  %v4478 = vpop.f32.mrf.mxu0
  %v4479 = vadd.f32 %v4387, %v4478
  %4480 = vmatmul.f32.gmra.mxu0 %v4417
  %v4481 = vpop.f32.mrf.mxu0
  %v4482 = vadd.f32 %v4387, %v4481
  %4483 = vmatmul.f32.gmra.mxu0 %v4420
  %v4484 = vpop.f32.mrf.mxu0
  %v4485 = vadd.f32 %v4387, %v4484
  %4486 = vmatmul.f32.gmra.mxu0 %v4423
  %v4487 = vpop.f32.mrf.mxu0
  %v4488 = vadd.f32 %v4387, %v4487
  %4489 = vmatmul.f32.gmra.mxu0 %v4426
  %v4490 = vpop.f32.mrf.mxu0
  %v4491 = vadd.f32 %v4387, %v4490
  %4492 = vmatmul.f32.gmra.mxu0 %v4429
  %v4493 = vpop.f32.mrf.mxu0
  %v4494 = vadd.f32 %v4387, %v4493
  %4495 = vmatmul.f32.gmra.mxu0 %v4432
  %v4496 = vpop.f32.mrf.mxu0
  %v4497 = vadd.f32 %v4387, %v4496
  %4498 = vmatmul.f32.gmra.mxu0 %v4435
  %v4499 = vpop.f32.mrf.mxu0
  %v4500 = vadd.f32 %v4387, %v4499
  %4501 = vdwg.mxu0
  %4502 = vst [vmem:[%s11] sm:$0xff] %v4455
  %4503 = vst [vmem:[%s11 + $0x8] sm:$0xff] %v4458
  %4504 = vst [vmem:[%s11 + $0x10] sm:$0xff] %v4461
  %4505 = vst [vmem:[%s11 + $0x18] sm:$0xff] %v4464
  %4506 = vst [vmem:[%s11 + $0x20] sm:$0xff] %v4467
  %4507 = vst [vmem:[%s11 + $0x28] sm:$0xff] %v4470
  %4508 = vst [vmem:[%s11 + $0x30] sm:$0xff] %v4473
  %4509 = vst [vmem:[%s11 + $0x38] sm:$0xff] %v4476
  %4510 = vst [vmem:[%s11 + $0x40] sm:$0xff] %v4479
  %4511 = vst [vmem:[%s11 + $0x48] sm:$0xff] %v4482
  %4512 = vst [vmem:[%s11 + $0x50] sm:$0xff] %v4485
  %4513 = vst [vmem:[%s11 + $0x58] sm:$0xff] %v4488
  %4514 = vst [vmem:[%s11 + $0x60] sm:$0xff] %v4491
  %4515 = vst [vmem:[%s11 + $0x68] sm:$0xff] %v4494
  %4516 = vst [vmem:[%s11 + $0x70] sm:$0xff] %v4497
  %4517 = vst [vmem:[%s11 + $0x78] sm:$0xff] %v4500
  // Predicated region
  $region46: #{bilstm_forward.1} parent=0 // pred_check
    _
  $region47: #{bilstm_forward.1} parent=0 // pred_check_branch
    %4519 = sbr.rel (0) target = $region49
  $region48: #{bilstm_forward.1} parent=0 // pred_region
    _
  $region49: #{bilstm_forward.1} parent=0 // pred_fallthru
    _
  // Predicated region
  $region50: #{bilstm_forward.1} parent=0 // pred_check
    _
  $region51: #{bilstm_forward.1} parent=0 // pred_check_branch
    %4521 = sbr.rel (0) target = $region53
  $region52: #{bilstm_forward.1} parent=0 // pred_region
    _
  $region53: #{bilstm_forward.1} parent=0 // pred_fallthru
    _

</llo_original>
